<compile_context>
chip_gen: v7x
topology: tpu7x:2x2x1
jax: 0.10.0
libtpu: 0.0.40
codegen_flags: <defaults>
</compile_context>

<pallas_src>
import math
from functools import partial

import jax
import jax.numpy as jnp
from jax.experimental import pallas as pl
from jax.experimental.pallas import tpu as pltpu


def _mlp_kernel(xl_ref, xc_ref, w1l_ref, w1c_ref, b1_ref, w2_ref, b2_ref, o_ref):
    # xl_ref : (tile_e, D_l) bf16     xc_ref : (tile_e, D_c) bf16
    # w1l_ref: (D_l, H) bf16          w1c_ref: (D_c, H) bf16
    # b1_ref : (1, H) f32             w2_ref : (1, H) f32 (row form of [H, 1])
    # b2_ref : (1, 1) f32 in SMEM     o_ref  : (1, tile_e) f32 (lane-dense row)
    h = jnp.dot(xl_ref[...], w1l_ref[...], preferred_element_type=jnp.float32)
    h = h + jnp.dot(xc_ref[...], w1c_ref[...], preferred_element_type=jnp.float32)
    h = h + b1_ref[...]
    h = jnp.maximum(h, 0.0)                               # ReLU

    # Linear(H, 1): VPU multiply + lane reduce, feeding the lane-dense row
    # write directly (avoids an N=1 MXU matmul; hidden under input DMA).
    o = jnp.sum(h * w2_ref[...], axis=1) + b2_ref[0, 0]   # (tile_e,)
    o_ref[...] = o.reshape(1, -1).astype(o_ref.dtype)


def _round_up(x, m):
    return ((x + m - 1) // m) * m


def _pick_tile_e(E, max_tile=8192):
    """Edge rows per grid step.

    Large tiles amortize the ~0.35 us fixed per-step overhead (roughly half of
    a 1 MiB step on v7x).  Small E collapses to 1-2 big tiles instead of many
    128-row steps; the tile count stays even when >1 so v7x's two TensorCores
    split the "parallel" axis evenly.  Tiles are multiples of 16 rows for bf16
    sublane packing.
    """
    n_target = 2 if E >= 1024 else 1            # enough rows to feed 2 TCs
    n = max(_round_up(E, max_tile) // max_tile, n_target)
    if n > 1 and n % 2:
        n += 1                                  # even tile count for v7x
    return max(_round_up(-(-E // n), 16), 16)


@partial(jax.jit, static_argnames=("tile_e", "compute_dtype"))
def mlp_forward(l_emb, c_emb, edge_i, edge_j, w1, b1, w2, b2, *,
                tile_e=None, compute_dtype=jnp.bfloat16):
    """Fused PGExplainer MLP head.

    l_emb: [num_lits, D_l], c_emb: [num_clauses, D_c] node embeddings (f32).
    edge_i / edge_j: [E] int32 endpoints (problem.batch_edges columns).
    w1: [D_l+D_c, H], b1: [1, H], w2: [H, 1], b2: [1, 1].
    Returns w_ij: [E] float32 (matches model(embCat).squeeze(1)).
    """
    D_l = l_emb.shape[1]
    D_c = c_emb.shape[1]
    E = edge_i.shape[0]
    K_in = D_l + D_c
    H = w1.shape[1]
    assert w1.shape == (K_in, H) and edge_j.shape == (E,)

    # Cast the small node tables to the compute dtype *before* the gather so
    # the gathered [E, D] slabs are produced once, already in bf16 (no extra
    # astype / pad passes over the dominant per-edge arrays).
    x_l = l_emb.astype(compute_dtype)[edge_i]        # [E, D_l] bf16
    x_c = c_emb.astype(compute_dtype)[edge_j]        # [E, D_c] bf16

    # Split W1 so emb_cat never exists:  x @ W1 == x_l @ W1_l + x_c @ W1_c
    w1_l = w1[:D_l].astype(compute_dtype)
    w1_c = w1[D_l:].astype(compute_dtype)
    b1 = b1.reshape(1, H).astype(jnp.float32)
    w2_row = w2.reshape(1, H).astype(jnp.float32)    # row form for the VPU mul
    b2 = b2.reshape(1, 1).astype(jnp.float32)

    if tile_e is None:
        tile_e = _pick_tile_e(E)
    n_tiles = pl.cdiv(E, tile_e)                     # ragged last block, no pad

    itemsize = jnp.dtype(compute_dtype).itemsize
    cost = pl.CostEstimate(
        flops=int(2 * n_tiles * tile_e * K_in * H + 3 * n_tiles * tile_e * H),
        transcendentals=0,
        bytes_accessed=int((x_l.size + x_c.size + w1_l.size + w1_c.size) * itemsize
                           + (b1.size + w2_row.size + b2.size) * 4
                           + n_tiles * tile_e * 4),
    )

    # Double-buffered x tiles + resident weights + output rows (+ headroom).
    vmem_need = (2 * tile_e * (D_l + D_c) * itemsize
                 + 2 * K_in * H * itemsize + 4 * H * 4 + 2 * tile_e * 4)
    vmem_limit = int(min(max(2 * vmem_need + (2 << 20), 32 << 20), 64 << 20))

    out = pl.pallas_call(
        _mlp_kernel,
        out_shape=jax.ShapeDtypeStruct((n_tiles, tile_e), jnp.float32),
        grid_spec=pltpu.PrefetchScalarGridSpec(
            num_scalar_prefetch=0,
            grid=(n_tiles,),
            in_specs=[
                pl.BlockSpec((tile_e, D_l), lambda e: (e, 0)),      # x_l tile
                pl.BlockSpec((tile_e, D_c), lambda e: (e, 0)),      # x_c tile
                pl.BlockSpec((D_l, H), lambda e: (0, 0)),           # W1 lit half
                pl.BlockSpec((D_c, H), lambda e: (0, 0)),           # W1 cls half
                pl.BlockSpec((1, H), lambda e: (0, 0)),             # b1
                pl.BlockSpec((1, H), lambda e: (0, 0)),             # w2 row
                pl.BlockSpec(memory_space=pltpu.MemorySpace.SMEM),  # b2 scalar
            ],
            out_specs=pl.BlockSpec((1, tile_e), lambda e: (e, 0)),  # lane-dense
        ),
        compiler_params=pltpu.CompilerParams(
            dimension_semantics=("parallel",),
            vmem_limit_bytes=vmem_limit),
        cost_estimate=cost,
    )(x_l, x_c, w1_l, w1_c, b1, w2_row, b2)

    # squeeze(1) + drop the unspecified tail rows of the ragged last block.
    return out.reshape(-1)[:E]


def xavier_uniform(key, fan_in, fan_out, shape):
    limit = math.sqrt(6.0 / (fan_in + fan_out))
    return jax.random.uniform(key, shape, jnp.float32, -limit, limit)


if __name__ == "__main__":
    # Module defaults: emb_dim=128, hidden_dim=64, three_embs=False.
    emb_dim = 128
    hidden_dim = 64
    input_size = 2 * emb_dim
    num_lits = 80
    num_clauses = 40
    num_edges = 1000          # non-multiple of 16 -> exercises the ragged tail

    key = jax.random.PRNGKey(0)
    k_l, k_c, k_i, k_j, k_w1, k_w2 = jax.random.split(key, 6)

    # Stand-in for downstreamTask node embeddings (l_emb, c_emb).
    l_emb = jax.random.normal(k_l, (num_lits, emb_dim), jnp.float32)
    c_emb = jax.random.normal(k_c, (num_clauses, emb_dim), jnp.float32)

    # problem.batch_edges[:, 0] / [:, 1]
    edge_i = jax.random.randint(k_i, (num_edges,), 0, num_lits)
    edge_j = jax.random.randint(k_j, (num_edges,), 0, num_clauses)

    # Deterministic Xavier-uniform init, zero biases (as in init_weights()).
    # Stored pre-transposed: w1 is [in, hidden], w2 is [hidden, 1].
    w1 = xavier_uniform(k_w1, input_size, hidden_dim, (input_size, hidden_dim))
    b1 = jnp.zeros((1, hidden_dim), jnp.float32)
    w2 = xavier_uniform(k_w2, hidden_dim, 1, (hidden_dim, 1))
    b2 = jnp.zeros((1, 1), jnp.float32)

    w_ij = mlp_forward(l_emb, c_emb, edge_i, edge_j, w1, b1, w2, b2)
    jax.block_until_ready(w_ij)
    assert w_ij.shape == (num_edges,)

    hp = jax.lax.Precision.HIGHEST
    bf = jnp.bfloat16

    # getGraphEdgeEmbeddings glue for the references.
    x_l = l_emb[edge_i]       # [E, emb_dim]
    x_c = c_emb[edge_j]       # [E, emb_dim]

    # (1) Exact-path reference: same bf16 rounding of the big operands, f32 math.
    xl_b = l_emb.astype(bf).astype(jnp.float32)[edge_i]
    xc_b = c_emb.astype(bf).astype(jnp.float32)[edge_j]
    w1l_b = w1[:emb_dim].astype(bf).astype(jnp.float32)
    w1c_b = w1[emb_dim:].astype(bf).astype(jnp.float32)
    h_ref = jnp.maximum(jnp.dot(xl_b, w1l_b, precision=hp)
                        + jnp.dot(xc_b, w1c_b, precision=hp) + b1, 0.0)
    ref_bf_path = (jnp.dot(h_ref, w2, precision=hp) + b2)[:, 0]
    assert jnp.allclose(w_ij, ref_bf_path, atol=1e-4, rtol=1e-4)

    # (2) Full-f32 module semantics (PyTorch reference), bf16-input tolerance.
    emb_cat = jnp.concatenate([x_l, x_c], axis=1)
    ref_f32 = (jnp.dot(jnp.maximum(jnp.dot(emb_cat, w1, precision=hp) + b1, 0.0),
                       w2, precision=hp) + b2)[:, 0]
    assert jnp.allclose(w_ij, ref_f32, atol=5e-2, rtol=5e-2)

    print("KERNEL_OK")
</pallas_src>

<mosaic_0001>
module attributes {stable_mosaic.version = 11 : i64} {
  func.func @_mlp_kernel(%arg0: i32, %arg1: memref<1008x128xbf16, #tpu.memory_space<vmem>>, %arg2: memref<1008x128xbf16, #tpu.memory_space<vmem>>, %arg3: memref<128x64xbf16, #tpu.memory_space<vmem>>, %arg4: memref<128x64xbf16, #tpu.memory_space<vmem>>, %arg5: memref<1x64xf32, #tpu.memory_space<vmem>>, %arg6: memref<1x64xf32, #tpu.memory_space<vmem>>, %arg7: memref<1x1xf32, #tpu.memory_space<smem>>, %arg8: memref<1x1008xf32, #tpu.memory_space<vmem>>) attributes {dimension_semantics = [#tpu.dimension_semantics<parallel>], iteration_bounds = array<i64: 1>, scalar_prefetch = 0 : i64, scratch_operands = 0 : i64, tpu.core_type = #tpu.core_type<tc>, window_params = [{transform_indices = @transform_0, window_bounds = array<i64: 1008, 128>}, {transform_indices = @transform_1, window_bounds = array<i64: 1008, 128>}, {pipeline_mode = #tpu.pipeline_mode<synchronous>, transform_indices = @transform_2, window_bounds = array<i64: 128, 64>}, {pipeline_mode = #tpu.pipeline_mode<synchronous>, transform_indices = @transform_3, window_bounds = array<i64: 128, 64>}, {pipeline_mode = #tpu.pipeline_mode<synchronous>, transform_indices = @transform_4, window_bounds = array<i64: 1, 64>}, {pipeline_mode = #tpu.pipeline_mode<synchronous>, transform_indices = @transform_5, window_bounds = array<i64: 1, 64>}, {transform_indices = @transform_6, window_bounds = array<i64: 1, 1>}, {transform_indices = @transform_7, window_bounds = array<i64: 1, 1008>}]} {
    %c0 = arith.constant 0 : index
    %c0_0 = arith.constant 0 : index
    %0 = vector.load %arg1[%c0, %c0_0] : memref<1008x128xbf16, #tpu.memory_space<vmem>>, vector<1008x128xbf16>
    %c0_1 = arith.constant 0 : index
    %c0_2 = arith.constant 0 : index
    %1 = vector.load %arg3[%c0_1, %c0_2] : memref<128x64xbf16, #tpu.memory_space<vmem>>, vector<128x64xbf16>
    %cst = arith.constant dense<0.000000e+00> : vector<1008x64xf32>
    %2 = tpu.matmul %0, %1, %cst {dimension_numbers = #tpu.dot_dimension_numbers<[1], [0], [0], [1], [0, 0, 1, 1], [], []>} : vector<1008x128xbf16>, vector<128x64xbf16>, vector<1008x64xf32> -> vector<1008x64xf32>
    %c0_3 = arith.constant 0 : index
    %c0_4 = arith.constant 0 : index
    %3 = vector.load %arg2[%c0_3, %c0_4] : memref<1008x128xbf16, #tpu.memory_space<vmem>>, vector<1008x128xbf16>
    %c0_5 = arith.constant 0 : index
    %c0_6 = arith.constant 0 : index
    %4 = vector.load %arg4[%c0_5, %c0_6] : memref<128x64xbf16, #tpu.memory_space<vmem>>, vector<128x64xbf16>
    %cst_7 = arith.constant dense<0.000000e+00> : vector<1008x64xf32>
    %5 = tpu.matmul %3, %4, %cst_7 {dimension_numbers = #tpu.dot_dimension_numbers<[1], [0], [0], [1], [0, 0, 1, 1], [], []>} : vector<1008x128xbf16>, vector<128x64xbf16>, vector<1008x64xf32> -> vector<1008x64xf32>
    %6 = arith.addf %2, %5 : vector<1008x64xf32>
    %c0_8 = arith.constant 0 : index
    %c0_9 = arith.constant 0 : index
    %7 = vector.load %arg5[%c0_8, %c0_9] : memref<1x64xf32, #tpu.memory_space<vmem>>, vector<1x64xf32>
    %8 = vector.broadcast %7 : vector<1x64xf32> to vector<1008x64xf32>
    %9 = arith.addf %6, %8 : vector<1008x64xf32>
    %cst_10 = arith.constant 0.000000e+00 : f32
    %10 = vector.broadcast %cst_10 : f32 to vector<1008x64xf32>
    %11 = arith.maximumf %9, %10 : vector<1008x64xf32>
    %c0_11 = arith.constant 0 : index
    %c0_12 = arith.constant 0 : index
    %12 = vector.load %arg6[%c0_11, %c0_12] : memref<1x64xf32, #tpu.memory_space<vmem>>, vector<1x64xf32>
    %13 = vector.broadcast %12 : vector<1x64xf32> to vector<1008x64xf32>
    %14 = arith.mulf %11, %13 : vector<1008x64xf32>
    %cst_13 = arith.constant dense<0.000000e+00> : vector<1008xf32>
    %15 = vector.multi_reduction <add>, %14, %cst_13 [1] : vector<1008x64xf32> to vector<1008xf32>
    %c0_14 = arith.constant 0 : index
    %c0_15 = arith.constant 0 : index
    %16 = memref.load %arg7[%c0_14, %c0_15] : memref<1x1xf32, #tpu.memory_space<smem>>
    %17 = vector.broadcast %16 : f32 to vector<1008xf32>
    %18 = arith.addf %15, %17 : vector<1008xf32>
    %19 = vector.shape_cast %18 : vector<1008xf32> to vector<1x1008xf32>
    %c0_16 = arith.constant 0 : index
    %c0_17 = arith.constant 0 : index
    %20 = vector.load %arg8[%c0_16, %c0_17] : memref<1x1008xf32, #tpu.memory_space<vmem>>, vector<1x1008xf32>
    tpu.vector_store %arg8[%c0_16, %c0_17], %19 {strides = array<i32>} : memref<1x1008xf32, #tpu.memory_space<vmem>>, vector<1x1008xf32>,
    return
  }
  func.func @transform_0(%arg0: i32) -> (i32, i32) {
    %c0_i32 = arith.constant 0 : i32
    %c0_i32_0 = arith.constant 0 : i32
    return %arg0, %c0_i32 : i32, i32
  }
  func.func @transform_1(%arg0: i32) -> (i32, i32) {
    %c0_i32 = arith.constant 0 : i32
    %c0_i32_0 = arith.constant 0 : i32
    return %arg0, %c0_i32 : i32, i32
  }
  func.func @transform_2(%arg0: i32) -> (i32, i32) {
    %c0_i32 = arith.constant 0 : i32
    %c0_i32_0 = arith.constant 0 : i32
    %c0_i32_1 = arith.constant 0 : i32
    return %c0_i32, %c0_i32_0 : i32, i32
  }
  func.func @transform_3(%arg0: i32) -> (i32, i32) {
    %c0_i32 = arith.constant 0 : i32
    %c0_i32_0 = arith.constant 0 : i32
    %c0_i32_1 = arith.constant 0 : i32
    return %c0_i32, %c0_i32_0 : i32, i32
  }
  func.func @transform_4(%arg0: i32) -> (i32, i32) {
    %c0_i32 = arith.constant 0 : i32
    %c0_i32_0 = arith.constant 0 : i32
    %c0_i32_1 = arith.constant 0 : i32
    return %c0_i32, %c0_i32_0 : i32, i32
  }
  func.func @transform_5(%arg0: i32) -> (i32, i32) {
    %c0_i32 = arith.constant 0 : i32
    %c0_i32_0 = arith.constant 0 : i32
    %c0_i32_1 = arith.constant 0 : i32
    return %c0_i32, %c0_i32_0 : i32, i32
  }
  func.func @transform_6(%arg0: i32) -> (i32, i32) {
    %c0_i32 = arith.constant 0 : i32
    %c0_i32_0 = arith.constant 0 : i32
    %c0_i32_1 = arith.constant 0 : i32
    return %c0_i32, %c0_i32_0 : i32, i32
  }
  func.func @transform_7(%arg0: i32) -> (i32, i32) {
    %c0_i32 = arith.constant 0 : i32
    %c0_i32_0 = arith.constant 0 : i32
    return %arg0, %c0_i32 : i32, i32
  }
}

</mosaic_0001>

<llo_original>
// kernel: mlp_forward.1
$region0: #{mlp_forward.1}
  #allocation0 [shape = 'u32[]', space=smem, size = 0x4, offset = 0x4, fixed_abs, tag = 'smem constant byte address 0x4 - core index']
  #allocation1 [shape = 'u32[144,128]{1,0:T(1,128)}', space=vmem, size = 0x12000, scoped, tag = 'internal scratch']
  #allocation2 [shape = 'f32[1,1]{1,0:T(1,128)S(6)}', space=smem, size = 0x200, scoped, tag = 'scoped memory for mlp_forward.1']
  %s0 = inlined_call_operand.vmem [shape: bf16[1000,128], index: 0, kind: input, shape index: {}]
  %s1 = inlined_call_operand.vmem [shape: bf16[1000,128], index: 1, kind: input, shape index: {}]
  %s2 = inlined_call_operand.vmem [shape: bf16[128,64], index: 2, kind: input, shape index: {}]
  %s3 = inlined_call_operand.vmem [shape: bf16[128,64], index: 3, kind: input, shape index: {}]
  %s4 = inlined_call_operand.vmem [shape: f32[1,64], index: 4, kind: input, shape index: {}]
  %s5 = inlined_call_operand.vmem [shape: f32[1,64], index: 5, kind: input, shape index: {}]
  %s6 = inlined_call_operand.<no memory space> [shape: f32[1,1], index: 6, kind: input, shape index: {}]
  %s7 = inlined_call_operand.hbm [shape: f32[1,1008], index: 7, kind: output, shape index: {}]
  %s8 = sld [smem:[#allocation0]]
  $region38: #{mlp_forward.1} parent=0
    _
  %s10 = ssub.s32 1, %s8
  %s11 = scalar_select 0, %s10, %s8
  %12 = sst [smem:[#allocation2]] %s6
  $region1: #{mlp_forward.1} parent=0
    #allocation3 [shape = 'u8[4096]{0}', space=vmem, size = 0x1000, scoped, tag = 'output window, operand 0, single buffered']
    #allocation4 [shape = 's32[1]{0}', space=sflag, size = 0x4, scoped, tag = 'scoped memory for mlp_forward.1']
    %13 = vsyncpa [#allocation4], 0
    // Predicated region
    $region2: #{mlp_forward.1} parent=1 // pred_check
      _
    $region3: #{mlp_forward.1} parent=1 // pred_check_branch
      %15 = sbr.rel (0) target = $region5
    $region4: #{mlp_forward.1} parent=1 // pred_region
      _
    $region5: #{mlp_forward.1} parent=1 // pred_fallthru
      _
    // Predicated region
    $region6: #{mlp_forward.1} parent=1 // pred_check
      _
    $region7: #{mlp_forward.1} parent=1 // pred_check_branch
      %17 = sbr.rel (0) target = $region9
    $region8: #{mlp_forward.1} parent=1 // pred_region
      _
    $region9: #{mlp_forward.1} parent=1 // pred_fallthru
      _
    // Predicated region
    $region10: #{mlp_forward.1} parent=1 // pred_check
      _
    $region11: #{mlp_forward.1} parent=1 // pred_check_branch
      %19 = sbr.rel (0) target = $region13
    $region12: #{mlp_forward.1} parent=1 // pred_region
      _
    $region13: #{mlp_forward.1} parent=1 // pred_fallthru
      _
    // Predicated region
    $region14: #{mlp_forward.1} parent=1 // pred_check
      _
    $region15: #{mlp_forward.1} parent=1 // pred_check_branch
      %21 = sbr.rel (0) target = $region17
    $region16: #{mlp_forward.1} parent=1 // pred_region
      _
    $region17: #{mlp_forward.1} parent=1 // pred_fallthru
      _
    // Predicated region
    $region18: #{mlp_forward.1} parent=1 // pred_check
      _
    $region19: #{mlp_forward.1} parent=1 // pred_check_branch
      %23 = sbr.rel (0) target = $region21
    $region20: #{mlp_forward.1} parent=1 // pred_region
      _
    $region21: #{mlp_forward.1} parent=1 // pred_fallthru
      _
    // Predicated region
    $region22: #{mlp_forward.1} parent=1 // pred_check
      _
    $region23: #{mlp_forward.1} parent=1 // pred_check_branch
      %25 = sbr.rel (0) target = $region25
    $region24: #{mlp_forward.1} parent=1 // pred_region
      _
    $region25: #{mlp_forward.1} parent=1 // pred_fallthru
      _
    // Predicated region
    $region26: #{mlp_forward.1} parent=1 // pred_check
      _
    $region27: #{mlp_forward.1} parent=1 // pred_check_branch
      %27 = sbr.rel (0) target = $region29
    $region28: #{mlp_forward.1} parent=1 // pred_region
      _
    $region29: #{mlp_forward.1} parent=1 // pred_fallthru
      _
    %v29 = vld [vmem:[%s0] sm:$0xf]
    %v30 = vld [vmem:[%s0 + $0x4] sm:$0xf]
    %v31 = vld [vmem:[%s0 + $0x8] sm:$0xf]
    %v32 = vld [vmem:[%s0 + $0xc] sm:$0xf]
    %v33 = vld [vmem:[%s0 + $0x10] sm:$0xf]
    %v34 = vld [vmem:[%s0 + $0x14] sm:$0xf]
    %v35 = vld [vmem:[%s0 + $0x18] sm:$0xf]
    %v36 = vld [vmem:[%s0 + $0x1c] sm:$0xf]
    %v37 = vld [vmem:[%s0 + $0x20] sm:$0xf]
    %v38 = vld [vmem:[%s0 + $0x24] sm:$0xf]
    %v39 = vld [vmem:[%s0 + $0x28] sm:$0xf]
    %v40 = vld [vmem:[%s0 + $0x2c] sm:$0xf]
    %v41 = vld [vmem:[%s0 + $0x30] sm:$0xf]
    %v42 = vld [vmem:[%s0 + $0x34] sm:$0xf]
    %v43 = vld [vmem:[%s0 + $0x38] sm:$0xf]
    %v44 = vld [vmem:[%s0 + $0x3c] sm:$0xf]
    %v45 = vld [vmem:[%s0 + $0x40] sm:$0xf]
    %v46 = vld [vmem:[%s0 + $0x44] sm:$0xf]
    %v47 = vld [vmem:[%s0 + $0x48] sm:$0xf]
    %v48 = vld [vmem:[%s0 + $0x4c] sm:$0xf]
    %v49 = vld [vmem:[%s0 + $0x50] sm:$0xf]
    %v50 = vld [vmem:[%s0 + $0x54] sm:$0xf]
    %v51 = vld [vmem:[%s0 + $0x58] sm:$0xf]
    %v52 = vld [vmem:[%s0 + $0x5c] sm:$0xf]
    %v53 = vld [vmem:[%s0 + $0x60] sm:$0xf]
    %v54 = vld [vmem:[%s0 + $0x64] sm:$0xf]
    %v55 = vld [vmem:[%s0 + $0x68] sm:$0xf]
    %v56 = vld [vmem:[%s0 + $0x6c] sm:$0xf]
    %v57 = vld [vmem:[%s0 + $0x70] sm:$0xf]
    %v58 = vld [vmem:[%s0 + $0x74] sm:$0xf]
    %v59 = vld [vmem:[%s0 + $0x78] sm:$0xf]
    %v60 = vld [vmem:[%s0 + $0x7c] sm:$0xf]
    %v61 = vld [vmem:[%s0 + $0x80] sm:$0xf]
    %v62 = vld [vmem:[%s0 + $0x84] sm:$0xf]
    %v63 = vld [vmem:[%s0 + $0x88] sm:$0xf]
    %v64 = vld [vmem:[%s0 + $0x8c] sm:$0xf]
    %v65 = vld [vmem:[%s0 + $0x90] sm:$0xf]
    %v66 = vld [vmem:[%s0 + $0x94] sm:$0xf]
    %v67 = vld [vmem:[%s0 + $0x98] sm:$0xf]
    %v68 = vld [vmem:[%s0 + $0x9c] sm:$0xf]
    %v69 = vld [vmem:[%s0 + $0xa0] sm:$0xf]
    %v70 = vld [vmem:[%s0 + $0xa4] sm:$0xf]
    %v71 = vld [vmem:[%s0 + $0xa8] sm:$0xf]
    %v72 = vld [vmem:[%s0 + $0xac] sm:$0xf]
    %v73 = vld [vmem:[%s0 + $0xb0] sm:$0xf]
    %v74 = vld [vmem:[%s0 + $0xb4] sm:$0xf]
    %v75 = vld [vmem:[%s0 + $0xb8] sm:$0xf]
    %v76 = vld [vmem:[%s0 + $0xbc] sm:$0xf]
    %v77 = vld [vmem:[%s0 + $0xc0] sm:$0xf]
    %v78 = vld [vmem:[%s0 + $0xc4] sm:$0xf]
    %v79 = vld [vmem:[%s0 + $0xc8] sm:$0xf]
    %v80 = vld [vmem:[%s0 + $0xcc] sm:$0xf]
    %v81 = vld [vmem:[%s0 + $0xd0] sm:$0xf]
    %v82 = vld [vmem:[%s0 + $0xd4] sm:$0xf]
    %v83 = vld [vmem:[%s0 + $0xd8] sm:$0xf]
    %v84 = vld [vmem:[%s0 + $0xdc] sm:$0xf]
    %v85 = vld [vmem:[%s0 + $0xe0] sm:$0xf]
    %v86 = vld [vmem:[%s0 + $0xe4] sm:$0xf]
    %v87 = vld [vmem:[%s0 + $0xe8] sm:$0xf]
    %v88 = vld [vmem:[%s0 + $0xec] sm:$0xf]
    %v89 = vld [vmem:[%s0 + $0xf0] sm:$0xf]
    %v90 = vld [vmem:[%s0 + $0xf4] sm:$0xf]
    %v91 = vld [vmem:[%s0 + $0xf8] sm:$0xf]
    %v92 = vld [vmem:[%s0 + $0xfc] sm:$0xf]
    %v93 = vld [vmem:[%s0 + $0x100] sm:$0xf]
    %v94 = vld [vmem:[%s0 + $0x104] sm:$0xf]
    %v95 = vld [vmem:[%s0 + $0x108] sm:$0xf]
    %v96 = vld [vmem:[%s0 + $0x10c] sm:$0xf]
    %v97 = vld [vmem:[%s0 + $0x110] sm:$0xf]
    %v98 = vld [vmem:[%s0 + $0x114] sm:$0xf]
    %v99 = vld [vmem:[%s0 + $0x118] sm:$0xf]
    %v100 = vld [vmem:[%s0 + $0x11c] sm:$0xf]
    %v101 = vld [vmem:[%s0 + $0x120] sm:$0xf]
    %v102 = vld [vmem:[%s0 + $0x124] sm:$0xf]
    %v103 = vld [vmem:[%s0 + $0x128] sm:$0xf]
    %v104 = vld [vmem:[%s0 + $0x12c] sm:$0xf]
    %v105 = vld [vmem:[%s0 + $0x130] sm:$0xf]
    %v106 = vld [vmem:[%s0 + $0x134] sm:$0xf]
    %v107 = vld [vmem:[%s0 + $0x138] sm:$0xf]
    %v108 = vld [vmem:[%s0 + $0x13c] sm:$0xf]
    %v109 = vld [vmem:[%s0 + $0x140] sm:$0xf]
    %v110 = vld [vmem:[%s0 + $0x144] sm:$0xf]
    %v111 = vld [vmem:[%s0 + $0x148] sm:$0xf]
    %v112 = vld [vmem:[%s0 + $0x14c] sm:$0xf]
    %v113 = vld [vmem:[%s0 + $0x150] sm:$0xf]
    %v114 = vld [vmem:[%s0 + $0x154] sm:$0xf]
    %v115 = vld [vmem:[%s0 + $0x158] sm:$0xf]
    %v116 = vld [vmem:[%s0 + $0x15c] sm:$0xf]
    %v117 = vld [vmem:[%s0 + $0x160] sm:$0xf]
    %v118 = vld [vmem:[%s0 + $0x164] sm:$0xf]
    %v119 = vld [vmem:[%s0 + $0x168] sm:$0xf]
    %v120 = vld [vmem:[%s0 + $0x16c] sm:$0xf]
    %v121 = vld [vmem:[%s0 + $0x170] sm:$0xf]
    %v122 = vld [vmem:[%s0 + $0x174] sm:$0xf]
    %v123 = vld [vmem:[%s0 + $0x178] sm:$0xf]
    %v124 = vld [vmem:[%s0 + $0x17c] sm:$0xf]
    %v125 = vld [vmem:[%s0 + $0x180] sm:$0xf]
    %v126 = vld [vmem:[%s0 + $0x184] sm:$0xf]
    %v127 = vld [vmem:[%s0 + $0x188] sm:$0xf]
    %v128 = vld [vmem:[%s0 + $0x18c] sm:$0xf]
    %v129 = vld [vmem:[%s0 + $0x190] sm:$0xf]
    %v130 = vld [vmem:[%s0 + $0x194] sm:$0xf]
    %v131 = vld [vmem:[%s0 + $0x198] sm:$0xf]
    %v132 = vld [vmem:[%s0 + $0x19c] sm:$0xf]
    %v133 = vld [vmem:[%s0 + $0x1a0] sm:$0xf]
    %v134 = vld [vmem:[%s0 + $0x1a4] sm:$0xf]
    %v135 = vld [vmem:[%s0 + $0x1a8] sm:$0xf]
    %v136 = vld [vmem:[%s0 + $0x1ac] sm:$0xf]
    %v137 = vld [vmem:[%s0 + $0x1b0] sm:$0xf]
    %v138 = vld [vmem:[%s0 + $0x1b4] sm:$0xf]
    %v139 = vld [vmem:[%s0 + $0x1b8] sm:$0xf]
    %v140 = vld [vmem:[%s0 + $0x1bc] sm:$0xf]
    %v141 = vld [vmem:[%s0 + $0x1c0] sm:$0xf]
    %v142 = vld [vmem:[%s0 + $0x1c4] sm:$0xf]
    %v143 = vld [vmem:[%s0 + $0x1c8] sm:$0xf]
    %v144 = vld [vmem:[%s0 + $0x1cc] sm:$0xf]
    %v145 = vld [vmem:[%s0 + $0x1d0] sm:$0xf]
    %v146 = vld [vmem:[%s0 + $0x1d4] sm:$0xf]
    %v147 = vld [vmem:[%s0 + $0x1d8] sm:$0xf]
    %v148 = vld [vmem:[%s0 + $0x1dc] sm:$0xf]
    %v149 = vld [vmem:[%s0 + $0x1e0] sm:$0xf]
    %v150 = vld [vmem:[%s0 + $0x1e4] sm:$0xf]
    %v151 = vld [vmem:[%s0 + $0x1e8] sm:$0xf]
    %v152 = vld [vmem:[%s0 + $0x1ec] sm:$0xf]
    %v153 = vld [vmem:[%s0 + $0x1f0] sm:$0xf]
    %v154 = vld [vmem:[%s0 + $0x1f4] sm:$0xf]
    %v155 = vld [vmem:[%s2] sm:$0xf]
    %v156 = vld [vmem:[%s2 + $0x4] sm:$0xf]
    %v157 = vld [vmem:[%s2 + $0x8] sm:$0xf]
    %v158 = vld [vmem:[%s2 + $0xc] sm:$0xf]
    %v159 = vld [vmem:[%s2 + $0x10] sm:$0xf]
    %v160 = vld [vmem:[%s2 + $0x14] sm:$0xf]
    %v161 = vld [vmem:[%s2 + $0x18] sm:$0xf]
    %v162 = vld [vmem:[%s2 + $0x1c] sm:$0xf]
    %v163 = vld [vmem:[%s2 + $0x20] sm:$0xf]
    %v164 = vld [vmem:[%s2 + $0x24] sm:$0xf]
    %v165 = vld [vmem:[%s2 + $0x28] sm:$0xf]
    %v166 = vld [vmem:[%s2 + $0x2c] sm:$0xf]
    %v167 = vld [vmem:[%s2 + $0x30] sm:$0xf]
    %v168 = vld [vmem:[%s2 + $0x34] sm:$0xf]
    %v169 = vld [vmem:[%s2 + $0x38] sm:$0xf]
    %v170 = vld [vmem:[%s2 + $0x3c] sm:$0xf]
    %v171 = vld [vmem:[%s1] sm:$0xf]
    %v172 = vld [vmem:[%s1 + $0x4] sm:$0xf]
    %v173 = vld [vmem:[%s1 + $0x8] sm:$0xf]
    %v174 = vld [vmem:[%s1 + $0xc] sm:$0xf]
    %v175 = vld [vmem:[%s1 + $0x10] sm:$0xf]
    %v176 = vld [vmem:[%s1 + $0x14] sm:$0xf]
    %v177 = vld [vmem:[%s1 + $0x18] sm:$0xf]
    %v178 = vld [vmem:[%s1 + $0x1c] sm:$0xf]
    %v179 = vld [vmem:[%s1 + $0x20] sm:$0xf]
    %v180 = vld [vmem:[%s1 + $0x24] sm:$0xf]
    %v181 = vld [vmem:[%s1 + $0x28] sm:$0xf]
    %v182 = vld [vmem:[%s1 + $0x2c] sm:$0xf]
    %v183 = vld [vmem:[%s1 + $0x30] sm:$0xf]
    %v184 = vld [vmem:[%s1 + $0x34] sm:$0xf]
    %v185 = vld [vmem:[%s1 + $0x38] sm:$0xf]
    %v186 = vld [vmem:[%s1 + $0x3c] sm:$0xf]
    %v187 = vld [vmem:[%s1 + $0x40] sm:$0xf]
    %v188 = vld [vmem:[%s1 + $0x44] sm:$0xf]
    %v189 = vld [vmem:[%s1 + $0x48] sm:$0xf]
    %v190 = vld [vmem:[%s1 + $0x4c] sm:$0xf]
    %v191 = vld [vmem:[%s1 + $0x50] sm:$0xf]
    %v192 = vld [vmem:[%s1 + $0x54] sm:$0xf]
    %v193 = vld [vmem:[%s1 + $0x58] sm:$0xf]
    %v194 = vld [vmem:[%s1 + $0x5c] sm:$0xf]
    %v195 = vld [vmem:[%s1 + $0x60] sm:$0xf]
    %v196 = vld [vmem:[%s1 + $0x64] sm:$0xf]
    %v197 = vld [vmem:[%s1 + $0x68] sm:$0xf]
    %v198 = vld [vmem:[%s1 + $0x6c] sm:$0xf]
    %v199 = vld [vmem:[%s1 + $0x70] sm:$0xf]
    %v200 = vld [vmem:[%s1 + $0x74] sm:$0xf]
    %v201 = vld [vmem:[%s1 + $0x78] sm:$0xf]
    %v202 = vld [vmem:[%s1 + $0x7c] sm:$0xf]
    %v203 = vld [vmem:[%s1 + $0x80] sm:$0xf]
    %v204 = vld [vmem:[%s1 + $0x84] sm:$0xf]
    %v205 = vld [vmem:[%s1 + $0x88] sm:$0xf]
    %v206 = vld [vmem:[%s1 + $0x8c] sm:$0xf]
    %v207 = vld [vmem:[%s1 + $0x90] sm:$0xf]
    %v208 = vld [vmem:[%s1 + $0x94] sm:$0xf]
    %v209 = vld [vmem:[%s1 + $0x98] sm:$0xf]
    %v210 = vld [vmem:[%s1 + $0x9c] sm:$0xf]
    %v211 = vld [vmem:[%s1 + $0xa0] sm:$0xf]
    %v212 = vld [vmem:[%s1 + $0xa4] sm:$0xf]
    %v213 = vld [vmem:[%s1 + $0xa8] sm:$0xf]
    %v214 = vld [vmem:[%s1 + $0xac] sm:$0xf]
    %v215 = vld [vmem:[%s1 + $0xb0] sm:$0xf]
    %v216 = vld [vmem:[%s1 + $0xb4] sm:$0xf]
    %v217 = vld [vmem:[%s1 + $0xb8] sm:$0xf]
    %v218 = vld [vmem:[%s1 + $0xbc] sm:$0xf]
    %v219 = vld [vmem:[%s1 + $0xc0] sm:$0xf]
    %v220 = vld [vmem:[%s1 + $0xc4] sm:$0xf]
    %v221 = vld [vmem:[%s1 + $0xc8] sm:$0xf]
    %v222 = vld [vmem:[%s1 + $0xcc] sm:$0xf]
    %v223 = vld [vmem:[%s1 + $0xd0] sm:$0xf]
    %v224 = vld [vmem:[%s1 + $0xd4] sm:$0xf]
    %v225 = vld [vmem:[%s1 + $0xd8] sm:$0xf]
    %v226 = vld [vmem:[%s1 + $0xdc] sm:$0xf]
    %v227 = vld [vmem:[%s1 + $0xe0] sm:$0xf]
    %v228 = vld [vmem:[%s1 + $0xe4] sm:$0xf]
    %v229 = vld [vmem:[%s1 + $0xe8] sm:$0xf]
    %v230 = vld [vmem:[%s1 + $0xec] sm:$0xf]
    %v231 = vld [vmem:[%s1 + $0xf0] sm:$0xf]
    %v232 = vld [vmem:[%s1 + $0xf4] sm:$0xf]
    %v233 = vld [vmem:[%s1 + $0xf8] sm:$0xf]
    %v234 = vld [vmem:[%s1 + $0xfc] sm:$0xf]
    %v235 = vld [vmem:[%s1 + $0x100] sm:$0xf]
    %v236 = vld [vmem:[%s1 + $0x104] sm:$0xf]
    %v237 = vld [vmem:[%s1 + $0x108] sm:$0xf]
    %v238 = vld [vmem:[%s1 + $0x10c] sm:$0xf]
    %v239 = vld [vmem:[%s1 + $0x110] sm:$0xf]
    %v240 = vld [vmem:[%s1 + $0x114] sm:$0xf]
    %v241 = vld [vmem:[%s1 + $0x118] sm:$0xf]
    %v242 = vld [vmem:[%s1 + $0x11c] sm:$0xf]
    %v243 = vld [vmem:[%s1 + $0x120] sm:$0xf]
    %v244 = vld [vmem:[%s1 + $0x124] sm:$0xf]
    %v245 = vld [vmem:[%s1 + $0x128] sm:$0xf]
    %v246 = vld [vmem:[%s1 + $0x12c] sm:$0xf]
    %v247 = vld [vmem:[%s1 + $0x130] sm:$0xf]
    %v248 = vld [vmem:[%s1 + $0x134] sm:$0xf]
    %v249 = vld [vmem:[%s1 + $0x138] sm:$0xf]
    %v250 = vld [vmem:[%s1 + $0x13c] sm:$0xf]
    %v251 = vld [vmem:[%s1 + $0x140] sm:$0xf]
    %v252 = vld [vmem:[%s1 + $0x144] sm:$0xf]
    %v253 = vld [vmem:[%s1 + $0x148] sm:$0xf]
    %v254 = vld [vmem:[%s1 + $0x14c] sm:$0xf]
    %v255 = vld [vmem:[%s1 + $0x150] sm:$0xf]
    %v256 = vld [vmem:[%s1 + $0x154] sm:$0xf]
    %v257 = vld [vmem:[%s1 + $0x158] sm:$0xf]
    %v258 = vld [vmem:[%s1 + $0x15c] sm:$0xf]
    %v259 = vld [vmem:[%s1 + $0x160] sm:$0xf]
    %v260 = vld [vmem:[%s1 + $0x164] sm:$0xf]
    %v261 = vld [vmem:[%s1 + $0x168] sm:$0xf]
    %v262 = vld [vmem:[%s1 + $0x16c] sm:$0xf]
    %v263 = vld [vmem:[%s1 + $0x170] sm:$0xf]
    %v264 = vld [vmem:[%s1 + $0x174] sm:$0xf]
    %v265 = vld [vmem:[%s1 + $0x178] sm:$0xf]
    %v266 = vld [vmem:[%s1 + $0x17c] sm:$0xf]
    %v267 = vld [vmem:[%s1 + $0x180] sm:$0xf]
    %v268 = vld [vmem:[%s1 + $0x184] sm:$0xf]
    %v269 = vld [vmem:[%s1 + $0x188] sm:$0xf]
    %v270 = vld [vmem:[%s1 + $0x18c] sm:$0xf]
    %v271 = vld [vmem:[%s1 + $0x190] sm:$0xf]
    %v272 = vld [vmem:[%s1 + $0x194] sm:$0xf]
    %v273 = vld [vmem:[%s1 + $0x198] sm:$0xf]
    %v274 = vld [vmem:[%s1 + $0x19c] sm:$0xf]
    %v275 = vld [vmem:[%s1 + $0x1a0] sm:$0xf]
    %v276 = vld [vmem:[%s1 + $0x1a4] sm:$0xf]
    %v277 = vld [vmem:[%s1 + $0x1a8] sm:$0xf]
    %v278 = vld [vmem:[%s1 + $0x1ac] sm:$0xf]
    %v279 = vld [vmem:[%s1 + $0x1b0] sm:$0xf]
    %v280 = vld [vmem:[%s1 + $0x1b4] sm:$0xf]
    %v281 = vld [vmem:[%s1 + $0x1b8] sm:$0xf]
    %v282 = vld [vmem:[%s1 + $0x1bc] sm:$0xf]
    %v283 = vld [vmem:[%s1 + $0x1c0] sm:$0xf]
    %v284 = vld [vmem:[%s1 + $0x1c4] sm:$0xf]
    %v285 = vld [vmem:[%s1 + $0x1c8] sm:$0xf]
    %v286 = vld [vmem:[%s1 + $0x1cc] sm:$0xf]
    %v287 = vld [vmem:[%s1 + $0x1d0] sm:$0xf]
    %v288 = vld [vmem:[%s1 + $0x1d4] sm:$0xf]
    %v289 = vld [vmem:[%s1 + $0x1d8] sm:$0xf]
    %v290 = vld [vmem:[%s1 + $0x1dc] sm:$0xf]
    %v291 = vld [vmem:[%s1 + $0x1e0] sm:$0xf]
    %v292 = vld [vmem:[%s1 + $0x1e4] sm:$0xf]
    %v293 = vld [vmem:[%s1 + $0x1e8] sm:$0xf]
    %v294 = vld [vmem:[%s1 + $0x1ec] sm:$0xf]
    %v295 = vld [vmem:[%s1 + $0x1f0] sm:$0xf]
    %v296 = vld [vmem:[%s1 + $0x1f4] sm:$0xf]
    %v297 = vld [vmem:[%s3] sm:$0xf]
    %v298 = vld [vmem:[%s3 + $0x4] sm:$0xf]
    %v299 = vld [vmem:[%s3 + $0x8] sm:$0xf]
    %v300 = vld [vmem:[%s3 + $0xc] sm:$0xf]
    %v301 = vld [vmem:[%s3 + $0x10] sm:$0xf]
    %v302 = vld [vmem:[%s3 + $0x14] sm:$0xf]
    %v303 = vld [vmem:[%s3 + $0x18] sm:$0xf]
    %v304 = vld [vmem:[%s3 + $0x1c] sm:$0xf]
    %v305 = vld [vmem:[%s3 + $0x20] sm:$0xf]
    %v306 = vld [vmem:[%s3 + $0x24] sm:$0xf]
    %v307 = vld [vmem:[%s3 + $0x28] sm:$0xf]
    %v308 = vld [vmem:[%s3 + $0x2c] sm:$0xf]
    %v309 = vld [vmem:[%s3 + $0x30] sm:$0xf]
    %v310 = vld [vmem:[%s3 + $0x34] sm:$0xf]
    %v311 = vld [vmem:[%s3 + $0x38] sm:$0xf]
    %v312 = vld [vmem:[%s3 + $0x3c] sm:$0xf]
    %v439 = vunpack.c.l.b16 %v171
    %v440 = vunpack.c.l.b16 %v172
    %v441 = vunpack.c.l.b16 %v173
    %v442 = vunpack.c.l.b16 %v174
    %v443 = vunpack.c.l.b16 %v175
    %v444 = vunpack.c.l.b16 %v176
    %v445 = vunpack.c.l.b16 %v177
    %v446 = vunpack.c.l.b16 %v178
    %v447 = vunpack.c.l.b16 %v179
    %v448 = vunpack.c.l.b16 %v180
    %v449 = vunpack.c.l.b16 %v181
    %v450 = vunpack.c.l.b16 %v182
    %v451 = vunpack.c.l.b16 %v183
    %v452 = vunpack.c.l.b16 %v184
    %v453 = vunpack.c.l.b16 %v185
    %v454 = vunpack.c.l.b16 %v186
    %v455 = vunpack.c.l.b16 %v187
    %v456 = vunpack.c.l.b16 %v188
    %v457 = vunpack.c.l.b16 %v189
    %v458 = vunpack.c.l.b16 %v190
    %v459 = vunpack.c.l.b16 %v191
    %v460 = vunpack.c.l.b16 %v192
    %v461 = vunpack.c.l.b16 %v193
    %v462 = vunpack.c.l.b16 %v194
    %v463 = vunpack.c.l.b16 %v195
    %v464 = vunpack.c.l.b16 %v196
    %v465 = vunpack.c.l.b16 %v197
    %v466 = vunpack.c.l.b16 %v198
    %v467 = vunpack.c.l.b16 %v199
    %v468 = vunpack.c.l.b16 %v200
    %v469 = vunpack.c.l.b16 %v201
    %v470 = vunpack.c.l.b16 %v202
    %v471 = vunpack.c.l.b16 %v203
    %v472 = vunpack.c.l.b16 %v204
    %v473 = vunpack.c.l.b16 %v205
    %v474 = vunpack.c.l.b16 %v206
    %v475 = vunpack.c.l.b16 %v207
    %v476 = vunpack.c.l.b16 %v208
    %v477 = vunpack.c.l.b16 %v209
    %v478 = vunpack.c.l.b16 %v210
    %v479 = vunpack.c.l.b16 %v211
    %v480 = vunpack.c.l.b16 %v212
    %v481 = vunpack.c.l.b16 %v213
    %v482 = vunpack.c.l.b16 %v214
    %v483 = vunpack.c.l.b16 %v215
    %v484 = vunpack.c.l.b16 %v216
    %v485 = vunpack.c.l.b16 %v217
    %v486 = vunpack.c.l.b16 %v218
    %v487 = vunpack.c.l.b16 %v219
    %v488 = vunpack.c.l.b16 %v220
    %v489 = vunpack.c.l.b16 %v221
    %v490 = vunpack.c.l.b16 %v222
    %v491 = vunpack.c.l.b16 %v223
    %v492 = vunpack.c.l.b16 %v224
    %v493 = vunpack.c.l.b16 %v225
    %v494 = vunpack.c.l.b16 %v226
    %v495 = vunpack.c.l.b16 %v227
    %v496 = vunpack.c.l.b16 %v228
    %v497 = vunpack.c.l.b16 %v229
    %v498 = vunpack.c.l.b16 %v230
    %v499 = vunpack.c.l.b16 %v231
    %v500 = vunpack.c.l.b16 %v232
    %v501 = vunpack.c.l.b16 %v233
    %v502 = vunpack.c.l.b16 %v234
    %v503 = vunpack.c.l.b16 %v235
    %v504 = vunpack.c.l.b16 %v236
    %v505 = vunpack.c.l.b16 %v237
    %v506 = vunpack.c.l.b16 %v238
    %v507 = vunpack.c.l.b16 %v239
    %v508 = vunpack.c.l.b16 %v240
    %v509 = vunpack.c.l.b16 %v241
    %v510 = vunpack.c.l.b16 %v242
    %v511 = vunpack.c.l.b16 %v243
    %v512 = vunpack.c.l.b16 %v244
    %v513 = vunpack.c.l.b16 %v245
    %v514 = vunpack.c.l.b16 %v246
    %v515 = vunpack.c.l.b16 %v247
    %v516 = vunpack.c.l.b16 %v248
    %v517 = vunpack.c.l.b16 %v249
    %v518 = vunpack.c.l.b16 %v250
    %v519 = vunpack.c.l.b16 %v251
    %v520 = vunpack.c.l.b16 %v252
    %v521 = vunpack.c.l.b16 %v253
    %v522 = vunpack.c.l.b16 %v254
    %v523 = vunpack.c.l.b16 %v255
    %v524 = vunpack.c.l.b16 %v256
    %v525 = vunpack.c.l.b16 %v257
    %v526 = vunpack.c.l.b16 %v258
    %v527 = vunpack.c.l.b16 %v259
    %v528 = vunpack.c.l.b16 %v260
    %v529 = vunpack.c.l.b16 %v261
    %v530 = vunpack.c.l.b16 %v262
    %v531 = vunpack.c.l.b16 %v263
    %v532 = vunpack.c.l.b16 %v264
    %v533 = vunpack.c.l.b16 %v265
    %v534 = vunpack.c.l.b16 %v266
    %v535 = vunpack.c.l.b16 %v267
    %v536 = vunpack.c.l.b16 %v268
    %v537 = vunpack.c.l.b16 %v269
    %v538 = vunpack.c.l.b16 %v270
    %v539 = vunpack.c.l.b16 %v271
    %v540 = vunpack.c.l.b16 %v272
    %v541 = vunpack.c.l.b16 %v273
    %v542 = vunpack.c.l.b16 %v274
    %v543 = vunpack.c.l.b16 %v275
    %v544 = vunpack.c.l.b16 %v276
    %v545 = vunpack.c.l.b16 %v277
    %v546 = vunpack.c.l.b16 %v278
    %v547 = vunpack.c.l.b16 %v279
    %v548 = vunpack.c.l.b16 %v280
    %v549 = vunpack.c.l.b16 %v281
    %v550 = vunpack.c.l.b16 %v282
    %v551 = vunpack.c.l.b16 %v283
    %v552 = vunpack.c.l.b16 %v284
    %v553 = vunpack.c.l.b16 %v285
    %v554 = vunpack.c.l.b16 %v286
    %v555 = vunpack.c.l.b16 %v287
    %v556 = vunpack.c.l.b16 %v288
    %v557 = vunpack.c.l.b16 %v289
    %v558 = vunpack.c.l.b16 %v290
    %v559 = vunpack.c.l.b16 %v291
    %v560 = vunpack.c.l.b16 %v292
    %v561 = vunpack.c.l.b16 %v293
    %v562 = vunpack.c.l.b16 %v294
    %v563 = vunpack.c.l.b16 %v295
    %v564 = vunpack.c.l.b16 %v296
    %v565 = vpack.c.b16 %v440, %v439
    %v566 = vpack.c.b16 %v442, %v441
    %v567 = vpack.c.b16 %v444, %v443
    %v568 = vpack.c.b16 %v446, %v445
    %v569 = vpack.c.b16 %v448, %v447
    %v570 = vpack.c.b16 %v450, %v449
    %v571 = vpack.c.b16 %v452, %v451
    %v572 = vpack.c.b16 %v454, %v453
    %v573 = vpack.c.b16 %v456, %v455
    %v574 = vpack.c.b16 %v458, %v457
    %v575 = vpack.c.b16 %v460, %v459
    %v576 = vpack.c.b16 %v462, %v461
    %v577 = vpack.c.b16 %v464, %v463
    %v578 = vpack.c.b16 %v466, %v465
    %v579 = vpack.c.b16 %v468, %v467
    %v580 = vpack.c.b16 %v470, %v469
    %v581 = vpack.c.b16 %v472, %v471
    %v582 = vpack.c.b16 %v474, %v473
    %v583 = vpack.c.b16 %v476, %v475
    %v584 = vpack.c.b16 %v478, %v477
    %v585 = vpack.c.b16 %v480, %v479
    %v586 = vpack.c.b16 %v482, %v481
    %v587 = vpack.c.b16 %v484, %v483
    %v588 = vpack.c.b16 %v486, %v485
    %v589 = vpack.c.b16 %v488, %v487
    %v590 = vpack.c.b16 %v490, %v489
    %v591 = vpack.c.b16 %v492, %v491
    %v592 = vpack.c.b16 %v494, %v493
    %v593 = vpack.c.b16 %v496, %v495
    %v594 = vpack.c.b16 %v498, %v497
    %v595 = vpack.c.b16 %v500, %v499
    %v596 = vpack.c.b16 %v502, %v501
    %v597 = vpack.c.b16 %v504, %v503
    %v598 = vpack.c.b16 %v506, %v505
    %v599 = vpack.c.b16 %v508, %v507
    %v600 = vpack.c.b16 %v510, %v509
    %v601 = vpack.c.b16 %v512, %v511
    %v602 = vpack.c.b16 %v514, %v513
    %v603 = vpack.c.b16 %v516, %v515
    %v604 = vpack.c.b16 %v518, %v517
    %v605 = vpack.c.b16 %v520, %v519
    %v606 = vpack.c.b16 %v522, %v521
    %v607 = vpack.c.b16 %v524, %v523
    %v608 = vpack.c.b16 %v526, %v525
    %v609 = vpack.c.b16 %v528, %v527
    %v610 = vpack.c.b16 %v530, %v529
    %v611 = vpack.c.b16 %v532, %v531
    %v612 = vpack.c.b16 %v534, %v533
    %v613 = vpack.c.b16 %v536, %v535
    %v614 = vpack.c.b16 %v538, %v537
    %v615 = vpack.c.b16 %v540, %v539
    %v616 = vpack.c.b16 %v542, %v541
    %v617 = vpack.c.b16 %v544, %v543
    %v618 = vpack.c.b16 %v546, %v545
    %v619 = vpack.c.b16 %v548, %v547
    %v620 = vpack.c.b16 %v550, %v549
    %v621 = vpack.c.b16 %v552, %v551
    %v622 = vpack.c.b16 %v554, %v553
    %v623 = vpack.c.b16 %v556, %v555
    %v624 = vpack.c.b16 %v558, %v557
    %v625 = vpack.c.b16 %v560, %v559
    %v626 = vpack.c.b16 %v562, %v561
    %v627 = vpack.c.b16 %v564, %v563
    %v707 = vunpack.c.l.b16 %v297
    %v708 = vunpack.c.l.b16 %v298
    %v709 = vunpack.c.l.b16 %v299
    %v710 = vunpack.c.l.b16 %v300
    %v711 = vunpack.c.l.b16 %v301
    %v712 = vunpack.c.l.b16 %v302
    %v713 = vunpack.c.l.b16 %v303
    %v714 = vunpack.c.l.b16 %v304
    %v715 = vunpack.c.l.b16 %v305
    %v716 = vunpack.c.l.b16 %v306
    %v717 = vunpack.c.l.b16 %v307
    %v718 = vunpack.c.l.b16 %v308
    %v719 = vunpack.c.l.b16 %v309
    %v720 = vunpack.c.l.b16 %v310
    %v721 = vunpack.c.l.b16 %v311
    %v722 = vunpack.c.l.b16 %v312
    %v723 = vpack.c.b16 %v708, %v707
    %v724 = vpack.c.b16 %v710, %v709
    %v725 = vpack.c.b16 %v712, %v711
    %v726 = vpack.c.b16 %v714, %v713
    %v727 = vpack.c.b16 %v716, %v715
    %v728 = vpack.c.b16 %v718, %v717
    %v729 = vpack.c.b16 %v720, %v719
    %v730 = vpack.c.b16 %v722, %v721
    %739 = vmatprep.subr.bf16.mxu0 0
    %740 = vmatpush1.bf16.msra.mxu0 %v723
    %741 = vmatprep.subr.bf16.mxu0 0
    %742 = vmatpush1.bf16.msra.mxu0 %v724
    %743 = vmatprep.subr.bf16.mxu0 0
    %744 = vmatpush1.bf16.msra.mxu0 %v725
    %745 = vmatprep.subr.bf16.mxu0 0
    %746 = vmatpush1.bf16.msra.mxu0 %v726
    %747 = vmatprep.subr.bf16.mxu0 0
    %748 = vmatpush1.bf16.msra.mxu0 %v727
    %749 = vmatprep.subr.bf16.mxu0 0
    %750 = vmatpush1.bf16.msra.mxu0 %v728
    %751 = vmatprep.subr.bf16.mxu0 0
    %752 = vmatpush1.bf16.msra.mxu0 %v729
    %753 = vmatprep.subr.bf16.mxu0 0
    %754 = vmatpush1.bf16.msra.mxu0 %v730
    %755 = vmatprep.subr.bf16.mxu0 0
    %756 = vmatpush1.bf16.msra.mxu0 0
    %757 = vmatprep.subr.bf16.mxu0 0
    %758 = vmatpush1.bf16.msra.mxu0 0
    %759 = vmatprep.subr.bf16.mxu0 0
    %760 = vmatpush1.bf16.msra.mxu0 0
    %761 = vmatprep.subr.bf16.mxu0 0
    %762 = vmatpush1.bf16.msra.mxu0 0
    %763 = vmatprep.subr.bf16.mxu0 0
    %764 = vmatpush1.bf16.msra.mxu0 0
    %765 = vmatprep.subr.bf16.mxu0 0
    %766 = vmatpush1.bf16.msra.mxu0 0
    %767 = vmatprep.subr.bf16.mxu0 0
    %768 = vmatpush1.bf16.msra.mxu0 0
    %769 = vmatprep.subr.bf16.mxu0 0
    %770 = vmatpush1.bf16.msra.mxu0 0
    %771 = vmatprep.mubr.bf16.mxu0 0
    %772 = vmatmul.mubr.bf16.gmra.mrb[0].mxu0 %v565
    %v773 = vpop.f32.mrb[0].mxu0
    %v774 = vadd.f32 0.0, %v773
    %v775 = vpop.f32.mrb[0].mxu0
    %v776 = vpop.f32.mrb[0].mxu0
    %v777 = vadd.f32 0.0, %v776
    %v778 = vpop.f32.mrb[0].mxu0
    %779 = vmatprep.mubr.bf16.mxu0 0
    %780 = vmatmul.mubr.bf16.gmra.mrb[0].mxu0 %v566
    %v781 = vpop.f32.mrb[0].mxu0
    %v782 = vadd.f32 0.0, %v781
    %v783 = vpop.f32.mrb[0].mxu0
    %v784 = vpop.f32.mrb[0].mxu0
    %v785 = vadd.f32 0.0, %v784
    %v786 = vpop.f32.mrb[0].mxu0
    %787 = vmatprep.mubr.bf16.mxu0 0
    %788 = vmatmul.mubr.bf16.gmra.mrb[0].mxu0 %v567
    %v789 = vpop.f32.mrb[0].mxu0
    %v790 = vadd.f32 0.0, %v789
    %v791 = vpop.f32.mrb[0].mxu0
    %v792 = vpop.f32.mrb[0].mxu0
    %v793 = vadd.f32 0.0, %v792
    %v794 = vpop.f32.mrb[0].mxu0
    %795 = vmatprep.mubr.bf16.mxu0 0
    %796 = vmatmul.mubr.bf16.gmra.mrb[0].mxu0 %v568
    %v797 = vpop.f32.mrb[0].mxu0
    %v798 = vadd.f32 0.0, %v797
    %v799 = vpop.f32.mrb[0].mxu0
    %v800 = vpop.f32.mrb[0].mxu0
    %v801 = vadd.f32 0.0, %v800
    %v802 = vpop.f32.mrb[0].mxu0
    %803 = vmatprep.mubr.bf16.mxu0 0
    %804 = vmatmul.mubr.bf16.gmra.mrb[0].mxu0 %v569
    %v805 = vpop.f32.mrb[0].mxu0
    %v806 = vadd.f32 0.0, %v805
    %v807 = vpop.f32.mrb[0].mxu0
    %v808 = vpop.f32.mrb[0].mxu0
    %v809 = vadd.f32 0.0, %v808
    %v810 = vpop.f32.mrb[0].mxu0
    %811 = vmatprep.mubr.bf16.mxu0 0
    %812 = vmatmul.mubr.bf16.gmra.mrb[0].mxu0 %v570
    %v813 = vpop.f32.mrb[0].mxu0
    %v814 = vadd.f32 0.0, %v813
    %v815 = vpop.f32.mrb[0].mxu0
    %v816 = vpop.f32.mrb[0].mxu0
    %v817 = vadd.f32 0.0, %v816
    %v818 = vpop.f32.mrb[0].mxu0
    %819 = vmatprep.mubr.bf16.mxu0 0
    %820 = vmatmul.mubr.bf16.gmra.mrb[0].mxu0 %v571
    %v821 = vpop.f32.mrb[0].mxu0
    %v822 = vadd.f32 0.0, %v821
    %v823 = vpop.f32.mrb[0].mxu0
    %v824 = vpop.f32.mrb[0].mxu0
    %v825 = vadd.f32 0.0, %v824
    %v826 = vpop.f32.mrb[0].mxu0
    %827 = vmatprep.mubr.bf16.mxu0 0
    %828 = vmatmul.mubr.bf16.gmra.mrb[0].mxu0 %v572
    %v829 = vpop.f32.mrb[0].mxu0
    %v830 = vadd.f32 0.0, %v829
    %v831 = vpop.f32.mrb[0].mxu0
    %v832 = vpop.f32.mrb[0].mxu0
    %v833 = vadd.f32 0.0, %v832
    %v834 = vpop.f32.mrb[0].mxu0
    %835 = vmatprep.mubr.bf16.mxu0 0
    %836 = vmatmul.mubr.bf16.gmra.mrb[0].mxu0 %v573
    %v837 = vpop.f32.mrb[0].mxu0
    %v838 = vadd.f32 0.0, %v837
    %v839 = vpop.f32.mrb[0].mxu0
    %v840 = vpop.f32.mrb[0].mxu0
    %v841 = vadd.f32 0.0, %v840
    %v842 = vpop.f32.mrb[0].mxu0
    %843 = vmatprep.mubr.bf16.mxu0 0
    %844 = vmatmul.mubr.bf16.gmra.mrb[0].mxu0 %v574
    %v845 = vpop.f32.mrb[0].mxu0
    %v846 = vadd.f32 0.0, %v845
    %v847 = vpop.f32.mrb[0].mxu0
    %v848 = vpop.f32.mrb[0].mxu0
    %v849 = vadd.f32 0.0, %v848
    %v850 = vpop.f32.mrb[0].mxu0
    %851 = vmatprep.mubr.bf16.mxu0 0
    %852 = vmatmul.mubr.bf16.gmra.mrb[0].mxu0 %v575
    %v853 = vpop.f32.mrb[0].mxu0
    %v854 = vadd.f32 0.0, %v853
    %v855 = vpop.f32.mrb[0].mxu0
    %v856 = vpop.f32.mrb[0].mxu0
    %v857 = vadd.f32 0.0, %v856
    %v858 = vpop.f32.mrb[0].mxu0
    %859 = vmatprep.mubr.bf16.mxu0 0
    %860 = vmatmul.mubr.bf16.gmra.mrb[0].mxu0 %v576
    %v861 = vpop.f32.mrb[0].mxu0
    %v862 = vadd.f32 0.0, %v861
    %v863 = vpop.f32.mrb[0].mxu0
    %v864 = vpop.f32.mrb[0].mxu0
    %v865 = vadd.f32 0.0, %v864
    %v866 = vpop.f32.mrb[0].mxu0
    %867 = vmatprep.mubr.bf16.mxu0 0
    %868 = vmatmul.mubr.bf16.gmra.mrb[0].mxu0 %v577
    %v869 = vpop.f32.mrb[0].mxu0
    %v870 = vadd.f32 0.0, %v869
    %v871 = vpop.f32.mrb[0].mxu0
    %v872 = vpop.f32.mrb[0].mxu0
    %v873 = vadd.f32 0.0, %v872
    %v874 = vpop.f32.mrb[0].mxu0
    %875 = vmatprep.mubr.bf16.mxu0 0
    %876 = vmatmul.mubr.bf16.gmra.mrb[0].mxu0 %v578
    %v877 = vpop.f32.mrb[0].mxu0
    %v878 = vadd.f32 0.0, %v877
    %v879 = vpop.f32.mrb[0].mxu0
    %v880 = vpop.f32.mrb[0].mxu0
    %v881 = vadd.f32 0.0, %v880
    %v882 = vpop.f32.mrb[0].mxu0
    %883 = vmatprep.mubr.bf16.mxu0 0
    %884 = vmatmul.mubr.bf16.gmra.mrb[0].mxu0 %v579
    %v885 = vpop.f32.mrb[0].mxu0
    %v886 = vadd.f32 0.0, %v885
    %v887 = vpop.f32.mrb[0].mxu0
    %v888 = vpop.f32.mrb[0].mxu0
    %v889 = vadd.f32 0.0, %v888
    %v890 = vpop.f32.mrb[0].mxu0
    %891 = vmatprep.mubr.bf16.mxu0 0
    %892 = vmatmul.mubr.bf16.gmra.mrb[0].mxu0 %v580
    %v893 = vpop.f32.mrb[0].mxu0
    %v894 = vadd.f32 0.0, %v893
    %v895 = vpop.f32.mrb[0].mxu0
    %v896 = vpop.f32.mrb[0].mxu0
    %v897 = vadd.f32 0.0, %v896
    %v898 = vpop.f32.mrb[0].mxu0
    %899 = vmatprep.mubr.bf16.mxu0 0
    %900 = vmatmul.mubr.bf16.gmra.mrb[0].mxu0 %v581
    %v901 = vpop.f32.mrb[0].mxu0
    %v902 = vadd.f32 0.0, %v901
    %v903 = vpop.f32.mrb[0].mxu0
    %v904 = vpop.f32.mrb[0].mxu0
    %v905 = vadd.f32 0.0, %v904
    %v906 = vpop.f32.mrb[0].mxu0
    %907 = vmatprep.mubr.bf16.mxu0 0
    %908 = vmatmul.mubr.bf16.gmra.mrb[0].mxu0 %v582
    %v909 = vpop.f32.mrb[0].mxu0
    %v910 = vadd.f32 0.0, %v909
    %v911 = vpop.f32.mrb[0].mxu0
    %v912 = vpop.f32.mrb[0].mxu0
    %v913 = vadd.f32 0.0, %v912
    %v914 = vpop.f32.mrb[0].mxu0
    %915 = vmatprep.mubr.bf16.mxu0 0
    %916 = vmatmul.mubr.bf16.gmra.mrb[0].mxu0 %v583
    %v917 = vpop.f32.mrb[0].mxu0
    %v918 = vadd.f32 0.0, %v917
    %v919 = vpop.f32.mrb[0].mxu0
    %v920 = vpop.f32.mrb[0].mxu0
    %v921 = vadd.f32 0.0, %v920
    %v922 = vpop.f32.mrb[0].mxu0
    %923 = vmatprep.mubr.bf16.mxu0 0
    %924 = vmatmul.mubr.bf16.gmra.mrb[0].mxu0 %v584
    %v925 = vpop.f32.mrb[0].mxu0
    %v926 = vadd.f32 0.0, %v925
    %v927 = vpop.f32.mrb[0].mxu0
    %v928 = vpop.f32.mrb[0].mxu0
    %v929 = vadd.f32 0.0, %v928
    %v930 = vpop.f32.mrb[0].mxu0
    %931 = vmatprep.mubr.bf16.mxu0 0
    %932 = vmatmul.mubr.bf16.gmra.mrb[0].mxu0 %v585
    %v933 = vpop.f32.mrb[0].mxu0
    %v934 = vadd.f32 0.0, %v933
    %v935 = vpop.f32.mrb[0].mxu0
    %v936 = vpop.f32.mrb[0].mxu0
    %v937 = vadd.f32 0.0, %v936
    %v938 = vpop.f32.mrb[0].mxu0
    %939 = vmatprep.mubr.bf16.mxu0 0
    %940 = vmatmul.mubr.bf16.gmra.mrb[0].mxu0 %v586
    %v941 = vpop.f32.mrb[0].mxu0
    %v942 = vadd.f32 0.0, %v941
    %v943 = vpop.f32.mrb[0].mxu0
    %v944 = vpop.f32.mrb[0].mxu0
    %v945 = vadd.f32 0.0, %v944
    %v946 = vpop.f32.mrb[0].mxu0
    %947 = vmatprep.mubr.bf16.mxu0 0
    %948 = vmatmul.mubr.bf16.gmra.mrb[0].mxu0 %v587
    %v949 = vpop.f32.mrb[0].mxu0
    %v950 = vadd.f32 0.0, %v949
    %v951 = vpop.f32.mrb[0].mxu0
    %v952 = vpop.f32.mrb[0].mxu0
    %v953 = vadd.f32 0.0, %v952
    %v954 = vpop.f32.mrb[0].mxu0
    %955 = vmatprep.mubr.bf16.mxu0 0
    %956 = vmatmul.mubr.bf16.gmra.mrb[0].mxu0 %v588
    %v957 = vpop.f32.mrb[0].mxu0
    %v958 = vadd.f32 0.0, %v957
    %v959 = vpop.f32.mrb[0].mxu0
    %v960 = vpop.f32.mrb[0].mxu0
    %v961 = vadd.f32 0.0, %v960
    %v962 = vpop.f32.mrb[0].mxu0
    %963 = vmatprep.mubr.bf16.mxu0 0
    %964 = vmatmul.mubr.bf16.gmra.mrb[0].mxu0 %v589
    %v965 = vpop.f32.mrb[0].mxu0
    %v966 = vadd.f32 0.0, %v965
    %v967 = vpop.f32.mrb[0].mxu0
    %v968 = vpop.f32.mrb[0].mxu0
    %v969 = vadd.f32 0.0, %v968
    %v970 = vpop.f32.mrb[0].mxu0
    %971 = vmatprep.mubr.bf16.mxu0 0
    %972 = vmatmul.mubr.bf16.gmra.mrb[0].mxu0 %v590
    %v973 = vpop.f32.mrb[0].mxu0
    %v974 = vadd.f32 0.0, %v973
    %v975 = vpop.f32.mrb[0].mxu0
    %v976 = vpop.f32.mrb[0].mxu0
    %v977 = vadd.f32 0.0, %v976
    %v978 = vpop.f32.mrb[0].mxu0
    %979 = vmatprep.mubr.bf16.mxu0 0
    %980 = vmatmul.mubr.bf16.gmra.mrb[0].mxu0 %v591
    %v981 = vpop.f32.mrb[0].mxu0
    %v982 = vadd.f32 0.0, %v981
    %v983 = vpop.f32.mrb[0].mxu0
    %v984 = vpop.f32.mrb[0].mxu0
    %v985 = vadd.f32 0.0, %v984
    %v986 = vpop.f32.mrb[0].mxu0
    %987 = vmatprep.mubr.bf16.mxu0 0
    %988 = vmatmul.mubr.bf16.gmra.mrb[0].mxu0 %v592
    %v989 = vpop.f32.mrb[0].mxu0
    %v990 = vadd.f32 0.0, %v989
    %v991 = vpop.f32.mrb[0].mxu0
    %v992 = vpop.f32.mrb[0].mxu0
    %v993 = vadd.f32 0.0, %v992
    %v994 = vpop.f32.mrb[0].mxu0
    %995 = vmatprep.mubr.bf16.mxu0 0
    %996 = vmatmul.mubr.bf16.gmra.mrb[0].mxu0 %v593
    %v997 = vpop.f32.mrb[0].mxu0
    %v998 = vadd.f32 0.0, %v997
    %v999 = vpop.f32.mrb[0].mxu0
    %v1000 = vpop.f32.mrb[0].mxu0
    %v1001 = vadd.f32 0.0, %v1000
    %v1002 = vpop.f32.mrb[0].mxu0
    %1003 = vmatprep.mubr.bf16.mxu0 0
    %1004 = vmatmul.mubr.bf16.gmra.mrb[0].mxu0 %v594
    %v1005 = vpop.f32.mrb[0].mxu0
    %v1006 = vadd.f32 0.0, %v1005
    %v1007 = vpop.f32.mrb[0].mxu0
    %v1008 = vpop.f32.mrb[0].mxu0
    %v1009 = vadd.f32 0.0, %v1008
    %v1010 = vpop.f32.mrb[0].mxu0
    %1011 = vmatprep.mubr.bf16.mxu0 0
    %1012 = vmatmul.mubr.bf16.gmra.mrb[0].mxu0 %v595
    %v1013 = vpop.f32.mrb[0].mxu0
    %v1014 = vadd.f32 0.0, %v1013
    %v1015 = vpop.f32.mrb[0].mxu0
    %v1016 = vpop.f32.mrb[0].mxu0
    %v1017 = vadd.f32 0.0, %v1016
    %v1018 = vpop.f32.mrb[0].mxu0
    %1019 = vmatprep.mubr.bf16.mxu0 0
    %1020 = vmatmul.mubr.bf16.gmra.mrb[0].mxu0 %v596
    %v1021 = vpop.f32.mrb[0].mxu0
    %v1022 = vadd.f32 0.0, %v1021
    %v1023 = vpop.f32.mrb[0].mxu0
    %v1024 = vpop.f32.mrb[0].mxu0
    %v1025 = vadd.f32 0.0, %v1024
    %v1026 = vpop.f32.mrb[0].mxu0
    %1027 = vmatprep.mubr.bf16.mxu0 0
    %1028 = vmatmul.mubr.bf16.gmra.mrb[0].mxu0 %v597
    %v1029 = vpop.f32.mrb[0].mxu0
    %v1030 = vadd.f32 0.0, %v1029
    %v1031 = vpop.f32.mrb[0].mxu0
    %v1032 = vpop.f32.mrb[0].mxu0
    %v1033 = vadd.f32 0.0, %v1032
    %v1034 = vpop.f32.mrb[0].mxu0
    %1035 = vmatprep.mubr.bf16.mxu0 0
    %1036 = vmatmul.mubr.bf16.gmra.mrb[0].mxu0 %v598
    %v1037 = vpop.f32.mrb[0].mxu0
    %v1038 = vadd.f32 0.0, %v1037
    %v1039 = vpop.f32.mrb[0].mxu0
    %v1040 = vpop.f32.mrb[0].mxu0
    %v1041 = vadd.f32 0.0, %v1040
    %v1042 = vpop.f32.mrb[0].mxu0
    %1043 = vmatprep.mubr.bf16.mxu0 0
    %1044 = vmatmul.mubr.bf16.gmra.mrb[0].mxu0 %v599
    %v1045 = vpop.f32.mrb[0].mxu0
    %v1046 = vadd.f32 0.0, %v1045
    %v1047 = vpop.f32.mrb[0].mxu0
    %v1048 = vpop.f32.mrb[0].mxu0
    %v1049 = vadd.f32 0.0, %v1048
    %v1050 = vpop.f32.mrb[0].mxu0
    %1051 = vmatprep.mubr.bf16.mxu0 0
    %1052 = vmatmul.mubr.bf16.gmra.mrb[0].mxu0 %v600
    %v1053 = vpop.f32.mrb[0].mxu0
    %v1054 = vadd.f32 0.0, %v1053
    %v1055 = vpop.f32.mrb[0].mxu0
    %v1056 = vpop.f32.mrb[0].mxu0
    %v1057 = vadd.f32 0.0, %v1056
    %v1058 = vpop.f32.mrb[0].mxu0
    %1059 = vmatprep.mubr.bf16.mxu0 0
    %1060 = vmatmul.mubr.bf16.gmra.mrb[0].mxu0 %v601
    %v1061 = vpop.f32.mrb[0].mxu0
    %v1062 = vadd.f32 0.0, %v1061
    %v1063 = vpop.f32.mrb[0].mxu0
    %v1064 = vpop.f32.mrb[0].mxu0
    %v1065 = vadd.f32 0.0, %v1064
    %v1066 = vpop.f32.mrb[0].mxu0
    %1067 = vmatprep.mubr.bf16.mxu0 0
    %1068 = vmatmul.mubr.bf16.gmra.mrb[0].mxu0 %v602
    %v1069 = vpop.f32.mrb[0].mxu0
    %v1070 = vadd.f32 0.0, %v1069
    %v1071 = vpop.f32.mrb[0].mxu0
    %v1072 = vpop.f32.mrb[0].mxu0
    %v1073 = vadd.f32 0.0, %v1072
    %v1074 = vpop.f32.mrb[0].mxu0
    %1075 = vmatprep.mubr.bf16.mxu0 0
    %1076 = vmatmul.mubr.bf16.gmra.mrb[0].mxu0 %v603
    %v1077 = vpop.f32.mrb[0].mxu0
    %v1078 = vadd.f32 0.0, %v1077
    %v1079 = vpop.f32.mrb[0].mxu0
    %v1080 = vpop.f32.mrb[0].mxu0
    %v1081 = vadd.f32 0.0, %v1080
    %v1082 = vpop.f32.mrb[0].mxu0
    %1083 = vmatprep.mubr.bf16.mxu0 0
    %1084 = vmatmul.mubr.bf16.gmra.mrb[0].mxu0 %v604
    %v1085 = vpop.f32.mrb[0].mxu0
    %v1086 = vadd.f32 0.0, %v1085
    %v1087 = vpop.f32.mrb[0].mxu0
    %v1088 = vpop.f32.mrb[0].mxu0
    %v1089 = vadd.f32 0.0, %v1088
    %v1090 = vpop.f32.mrb[0].mxu0
    %1091 = vmatprep.mubr.bf16.mxu0 0
    %1092 = vmatmul.mubr.bf16.gmra.mrb[0].mxu0 %v605
    %v1093 = vpop.f32.mrb[0].mxu0
    %v1094 = vadd.f32 0.0, %v1093
    %v1095 = vpop.f32.mrb[0].mxu0
    %v1096 = vpop.f32.mrb[0].mxu0
    %v1097 = vadd.f32 0.0, %v1096
    %v1098 = vpop.f32.mrb[0].mxu0
    %1099 = vmatprep.mubr.bf16.mxu0 0
    %1100 = vmatmul.mubr.bf16.gmra.mrb[0].mxu0 %v606
    %v1101 = vpop.f32.mrb[0].mxu0
    %v1102 = vadd.f32 0.0, %v1101
    %v1103 = vpop.f32.mrb[0].mxu0
    %v1104 = vpop.f32.mrb[0].mxu0
    %v1105 = vadd.f32 0.0, %v1104
    %v1106 = vpop.f32.mrb[0].mxu0
    %1107 = vmatprep.mubr.bf16.mxu0 0
    %1108 = vmatmul.mubr.bf16.gmra.mrb[0].mxu0 %v607
    %v1109 = vpop.f32.mrb[0].mxu0
    %v1110 = vadd.f32 0.0, %v1109
    %v1111 = vpop.f32.mrb[0].mxu0
    %v1112 = vpop.f32.mrb[0].mxu0
    %v1113 = vadd.f32 0.0, %v1112
    %v1114 = vpop.f32.mrb[0].mxu0
    %1115 = vmatprep.mubr.bf16.mxu0 0
    %1116 = vmatmul.mubr.bf16.gmra.mrb[0].mxu0 %v608
    %v1117 = vpop.f32.mrb[0].mxu0
    %v1118 = vadd.f32 0.0, %v1117
    %v1119 = vpop.f32.mrb[0].mxu0
    %v1120 = vpop.f32.mrb[0].mxu0
    %v1121 = vadd.f32 0.0, %v1120
    %v1122 = vpop.f32.mrb[0].mxu0
    %1123 = vmatprep.mubr.bf16.mxu0 0
    %1124 = vmatmul.mubr.bf16.gmra.mrb[0].mxu0 %v609
    %v1125 = vpop.f32.mrb[0].mxu0
    %v1126 = vadd.f32 0.0, %v1125
    %v1127 = vpop.f32.mrb[0].mxu0
    %v1128 = vpop.f32.mrb[0].mxu0
    %v1129 = vadd.f32 0.0, %v1128
    %v1130 = vpop.f32.mrb[0].mxu0
    %1131 = vmatprep.mubr.bf16.mxu0 0
    %1132 = vmatmul.mubr.bf16.gmra.mrb[0].mxu0 %v610
    %v1133 = vpop.f32.mrb[0].mxu0
    %v1134 = vadd.f32 0.0, %v1133
    %v1135 = vpop.f32.mrb[0].mxu0
    %v1136 = vpop.f32.mrb[0].mxu0
    %v1137 = vadd.f32 0.0, %v1136
    %v1138 = vpop.f32.mrb[0].mxu0
    %1139 = vmatprep.mubr.bf16.mxu0 0
    %1140 = vmatmul.mubr.bf16.gmra.mrb[0].mxu0 %v611
    %v1141 = vpop.f32.mrb[0].mxu0
    %v1142 = vadd.f32 0.0, %v1141
    %v1143 = vpop.f32.mrb[0].mxu0
    %v1144 = vpop.f32.mrb[0].mxu0
    %v1145 = vadd.f32 0.0, %v1144
    %v1146 = vpop.f32.mrb[0].mxu0
    %1147 = vmatprep.mubr.bf16.mxu0 0
    %1148 = vmatmul.mubr.bf16.gmra.mrb[0].mxu0 %v612
    %v1149 = vpop.f32.mrb[0].mxu0
    %v1150 = vadd.f32 0.0, %v1149
    %v1151 = vpop.f32.mrb[0].mxu0
    %v1152 = vpop.f32.mrb[0].mxu0
    %v1153 = vadd.f32 0.0, %v1152
    %v1154 = vpop.f32.mrb[0].mxu0
    %1155 = vmatprep.mubr.bf16.mxu0 0
    %1156 = vmatmul.mubr.bf16.gmra.mrb[0].mxu0 %v613
    %v1157 = vpop.f32.mrb[0].mxu0
    %v1158 = vadd.f32 0.0, %v1157
    %v1159 = vpop.f32.mrb[0].mxu0
    %v1160 = vpop.f32.mrb[0].mxu0
    %v1161 = vadd.f32 0.0, %v1160
    %v1162 = vpop.f32.mrb[0].mxu0
    %1163 = vmatprep.mubr.bf16.mxu0 0
    %1164 = vmatmul.mubr.bf16.gmra.mrb[0].mxu0 %v614
    %v1165 = vpop.f32.mrb[0].mxu0
    %v1166 = vadd.f32 0.0, %v1165
    %v1167 = vpop.f32.mrb[0].mxu0
    %v1168 = vpop.f32.mrb[0].mxu0
    %v1169 = vadd.f32 0.0, %v1168
    %v1170 = vpop.f32.mrb[0].mxu0
    %1171 = vmatprep.mubr.bf16.mxu0 0
    %1172 = vmatmul.mubr.bf16.gmra.mrb[0].mxu0 %v615
    %v1173 = vpop.f32.mrb[0].mxu0
    %v1174 = vadd.f32 0.0, %v1173
    %v1175 = vpop.f32.mrb[0].mxu0
    %v1176 = vpop.f32.mrb[0].mxu0
    %v1177 = vadd.f32 0.0, %v1176
    %v1178 = vpop.f32.mrb[0].mxu0
    %1179 = vmatprep.mubr.bf16.mxu0 0
    %1180 = vmatmul.mubr.bf16.gmra.mrb[0].mxu0 %v616
    %v1181 = vpop.f32.mrb[0].mxu0
    %v1182 = vadd.f32 0.0, %v1181
    %v1183 = vpop.f32.mrb[0].mxu0
    %v1184 = vpop.f32.mrb[0].mxu0
    %v1185 = vadd.f32 0.0, %v1184
    %v1186 = vpop.f32.mrb[0].mxu0
    %1187 = vmatprep.mubr.bf16.mxu0 0
    %1188 = vmatmul.mubr.bf16.gmra.mrb[0].mxu0 %v617
    %v1189 = vpop.f32.mrb[0].mxu0
    %v1190 = vadd.f32 0.0, %v1189
    %v1191 = vpop.f32.mrb[0].mxu0
    %v1192 = vpop.f32.mrb[0].mxu0
    %v1193 = vadd.f32 0.0, %v1192
    %v1194 = vpop.f32.mrb[0].mxu0
    %1195 = vmatprep.mubr.bf16.mxu0 0
    %1196 = vmatmul.mubr.bf16.gmra.mrb[0].mxu0 %v618
    %v1197 = vpop.f32.mrb[0].mxu0
    %v1198 = vadd.f32 0.0, %v1197
    %v1199 = vpop.f32.mrb[0].mxu0
    %v1200 = vpop.f32.mrb[0].mxu0
    %v1201 = vadd.f32 0.0, %v1200
    %v1202 = vpop.f32.mrb[0].mxu0
    %1203 = vmatprep.mubr.bf16.mxu0 0
    %1204 = vmatmul.mubr.bf16.gmra.mrb[0].mxu0 %v619
    %v1205 = vpop.f32.mrb[0].mxu0
    %v1206 = vadd.f32 0.0, %v1205
    %v1207 = vpop.f32.mrb[0].mxu0
    %v1208 = vpop.f32.mrb[0].mxu0
    %v1209 = vadd.f32 0.0, %v1208
    %v1210 = vpop.f32.mrb[0].mxu0
    %1211 = vmatprep.mubr.bf16.mxu0 0
    %1212 = vmatmul.mubr.bf16.gmra.mrb[0].mxu0 %v620
    %v1213 = vpop.f32.mrb[0].mxu0
    %v1214 = vadd.f32 0.0, %v1213
    %v1215 = vpop.f32.mrb[0].mxu0
    %v1216 = vpop.f32.mrb[0].mxu0
    %v1217 = vadd.f32 0.0, %v1216
    %v1218 = vpop.f32.mrb[0].mxu0
    %1219 = vmatprep.mubr.bf16.mxu0 0
    %1220 = vmatmul.mubr.bf16.gmra.mrb[0].mxu0 %v621
    %v1221 = vpop.f32.mrb[0].mxu0
    %v1222 = vadd.f32 0.0, %v1221
    %v1223 = vpop.f32.mrb[0].mxu0
    %v1224 = vpop.f32.mrb[0].mxu0
    %v1225 = vadd.f32 0.0, %v1224
    %v1226 = vpop.f32.mrb[0].mxu0
    %1227 = vmatprep.mubr.bf16.mxu0 0
    %1228 = vmatmul.mubr.bf16.gmra.mrb[0].mxu0 %v622
    %v1229 = vpop.f32.mrb[0].mxu0
    %v1230 = vadd.f32 0.0, %v1229
    %v1231 = vpop.f32.mrb[0].mxu0
    %v1232 = vpop.f32.mrb[0].mxu0
    %v1233 = vadd.f32 0.0, %v1232
    %v1234 = vpop.f32.mrb[0].mxu0
    %1235 = vmatprep.mubr.bf16.mxu0 0
    %1236 = vmatmul.mubr.bf16.gmra.mrb[0].mxu0 %v623
    %v1237 = vpop.f32.mrb[0].mxu0
    %v1238 = vadd.f32 0.0, %v1237
    %v1239 = vpop.f32.mrb[0].mxu0
    %v1240 = vpop.f32.mrb[0].mxu0
    %v1241 = vadd.f32 0.0, %v1240
    %v1242 = vpop.f32.mrb[0].mxu0
    %1243 = vmatprep.mubr.bf16.mxu0 0
    %1244 = vmatmul.mubr.bf16.gmra.mrb[0].mxu0 %v624
    %v1245 = vpop.f32.mrb[0].mxu0
    %v1246 = vadd.f32 0.0, %v1245
    %v1247 = vpop.f32.mrb[0].mxu0
    %v1248 = vpop.f32.mrb[0].mxu0
    %v1249 = vadd.f32 0.0, %v1248
    %v1250 = vpop.f32.mrb[0].mxu0
    %1251 = vmatprep.mubr.bf16.mxu0 0
    %1252 = vmatmul.mubr.bf16.gmra.mrb[0].mxu0 %v625
    %v1253 = vpop.f32.mrb[0].mxu0
    %v1254 = vadd.f32 0.0, %v1253
    %v1255 = vpop.f32.mrb[0].mxu0
    %v1256 = vpop.f32.mrb[0].mxu0
    %v1257 = vadd.f32 0.0, %v1256
    %v1258 = vpop.f32.mrb[0].mxu0
    %1259 = vmatprep.mubr.bf16.mxu0 0
    %1260 = vmatmul.mubr.bf16.gmra.mrb[0].mxu0 %v626
    %v1261 = vpop.f32.mrb[0].mxu0
    %v1262 = vadd.f32 0.0, %v1261
    %v1263 = vpop.f32.mrb[0].mxu0
    %v1264 = vpop.f32.mrb[0].mxu0
    %v1265 = vadd.f32 0.0, %v1264
    %v1266 = vpop.f32.mrb[0].mxu0
    %1267 = vmatprep.mubr.bf16.mxu0 0
    %1268 = vmatmul.mubr.bf16.gmra.mrb[0].mxu0 %v627
    %v1269 = vpop.f32.mrb[0].mxu0
    %v1270 = vadd.f32 0.0, %v1269
    %v1271 = vpop.f32.mrb[0].mxu0
    %v1272 = vpop.f32.mrb[0].mxu0
    %v1273 = vadd.f32 0.0, %v1272
    %v1274 = vpop.f32.mrb[0].mxu0
    %1275 = vdwg.mxu0
    %v1402 = vunpack.c.l.b16 %v29
    %v1403 = vunpack.c.l.b16 %v30
    %v1404 = vunpack.c.l.b16 %v31
    %v1405 = vunpack.c.l.b16 %v32
    %v1406 = vunpack.c.l.b16 %v33
    %v1407 = vunpack.c.l.b16 %v34
    %v1408 = vunpack.c.l.b16 %v35
    %v1409 = vunpack.c.l.b16 %v36
    %v1410 = vunpack.c.l.b16 %v37
    %v1411 = vunpack.c.l.b16 %v38
    %v1412 = vunpack.c.l.b16 %v39
    %v1413 = vunpack.c.l.b16 %v40
    %v1414 = vunpack.c.l.b16 %v41
    %v1415 = vunpack.c.l.b16 %v42
    %v1416 = vunpack.c.l.b16 %v43
    %v1417 = vunpack.c.l.b16 %v44
    %v1418 = vunpack.c.l.b16 %v45
    %v1419 = vunpack.c.l.b16 %v46
    %v1420 = vunpack.c.l.b16 %v47
    %v1421 = vunpack.c.l.b16 %v48
    %v1422 = vunpack.c.l.b16 %v49
    %v1423 = vunpack.c.l.b16 %v50
    %v1424 = vunpack.c.l.b16 %v51
    %v1425 = vunpack.c.l.b16 %v52
    %v1426 = vunpack.c.l.b16 %v53
    %v1427 = vunpack.c.l.b16 %v54
    %v1428 = vunpack.c.l.b16 %v55
    %v1429 = vunpack.c.l.b16 %v56
    %v1430 = vunpack.c.l.b16 %v57
    %v1431 = vunpack.c.l.b16 %v58
    %v1432 = vunpack.c.l.b16 %v59
    %v1433 = vunpack.c.l.b16 %v60
    %v1434 = vunpack.c.l.b16 %v61
    %v1435 = vunpack.c.l.b16 %v62
    %v1436 = vunpack.c.l.b16 %v63
    %v1437 = vunpack.c.l.b16 %v64
    %v1438 = vunpack.c.l.b16 %v65
    %v1439 = vunpack.c.l.b16 %v66
    %v1440 = vunpack.c.l.b16 %v67
    %v1441 = vunpack.c.l.b16 %v68
    %v1442 = vunpack.c.l.b16 %v69
    %v1443 = vunpack.c.l.b16 %v70
    %v1444 = vunpack.c.l.b16 %v71
    %v1445 = vunpack.c.l.b16 %v72
    %v1446 = vunpack.c.l.b16 %v73
    %v1447 = vunpack.c.l.b16 %v74
    %v1448 = vunpack.c.l.b16 %v75
    %v1449 = vunpack.c.l.b16 %v76
    %v1450 = vunpack.c.l.b16 %v77
    %v1451 = vunpack.c.l.b16 %v78
    %v1452 = vunpack.c.l.b16 %v79
    %v1453 = vunpack.c.l.b16 %v80
    %v1454 = vunpack.c.l.b16 %v81
    %v1455 = vunpack.c.l.b16 %v82
    %v1456 = vunpack.c.l.b16 %v83
    %v1457 = vunpack.c.l.b16 %v84
    %v1458 = vunpack.c.l.b16 %v85
    %v1459 = vunpack.c.l.b16 %v86
    %v1460 = vunpack.c.l.b16 %v87
    %v1461 = vunpack.c.l.b16 %v88
    %v1462 = vunpack.c.l.b16 %v89
    %v1463 = vunpack.c.l.b16 %v90
    %v1464 = vunpack.c.l.b16 %v91
    %v1465 = vunpack.c.l.b16 %v92
    %v1466 = vunpack.c.l.b16 %v93
    %v1467 = vunpack.c.l.b16 %v94
    %v1468 = vunpack.c.l.b16 %v95
    %v1469 = vunpack.c.l.b16 %v96
    %v1470 = vunpack.c.l.b16 %v97
    %v1471 = vunpack.c.l.b16 %v98
    %v1472 = vunpack.c.l.b16 %v99
    %v1473 = vunpack.c.l.b16 %v100
    %v1474 = vunpack.c.l.b16 %v101
    %v1475 = vunpack.c.l.b16 %v102
    %v1476 = vunpack.c.l.b16 %v103
    %v1477 = vunpack.c.l.b16 %v104
    %v1478 = vunpack.c.l.b16 %v105
    %v1479 = vunpack.c.l.b16 %v106
    %v1480 = vunpack.c.l.b16 %v107
    %v1481 = vunpack.c.l.b16 %v108
    %v1482 = vunpack.c.l.b16 %v109
    %v1483 = vunpack.c.l.b16 %v110
    %v1484 = vunpack.c.l.b16 %v111
    %v1485 = vunpack.c.l.b16 %v112
    %v1486 = vunpack.c.l.b16 %v113
    %v1487 = vunpack.c.l.b16 %v114
    %v1488 = vunpack.c.l.b16 %v115
    %v1489 = vunpack.c.l.b16 %v116
    %v1490 = vunpack.c.l.b16 %v117
    %v1491 = vunpack.c.l.b16 %v118
    %v1492 = vunpack.c.l.b16 %v119
    %v1493 = vunpack.c.l.b16 %v120
    %v1494 = vunpack.c.l.b16 %v121
    %v1495 = vunpack.c.l.b16 %v122
    %v1496 = vunpack.c.l.b16 %v123
    %v1497 = vunpack.c.l.b16 %v124
    %v1498 = vunpack.c.l.b16 %v125
    %v1499 = vunpack.c.l.b16 %v126
    %v1500 = vunpack.c.l.b16 %v127
    %v1501 = vunpack.c.l.b16 %v128
    %v1502 = vunpack.c.l.b16 %v129
    %v1503 = vunpack.c.l.b16 %v130
    %v1504 = vunpack.c.l.b16 %v131
    %v1505 = vunpack.c.l.b16 %v132
    %v1506 = vunpack.c.l.b16 %v133
    %v1507 = vunpack.c.l.b16 %v134
    %v1508 = vunpack.c.l.b16 %v135
    %v1509 = vunpack.c.l.b16 %v136
    %v1510 = vunpack.c.l.b16 %v137
    %v1511 = vunpack.c.l.b16 %v138
    %v1512 = vunpack.c.l.b16 %v139
    %v1513 = vunpack.c.l.b16 %v140
    %v1514 = vunpack.c.l.b16 %v141
    %v1515 = vunpack.c.l.b16 %v142
    %v1516 = vunpack.c.l.b16 %v143
    %v1517 = vunpack.c.l.b16 %v144
    %v1518 = vunpack.c.l.b16 %v145
    %v1519 = vunpack.c.l.b16 %v146
    %v1520 = vunpack.c.l.b16 %v147
    %v1521 = vunpack.c.l.b16 %v148
    %v1522 = vunpack.c.l.b16 %v149
    %v1523 = vunpack.c.l.b16 %v150
    %v1524 = vunpack.c.l.b16 %v151
    %v1525 = vunpack.c.l.b16 %v152
    %v1526 = vunpack.c.l.b16 %v153
    %v1527 = vunpack.c.l.b16 %v154
    %v1528 = vpack.c.b16 %v1403, %v1402
    %v1529 = vpack.c.b16 %v1405, %v1404
    %v1530 = vpack.c.b16 %v1407, %v1406
    %v1531 = vpack.c.b16 %v1409, %v1408
    %v1532 = vpack.c.b16 %v1411, %v1410
    %v1533 = vpack.c.b16 %v1413, %v1412
    %v1534 = vpack.c.b16 %v1415, %v1414
    %v1535 = vpack.c.b16 %v1417, %v1416
    %v1536 = vpack.c.b16 %v1419, %v1418
    %v1537 = vpack.c.b16 %v1421, %v1420
    %v1538 = vpack.c.b16 %v1423, %v1422
    %v1539 = vpack.c.b16 %v1425, %v1424
    %v1540 = vpack.c.b16 %v1427, %v1426
    %v1541 = vpack.c.b16 %v1429, %v1428
    %v1542 = vpack.c.b16 %v1431, %v1430
    %v1543 = vpack.c.b16 %v1433, %v1432
    %v1544 = vpack.c.b16 %v1435, %v1434
    %v1545 = vpack.c.b16 %v1437, %v1436
    %v1546 = vpack.c.b16 %v1439, %v1438
    %v1547 = vpack.c.b16 %v1441, %v1440
    %v1548 = vpack.c.b16 %v1443, %v1442
    %v1549 = vpack.c.b16 %v1445, %v1444
    %v1550 = vpack.c.b16 %v1447, %v1446
    %v1551 = vpack.c.b16 %v1449, %v1448
    %v1552 = vpack.c.b16 %v1451, %v1450
    %v1553 = vpack.c.b16 %v1453, %v1452
    %v1554 = vpack.c.b16 %v1455, %v1454
    %v1555 = vpack.c.b16 %v1457, %v1456
    %v1556 = vpack.c.b16 %v1459, %v1458
    %v1557 = vpack.c.b16 %v1461, %v1460
    %v1558 = vpack.c.b16 %v1463, %v1462
    %v1559 = vpack.c.b16 %v1465, %v1464
    %v1560 = vpack.c.b16 %v1467, %v1466
    %v1561 = vpack.c.b16 %v1469, %v1468
    %v1562 = vpack.c.b16 %v1471, %v1470
    %v1563 = vpack.c.b16 %v1473, %v1472
    %v1564 = vpack.c.b16 %v1475, %v1474
    %v1565 = vpack.c.b16 %v1477, %v1476
    %v1566 = vpack.c.b16 %v1479, %v1478
    %v1567 = vpack.c.b16 %v1481, %v1480
    %v1568 = vpack.c.b16 %v1483, %v1482
    %v1569 = vpack.c.b16 %v1485, %v1484
    %v1570 = vpack.c.b16 %v1487, %v1486
    %v1571 = vpack.c.b16 %v1489, %v1488
    %v1572 = vpack.c.b16 %v1491, %v1490
    %v1573 = vpack.c.b16 %v1493, %v1492
    %v1574 = vpack.c.b16 %v1495, %v1494
    %v1575 = vpack.c.b16 %v1497, %v1496
    %v1576 = vpack.c.b16 %v1499, %v1498
    %v1577 = vpack.c.b16 %v1501, %v1500
    %v1578 = vpack.c.b16 %v1503, %v1502
    %v1579 = vpack.c.b16 %v1505, %v1504
    %v1580 = vpack.c.b16 %v1507, %v1506
    %v1581 = vpack.c.b16 %v1509, %v1508
    %v1582 = vpack.c.b16 %v1511, %v1510
    %v1583 = vpack.c.b16 %v1513, %v1512
    %v1584 = vpack.c.b16 %v1515, %v1514
    %v1585 = vpack.c.b16 %v1517, %v1516
    %v1586 = vpack.c.b16 %v1519, %v1518
    %v1587 = vpack.c.b16 %v1521, %v1520
    %v1588 = vpack.c.b16 %v1523, %v1522
    %v1589 = vpack.c.b16 %v1525, %v1524
    %v1590 = vpack.c.b16 %v1527, %v1526
    %v1670 = vunpack.c.l.b16 %v155
    %v1671 = vunpack.c.l.b16 %v156
    %v1672 = vunpack.c.l.b16 %v157
    %v1673 = vunpack.c.l.b16 %v158
    %v1674 = vunpack.c.l.b16 %v159
    %v1675 = vunpack.c.l.b16 %v160
    %v1676 = vunpack.c.l.b16 %v161
    %v1677 = vunpack.c.l.b16 %v162
    %v1678 = vunpack.c.l.b16 %v163
    %v1679 = vunpack.c.l.b16 %v164
    %v1680 = vunpack.c.l.b16 %v165
    %v1681 = vunpack.c.l.b16 %v166
    %v1682 = vunpack.c.l.b16 %v167
    %v1683 = vunpack.c.l.b16 %v168
    %v1684 = vunpack.c.l.b16 %v169
    %v1685 = vunpack.c.l.b16 %v170
    %v1686 = vpack.c.b16 %v1671, %v1670
    %v1687 = vpack.c.b16 %v1673, %v1672
    %v1688 = vpack.c.b16 %v1675, %v1674
    %v1689 = vpack.c.b16 %v1677, %v1676
    %v1690 = vpack.c.b16 %v1679, %v1678
    %v1691 = vpack.c.b16 %v1681, %v1680
    %v1692 = vpack.c.b16 %v1683, %v1682
    %v1693 = vpack.c.b16 %v1685, %v1684
    %1702 = vmatprep.subr.bf16.mxu0 0
    %1703 = vmatpush1.bf16.msra.mxu0 %v1686
    %1704 = vmatprep.subr.bf16.mxu0 0
    %1705 = vmatpush1.bf16.msra.mxu0 %v1687
    %1706 = vmatprep.subr.bf16.mxu0 0
    %1707 = vmatpush1.bf16.msra.mxu0 %v1688
    %1708 = vmatprep.subr.bf16.mxu0 0
    %1709 = vmatpush1.bf16.msra.mxu0 %v1689
    %1710 = vmatprep.subr.bf16.mxu0 0
    %1711 = vmatpush1.bf16.msra.mxu0 %v1690
    %1712 = vmatprep.subr.bf16.mxu0 0
    %1713 = vmatpush1.bf16.msra.mxu0 %v1691
    %1714 = vmatprep.subr.bf16.mxu0 0
    %1715 = vmatpush1.bf16.msra.mxu0 %v1692
    %1716 = vmatprep.subr.bf16.mxu0 0
    %1717 = vmatpush1.bf16.msra.mxu0 %v1693
    %1718 = vmatprep.subr.bf16.mxu0 0
    %1719 = vmatpush1.bf16.msra.mxu0 0
    %1720 = vmatprep.subr.bf16.mxu0 0
    %1721 = vmatpush1.bf16.msra.mxu0 0
    %1722 = vmatprep.subr.bf16.mxu0 0
    %1723 = vmatpush1.bf16.msra.mxu0 0
    %1724 = vmatprep.subr.bf16.mxu0 0
    %1725 = vmatpush1.bf16.msra.mxu0 0
    %1726 = vmatprep.subr.bf16.mxu0 0
    %1727 = vmatpush1.bf16.msra.mxu0 0
    %1728 = vmatprep.subr.bf16.mxu0 0
    %1729 = vmatpush1.bf16.msra.mxu0 0
    %1730 = vmatprep.subr.bf16.mxu0 0
    %1731 = vmatpush1.bf16.msra.mxu0 0
    %1732 = vmatprep.subr.bf16.mxu0 0
    %1733 = vmatpush1.bf16.msra.mxu0 0
    %1734 = vmatprep.mubr.bf16.mxu0 0
    %1735 = vmatmul.mubr.bf16.gmra.mrb[0].mxu0 %v1528
    %v1736 = vpop.f32.mrb[0].mxu0
    %v1737 = vadd.f32 %v774, %v1736
    %v1738 = vpop.f32.mrb[0].mxu0
    %v1739 = vpop.f32.mrb[0].mxu0
    %v1740 = vadd.f32 %v777, %v1739
    %v1741 = vpop.f32.mrb[0].mxu0
    %1742 = vmatprep.mubr.bf16.mxu0 0
    %1743 = vmatmul.mubr.bf16.gmra.mrb[0].mxu0 %v1529
    %v1744 = vpop.f32.mrb[0].mxu0
    %v1745 = vadd.f32 %v782, %v1744
    %v1746 = vpop.f32.mrb[0].mxu0
    %v1747 = vpop.f32.mrb[0].mxu0
    %v1748 = vadd.f32 %v785, %v1747
    %v1749 = vpop.f32.mrb[0].mxu0
    %1750 = vmatprep.mubr.bf16.mxu0 0
    %1751 = vmatmul.mubr.bf16.gmra.mrb[0].mxu0 %v1530
    %v1752 = vpop.f32.mrb[0].mxu0
    %v1753 = vadd.f32 %v790, %v1752
    %v1754 = vpop.f32.mrb[0].mxu0
    %v1755 = vpop.f32.mrb[0].mxu0
    %v1756 = vadd.f32 %v793, %v1755
    %v1757 = vpop.f32.mrb[0].mxu0
    %1758 = vmatprep.mubr.bf16.mxu0 0
    %1759 = vmatmul.mubr.bf16.gmra.mrb[0].mxu0 %v1531
    %v1760 = vpop.f32.mrb[0].mxu0
    %v1761 = vadd.f32 %v798, %v1760
    %v1762 = vpop.f32.mrb[0].mxu0
    %v1763 = vpop.f32.mrb[0].mxu0
    %v1764 = vadd.f32 %v801, %v1763
    %v1765 = vpop.f32.mrb[0].mxu0
    %1766 = vmatprep.mubr.bf16.mxu0 0
    %1767 = vmatmul.mubr.bf16.gmra.mrb[0].mxu0 %v1532
    %v1768 = vpop.f32.mrb[0].mxu0
    %v1769 = vadd.f32 %v806, %v1768
    %v1770 = vpop.f32.mrb[0].mxu0
    %v1771 = vpop.f32.mrb[0].mxu0
    %v1772 = vadd.f32 %v809, %v1771
    %v1773 = vpop.f32.mrb[0].mxu0
    %1774 = vmatprep.mubr.bf16.mxu0 0
    %1775 = vmatmul.mubr.bf16.gmra.mrb[0].mxu0 %v1533
    %v1776 = vpop.f32.mrb[0].mxu0
    %v1777 = vadd.f32 %v814, %v1776
    %v1778 = vpop.f32.mrb[0].mxu0
    %v1779 = vpop.f32.mrb[0].mxu0
    %v1780 = vadd.f32 %v817, %v1779
    %v1781 = vpop.f32.mrb[0].mxu0
    %1782 = vmatprep.mubr.bf16.mxu0 0
    %1783 = vmatmul.mubr.bf16.gmra.mrb[0].mxu0 %v1534
    %v1784 = vpop.f32.mrb[0].mxu0
    %v1785 = vadd.f32 %v822, %v1784
    %v1786 = vpop.f32.mrb[0].mxu0
    %v1787 = vpop.f32.mrb[0].mxu0
    %v1788 = vadd.f32 %v825, %v1787
    %v1789 = vpop.f32.mrb[0].mxu0
    %1790 = vmatprep.mubr.bf16.mxu0 0
    %1791 = vmatmul.mubr.bf16.gmra.mrb[0].mxu0 %v1535
    %v1792 = vpop.f32.mrb[0].mxu0
    %v1793 = vadd.f32 %v830, %v1792
    %v1794 = vpop.f32.mrb[0].mxu0
    %v1795 = vpop.f32.mrb[0].mxu0
    %v1796 = vadd.f32 %v833, %v1795
    %v1797 = vpop.f32.mrb[0].mxu0
    %1798 = vmatprep.mubr.bf16.mxu0 0
    %1799 = vmatmul.mubr.bf16.gmra.mrb[0].mxu0 %v1536
    %v1800 = vpop.f32.mrb[0].mxu0
    %v1801 = vadd.f32 %v838, %v1800
    %v1802 = vpop.f32.mrb[0].mxu0
    %v1803 = vpop.f32.mrb[0].mxu0
    %v1804 = vadd.f32 %v841, %v1803
    %v1805 = vpop.f32.mrb[0].mxu0
    %1806 = vmatprep.mubr.bf16.mxu0 0
    %1807 = vmatmul.mubr.bf16.gmra.mrb[0].mxu0 %v1537
    %v1808 = vpop.f32.mrb[0].mxu0
    %v1809 = vadd.f32 %v846, %v1808
    %v1810 = vpop.f32.mrb[0].mxu0
    %v1811 = vpop.f32.mrb[0].mxu0
    %v1812 = vadd.f32 %v849, %v1811
    %v1813 = vpop.f32.mrb[0].mxu0
    %1814 = vmatprep.mubr.bf16.mxu0 0
    %1815 = vmatmul.mubr.bf16.gmra.mrb[0].mxu0 %v1538
    %v1816 = vpop.f32.mrb[0].mxu0
    %v1817 = vadd.f32 %v854, %v1816
    %v1818 = vpop.f32.mrb[0].mxu0
    %v1819 = vpop.f32.mrb[0].mxu0
    %v1820 = vadd.f32 %v857, %v1819
    %v1821 = vpop.f32.mrb[0].mxu0
    %1822 = vmatprep.mubr.bf16.mxu0 0
    %1823 = vmatmul.mubr.bf16.gmra.mrb[0].mxu0 %v1539
    %v1824 = vpop.f32.mrb[0].mxu0
    %v1825 = vadd.f32 %v862, %v1824
    %v1826 = vpop.f32.mrb[0].mxu0
    %v1827 = vpop.f32.mrb[0].mxu0
    %v1828 = vadd.f32 %v865, %v1827
    %v1829 = vpop.f32.mrb[0].mxu0
    %1830 = vmatprep.mubr.bf16.mxu0 0
    %1831 = vmatmul.mubr.bf16.gmra.mrb[0].mxu0 %v1540
    %v1832 = vpop.f32.mrb[0].mxu0
    %v1833 = vadd.f32 %v870, %v1832
    %v1834 = vpop.f32.mrb[0].mxu0
    %v1835 = vpop.f32.mrb[0].mxu0
    %v1836 = vadd.f32 %v873, %v1835
    %v1837 = vpop.f32.mrb[0].mxu0
    %1838 = vmatprep.mubr.bf16.mxu0 0
    %1839 = vmatmul.mubr.bf16.gmra.mrb[0].mxu0 %v1541
    %v1840 = vpop.f32.mrb[0].mxu0
    %v1841 = vadd.f32 %v878, %v1840
    %v1842 = vpop.f32.mrb[0].mxu0
    %v1843 = vpop.f32.mrb[0].mxu0
    %v1844 = vadd.f32 %v881, %v1843
    %v1845 = vpop.f32.mrb[0].mxu0
    %1846 = vmatprep.mubr.bf16.mxu0 0
    %1847 = vmatmul.mubr.bf16.gmra.mrb[0].mxu0 %v1542
    %v1848 = vpop.f32.mrb[0].mxu0
    %v1849 = vadd.f32 %v886, %v1848
    %v1850 = vpop.f32.mrb[0].mxu0
    %v1851 = vpop.f32.mrb[0].mxu0
    %v1852 = vadd.f32 %v889, %v1851
    %v1853 = vpop.f32.mrb[0].mxu0
    %1854 = vmatprep.mubr.bf16.mxu0 0
    %1855 = vmatmul.mubr.bf16.gmra.mrb[0].mxu0 %v1543
    %v1856 = vpop.f32.mrb[0].mxu0
    %v1857 = vadd.f32 %v894, %v1856
    %v1858 = vpop.f32.mrb[0].mxu0
    %v1859 = vpop.f32.mrb[0].mxu0
    %v1860 = vadd.f32 %v897, %v1859
    %v1861 = vpop.f32.mrb[0].mxu0
    %1862 = vmatprep.mubr.bf16.mxu0 0
    %1863 = vmatmul.mubr.bf16.gmra.mrb[0].mxu0 %v1544
    %v1864 = vpop.f32.mrb[0].mxu0
    %v1865 = vadd.f32 %v902, %v1864
    %v1866 = vpop.f32.mrb[0].mxu0
    %v1867 = vpop.f32.mrb[0].mxu0
    %v1868 = vadd.f32 %v905, %v1867
    %v1869 = vpop.f32.mrb[0].mxu0
    %1870 = vmatprep.mubr.bf16.mxu0 0
    %1871 = vmatmul.mubr.bf16.gmra.mrb[0].mxu0 %v1545
    %v1872 = vpop.f32.mrb[0].mxu0
    %v1873 = vadd.f32 %v910, %v1872
    %v1874 = vpop.f32.mrb[0].mxu0
    %v1875 = vpop.f32.mrb[0].mxu0
    %v1876 = vadd.f32 %v913, %v1875
    %v1877 = vpop.f32.mrb[0].mxu0
    %1878 = vmatprep.mubr.bf16.mxu0 0
    %1879 = vmatmul.mubr.bf16.gmra.mrb[0].mxu0 %v1546
    %v1880 = vpop.f32.mrb[0].mxu0
    %v1881 = vadd.f32 %v918, %v1880
    %v1882 = vpop.f32.mrb[0].mxu0
    %v1883 = vpop.f32.mrb[0].mxu0
    %v1884 = vadd.f32 %v921, %v1883
    %v1885 = vpop.f32.mrb[0].mxu0
    %1886 = vmatprep.mubr.bf16.mxu0 0
    %1887 = vmatmul.mubr.bf16.gmra.mrb[0].mxu0 %v1547
    %v1888 = vpop.f32.mrb[0].mxu0
    %v1889 = vadd.f32 %v926, %v1888
    %v1890 = vpop.f32.mrb[0].mxu0
    %v1891 = vpop.f32.mrb[0].mxu0
    %v1892 = vadd.f32 %v929, %v1891
    %v1893 = vpop.f32.mrb[0].mxu0
    %1894 = vmatprep.mubr.bf16.mxu0 0
    %1895 = vmatmul.mubr.bf16.gmra.mrb[0].mxu0 %v1548
    %v1896 = vpop.f32.mrb[0].mxu0
    %v1897 = vadd.f32 %v934, %v1896
    %v1898 = vpop.f32.mrb[0].mxu0
    %v1899 = vpop.f32.mrb[0].mxu0
    %v1900 = vadd.f32 %v937, %v1899
    %v1901 = vpop.f32.mrb[0].mxu0
    %1902 = vmatprep.mubr.bf16.mxu0 0
    %1903 = vmatmul.mubr.bf16.gmra.mrb[0].mxu0 %v1549
    %v1904 = vpop.f32.mrb[0].mxu0
    %v1905 = vadd.f32 %v942, %v1904
    %v1906 = vpop.f32.mrb[0].mxu0
    %v1907 = vpop.f32.mrb[0].mxu0
    %v1908 = vadd.f32 %v945, %v1907
    %v1909 = vpop.f32.mrb[0].mxu0
    %1910 = vmatprep.mubr.bf16.mxu0 0
    %1911 = vmatmul.mubr.bf16.gmra.mrb[0].mxu0 %v1550
    %v1912 = vpop.f32.mrb[0].mxu0
    %v1913 = vadd.f32 %v950, %v1912
    %v1914 = vpop.f32.mrb[0].mxu0
    %v1915 = vpop.f32.mrb[0].mxu0
    %v1916 = vadd.f32 %v953, %v1915
    %v1917 = vpop.f32.mrb[0].mxu0
    %1918 = vmatprep.mubr.bf16.mxu0 0
    %1919 = vmatmul.mubr.bf16.gmra.mrb[0].mxu0 %v1551
    %v1920 = vpop.f32.mrb[0].mxu0
    %v1921 = vadd.f32 %v958, %v1920
    %v1922 = vpop.f32.mrb[0].mxu0
    %v1923 = vpop.f32.mrb[0].mxu0
    %v1924 = vadd.f32 %v961, %v1923
    %v1925 = vpop.f32.mrb[0].mxu0
    %1926 = vmatprep.mubr.bf16.mxu0 0
    %1927 = vmatmul.mubr.bf16.gmra.mrb[0].mxu0 %v1552
    %v1928 = vpop.f32.mrb[0].mxu0
    %v1929 = vadd.f32 %v966, %v1928
    %v1930 = vpop.f32.mrb[0].mxu0
    %v1931 = vpop.f32.mrb[0].mxu0
    %v1932 = vadd.f32 %v969, %v1931
    %v1933 = vpop.f32.mrb[0].mxu0
    %1934 = vmatprep.mubr.bf16.mxu0 0
    %1935 = vmatmul.mubr.bf16.gmra.mrb[0].mxu0 %v1553
    %v1936 = vpop.f32.mrb[0].mxu0
    %v1937 = vadd.f32 %v974, %v1936
    %v1938 = vpop.f32.mrb[0].mxu0
    %v1939 = vpop.f32.mrb[0].mxu0
    %v1940 = vadd.f32 %v977, %v1939
    %v1941 = vpop.f32.mrb[0].mxu0
    %1942 = vmatprep.mubr.bf16.mxu0 0
    %1943 = vmatmul.mubr.bf16.gmra.mrb[0].mxu0 %v1554
    %v1944 = vpop.f32.mrb[0].mxu0
    %v1945 = vadd.f32 %v982, %v1944
    %v1946 = vpop.f32.mrb[0].mxu0
    %v1947 = vpop.f32.mrb[0].mxu0
    %v1948 = vadd.f32 %v985, %v1947
    %v1949 = vpop.f32.mrb[0].mxu0
    %1950 = vmatprep.mubr.bf16.mxu0 0
    %1951 = vmatmul.mubr.bf16.gmra.mrb[0].mxu0 %v1555
    %v1952 = vpop.f32.mrb[0].mxu0
    %v1953 = vadd.f32 %v990, %v1952
    %v1954 = vpop.f32.mrb[0].mxu0
    %v1955 = vpop.f32.mrb[0].mxu0
    %v1956 = vadd.f32 %v993, %v1955
    %v1957 = vpop.f32.mrb[0].mxu0
    %1958 = vmatprep.mubr.bf16.mxu0 0
    %1959 = vmatmul.mubr.bf16.gmra.mrb[0].mxu0 %v1556
    %v1960 = vpop.f32.mrb[0].mxu0
    %v1961 = vadd.f32 %v998, %v1960
    %v1962 = vpop.f32.mrb[0].mxu0
    %v1963 = vpop.f32.mrb[0].mxu0
    %v1964 = vadd.f32 %v1001, %v1963
    %v1965 = vpop.f32.mrb[0].mxu0
    %1966 = vmatprep.mubr.bf16.mxu0 0
    %1967 = vmatmul.mubr.bf16.gmra.mrb[0].mxu0 %v1557
    %v1968 = vpop.f32.mrb[0].mxu0
    %v1969 = vadd.f32 %v1006, %v1968
    %v1970 = vpop.f32.mrb[0].mxu0
    %v1971 = vpop.f32.mrb[0].mxu0
    %v1972 = vadd.f32 %v1009, %v1971
    %v1973 = vpop.f32.mrb[0].mxu0
    %1974 = vmatprep.mubr.bf16.mxu0 0
    %1975 = vmatmul.mubr.bf16.gmra.mrb[0].mxu0 %v1558
    %v1976 = vpop.f32.mrb[0].mxu0
    %v1977 = vadd.f32 %v1014, %v1976
    %v1978 = vpop.f32.mrb[0].mxu0
    %v1979 = vpop.f32.mrb[0].mxu0
    %v1980 = vadd.f32 %v1017, %v1979
    %v1981 = vpop.f32.mrb[0].mxu0
    %1982 = vmatprep.mubr.bf16.mxu0 0
    %1983 = vmatmul.mubr.bf16.gmra.mrb[0].mxu0 %v1559
    %v1984 = vpop.f32.mrb[0].mxu0
    %v1985 = vadd.f32 %v1022, %v1984
    %v1986 = vpop.f32.mrb[0].mxu0
    %v1987 = vpop.f32.mrb[0].mxu0
    %v1988 = vadd.f32 %v1025, %v1987
    %v1989 = vpop.f32.mrb[0].mxu0
    %1990 = vmatprep.mubr.bf16.mxu0 0
    %1991 = vmatmul.mubr.bf16.gmra.mrb[0].mxu0 %v1560
    %v1992 = vpop.f32.mrb[0].mxu0
    %v1993 = vadd.f32 %v1030, %v1992
    %v1994 = vpop.f32.mrb[0].mxu0
    %v1995 = vpop.f32.mrb[0].mxu0
    %v1996 = vadd.f32 %v1033, %v1995
    %v1997 = vpop.f32.mrb[0].mxu0
    %1998 = vmatprep.mubr.bf16.mxu0 0
    %1999 = vmatmul.mubr.bf16.gmra.mrb[0].mxu0 %v1561
    %v2000 = vpop.f32.mrb[0].mxu0
    %v2001 = vadd.f32 %v1038, %v2000
    %v2002 = vpop.f32.mrb[0].mxu0
    %v2003 = vpop.f32.mrb[0].mxu0
    %v2004 = vadd.f32 %v1041, %v2003
    %v2005 = vpop.f32.mrb[0].mxu0
    %2006 = vmatprep.mubr.bf16.mxu0 0
    %2007 = vmatmul.mubr.bf16.gmra.mrb[0].mxu0 %v1562
    %v2008 = vpop.f32.mrb[0].mxu0
    %v2009 = vadd.f32 %v1046, %v2008
    %v2010 = vpop.f32.mrb[0].mxu0
    %v2011 = vpop.f32.mrb[0].mxu0
    %v2012 = vadd.f32 %v1049, %v2011
    %v2013 = vpop.f32.mrb[0].mxu0
    %2014 = vmatprep.mubr.bf16.mxu0 0
    %2015 = vmatmul.mubr.bf16.gmra.mrb[0].mxu0 %v1563
    %v2016 = vpop.f32.mrb[0].mxu0
    %v2017 = vadd.f32 %v1054, %v2016
    %v2018 = vpop.f32.mrb[0].mxu0
    %v2019 = vpop.f32.mrb[0].mxu0
    %v2020 = vadd.f32 %v1057, %v2019
    %v2021 = vpop.f32.mrb[0].mxu0
    %2022 = vmatprep.mubr.bf16.mxu0 0
    %2023 = vmatmul.mubr.bf16.gmra.mrb[0].mxu0 %v1564
    %v2024 = vpop.f32.mrb[0].mxu0
    %v2025 = vadd.f32 %v1062, %v2024
    %v2026 = vpop.f32.mrb[0].mxu0
    %v2027 = vpop.f32.mrb[0].mxu0
    %v2028 = vadd.f32 %v1065, %v2027
    %v2029 = vpop.f32.mrb[0].mxu0
    %2030 = vmatprep.mubr.bf16.mxu0 0
    %2031 = vmatmul.mubr.bf16.gmra.mrb[0].mxu0 %v1565
    %v2032 = vpop.f32.mrb[0].mxu0
    %v2033 = vadd.f32 %v1070, %v2032
    %v2034 = vpop.f32.mrb[0].mxu0
    %v2035 = vpop.f32.mrb[0].mxu0
    %v2036 = vadd.f32 %v1073, %v2035
    %v2037 = vpop.f32.mrb[0].mxu0
    %2038 = vmatprep.mubr.bf16.mxu0 0
    %2039 = vmatmul.mubr.bf16.gmra.mrb[0].mxu0 %v1566
    %v2040 = vpop.f32.mrb[0].mxu0
    %v2041 = vadd.f32 %v1078, %v2040
    %v2042 = vpop.f32.mrb[0].mxu0
    %v2043 = vpop.f32.mrb[0].mxu0
    %v2044 = vadd.f32 %v1081, %v2043
    %v2045 = vpop.f32.mrb[0].mxu0
    %2046 = vmatprep.mubr.bf16.mxu0 0
    %2047 = vmatmul.mubr.bf16.gmra.mrb[0].mxu0 %v1567
    %v2048 = vpop.f32.mrb[0].mxu0
    %v2049 = vadd.f32 %v1086, %v2048
    %v2050 = vpop.f32.mrb[0].mxu0
    %v2051 = vpop.f32.mrb[0].mxu0
    %v2052 = vadd.f32 %v1089, %v2051
    %v2053 = vpop.f32.mrb[0].mxu0
    %2054 = vmatprep.mubr.bf16.mxu0 0
    %2055 = vmatmul.mubr.bf16.gmra.mrb[0].mxu0 %v1568
    %v2056 = vpop.f32.mrb[0].mxu0
    %v2057 = vadd.f32 %v1094, %v2056
    %v2058 = vpop.f32.mrb[0].mxu0
    %v2059 = vpop.f32.mrb[0].mxu0
    %v2060 = vadd.f32 %v1097, %v2059
    %v2061 = vpop.f32.mrb[0].mxu0
    %2062 = vmatprep.mubr.bf16.mxu0 0
    %2063 = vmatmul.mubr.bf16.gmra.mrb[0].mxu0 %v1569
    %v2064 = vpop.f32.mrb[0].mxu0
    %v2065 = vadd.f32 %v1102, %v2064
    %v2066 = vpop.f32.mrb[0].mxu0
    %v2067 = vpop.f32.mrb[0].mxu0
    %v2068 = vadd.f32 %v1105, %v2067
    %v2069 = vpop.f32.mrb[0].mxu0
    %2070 = vmatprep.mubr.bf16.mxu0 0
    %2071 = vmatmul.mubr.bf16.gmra.mrb[0].mxu0 %v1570
    %v2072 = vpop.f32.mrb[0].mxu0
    %v2073 = vadd.f32 %v1110, %v2072
    %v2074 = vpop.f32.mrb[0].mxu0
    %v2075 = vpop.f32.mrb[0].mxu0
    %v2076 = vadd.f32 %v1113, %v2075
    %v2077 = vpop.f32.mrb[0].mxu0
    %2078 = vmatprep.mubr.bf16.mxu0 0
    %2079 = vmatmul.mubr.bf16.gmra.mrb[0].mxu0 %v1571
    %v2080 = vpop.f32.mrb[0].mxu0
    %v2081 = vadd.f32 %v1118, %v2080
    %v2082 = vpop.f32.mrb[0].mxu0
    %v2083 = vpop.f32.mrb[0].mxu0
    %v2084 = vadd.f32 %v1121, %v2083
    %v2085 = vpop.f32.mrb[0].mxu0
    %2086 = vmatprep.mubr.bf16.mxu0 0
    %2087 = vmatmul.mubr.bf16.gmra.mrb[0].mxu0 %v1572
    %v2088 = vpop.f32.mrb[0].mxu0
    %v2089 = vadd.f32 %v1126, %v2088
    %v2090 = vpop.f32.mrb[0].mxu0
    %v2091 = vpop.f32.mrb[0].mxu0
    %v2092 = vadd.f32 %v1129, %v2091
    %v2093 = vpop.f32.mrb[0].mxu0
    %2094 = vmatprep.mubr.bf16.mxu0 0
    %2095 = vmatmul.mubr.bf16.gmra.mrb[0].mxu0 %v1573
    %v2096 = vpop.f32.mrb[0].mxu0
    %v2097 = vadd.f32 %v1134, %v2096
    %v2098 = vpop.f32.mrb[0].mxu0
    %v2099 = vpop.f32.mrb[0].mxu0
    %v2100 = vadd.f32 %v1137, %v2099
    %v2101 = vpop.f32.mrb[0].mxu0
    %2102 = vmatprep.mubr.bf16.mxu0 0
    %2103 = vmatmul.mubr.bf16.gmra.mrb[0].mxu0 %v1574
    %v2104 = vpop.f32.mrb[0].mxu0
    %v2105 = vadd.f32 %v1142, %v2104
    %v2106 = vpop.f32.mrb[0].mxu0
    %v2107 = vpop.f32.mrb[0].mxu0
    %v2108 = vadd.f32 %v1145, %v2107
    %v2109 = vpop.f32.mrb[0].mxu0
    %2110 = vmatprep.mubr.bf16.mxu0 0
    %2111 = vmatmul.mubr.bf16.gmra.mrb[0].mxu0 %v1575
    %v2112 = vpop.f32.mrb[0].mxu0
    %v2113 = vadd.f32 %v1150, %v2112
    %v2114 = vpop.f32.mrb[0].mxu0
    %v2115 = vpop.f32.mrb[0].mxu0
    %v2116 = vadd.f32 %v1153, %v2115
    %v2117 = vpop.f32.mrb[0].mxu0
    %2118 = vmatprep.mubr.bf16.mxu0 0
    %2119 = vmatmul.mubr.bf16.gmra.mrb[0].mxu0 %v1576
    %v2120 = vpop.f32.mrb[0].mxu0
    %v2121 = vadd.f32 %v1158, %v2120
    %v2122 = vpop.f32.mrb[0].mxu0
    %v2123 = vpop.f32.mrb[0].mxu0
    %v2124 = vadd.f32 %v1161, %v2123
    %v2125 = vpop.f32.mrb[0].mxu0
    %2126 = vmatprep.mubr.bf16.mxu0 0
    %2127 = vmatmul.mubr.bf16.gmra.mrb[0].mxu0 %v1577
    %v2128 = vpop.f32.mrb[0].mxu0
    %v2129 = vadd.f32 %v1166, %v2128
    %v2130 = vpop.f32.mrb[0].mxu0
    %v2131 = vpop.f32.mrb[0].mxu0
    %v2132 = vadd.f32 %v1169, %v2131
    %v2133 = vpop.f32.mrb[0].mxu0
    %2134 = vmatprep.mubr.bf16.mxu0 0
    %2135 = vmatmul.mubr.bf16.gmra.mrb[0].mxu0 %v1578
    %v2136 = vpop.f32.mrb[0].mxu0
    %v2137 = vadd.f32 %v1174, %v2136
    %v2138 = vpop.f32.mrb[0].mxu0
    %v2139 = vpop.f32.mrb[0].mxu0
    %v2140 = vadd.f32 %v1177, %v2139
    %v2141 = vpop.f32.mrb[0].mxu0
    %2142 = vmatprep.mubr.bf16.mxu0 0
    %2143 = vmatmul.mubr.bf16.gmra.mrb[0].mxu0 %v1579
    %v2144 = vpop.f32.mrb[0].mxu0
    %v2145 = vadd.f32 %v1182, %v2144
    %v2146 = vpop.f32.mrb[0].mxu0
    %v2147 = vpop.f32.mrb[0].mxu0
    %v2148 = vadd.f32 %v1185, %v2147
    %v2149 = vpop.f32.mrb[0].mxu0
    %2150 = vmatprep.mubr.bf16.mxu0 0
    %2151 = vmatmul.mubr.bf16.gmra.mrb[0].mxu0 %v1580
    %v2152 = vpop.f32.mrb[0].mxu0
    %v2153 = vadd.f32 %v1190, %v2152
    %v2154 = vpop.f32.mrb[0].mxu0
    %v2155 = vpop.f32.mrb[0].mxu0
    %v2156 = vadd.f32 %v1193, %v2155
    %v2157 = vpop.f32.mrb[0].mxu0
    %2158 = vmatprep.mubr.bf16.mxu0 0
    %2159 = vmatmul.mubr.bf16.gmra.mrb[0].mxu0 %v1581
    %v2160 = vpop.f32.mrb[0].mxu0
    %v2161 = vadd.f32 %v1198, %v2160
    %v2162 = vpop.f32.mrb[0].mxu0
    %v2163 = vpop.f32.mrb[0].mxu0
    %v2164 = vadd.f32 %v1201, %v2163
    %v2165 = vpop.f32.mrb[0].mxu0
    %2166 = vmatprep.mubr.bf16.mxu0 0
    %2167 = vmatmul.mubr.bf16.gmra.mrb[0].mxu0 %v1582
    %v2168 = vpop.f32.mrb[0].mxu0
    %v2169 = vadd.f32 %v1206, %v2168
    %v2170 = vpop.f32.mrb[0].mxu0
    %v2171 = vpop.f32.mrb[0].mxu0
    %v2172 = vadd.f32 %v1209, %v2171
    %v2173 = vpop.f32.mrb[0].mxu0
    %2174 = vmatprep.mubr.bf16.mxu0 0
    %2175 = vmatmul.mubr.bf16.gmra.mrb[0].mxu0 %v1583
    %v2176 = vpop.f32.mrb[0].mxu0
    %v2177 = vadd.f32 %v1214, %v2176
    %v2178 = vpop.f32.mrb[0].mxu0
    %v2179 = vpop.f32.mrb[0].mxu0
    %v2180 = vadd.f32 %v1217, %v2179
    %v2181 = vpop.f32.mrb[0].mxu0
    %2182 = vmatprep.mubr.bf16.mxu0 0
    %2183 = vmatmul.mubr.bf16.gmra.mrb[0].mxu0 %v1584
    %v2184 = vpop.f32.mrb[0].mxu0
    %v2185 = vadd.f32 %v1222, %v2184
    %v2186 = vpop.f32.mrb[0].mxu0
    %v2187 = vpop.f32.mrb[0].mxu0
    %v2188 = vadd.f32 %v1225, %v2187
    %v2189 = vpop.f32.mrb[0].mxu0
    %2190 = vmatprep.mubr.bf16.mxu0 0
    %2191 = vmatmul.mubr.bf16.gmra.mrb[0].mxu0 %v1585
    %v2192 = vpop.f32.mrb[0].mxu0
    %v2193 = vadd.f32 %v1230, %v2192
    %v2194 = vpop.f32.mrb[0].mxu0
    %v2195 = vpop.f32.mrb[0].mxu0
    %v2196 = vadd.f32 %v1233, %v2195
    %v2197 = vpop.f32.mrb[0].mxu0
    %2198 = vmatprep.mubr.bf16.mxu0 0
    %2199 = vmatmul.mubr.bf16.gmra.mrb[0].mxu0 %v1586
    %v2200 = vpop.f32.mrb[0].mxu0
    %v2201 = vadd.f32 %v1238, %v2200
    %v2202 = vpop.f32.mrb[0].mxu0
    %v2203 = vpop.f32.mrb[0].mxu0
    %v2204 = vadd.f32 %v1241, %v2203
    %v2205 = vpop.f32.mrb[0].mxu0
    %2206 = vmatprep.mubr.bf16.mxu0 0
    %2207 = vmatmul.mubr.bf16.gmra.mrb[0].mxu0 %v1587
    %v2208 = vpop.f32.mrb[0].mxu0
    %v2209 = vadd.f32 %v1246, %v2208
    %v2210 = vpop.f32.mrb[0].mxu0
    %v2211 = vpop.f32.mrb[0].mxu0
    %v2212 = vadd.f32 %v1249, %v2211
    %v2213 = vpop.f32.mrb[0].mxu0
    %2214 = vmatprep.mubr.bf16.mxu0 0
    %2215 = vmatmul.mubr.bf16.gmra.mrb[0].mxu0 %v1588
    %v2216 = vpop.f32.mrb[0].mxu0
    %v2217 = vadd.f32 %v1254, %v2216
    %v2218 = vpop.f32.mrb[0].mxu0
    %v2219 = vpop.f32.mrb[0].mxu0
    %v2220 = vadd.f32 %v1257, %v2219
    %v2221 = vpop.f32.mrb[0].mxu0
    %2222 = vmatprep.mubr.bf16.mxu0 0
    %2223 = vmatmul.mubr.bf16.gmra.mrb[0].mxu0 %v1589
    %v2224 = vpop.f32.mrb[0].mxu0
    %v2225 = vadd.f32 %v1262, %v2224
    %v2226 = vpop.f32.mrb[0].mxu0
    %v2227 = vpop.f32.mrb[0].mxu0
    %v2228 = vadd.f32 %v1265, %v2227
    %v2229 = vpop.f32.mrb[0].mxu0
    %2230 = vmatprep.mubr.bf16.mxu0 0
    %2231 = vmatmul.mubr.bf16.gmra.mrb[0].mxu0 %v1590
    %v2232 = vpop.f32.mrb[0].mxu0
    %v2233 = vadd.f32 %v1270, %v2232
    %v2234 = vpop.f32.mrb[0].mxu0
    %v2235 = vpop.f32.mrb[0].mxu0
    %v2236 = vadd.f32 %v1273, %v2235
    %v2237 = vpop.f32.mrb[0].mxu0
    %2238 = vdwg.mxu0
    %v2239 = vld [vmem:[%s4] sm:$0x1]
    %v2241 = vlaneseq
    %v2242 = vshrl.u32 %v2241, 7
    %v2243 = vsub.s32 0, %v2242
    %v2244 = vrot.slane %v2239, %v2243
    %v2246 = vadd.f32 %v1737, %v2244
    %v2247 = vadd.f32 %v1740, %v2244
    %v2248 = vadd.f32 %v1745, %v2244
    %v2249 = vadd.f32 %v1748, %v2244
    %v2250 = vadd.f32 %v1753, %v2244
    %v2251 = vadd.f32 %v1756, %v2244
    %v2252 = vadd.f32 %v1761, %v2244
    %v2253 = vadd.f32 %v1764, %v2244
    %v2254 = vadd.f32 %v1769, %v2244
    %v2255 = vadd.f32 %v1772, %v2244
    %v2256 = vadd.f32 %v1777, %v2244
    %v2257 = vadd.f32 %v1780, %v2244
    %v2258 = vadd.f32 %v1785, %v2244
    %v2259 = vadd.f32 %v1788, %v2244
    %v2260 = vadd.f32 %v1793, %v2244
    %v2261 = vadd.f32 %v1796, %v2244
    %v2262 = vadd.f32 %v1801, %v2244
    %v2263 = vadd.f32 %v1804, %v2244
    %v2264 = vadd.f32 %v1809, %v2244
    %v2265 = vadd.f32 %v1812, %v2244
    %v2266 = vadd.f32 %v1817, %v2244
    %v2267 = vadd.f32 %v1820, %v2244
    %v2268 = vadd.f32 %v1825, %v2244
    %v2269 = vadd.f32 %v1828, %v2244
    %v2270 = vadd.f32 %v1833, %v2244
    %v2271 = vadd.f32 %v1836, %v2244
    %v2272 = vadd.f32 %v1841, %v2244
    %v2273 = vadd.f32 %v1844, %v2244
    %v2274 = vadd.f32 %v1849, %v2244
    %v2275 = vadd.f32 %v1852, %v2244
    %v2276 = vadd.f32 %v1857, %v2244
    %v2277 = vadd.f32 %v1860, %v2244
    %v2278 = vadd.f32 %v1865, %v2244
    %v2279 = vadd.f32 %v1868, %v2244
    %v2280 = vadd.f32 %v1873, %v2244
    %v2281 = vadd.f32 %v1876, %v2244
    %v2282 = vadd.f32 %v1881, %v2244
    %v2283 = vadd.f32 %v1884, %v2244
    %v2284 = vadd.f32 %v1889, %v2244
    %v2285 = vadd.f32 %v1892, %v2244
    %v2286 = vadd.f32 %v1897, %v2244
    %v2287 = vadd.f32 %v1900, %v2244
    %v2288 = vadd.f32 %v1905, %v2244
    %v2289 = vadd.f32 %v1908, %v2244
    %v2290 = vadd.f32 %v1913, %v2244
    %v2291 = vadd.f32 %v1916, %v2244
    %v2292 = vadd.f32 %v1921, %v2244
    %v2293 = vadd.f32 %v1924, %v2244
    %v2294 = vadd.f32 %v1929, %v2244
    %v2295 = vadd.f32 %v1932, %v2244
    %v2296 = vadd.f32 %v1937, %v2244
    %v2297 = vadd.f32 %v1940, %v2244
    %v2298 = vadd.f32 %v1945, %v2244
    %v2299 = vadd.f32 %v1948, %v2244
    %v2300 = vadd.f32 %v1953, %v2244
    %v2301 = vadd.f32 %v1956, %v2244
    %v2302 = vadd.f32 %v1961, %v2244
    %v2303 = vadd.f32 %v1964, %v2244
    %v2304 = vadd.f32 %v1969, %v2244
    %v2305 = vadd.f32 %v1972, %v2244
    %v2306 = vadd.f32 %v1977, %v2244
    %v2307 = vadd.f32 %v1980, %v2244
    %v2308 = vadd.f32 %v1985, %v2244
    %v2309 = vadd.f32 %v1988, %v2244
    %v2310 = vadd.f32 %v1993, %v2244
    %v2311 = vadd.f32 %v1996, %v2244
    %v2312 = vadd.f32 %v2001, %v2244
    %v2313 = vadd.f32 %v2004, %v2244
    %v2314 = vadd.f32 %v2009, %v2244
    %v2315 = vadd.f32 %v2012, %v2244
    %v2316 = vadd.f32 %v2017, %v2244
    %v2317 = vadd.f32 %v2020, %v2244
    %v2318 = vadd.f32 %v2025, %v2244
    %v2319 = vadd.f32 %v2028, %v2244
    %v2320 = vadd.f32 %v2033, %v2244
    %v2321 = vadd.f32 %v2036, %v2244
    %v2322 = vadd.f32 %v2041, %v2244
    %v2323 = vadd.f32 %v2044, %v2244
    %v2324 = vadd.f32 %v2049, %v2244
    %v2325 = vadd.f32 %v2052, %v2244
    %v2326 = vadd.f32 %v2057, %v2244
    %v2327 = vadd.f32 %v2060, %v2244
    %v2328 = vadd.f32 %v2065, %v2244
    %v2329 = vadd.f32 %v2068, %v2244
    %v2330 = vadd.f32 %v2073, %v2244
    %v2331 = vadd.f32 %v2076, %v2244
    %v2332 = vadd.f32 %v2081, %v2244
    %v2333 = vadd.f32 %v2084, %v2244
    %v2334 = vadd.f32 %v2089, %v2244
    %v2335 = vadd.f32 %v2092, %v2244
    %v2336 = vadd.f32 %v2097, %v2244
    %v2337 = vadd.f32 %v2100, %v2244
    %v2338 = vadd.f32 %v2105, %v2244
    %v2339 = vadd.f32 %v2108, %v2244
    %v2340 = vadd.f32 %v2113, %v2244
    %v2341 = vadd.f32 %v2116, %v2244
    %v2342 = vadd.f32 %v2121, %v2244
    %v2343 = vadd.f32 %v2124, %v2244
    %v2344 = vadd.f32 %v2129, %v2244
    %v2345 = vadd.f32 %v2132, %v2244
    %v2346 = vadd.f32 %v2137, %v2244
    %v2347 = vadd.f32 %v2140, %v2244
    %v2348 = vadd.f32 %v2145, %v2244
    %v2349 = vadd.f32 %v2148, %v2244
    %v2350 = vadd.f32 %v2153, %v2244
    %v2351 = vadd.f32 %v2156, %v2244
    %v2352 = vadd.f32 %v2161, %v2244
    %v2353 = vadd.f32 %v2164, %v2244
    %v2354 = vadd.f32 %v2169, %v2244
    %v2355 = vadd.f32 %v2172, %v2244
    %v2356 = vadd.f32 %v2177, %v2244
    %v2357 = vadd.f32 %v2180, %v2244
    %v2358 = vadd.f32 %v2185, %v2244
    %v2359 = vadd.f32 %v2188, %v2244
    %v2360 = vadd.f32 %v2193, %v2244
    %v2361 = vadd.f32 %v2196, %v2244
    %v2362 = vadd.f32 %v2201, %v2244
    %v2363 = vadd.f32 %v2204, %v2244
    %v2364 = vadd.f32 %v2209, %v2244
    %v2365 = vadd.f32 %v2212, %v2244
    %v2366 = vadd.f32 %v2217, %v2244
    %v2367 = vadd.f32 %v2220, %v2244
    %v2368 = vadd.f32 %v2225, %v2244
    %v2369 = vadd.f32 %v2228, %v2244
    %v2370 = vadd.f32 %v2233, %v2244
    %v2371 = vadd.f32 %v2236, %v2244
    %v2372 = vmax.f32 %v2246, 0.0
    %v2373 = vmax.f32 %v2247, 0.0
    %v2374 = vmax.f32 %v2248, 0.0
    %v2375 = vmax.f32 %v2249, 0.0
    %v2376 = vmax.f32 %v2250, 0.0
    %v2377 = vmax.f32 %v2251, 0.0
    %v2378 = vmax.f32 %v2252, 0.0
    %v2379 = vmax.f32 %v2253, 0.0
    %v2380 = vmax.f32 %v2254, 0.0
    %v2381 = vmax.f32 %v2255, 0.0
    %v2382 = vmax.f32 %v2256, 0.0
    %v2383 = vmax.f32 %v2257, 0.0
    %v2384 = vmax.f32 %v2258, 0.0
    %v2385 = vmax.f32 %v2259, 0.0
    %v2386 = vmax.f32 %v2260, 0.0
    %v2387 = vmax.f32 %v2261, 0.0
    %v2388 = vmax.f32 %v2262, 0.0
    %v2389 = vmax.f32 %v2263, 0.0
    %v2390 = vmax.f32 %v2264, 0.0
    %v2391 = vmax.f32 %v2265, 0.0
    %v2392 = vmax.f32 %v2266, 0.0
    %v2393 = vmax.f32 %v2267, 0.0
    %v2394 = vmax.f32 %v2268, 0.0
    %v2395 = vmax.f32 %v2269, 0.0
    %v2396 = vmax.f32 %v2270, 0.0
    %v2397 = vmax.f32 %v2271, 0.0
    %v2398 = vmax.f32 %v2272, 0.0
    %v2399 = vmax.f32 %v2273, 0.0
    %v2400 = vmax.f32 %v2274, 0.0
    %v2401 = vmax.f32 %v2275, 0.0
    %v2402 = vmax.f32 %v2276, 0.0
    %v2403 = vmax.f32 %v2277, 0.0
    %v2404 = vmax.f32 %v2278, 0.0
    %v2405 = vmax.f32 %v2279, 0.0
    %v2406 = vmax.f32 %v2280, 0.0
    %v2407 = vmax.f32 %v2281, 0.0
    %v2408 = vmax.f32 %v2282, 0.0
    %v2409 = vmax.f32 %v2283, 0.0
    %v2410 = vmax.f32 %v2284, 0.0
    %v2411 = vmax.f32 %v2285, 0.0
    %v2412 = vmax.f32 %v2286, 0.0
    %v2413 = vmax.f32 %v2287, 0.0
    %v2414 = vmax.f32 %v2288, 0.0
    %v2415 = vmax.f32 %v2289, 0.0
    %v2416 = vmax.f32 %v2290, 0.0
    %v2417 = vmax.f32 %v2291, 0.0
    %v2418 = vmax.f32 %v2292, 0.0
    %v2419 = vmax.f32 %v2293, 0.0
    %v2420 = vmax.f32 %v2294, 0.0
    %v2421 = vmax.f32 %v2295, 0.0
    %v2422 = vmax.f32 %v2296, 0.0
    %v2423 = vmax.f32 %v2297, 0.0
    %v2424 = vmax.f32 %v2298, 0.0
    %v2425 = vmax.f32 %v2299, 0.0
    %v2426 = vmax.f32 %v2300, 0.0
    %v2427 = vmax.f32 %v2301, 0.0
    %v2428 = vmax.f32 %v2302, 0.0
    %v2429 = vmax.f32 %v2303, 0.0
    %v2430 = vmax.f32 %v2304, 0.0
    %v2431 = vmax.f32 %v2305, 0.0
    %v2432 = vmax.f32 %v2306, 0.0
    %v2433 = vmax.f32 %v2307, 0.0
    %v2434 = vmax.f32 %v2308, 0.0
    %v2435 = vmax.f32 %v2309, 0.0
    %v2436 = vmax.f32 %v2310, 0.0
    %v2437 = vmax.f32 %v2311, 0.0
    %v2438 = vmax.f32 %v2312, 0.0
    %v2439 = vmax.f32 %v2313, 0.0
    %v2440 = vmax.f32 %v2314, 0.0
    %v2441 = vmax.f32 %v2315, 0.0
    %v2442 = vmax.f32 %v2316, 0.0
    %v2443 = vmax.f32 %v2317, 0.0
    %v2444 = vmax.f32 %v2318, 0.0
    %v2445 = vmax.f32 %v2319, 0.0
    %v2446 = vmax.f32 %v2320, 0.0
    %v2447 = vmax.f32 %v2321, 0.0
    %v2448 = vmax.f32 %v2322, 0.0
    %v2449 = vmax.f32 %v2323, 0.0
    %v2450 = vmax.f32 %v2324, 0.0
    %v2451 = vmax.f32 %v2325, 0.0
    %v2452 = vmax.f32 %v2326, 0.0
    %v2453 = vmax.f32 %v2327, 0.0
    %v2454 = vmax.f32 %v2328, 0.0
    %v2455 = vmax.f32 %v2329, 0.0
    %v2456 = vmax.f32 %v2330, 0.0
    %v2457 = vmax.f32 %v2331, 0.0
    %v2458 = vmax.f32 %v2332, 0.0
    %v2459 = vmax.f32 %v2333, 0.0
    %v2460 = vmax.f32 %v2334, 0.0
    %v2461 = vmax.f32 %v2335, 0.0
    %v2462 = vmax.f32 %v2336, 0.0
    %v2463 = vmax.f32 %v2337, 0.0
    %v2464 = vmax.f32 %v2338, 0.0
    %v2465 = vmax.f32 %v2339, 0.0
    %v2466 = vmax.f32 %v2340, 0.0
    %v2467 = vmax.f32 %v2341, 0.0
    %v2468 = vmax.f32 %v2342, 0.0
    %v2469 = vmax.f32 %v2343, 0.0
    %v2470 = vmax.f32 %v2344, 0.0
    %v2471 = vmax.f32 %v2345, 0.0
    %v2472 = vmax.f32 %v2346, 0.0
    %v2473 = vmax.f32 %v2347, 0.0
    %v2474 = vmax.f32 %v2348, 0.0
    %v2475 = vmax.f32 %v2349, 0.0
    %v2476 = vmax.f32 %v2350, 0.0
    %v2477 = vmax.f32 %v2351, 0.0
    %v2478 = vmax.f32 %v2352, 0.0
    %v2479 = vmax.f32 %v2353, 0.0
    %v2480 = vmax.f32 %v2354, 0.0
    %v2481 = vmax.f32 %v2355, 0.0
    %v2482 = vmax.f32 %v2356, 0.0
    %v2483 = vmax.f32 %v2357, 0.0
    %v2484 = vmax.f32 %v2358, 0.0
    %v2485 = vmax.f32 %v2359, 0.0
    %v2486 = vmax.f32 %v2360, 0.0
    %v2487 = vmax.f32 %v2361, 0.0
    %v2488 = vmax.f32 %v2362, 0.0
    %v2489 = vmax.f32 %v2363, 0.0
    %v2490 = vmax.f32 %v2364, 0.0
    %v2491 = vmax.f32 %v2365, 0.0
    %v2492 = vmax.f32 %v2366, 0.0
    %v2493 = vmax.f32 %v2367, 0.0
    %v2494 = vmax.f32 %v2368, 0.0
    %v2495 = vmax.f32 %v2369, 0.0
    %v2496 = vmax.f32 %v2370, 0.0
    %v2497 = vmax.f32 %v2371, 0.0
    %v2498 = vld [vmem:[%s5] sm:$0x1]
    %v2500 = vlaneseq
    %v2501 = vshrl.u32 %v2500, 7
    %v2502 = vsub.s32 0, %v2501
    %v2503 = vrot.slane %v2498, %v2502
    %v2505 = vmul.f32 %v2372, %v2503
    %v2506 = vmul.f32 %v2373, %v2503
    %v2507 = vmul.f32 %v2374, %v2503
    %v2508 = vmul.f32 %v2375, %v2503
    %v2509 = vmul.f32 %v2376, %v2503
    %v2510 = vmul.f32 %v2377, %v2503
    %v2511 = vmul.f32 %v2378, %v2503
    %v2512 = vmul.f32 %v2379, %v2503
    %v2513 = vmul.f32 %v2380, %v2503
    %v2514 = vmul.f32 %v2381, %v2503
    %v2515 = vmul.f32 %v2382, %v2503
    %v2516 = vmul.f32 %v2383, %v2503
    %v2517 = vmul.f32 %v2384, %v2503
    %v2518 = vmul.f32 %v2385, %v2503
    %v2519 = vmul.f32 %v2386, %v2503
    %v2520 = vmul.f32 %v2387, %v2503
    %v2521 = vmul.f32 %v2388, %v2503
    %v2522 = vmul.f32 %v2389, %v2503
    %v2523 = vmul.f32 %v2390, %v2503
    %v2524 = vmul.f32 %v2391, %v2503
    %v2525 = vmul.f32 %v2392, %v2503
    %v2526 = vmul.f32 %v2393, %v2503
    %v2527 = vmul.f32 %v2394, %v2503
    %v2528 = vmul.f32 %v2395, %v2503
    %v2529 = vmul.f32 %v2396, %v2503
    %v2530 = vmul.f32 %v2397, %v2503
    %v2531 = vmul.f32 %v2398, %v2503
    %v2532 = vmul.f32 %v2399, %v2503
    %v2533 = vmul.f32 %v2400, %v2503
    %v2534 = vmul.f32 %v2401, %v2503
    %v2535 = vmul.f32 %v2402, %v2503
    %v2536 = vmul.f32 %v2403, %v2503
    %v2537 = vmul.f32 %v2404, %v2503
    %v2538 = vmul.f32 %v2405, %v2503
    %v2539 = vmul.f32 %v2406, %v2503
    %v2540 = vmul.f32 %v2407, %v2503
    %v2541 = vmul.f32 %v2408, %v2503
    %v2542 = vmul.f32 %v2409, %v2503
    %v2543 = vmul.f32 %v2410, %v2503
    %v2544 = vmul.f32 %v2411, %v2503
    %v2545 = vmul.f32 %v2412, %v2503
    %v2546 = vmul.f32 %v2413, %v2503
    %v2547 = vmul.f32 %v2414, %v2503
    %v2548 = vmul.f32 %v2415, %v2503
    %v2549 = vmul.f32 %v2416, %v2503
    %v2550 = vmul.f32 %v2417, %v2503
    %v2551 = vmul.f32 %v2418, %v2503
    %v2552 = vmul.f32 %v2419, %v2503
    %v2553 = vmul.f32 %v2420, %v2503
    %v2554 = vmul.f32 %v2421, %v2503
    %v2555 = vmul.f32 %v2422, %v2503
    %v2556 = vmul.f32 %v2423, %v2503
    %v2557 = vmul.f32 %v2424, %v2503
    %v2558 = vmul.f32 %v2425, %v2503
    %v2559 = vmul.f32 %v2426, %v2503
    %v2560 = vmul.f32 %v2427, %v2503
    %v2561 = vmul.f32 %v2428, %v2503
    %v2562 = vmul.f32 %v2429, %v2503
    %v2563 = vmul.f32 %v2430, %v2503
    %v2564 = vmul.f32 %v2431, %v2503
    %v2565 = vmul.f32 %v2432, %v2503
    %v2566 = vmul.f32 %v2433, %v2503
    %v2567 = vmul.f32 %v2434, %v2503
    %v2568 = vmul.f32 %v2435, %v2503
    %v2569 = vmul.f32 %v2436, %v2503
    %v2570 = vmul.f32 %v2437, %v2503
    %v2571 = vmul.f32 %v2438, %v2503
    %v2572 = vmul.f32 %v2439, %v2503
    %v2573 = vmul.f32 %v2440, %v2503
    %v2574 = vmul.f32 %v2441, %v2503
    %v2575 = vmul.f32 %v2442, %v2503
    %v2576 = vmul.f32 %v2443, %v2503
    %v2577 = vmul.f32 %v2444, %v2503
    %v2578 = vmul.f32 %v2445, %v2503
    %v2579 = vmul.f32 %v2446, %v2503
    %v2580 = vmul.f32 %v2447, %v2503
    %v2581 = vmul.f32 %v2448, %v2503
    %v2582 = vmul.f32 %v2449, %v2503
    %v2583 = vmul.f32 %v2450, %v2503
    %v2584 = vmul.f32 %v2451, %v2503
    %v2585 = vmul.f32 %v2452, %v2503
    %v2586 = vmul.f32 %v2453, %v2503
    %v2587 = vmul.f32 %v2454, %v2503
    %v2588 = vmul.f32 %v2455, %v2503
    %v2589 = vmul.f32 %v2456, %v2503
    %v2590 = vmul.f32 %v2457, %v2503
    %v2591 = vmul.f32 %v2458, %v2503
    %v2592 = vmul.f32 %v2459, %v2503
    %v2593 = vmul.f32 %v2460, %v2503
    %v2594 = vmul.f32 %v2461, %v2503
    %v2595 = vmul.f32 %v2462, %v2503
    %v2596 = vmul.f32 %v2463, %v2503
    %v2597 = vmul.f32 %v2464, %v2503
    %v2598 = vmul.f32 %v2465, %v2503
    %v2599 = vmul.f32 %v2466, %v2503
    %v2600 = vmul.f32 %v2467, %v2503
    %v2601 = vmul.f32 %v2468, %v2503
    %v2602 = vmul.f32 %v2469, %v2503
    %v2603 = vmul.f32 %v2470, %v2503
    %v2604 = vmul.f32 %v2471, %v2503
    %v2605 = vmul.f32 %v2472, %v2503
    %v2606 = vmul.f32 %v2473, %v2503
    %v2607 = vmul.f32 %v2474, %v2503
    %v2608 = vmul.f32 %v2475, %v2503
    %v2609 = vmul.f32 %v2476, %v2503
    %v2610 = vmul.f32 %v2477, %v2503
    %v2611 = vmul.f32 %v2478, %v2503
    %v2612 = vmul.f32 %v2479, %v2503
    %v2613 = vmul.f32 %v2480, %v2503
    %v2614 = vmul.f32 %v2481, %v2503
    %v2615 = vmul.f32 %v2482, %v2503
    %v2616 = vmul.f32 %v2483, %v2503
    %v2617 = vmul.f32 %v2484, %v2503
    %v2618 = vmul.f32 %v2485, %v2503
    %v2619 = vmul.f32 %v2486, %v2503
    %v2620 = vmul.f32 %v2487, %v2503
    %v2621 = vmul.f32 %v2488, %v2503
    %v2622 = vmul.f32 %v2489, %v2503
    %v2623 = vmul.f32 %v2490, %v2503
    %v2624 = vmul.f32 %v2491, %v2503
    %v2625 = vmul.f32 %v2492, %v2503
    %v2626 = vmul.f32 %v2493, %v2503
    %v2627 = vmul.f32 %v2494, %v2503
    %v2628 = vmul.f32 %v2495, %v2503
    %v2629 = vmul.f32 %v2496, %v2503
    %v2630 = vmul.f32 %v2497, %v2503
    %vm2631 = vcmask 523264
    %v2632 = vsel %vm2631, %v2505, 0.0
    %2633 = vadd.xlane.f32.xlu0 %v2632
    %v2634 = vpop.xlane.xlu0 %2633
    %v2635 = vsel %vm2631, %v2506, 0.0
    %2636 = vadd.xlane.f32.xlu0 %v2635
    %v2637 = vpop.xlane.xlu0 %2636
    %v2638 = vsel %vm2631, %v2507, 0.0
    %2639 = vadd.xlane.f32.xlu0 %v2638
    %v2640 = vpop.xlane.xlu0 %2639
    %v2641 = vsel %vm2631, %v2508, 0.0
    %2642 = vadd.xlane.f32.xlu0 %v2641
    %v2643 = vpop.xlane.xlu0 %2642
    %v2644 = vsel %vm2631, %v2509, 0.0
    %2645 = vadd.xlane.f32.xlu0 %v2644
    %v2646 = vpop.xlane.xlu0 %2645
    %v2647 = vsel %vm2631, %v2510, 0.0
    %2648 = vadd.xlane.f32.xlu0 %v2647
    %v2649 = vpop.xlane.xlu0 %2648
    %v2650 = vsel %vm2631, %v2511, 0.0
    %2651 = vadd.xlane.f32.xlu0 %v2650
    %v2652 = vpop.xlane.xlu0 %2651
    %v2653 = vsel %vm2631, %v2512, 0.0
    %2654 = vadd.xlane.f32.xlu0 %v2653
    %v2655 = vpop.xlane.xlu0 %2654
    %v2656 = vsel %vm2631, %v2513, 0.0
    %2657 = vadd.xlane.f32.xlu0 %v2656
    %v2658 = vpop.xlane.xlu0 %2657
    %v2659 = vsel %vm2631, %v2514, 0.0
    %2660 = vadd.xlane.f32.xlu0 %v2659
    %v2661 = vpop.xlane.xlu0 %2660
    %v2662 = vsel %vm2631, %v2515, 0.0
    %2663 = vadd.xlane.f32.xlu0 %v2662
    %v2664 = vpop.xlane.xlu0 %2663
    %v2665 = vsel %vm2631, %v2516, 0.0
    %2666 = vadd.xlane.f32.xlu0 %v2665
    %v2667 = vpop.xlane.xlu0 %2666
    %v2668 = vsel %vm2631, %v2517, 0.0
    %2669 = vadd.xlane.f32.xlu0 %v2668
    %v2670 = vpop.xlane.xlu0 %2669
    %v2671 = vsel %vm2631, %v2518, 0.0
    %2672 = vadd.xlane.f32.xlu0 %v2671
    %v2673 = vpop.xlane.xlu0 %2672
    %v2674 = vsel %vm2631, %v2519, 0.0
    %2675 = vadd.xlane.f32.xlu0 %v2674
    %v2676 = vpop.xlane.xlu0 %2675
    %v2677 = vsel %vm2631, %v2520, 0.0
    %2678 = vadd.xlane.f32.xlu0 %v2677
    %v2679 = vpop.xlane.xlu0 %2678
    %v2680 = vsel %vm2631, %v2521, 0.0
    %2681 = vadd.xlane.f32.xlu0 %v2680
    %v2682 = vpop.xlane.xlu0 %2681
    %v2683 = vsel %vm2631, %v2522, 0.0
    %2684 = vadd.xlane.f32.xlu0 %v2683
    %v2685 = vpop.xlane.xlu0 %2684
    %v2686 = vsel %vm2631, %v2523, 0.0
    %2687 = vadd.xlane.f32.xlu0 %v2686
    %v2688 = vpop.xlane.xlu0 %2687
    %v2689 = vsel %vm2631, %v2524, 0.0
    %2690 = vadd.xlane.f32.xlu0 %v2689
    %v2691 = vpop.xlane.xlu0 %2690
    %v2692 = vsel %vm2631, %v2525, 0.0
    %2693 = vadd.xlane.f32.xlu0 %v2692
    %v2694 = vpop.xlane.xlu0 %2693
    %v2695 = vsel %vm2631, %v2526, 0.0
    %2696 = vadd.xlane.f32.xlu0 %v2695
    %v2697 = vpop.xlane.xlu0 %2696
    %v2698 = vsel %vm2631, %v2527, 0.0
    %2699 = vadd.xlane.f32.xlu0 %v2698
    %v2700 = vpop.xlane.xlu0 %2699
    %v2701 = vsel %vm2631, %v2528, 0.0
    %2702 = vadd.xlane.f32.xlu0 %v2701
    %v2703 = vpop.xlane.xlu0 %2702
    %v2704 = vsel %vm2631, %v2529, 0.0
    %2705 = vadd.xlane.f32.xlu0 %v2704
    %v2706 = vpop.xlane.xlu0 %2705
    %v2707 = vsel %vm2631, %v2530, 0.0
    %2708 = vadd.xlane.f32.xlu0 %v2707
    %v2709 = vpop.xlane.xlu0 %2708
    %v2710 = vsel %vm2631, %v2531, 0.0
    %2711 = vadd.xlane.f32.xlu0 %v2710
    %v2712 = vpop.xlane.xlu0 %2711
    %v2713 = vsel %vm2631, %v2532, 0.0
    %2714 = vadd.xlane.f32.xlu0 %v2713
    %v2715 = vpop.xlane.xlu0 %2714
    %v2716 = vsel %vm2631, %v2533, 0.0
    %2717 = vadd.xlane.f32.xlu0 %v2716
    %v2718 = vpop.xlane.xlu0 %2717
    %v2719 = vsel %vm2631, %v2534, 0.0
    %2720 = vadd.xlane.f32.xlu0 %v2719
    %v2721 = vpop.xlane.xlu0 %2720
    %v2722 = vsel %vm2631, %v2535, 0.0
    %2723 = vadd.xlane.f32.xlu0 %v2722
    %v2724 = vpop.xlane.xlu0 %2723
    %v2725 = vsel %vm2631, %v2536, 0.0
    %2726 = vadd.xlane.f32.xlu0 %v2725
    %v2727 = vpop.xlane.xlu0 %2726
    %v2728 = vsel %vm2631, %v2537, 0.0
    %2729 = vadd.xlane.f32.xlu0 %v2728
    %v2730 = vpop.xlane.xlu0 %2729
    %v2731 = vsel %vm2631, %v2538, 0.0
    %2732 = vadd.xlane.f32.xlu0 %v2731
    %v2733 = vpop.xlane.xlu0 %2732
    %v2734 = vsel %vm2631, %v2539, 0.0
    %2735 = vadd.xlane.f32.xlu0 %v2734
    %v2736 = vpop.xlane.xlu0 %2735
    %v2737 = vsel %vm2631, %v2540, 0.0
    %2738 = vadd.xlane.f32.xlu0 %v2737
    %v2739 = vpop.xlane.xlu0 %2738
    %v2740 = vsel %vm2631, %v2541, 0.0
    %2741 = vadd.xlane.f32.xlu0 %v2740
    %v2742 = vpop.xlane.xlu0 %2741
    %v2743 = vsel %vm2631, %v2542, 0.0
    %2744 = vadd.xlane.f32.xlu0 %v2743
    %v2745 = vpop.xlane.xlu0 %2744
    %v2746 = vsel %vm2631, %v2543, 0.0
    %2747 = vadd.xlane.f32.xlu0 %v2746
    %v2748 = vpop.xlane.xlu0 %2747
    %v2749 = vsel %vm2631, %v2544, 0.0
    %2750 = vadd.xlane.f32.xlu0 %v2749
    %v2751 = vpop.xlane.xlu0 %2750
    %v2752 = vsel %vm2631, %v2545, 0.0
    %2753 = vadd.xlane.f32.xlu0 %v2752
    %v2754 = vpop.xlane.xlu0 %2753
    %v2755 = vsel %vm2631, %v2546, 0.0
    %2756 = vadd.xlane.f32.xlu0 %v2755
    %v2757 = vpop.xlane.xlu0 %2756
    %v2758 = vsel %vm2631, %v2547, 0.0
    %2759 = vadd.xlane.f32.xlu0 %v2758
    %v2760 = vpop.xlane.xlu0 %2759
    %v2761 = vsel %vm2631, %v2548, 0.0
    %2762 = vadd.xlane.f32.xlu0 %v2761
    %v2763 = vpop.xlane.xlu0 %2762
    %v2764 = vsel %vm2631, %v2549, 0.0
    %2765 = vadd.xlane.f32.xlu0 %v2764
    %v2766 = vpop.xlane.xlu0 %2765
    %v2767 = vsel %vm2631, %v2550, 0.0
    %2768 = vadd.xlane.f32.xlu0 %v2767
    %v2769 = vpop.xlane.xlu0 %2768
    %v2770 = vsel %vm2631, %v2551, 0.0
    %2771 = vadd.xlane.f32.xlu0 %v2770
    %v2772 = vpop.xlane.xlu0 %2771
    %v2773 = vsel %vm2631, %v2552, 0.0
    %2774 = vadd.xlane.f32.xlu0 %v2773
    %v2775 = vpop.xlane.xlu0 %2774
    %v2776 = vsel %vm2631, %v2553, 0.0
    %2777 = vadd.xlane.f32.xlu0 %v2776
    %v2778 = vpop.xlane.xlu0 %2777
    %v2779 = vsel %vm2631, %v2554, 0.0
    %2780 = vadd.xlane.f32.xlu0 %v2779
    %v2781 = vpop.xlane.xlu0 %2780
    %v2782 = vsel %vm2631, %v2555, 0.0
    %2783 = vadd.xlane.f32.xlu0 %v2782
    %v2784 = vpop.xlane.xlu0 %2783
    %v2785 = vsel %vm2631, %v2556, 0.0
    %2786 = vadd.xlane.f32.xlu0 %v2785
    %v2787 = vpop.xlane.xlu0 %2786
    %v2788 = vsel %vm2631, %v2557, 0.0
    %2789 = vadd.xlane.f32.xlu0 %v2788
    %v2790 = vpop.xlane.xlu0 %2789
    %v2791 = vsel %vm2631, %v2558, 0.0
    %2792 = vadd.xlane.f32.xlu0 %v2791
    %v2793 = vpop.xlane.xlu0 %2792
    %v2794 = vsel %vm2631, %v2559, 0.0
    %2795 = vadd.xlane.f32.xlu0 %v2794
    %v2796 = vpop.xlane.xlu0 %2795
    %v2797 = vsel %vm2631, %v2560, 0.0
    %2798 = vadd.xlane.f32.xlu0 %v2797
    %v2799 = vpop.xlane.xlu0 %2798
    %v2800 = vsel %vm2631, %v2561, 0.0
    %2801 = vadd.xlane.f32.xlu0 %v2800
    %v2802 = vpop.xlane.xlu0 %2801
    %v2803 = vsel %vm2631, %v2562, 0.0
    %2804 = vadd.xlane.f32.xlu0 %v2803
    %v2805 = vpop.xlane.xlu0 %2804
    %v2806 = vsel %vm2631, %v2563, 0.0
    %2807 = vadd.xlane.f32.xlu0 %v2806
    %v2808 = vpop.xlane.xlu0 %2807
    %v2809 = vsel %vm2631, %v2564, 0.0
    %2810 = vadd.xlane.f32.xlu0 %v2809
    %v2811 = vpop.xlane.xlu0 %2810
    %v2812 = vsel %vm2631, %v2565, 0.0
    %2813 = vadd.xlane.f32.xlu0 %v2812
    %v2814 = vpop.xlane.xlu0 %2813
    %v2815 = vsel %vm2631, %v2566, 0.0
    %2816 = vadd.xlane.f32.xlu0 %v2815
    %v2817 = vpop.xlane.xlu0 %2816
    %v2818 = vsel %vm2631, %v2567, 0.0
    %2819 = vadd.xlane.f32.xlu0 %v2818
    %v2820 = vpop.xlane.xlu0 %2819
    %v2821 = vsel %vm2631, %v2568, 0.0
    %2822 = vadd.xlane.f32.xlu0 %v2821
    %v2823 = vpop.xlane.xlu0 %2822
    %v2824 = vsel %vm2631, %v2569, 0.0
    %2825 = vadd.xlane.f32.xlu0 %v2824
    %v2826 = vpop.xlane.xlu0 %2825
    %v2827 = vsel %vm2631, %v2570, 0.0
    %2828 = vadd.xlane.f32.xlu0 %v2827
    %v2829 = vpop.xlane.xlu0 %2828
    %v2830 = vsel %vm2631, %v2571, 0.0
    %2831 = vadd.xlane.f32.xlu0 %v2830
    %v2832 = vpop.xlane.xlu0 %2831
    %v2833 = vsel %vm2631, %v2572, 0.0
    %2834 = vadd.xlane.f32.xlu0 %v2833
    %v2835 = vpop.xlane.xlu0 %2834
    %v2836 = vsel %vm2631, %v2573, 0.0
    %2837 = vadd.xlane.f32.xlu0 %v2836
    %v2838 = vpop.xlane.xlu0 %2837
    %v2839 = vsel %vm2631, %v2574, 0.0
    %2840 = vadd.xlane.f32.xlu0 %v2839
    %v2841 = vpop.xlane.xlu0 %2840
    %v2842 = vsel %vm2631, %v2575, 0.0
    %2843 = vadd.xlane.f32.xlu0 %v2842
    %v2844 = vpop.xlane.xlu0 %2843
    %v2845 = vsel %vm2631, %v2576, 0.0
    %2846 = vadd.xlane.f32.xlu0 %v2845
    %v2847 = vpop.xlane.xlu0 %2846
    %v2848 = vsel %vm2631, %v2577, 0.0
    %2849 = vadd.xlane.f32.xlu0 %v2848
    %v2850 = vpop.xlane.xlu0 %2849
    %v2851 = vsel %vm2631, %v2578, 0.0
    %2852 = vadd.xlane.f32.xlu0 %v2851
    %v2853 = vpop.xlane.xlu0 %2852
    %v2854 = vsel %vm2631, %v2579, 0.0
    %2855 = vadd.xlane.f32.xlu0 %v2854
    %v2856 = vpop.xlane.xlu0 %2855
    %v2857 = vsel %vm2631, %v2580, 0.0
    %2858 = vadd.xlane.f32.xlu0 %v2857
    %v2859 = vpop.xlane.xlu0 %2858
    %v2860 = vsel %vm2631, %v2581, 0.0
    %2861 = vadd.xlane.f32.xlu0 %v2860
    %v2862 = vpop.xlane.xlu0 %2861
    %v2863 = vsel %vm2631, %v2582, 0.0
    %2864 = vadd.xlane.f32.xlu0 %v2863
    %v2865 = vpop.xlane.xlu0 %2864
    %v2866 = vsel %vm2631, %v2583, 0.0
    %2867 = vadd.xlane.f32.xlu0 %v2866
    %v2868 = vpop.xlane.xlu0 %2867
    %v2869 = vsel %vm2631, %v2584, 0.0
    %2870 = vadd.xlane.f32.xlu0 %v2869
    %v2871 = vpop.xlane.xlu0 %2870
    %v2872 = vsel %vm2631, %v2585, 0.0
    %2873 = vadd.xlane.f32.xlu0 %v2872
    %v2874 = vpop.xlane.xlu0 %2873
    %v2875 = vsel %vm2631, %v2586, 0.0
    %2876 = vadd.xlane.f32.xlu0 %v2875
    %v2877 = vpop.xlane.xlu0 %2876
    %v2878 = vsel %vm2631, %v2587, 0.0
    %2879 = vadd.xlane.f32.xlu0 %v2878
    %v2880 = vpop.xlane.xlu0 %2879
    %v2881 = vsel %vm2631, %v2588, 0.0
    %2882 = vadd.xlane.f32.xlu0 %v2881
    %v2883 = vpop.xlane.xlu0 %2882
    %v2884 = vsel %vm2631, %v2589, 0.0
    %2885 = vadd.xlane.f32.xlu0 %v2884
    %v2886 = vpop.xlane.xlu0 %2885
    %v2887 = vsel %vm2631, %v2590, 0.0
    %2888 = vadd.xlane.f32.xlu0 %v2887
    %v2889 = vpop.xlane.xlu0 %2888
    %v2890 = vsel %vm2631, %v2591, 0.0
    %2891 = vadd.xlane.f32.xlu0 %v2890
    %v2892 = vpop.xlane.xlu0 %2891
    %v2893 = vsel %vm2631, %v2592, 0.0
    %2894 = vadd.xlane.f32.xlu0 %v2893
    %v2895 = vpop.xlane.xlu0 %2894
    %v2896 = vsel %vm2631, %v2593, 0.0
    %2897 = vadd.xlane.f32.xlu0 %v2896
    %v2898 = vpop.xlane.xlu0 %2897
    %v2899 = vsel %vm2631, %v2594, 0.0
    %2900 = vadd.xlane.f32.xlu0 %v2899
    %v2901 = vpop.xlane.xlu0 %2900
    %v2902 = vsel %vm2631, %v2595, 0.0
    %2903 = vadd.xlane.f32.xlu0 %v2902
    %v2904 = vpop.xlane.xlu0 %2903
    %v2905 = vsel %vm2631, %v2596, 0.0
    %2906 = vadd.xlane.f32.xlu0 %v2905
    %v2907 = vpop.xlane.xlu0 %2906
    %v2908 = vsel %vm2631, %v2597, 0.0
    %2909 = vadd.xlane.f32.xlu0 %v2908
    %v2910 = vpop.xlane.xlu0 %2909
    %v2911 = vsel %vm2631, %v2598, 0.0
    %2912 = vadd.xlane.f32.xlu0 %v2911
    %v2913 = vpop.xlane.xlu0 %2912
    %v2914 = vsel %vm2631, %v2599, 0.0
    %2915 = vadd.xlane.f32.xlu0 %v2914
    %v2916 = vpop.xlane.xlu0 %2915
    %v2917 = vsel %vm2631, %v2600, 0.0
    %2918 = vadd.xlane.f32.xlu0 %v2917
    %v2919 = vpop.xlane.xlu0 %2918
    %v2920 = vsel %vm2631, %v2601, 0.0
    %2921 = vadd.xlane.f32.xlu0 %v2920
    %v2922 = vpop.xlane.xlu0 %2921
    %v2923 = vsel %vm2631, %v2602, 0.0
    %2924 = vadd.xlane.f32.xlu0 %v2923
    %v2925 = vpop.xlane.xlu0 %2924
    %v2926 = vsel %vm2631, %v2603, 0.0
    %2927 = vadd.xlane.f32.xlu0 %v2926
    %v2928 = vpop.xlane.xlu0 %2927
    %v2929 = vsel %vm2631, %v2604, 0.0
    %2930 = vadd.xlane.f32.xlu0 %v2929
    %v2931 = vpop.xlane.xlu0 %2930
    %v2932 = vsel %vm2631, %v2605, 0.0
    %2933 = vadd.xlane.f32.xlu0 %v2932
    %v2934 = vpop.xlane.xlu0 %2933
    %v2935 = vsel %vm2631, %v2606, 0.0
    %2936 = vadd.xlane.f32.xlu0 %v2935
    %v2937 = vpop.xlane.xlu0 %2936
    %v2938 = vsel %vm2631, %v2607, 0.0
    %2939 = vadd.xlane.f32.xlu0 %v2938
    %v2940 = vpop.xlane.xlu0 %2939
    %v2941 = vsel %vm2631, %v2608, 0.0
    %2942 = vadd.xlane.f32.xlu0 %v2941
    %v2943 = vpop.xlane.xlu0 %2942
    %v2944 = vsel %vm2631, %v2609, 0.0
    %2945 = vadd.xlane.f32.xlu0 %v2944
    %v2946 = vpop.xlane.xlu0 %2945
    %v2947 = vsel %vm2631, %v2610, 0.0
    %2948 = vadd.xlane.f32.xlu0 %v2947
    %v2949 = vpop.xlane.xlu0 %2948
    %v2950 = vsel %vm2631, %v2611, 0.0
    %2951 = vadd.xlane.f32.xlu0 %v2950
    %v2952 = vpop.xlane.xlu0 %2951
    %v2953 = vsel %vm2631, %v2612, 0.0
    %2954 = vadd.xlane.f32.xlu0 %v2953
    %v2955 = vpop.xlane.xlu0 %2954
    %v2956 = vsel %vm2631, %v2613, 0.0
    %2957 = vadd.xlane.f32.xlu0 %v2956
    %v2958 = vpop.xlane.xlu0 %2957
    %v2959 = vsel %vm2631, %v2614, 0.0
    %2960 = vadd.xlane.f32.xlu0 %v2959
    %v2961 = vpop.xlane.xlu0 %2960
    %v2962 = vsel %vm2631, %v2615, 0.0
    %2963 = vadd.xlane.f32.xlu0 %v2962
    %v2964 = vpop.xlane.xlu0 %2963
    %v2965 = vsel %vm2631, %v2616, 0.0
    %2966 = vadd.xlane.f32.xlu0 %v2965
    %v2967 = vpop.xlane.xlu0 %2966
    %v2968 = vsel %vm2631, %v2617, 0.0
    %2969 = vadd.xlane.f32.xlu0 %v2968
    %v2970 = vpop.xlane.xlu0 %2969
    %v2971 = vsel %vm2631, %v2618, 0.0
    %2972 = vadd.xlane.f32.xlu0 %v2971
    %v2973 = vpop.xlane.xlu0 %2972
    %v2974 = vsel %vm2631, %v2619, 0.0
    %2975 = vadd.xlane.f32.xlu0 %v2974
    %v2976 = vpop.xlane.xlu0 %2975
    %v2977 = vsel %vm2631, %v2620, 0.0
    %2978 = vadd.xlane.f32.xlu0 %v2977
    %v2979 = vpop.xlane.xlu0 %2978
    %v2980 = vsel %vm2631, %v2621, 0.0
    %2981 = vadd.xlane.f32.xlu0 %v2980
    %v2982 = vpop.xlane.xlu0 %2981
    %v2983 = vsel %vm2631, %v2622, 0.0
    %2984 = vadd.xlane.f32.xlu0 %v2983
    %v2985 = vpop.xlane.xlu0 %2984
    %v2986 = vsel %vm2631, %v2623, 0.0
    %2987 = vadd.xlane.f32.xlu0 %v2986
    %v2988 = vpop.xlane.xlu0 %2987
    %v2989 = vsel %vm2631, %v2624, 0.0
    %2990 = vadd.xlane.f32.xlu0 %v2989
    %v2991 = vpop.xlane.xlu0 %2990
    %v2992 = vsel %vm2631, %v2625, 0.0
    %2993 = vadd.xlane.f32.xlu0 %v2992
    %v2994 = vpop.xlane.xlu0 %2993
    %v2995 = vsel %vm2631, %v2626, 0.0
    %2996 = vadd.xlane.f32.xlu0 %v2995
    %v2997 = vpop.xlane.xlu0 %2996
    %v2998 = vsel %vm2631, %v2627, 0.0
    %2999 = vadd.xlane.f32.xlu0 %v2998
    %v3000 = vpop.xlane.xlu0 %2999
    %v3001 = vsel %vm2631, %v2628, 0.0
    %3002 = vadd.xlane.f32.xlu0 %v3001
    %v3003 = vpop.xlane.xlu0 %3002
    %v3004 = vsel %vm2631, %v2629, 0.0
    %3005 = vadd.xlane.f32.xlu0 %v3004
    %v3006 = vpop.xlane.xlu0 %3005
    %v3007 = vsel %vm2631, %v2630, 0.0
    %3008 = vadd.xlane.f32.xlu0 %v3007
    %v3009 = vpop.xlane.xlu0 %3008
    %s3010 = sld [smem:[#allocation2]]
    %v3011 = vstv %s3010
    %v3012 = vadd.f32 %v2634, %v3011
    %v3013 = vadd.f32 %v2637, %v3011
    %v3014 = vadd.f32 %v2640, %v3011
    %v3015 = vadd.f32 %v2643, %v3011
    %v3016 = vadd.f32 %v2646, %v3011
    %v3017 = vadd.f32 %v2649, %v3011
    %v3018 = vadd.f32 %v2652, %v3011
    %v3019 = vadd.f32 %v2655, %v3011
    %v3020 = vadd.f32 %v2658, %v3011
    %v3021 = vadd.f32 %v2661, %v3011
    %v3022 = vadd.f32 %v2664, %v3011
    %v3023 = vadd.f32 %v2667, %v3011
    %v3024 = vadd.f32 %v2670, %v3011
    %v3025 = vadd.f32 %v2673, %v3011
    %v3026 = vadd.f32 %v2676, %v3011
    %v3027 = vadd.f32 %v2679, %v3011
    %v3028 = vadd.f32 %v2682, %v3011
    %v3029 = vadd.f32 %v2685, %v3011
    %v3030 = vadd.f32 %v2688, %v3011
    %v3031 = vadd.f32 %v2691, %v3011
    %v3032 = vadd.f32 %v2694, %v3011
    %v3033 = vadd.f32 %v2697, %v3011
    %v3034 = vadd.f32 %v2700, %v3011
    %v3035 = vadd.f32 %v2703, %v3011
    %v3036 = vadd.f32 %v2706, %v3011
    %v3037 = vadd.f32 %v2709, %v3011
    %v3038 = vadd.f32 %v2712, %v3011
    %v3039 = vadd.f32 %v2715, %v3011
    %v3040 = vadd.f32 %v2718, %v3011
    %v3041 = vadd.f32 %v2721, %v3011
    %v3042 = vadd.f32 %v2724, %v3011
    %v3043 = vadd.f32 %v2727, %v3011
    %v3044 = vadd.f32 %v2730, %v3011
    %v3045 = vadd.f32 %v2733, %v3011
    %v3046 = vadd.f32 %v2736, %v3011
    %v3047 = vadd.f32 %v2739, %v3011
    %v3048 = vadd.f32 %v2742, %v3011
    %v3049 = vadd.f32 %v2745, %v3011
    %v3050 = vadd.f32 %v2748, %v3011
    %v3051 = vadd.f32 %v2751, %v3011
    %v3052 = vadd.f32 %v2754, %v3011
    %v3053 = vadd.f32 %v2757, %v3011
    %v3054 = vadd.f32 %v2760, %v3011
    %v3055 = vadd.f32 %v2763, %v3011
    %v3056 = vadd.f32 %v2766, %v3011
    %v3057 = vadd.f32 %v2769, %v3011
    %v3058 = vadd.f32 %v2772, %v3011
    %v3059 = vadd.f32 %v2775, %v3011
    %v3060 = vadd.f32 %v2778, %v3011
    %v3061 = vadd.f32 %v2781, %v3011
    %v3062 = vadd.f32 %v2784, %v3011
    %v3063 = vadd.f32 %v2787, %v3011
    %v3064 = vadd.f32 %v2790, %v3011
    %v3065 = vadd.f32 %v2793, %v3011
    %v3066 = vadd.f32 %v2796, %v3011
    %v3067 = vadd.f32 %v2799, %v3011
    %v3068 = vadd.f32 %v2802, %v3011
    %v3069 = vadd.f32 %v2805, %v3011
    %v3070 = vadd.f32 %v2808, %v3011
    %v3071 = vadd.f32 %v2811, %v3011
    %v3072 = vadd.f32 %v2814, %v3011
    %v3073 = vadd.f32 %v2817, %v3011
    %v3074 = vadd.f32 %v2820, %v3011
    %v3075 = vadd.f32 %v2823, %v3011
    %v3076 = vadd.f32 %v2826, %v3011
    %v3077 = vadd.f32 %v2829, %v3011
    %v3078 = vadd.f32 %v2832, %v3011
    %v3079 = vadd.f32 %v2835, %v3011
    %v3080 = vadd.f32 %v2838, %v3011
    %v3081 = vadd.f32 %v2841, %v3011
    %v3082 = vadd.f32 %v2844, %v3011
    %v3083 = vadd.f32 %v2847, %v3011
    %v3084 = vadd.f32 %v2850, %v3011
    %v3085 = vadd.f32 %v2853, %v3011
    %v3086 = vadd.f32 %v2856, %v3011
    %v3087 = vadd.f32 %v2859, %v3011
    %v3088 = vadd.f32 %v2862, %v3011
    %v3089 = vadd.f32 %v2865, %v3011
    %v3090 = vadd.f32 %v2868, %v3011
    %v3091 = vadd.f32 %v2871, %v3011
    %v3092 = vadd.f32 %v2874, %v3011
    %v3093 = vadd.f32 %v2877, %v3011
    %v3094 = vadd.f32 %v2880, %v3011
    %v3095 = vadd.f32 %v2883, %v3011
    %v3096 = vadd.f32 %v2886, %v3011
    %v3097 = vadd.f32 %v2889, %v3011
    %v3098 = vadd.f32 %v2892, %v3011
    %v3099 = vadd.f32 %v2895, %v3011
    %v3100 = vadd.f32 %v2898, %v3011
    %v3101 = vadd.f32 %v2901, %v3011
    %v3102 = vadd.f32 %v2904, %v3011
    %v3103 = vadd.f32 %v2907, %v3011
    %v3104 = vadd.f32 %v2910, %v3011
    %v3105 = vadd.f32 %v2913, %v3011
    %v3106 = vadd.f32 %v2916, %v3011
    %v3107 = vadd.f32 %v2919, %v3011
    %v3108 = vadd.f32 %v2922, %v3011
    %v3109 = vadd.f32 %v2925, %v3011
    %v3110 = vadd.f32 %v2928, %v3011
    %v3111 = vadd.f32 %v2931, %v3011
    %v3112 = vadd.f32 %v2934, %v3011
    %v3113 = vadd.f32 %v2937, %v3011
    %v3114 = vadd.f32 %v2940, %v3011
    %v3115 = vadd.f32 %v2943, %v3011
    %v3116 = vadd.f32 %v2946, %v3011
    %v3117 = vadd.f32 %v2949, %v3011
    %v3118 = vadd.f32 %v2952, %v3011
    %v3119 = vadd.f32 %v2955, %v3011
    %v3120 = vadd.f32 %v2958, %v3011
    %v3121 = vadd.f32 %v2961, %v3011
    %v3122 = vadd.f32 %v2964, %v3011
    %v3123 = vadd.f32 %v2967, %v3011
    %v3124 = vadd.f32 %v2970, %v3011
    %v3125 = vadd.f32 %v2973, %v3011
    %v3126 = vadd.f32 %v2976, %v3011
    %v3127 = vadd.f32 %v2979, %v3011
    %v3128 = vadd.f32 %v2982, %v3011
    %v3129 = vadd.f32 %v2985, %v3011
    %v3130 = vadd.f32 %v2988, %v3011
    %v3131 = vadd.f32 %v2991, %v3011
    %v3132 = vadd.f32 %v2994, %v3011
    %v3133 = vadd.f32 %v2997, %v3011
    %v3134 = vadd.f32 %v3000, %v3011
    %v3135 = vadd.f32 %v3003, %v3011
    %v3136 = vadd.f32 %v3006, %v3011
    %v3137 = vadd.f32 %v3009, %v3011
    %v3264 = vlaneseq
    %v3265 = vshrl.u32 %v3264, 7
    %v3266 = vsub.s32 0, %v3265
    %v3267 = vrot.slane %v3012, %v3266
    %v3268 = vlaneseq
    %v3269 = vshrl.u32 %v3268, 7
    %v3270 = vsub.s32 1, %v3269
    %v3271 = vrot.slane %v3012, %v3270
    %v3272 = vlaneseq
    %v3273 = vshrl.u32 %v3272, 7
    %v3274 = vsub.s32 2, %v3273
    %v3275 = vrot.slane %v3012, %v3274
    %v3276 = vlaneseq
    %v3277 = vshrl.u32 %v3276, 7
    %v3278 = vsub.s32 3, %v3277
    %v3279 = vrot.slane %v3012, %v3278
    %v3280 = vlaneseq
    %v3281 = vshrl.u32 %v3280, 7
    %v3282 = vsub.s32 4, %v3281
    %v3283 = vrot.slane %v3012, %v3282
    %v3284 = vlaneseq
    %v3285 = vshrl.u32 %v3284, 7
    %v3286 = vsub.s32 5, %v3285
    %v3287 = vrot.slane %v3012, %v3286
    %v3288 = vlaneseq
    %v3289 = vshrl.u32 %v3288, 7
    %v3290 = vsub.s32 6, %v3289
    %v3291 = vrot.slane %v3012, %v3290
    %v3292 = vlaneseq
    %v3293 = vshrl.u32 %v3292, 7
    %v3294 = vsub.s32 7, %v3293
    %v3295 = vrot.slane %v3012, %v3294
    %v3296 = vlaneseq
    %v3297 = vshrl.u32 %v3296, 7
    %v3298 = vsub.s32 0, %v3297
    %v3299 = vrot.slane %v3013, %v3298
    %v3300 = vlaneseq
    %v3301 = vshrl.u32 %v3300, 7
    %v3302 = vsub.s32 1, %v3301
    %v3303 = vrot.slane %v3013, %v3302
    %v3304 = vlaneseq
    %v3305 = vshrl.u32 %v3304, 7
    %v3306 = vsub.s32 2, %v3305
    %v3307 = vrot.slane %v3013, %v3306
    %v3308 = vlaneseq
    %v3309 = vshrl.u32 %v3308, 7
    %v3310 = vsub.s32 3, %v3309
    %v3311 = vrot.slane %v3013, %v3310
    %v3312 = vlaneseq
    %v3313 = vshrl.u32 %v3312, 7
    %v3314 = vsub.s32 4, %v3313
    %v3315 = vrot.slane %v3013, %v3314
    %v3316 = vlaneseq
    %v3317 = vshrl.u32 %v3316, 7
    %v3318 = vsub.s32 5, %v3317
    %v3319 = vrot.slane %v3013, %v3318
    %v3320 = vlaneseq
    %v3321 = vshrl.u32 %v3320, 7
    %v3322 = vsub.s32 6, %v3321
    %v3323 = vrot.slane %v3013, %v3322
    %v3324 = vlaneseq
    %v3325 = vshrl.u32 %v3324, 7
    %v3326 = vsub.s32 7, %v3325
    %v3327 = vrot.slane %v3013, %v3326
    %v3328 = vlaneseq
    %v3329 = vshrl.u32 %v3328, 7
    %v3330 = vsub.s32 0, %v3329
    %v3331 = vrot.slane %v3014, %v3330
    %v3332 = vlaneseq
    %v3333 = vshrl.u32 %v3332, 7
    %v3334 = vsub.s32 1, %v3333
    %v3335 = vrot.slane %v3014, %v3334
    %v3336 = vlaneseq
    %v3337 = vshrl.u32 %v3336, 7
    %v3338 = vsub.s32 2, %v3337
    %v3339 = vrot.slane %v3014, %v3338
    %v3340 = vlaneseq
    %v3341 = vshrl.u32 %v3340, 7
    %v3342 = vsub.s32 3, %v3341
    %v3343 = vrot.slane %v3014, %v3342
    %v3344 = vlaneseq
    %v3345 = vshrl.u32 %v3344, 7
    %v3346 = vsub.s32 4, %v3345
    %v3347 = vrot.slane %v3014, %v3346
    %v3348 = vlaneseq
    %v3349 = vshrl.u32 %v3348, 7
    %v3350 = vsub.s32 5, %v3349
    %v3351 = vrot.slane %v3014, %v3350
    %v3352 = vlaneseq
    %v3353 = vshrl.u32 %v3352, 7
    %v3354 = vsub.s32 6, %v3353
    %v3355 = vrot.slane %v3014, %v3354
    %v3356 = vlaneseq
    %v3357 = vshrl.u32 %v3356, 7
    %v3358 = vsub.s32 7, %v3357
    %v3359 = vrot.slane %v3014, %v3358
    %v3360 = vlaneseq
    %v3361 = vshrl.u32 %v3360, 7
    %v3362 = vsub.s32 0, %v3361
    %v3363 = vrot.slane %v3015, %v3362
    %v3364 = vlaneseq
    %v3365 = vshrl.u32 %v3364, 7
    %v3366 = vsub.s32 1, %v3365
    %v3367 = vrot.slane %v3015, %v3366
    %v3368 = vlaneseq
    %v3369 = vshrl.u32 %v3368, 7
    %v3370 = vsub.s32 2, %v3369
    %v3371 = vrot.slane %v3015, %v3370
    %v3372 = vlaneseq
    %v3373 = vshrl.u32 %v3372, 7
    %v3374 = vsub.s32 3, %v3373
    %v3375 = vrot.slane %v3015, %v3374
    %v3376 = vlaneseq
    %v3377 = vshrl.u32 %v3376, 7
    %v3378 = vsub.s32 4, %v3377
    %v3379 = vrot.slane %v3015, %v3378
    %v3380 = vlaneseq
    %v3381 = vshrl.u32 %v3380, 7
    %v3382 = vsub.s32 5, %v3381
    %v3383 = vrot.slane %v3015, %v3382
    %v3384 = vlaneseq
    %v3385 = vshrl.u32 %v3384, 7
    %v3386 = vsub.s32 6, %v3385
    %v3387 = vrot.slane %v3015, %v3386
    %v3388 = vlaneseq
    %v3389 = vshrl.u32 %v3388, 7
    %v3390 = vsub.s32 7, %v3389
    %v3391 = vrot.slane %v3015, %v3390
    %v3392 = vlaneseq
    %v3393 = vshrl.u32 %v3392, 7
    %v3394 = vsub.s32 0, %v3393
    %v3395 = vrot.slane %v3016, %v3394
    %v3396 = vlaneseq
    %v3397 = vshrl.u32 %v3396, 7
    %v3398 = vsub.s32 1, %v3397
    %v3399 = vrot.slane %v3016, %v3398
    %v3400 = vlaneseq
    %v3401 = vshrl.u32 %v3400, 7
    %v3402 = vsub.s32 2, %v3401
    %v3403 = vrot.slane %v3016, %v3402
    %v3404 = vlaneseq
    %v3405 = vshrl.u32 %v3404, 7
    %v3406 = vsub.s32 3, %v3405
    %v3407 = vrot.slane %v3016, %v3406
    %v3408 = vlaneseq
    %v3409 = vshrl.u32 %v3408, 7
    %v3410 = vsub.s32 4, %v3409
    %v3411 = vrot.slane %v3016, %v3410
    %v3412 = vlaneseq
    %v3413 = vshrl.u32 %v3412, 7
    %v3414 = vsub.s32 5, %v3413
    %v3415 = vrot.slane %v3016, %v3414
    %v3416 = vlaneseq
    %v3417 = vshrl.u32 %v3416, 7
    %v3418 = vsub.s32 6, %v3417
    %v3419 = vrot.slane %v3016, %v3418
    %v3420 = vlaneseq
    %v3421 = vshrl.u32 %v3420, 7
    %v3422 = vsub.s32 7, %v3421
    %v3423 = vrot.slane %v3016, %v3422
    %v3424 = vlaneseq
    %v3425 = vshrl.u32 %v3424, 7
    %v3426 = vsub.s32 0, %v3425
    %v3427 = vrot.slane %v3017, %v3426
    %v3428 = vlaneseq
    %v3429 = vshrl.u32 %v3428, 7
    %v3430 = vsub.s32 1, %v3429
    %v3431 = vrot.slane %v3017, %v3430
    %v3432 = vlaneseq
    %v3433 = vshrl.u32 %v3432, 7
    %v3434 = vsub.s32 2, %v3433
    %v3435 = vrot.slane %v3017, %v3434
    %v3436 = vlaneseq
    %v3437 = vshrl.u32 %v3436, 7
    %v3438 = vsub.s32 3, %v3437
    %v3439 = vrot.slane %v3017, %v3438
    %v3440 = vlaneseq
    %v3441 = vshrl.u32 %v3440, 7
    %v3442 = vsub.s32 4, %v3441
    %v3443 = vrot.slane %v3017, %v3442
    %v3444 = vlaneseq
    %v3445 = vshrl.u32 %v3444, 7
    %v3446 = vsub.s32 5, %v3445
    %v3447 = vrot.slane %v3017, %v3446
    %v3448 = vlaneseq
    %v3449 = vshrl.u32 %v3448, 7
    %v3450 = vsub.s32 6, %v3449
    %v3451 = vrot.slane %v3017, %v3450
    %v3452 = vlaneseq
    %v3453 = vshrl.u32 %v3452, 7
    %v3454 = vsub.s32 7, %v3453
    %v3455 = vrot.slane %v3017, %v3454
    %v3456 = vlaneseq
    %v3457 = vshrl.u32 %v3456, 7
    %v3458 = vsub.s32 0, %v3457
    %v3459 = vrot.slane %v3018, %v3458
    %v3460 = vlaneseq
    %v3461 = vshrl.u32 %v3460, 7
    %v3462 = vsub.s32 1, %v3461
    %v3463 = vrot.slane %v3018, %v3462
    %v3464 = vlaneseq
    %v3465 = vshrl.u32 %v3464, 7
    %v3466 = vsub.s32 2, %v3465
    %v3467 = vrot.slane %v3018, %v3466
    %v3468 = vlaneseq
    %v3469 = vshrl.u32 %v3468, 7
    %v3470 = vsub.s32 3, %v3469
    %v3471 = vrot.slane %v3018, %v3470
    %v3472 = vlaneseq
    %v3473 = vshrl.u32 %v3472, 7
    %v3474 = vsub.s32 4, %v3473
    %v3475 = vrot.slane %v3018, %v3474
    %v3476 = vlaneseq
    %v3477 = vshrl.u32 %v3476, 7
    %v3478 = vsub.s32 5, %v3477
    %v3479 = vrot.slane %v3018, %v3478
    %v3480 = vlaneseq
    %v3481 = vshrl.u32 %v3480, 7
    %v3482 = vsub.s32 6, %v3481
    %v3483 = vrot.slane %v3018, %v3482
    %v3484 = vlaneseq
    %v3485 = vshrl.u32 %v3484, 7
    %v3486 = vsub.s32 7, %v3485
    %v3487 = vrot.slane %v3018, %v3486
    %v3488 = vlaneseq
    %v3489 = vshrl.u32 %v3488, 7
    %v3490 = vsub.s32 0, %v3489
    %v3491 = vrot.slane %v3019, %v3490
    %v3492 = vlaneseq
    %v3493 = vshrl.u32 %v3492, 7
    %v3494 = vsub.s32 1, %v3493
    %v3495 = vrot.slane %v3019, %v3494
    %v3496 = vlaneseq
    %v3497 = vshrl.u32 %v3496, 7
    %v3498 = vsub.s32 2, %v3497
    %v3499 = vrot.slane %v3019, %v3498
    %v3500 = vlaneseq
    %v3501 = vshrl.u32 %v3500, 7
    %v3502 = vsub.s32 3, %v3501
    %v3503 = vrot.slane %v3019, %v3502
    %v3504 = vlaneseq
    %v3505 = vshrl.u32 %v3504, 7
    %v3506 = vsub.s32 4, %v3505
    %v3507 = vrot.slane %v3019, %v3506
    %v3508 = vlaneseq
    %v3509 = vshrl.u32 %v3508, 7
    %v3510 = vsub.s32 5, %v3509
    %v3511 = vrot.slane %v3019, %v3510
    %v3512 = vlaneseq
    %v3513 = vshrl.u32 %v3512, 7
    %v3514 = vsub.s32 6, %v3513
    %v3515 = vrot.slane %v3019, %v3514
    %v3516 = vlaneseq
    %v3517 = vshrl.u32 %v3516, 7
    %v3518 = vsub.s32 7, %v3517
    %v3519 = vrot.slane %v3019, %v3518
    %v3520 = vlaneseq
    %v3521 = vshrl.u32 %v3520, 7
    %v3522 = vsub.s32 0, %v3521
    %v3523 = vrot.slane %v3020, %v3522
    %v3524 = vlaneseq
    %v3525 = vshrl.u32 %v3524, 7
    %v3526 = vsub.s32 1, %v3525
    %v3527 = vrot.slane %v3020, %v3526
    %v3528 = vlaneseq
    %v3529 = vshrl.u32 %v3528, 7
    %v3530 = vsub.s32 2, %v3529
    %v3531 = vrot.slane %v3020, %v3530
    %v3532 = vlaneseq
    %v3533 = vshrl.u32 %v3532, 7
    %v3534 = vsub.s32 3, %v3533
    %v3535 = vrot.slane %v3020, %v3534
    %v3536 = vlaneseq
    %v3537 = vshrl.u32 %v3536, 7
    %v3538 = vsub.s32 4, %v3537
    %v3539 = vrot.slane %v3020, %v3538
    %v3540 = vlaneseq
    %v3541 = vshrl.u32 %v3540, 7
    %v3542 = vsub.s32 5, %v3541
    %v3543 = vrot.slane %v3020, %v3542
    %v3544 = vlaneseq
    %v3545 = vshrl.u32 %v3544, 7
    %v3546 = vsub.s32 6, %v3545
    %v3547 = vrot.slane %v3020, %v3546
    %v3548 = vlaneseq
    %v3549 = vshrl.u32 %v3548, 7
    %v3550 = vsub.s32 7, %v3549
    %v3551 = vrot.slane %v3020, %v3550
    %v3552 = vlaneseq
    %v3553 = vshrl.u32 %v3552, 7
    %v3554 = vsub.s32 0, %v3553
    %v3555 = vrot.slane %v3021, %v3554
    %v3556 = vlaneseq
    %v3557 = vshrl.u32 %v3556, 7
    %v3558 = vsub.s32 1, %v3557
    %v3559 = vrot.slane %v3021, %v3558
    %v3560 = vlaneseq
    %v3561 = vshrl.u32 %v3560, 7
    %v3562 = vsub.s32 2, %v3561
    %v3563 = vrot.slane %v3021, %v3562
    %v3564 = vlaneseq
    %v3565 = vshrl.u32 %v3564, 7
    %v3566 = vsub.s32 3, %v3565
    %v3567 = vrot.slane %v3021, %v3566
    %v3568 = vlaneseq
    %v3569 = vshrl.u32 %v3568, 7
    %v3570 = vsub.s32 4, %v3569
    %v3571 = vrot.slane %v3021, %v3570
    %v3572 = vlaneseq
    %v3573 = vshrl.u32 %v3572, 7
    %v3574 = vsub.s32 5, %v3573
    %v3575 = vrot.slane %v3021, %v3574
    %v3576 = vlaneseq
    %v3577 = vshrl.u32 %v3576, 7
    %v3578 = vsub.s32 6, %v3577
    %v3579 = vrot.slane %v3021, %v3578
    %v3580 = vlaneseq
    %v3581 = vshrl.u32 %v3580, 7
    %v3582 = vsub.s32 7, %v3581
    %v3583 = vrot.slane %v3021, %v3582
    %v3584 = vlaneseq
    %v3585 = vshrl.u32 %v3584, 7
    %v3586 = vsub.s32 0, %v3585
    %v3587 = vrot.slane %v3022, %v3586
    %v3588 = vlaneseq
    %v3589 = vshrl.u32 %v3588, 7
    %v3590 = vsub.s32 1, %v3589
    %v3591 = vrot.slane %v3022, %v3590
    %v3592 = vlaneseq
    %v3593 = vshrl.u32 %v3592, 7
    %v3594 = vsub.s32 2, %v3593
    %v3595 = vrot.slane %v3022, %v3594
    %v3596 = vlaneseq
    %v3597 = vshrl.u32 %v3596, 7
    %v3598 = vsub.s32 3, %v3597
    %v3599 = vrot.slane %v3022, %v3598
    %v3600 = vlaneseq
    %v3601 = vshrl.u32 %v3600, 7
    %v3602 = vsub.s32 4, %v3601
    %v3603 = vrot.slane %v3022, %v3602
    %v3604 = vlaneseq
    %v3605 = vshrl.u32 %v3604, 7
    %v3606 = vsub.s32 5, %v3605
    %v3607 = vrot.slane %v3022, %v3606
    %v3608 = vlaneseq
    %v3609 = vshrl.u32 %v3608, 7
    %v3610 = vsub.s32 6, %v3609
    %v3611 = vrot.slane %v3022, %v3610
    %v3612 = vlaneseq
    %v3613 = vshrl.u32 %v3612, 7
    %v3614 = vsub.s32 7, %v3613
    %v3615 = vrot.slane %v3022, %v3614
    %v3616 = vlaneseq
    %v3617 = vshrl.u32 %v3616, 7
    %v3618 = vsub.s32 0, %v3617
    %v3619 = vrot.slane %v3023, %v3618
    %v3620 = vlaneseq
    %v3621 = vshrl.u32 %v3620, 7
    %v3622 = vsub.s32 1, %v3621
    %v3623 = vrot.slane %v3023, %v3622
    %v3624 = vlaneseq
    %v3625 = vshrl.u32 %v3624, 7
    %v3626 = vsub.s32 2, %v3625
    %v3627 = vrot.slane %v3023, %v3626
    %v3628 = vlaneseq
    %v3629 = vshrl.u32 %v3628, 7
    %v3630 = vsub.s32 3, %v3629
    %v3631 = vrot.slane %v3023, %v3630
    %v3632 = vlaneseq
    %v3633 = vshrl.u32 %v3632, 7
    %v3634 = vsub.s32 4, %v3633
    %v3635 = vrot.slane %v3023, %v3634
    %v3636 = vlaneseq
    %v3637 = vshrl.u32 %v3636, 7
    %v3638 = vsub.s32 5, %v3637
    %v3639 = vrot.slane %v3023, %v3638
    %v3640 = vlaneseq
    %v3641 = vshrl.u32 %v3640, 7
    %v3642 = vsub.s32 6, %v3641
    %v3643 = vrot.slane %v3023, %v3642
    %v3644 = vlaneseq
    %v3645 = vshrl.u32 %v3644, 7
    %v3646 = vsub.s32 7, %v3645
    %v3647 = vrot.slane %v3023, %v3646
    %v3648 = vlaneseq
    %v3649 = vshrl.u32 %v3648, 7
    %v3650 = vsub.s32 0, %v3649
    %v3651 = vrot.slane %v3024, %v3650
    %v3652 = vlaneseq
    %v3653 = vshrl.u32 %v3652, 7
    %v3654 = vsub.s32 1, %v3653
    %v3655 = vrot.slane %v3024, %v3654
    %v3656 = vlaneseq
    %v3657 = vshrl.u32 %v3656, 7
    %v3658 = vsub.s32 2, %v3657
    %v3659 = vrot.slane %v3024, %v3658
    %v3660 = vlaneseq
    %v3661 = vshrl.u32 %v3660, 7
    %v3662 = vsub.s32 3, %v3661
    %v3663 = vrot.slane %v3024, %v3662
    %v3664 = vlaneseq
    %v3665 = vshrl.u32 %v3664, 7
    %v3666 = vsub.s32 4, %v3665
    %v3667 = vrot.slane %v3024, %v3666
    %v3668 = vlaneseq
    %v3669 = vshrl.u32 %v3668, 7
    %v3670 = vsub.s32 5, %v3669
    %v3671 = vrot.slane %v3024, %v3670
    %v3672 = vlaneseq
    %v3673 = vshrl.u32 %v3672, 7
    %v3674 = vsub.s32 6, %v3673
    %v3675 = vrot.slane %v3024, %v3674
    %v3676 = vlaneseq
    %v3677 = vshrl.u32 %v3676, 7
    %v3678 = vsub.s32 7, %v3677
    %v3679 = vrot.slane %v3024, %v3678
    %v3680 = vlaneseq
    %v3681 = vshrl.u32 %v3680, 7
    %v3682 = vsub.s32 0, %v3681
    %v3683 = vrot.slane %v3025, %v3682
    %v3684 = vlaneseq
    %v3685 = vshrl.u32 %v3684, 7
    %v3686 = vsub.s32 1, %v3685
    %v3687 = vrot.slane %v3025, %v3686
    %v3688 = vlaneseq
    %v3689 = vshrl.u32 %v3688, 7
    %v3690 = vsub.s32 2, %v3689
    %v3691 = vrot.slane %v3025, %v3690
    %v3692 = vlaneseq
    %v3693 = vshrl.u32 %v3692, 7
    %v3694 = vsub.s32 3, %v3693
    %v3695 = vrot.slane %v3025, %v3694
    %v3696 = vlaneseq
    %v3697 = vshrl.u32 %v3696, 7
    %v3698 = vsub.s32 4, %v3697
    %v3699 = vrot.slane %v3025, %v3698
    %v3700 = vlaneseq
    %v3701 = vshrl.u32 %v3700, 7
    %v3702 = vsub.s32 5, %v3701
    %v3703 = vrot.slane %v3025, %v3702
    %v3704 = vlaneseq
    %v3705 = vshrl.u32 %v3704, 7
    %v3706 = vsub.s32 6, %v3705
    %v3707 = vrot.slane %v3025, %v3706
    %v3708 = vlaneseq
    %v3709 = vshrl.u32 %v3708, 7
    %v3710 = vsub.s32 7, %v3709
    %v3711 = vrot.slane %v3025, %v3710
    %v3712 = vlaneseq
    %v3713 = vshrl.u32 %v3712, 7
    %v3714 = vsub.s32 0, %v3713
    %v3715 = vrot.slane %v3026, %v3714
    %v3716 = vlaneseq
    %v3717 = vshrl.u32 %v3716, 7
    %v3718 = vsub.s32 1, %v3717
    %v3719 = vrot.slane %v3026, %v3718
    %v3720 = vlaneseq
    %v3721 = vshrl.u32 %v3720, 7
    %v3722 = vsub.s32 2, %v3721
    %v3723 = vrot.slane %v3026, %v3722
    %v3724 = vlaneseq
    %v3725 = vshrl.u32 %v3724, 7
    %v3726 = vsub.s32 3, %v3725
    %v3727 = vrot.slane %v3026, %v3726
    %v3728 = vlaneseq
    %v3729 = vshrl.u32 %v3728, 7
    %v3730 = vsub.s32 4, %v3729
    %v3731 = vrot.slane %v3026, %v3730
    %v3732 = vlaneseq
    %v3733 = vshrl.u32 %v3732, 7
    %v3734 = vsub.s32 5, %v3733
    %v3735 = vrot.slane %v3026, %v3734
    %v3736 = vlaneseq
    %v3737 = vshrl.u32 %v3736, 7
    %v3738 = vsub.s32 6, %v3737
    %v3739 = vrot.slane %v3026, %v3738
    %v3740 = vlaneseq
    %v3741 = vshrl.u32 %v3740, 7
    %v3742 = vsub.s32 7, %v3741
    %v3743 = vrot.slane %v3026, %v3742
    %v3744 = vlaneseq
    %v3745 = vshrl.u32 %v3744, 7
    %v3746 = vsub.s32 0, %v3745
    %v3747 = vrot.slane %v3027, %v3746
    %v3748 = vlaneseq
    %v3749 = vshrl.u32 %v3748, 7
    %v3750 = vsub.s32 1, %v3749
    %v3751 = vrot.slane %v3027, %v3750
    %v3752 = vlaneseq
    %v3753 = vshrl.u32 %v3752, 7
    %v3754 = vsub.s32 2, %v3753
    %v3755 = vrot.slane %v3027, %v3754
    %v3756 = vlaneseq
    %v3757 = vshrl.u32 %v3756, 7
    %v3758 = vsub.s32 3, %v3757
    %v3759 = vrot.slane %v3027, %v3758
    %v3760 = vlaneseq
    %v3761 = vshrl.u32 %v3760, 7
    %v3762 = vsub.s32 4, %v3761
    %v3763 = vrot.slane %v3027, %v3762
    %v3764 = vlaneseq
    %v3765 = vshrl.u32 %v3764, 7
    %v3766 = vsub.s32 5, %v3765
    %v3767 = vrot.slane %v3027, %v3766
    %v3768 = vlaneseq
    %v3769 = vshrl.u32 %v3768, 7
    %v3770 = vsub.s32 6, %v3769
    %v3771 = vrot.slane %v3027, %v3770
    %v3772 = vlaneseq
    %v3773 = vshrl.u32 %v3772, 7
    %v3774 = vsub.s32 7, %v3773
    %v3775 = vrot.slane %v3027, %v3774
    %v3776 = vlaneseq
    %v3777 = vshrl.u32 %v3776, 7
    %v3778 = vsub.s32 0, %v3777
    %v3779 = vrot.slane %v3028, %v3778
    %v3780 = vlaneseq
    %v3781 = vshrl.u32 %v3780, 7
    %v3782 = vsub.s32 1, %v3781
    %v3783 = vrot.slane %v3028, %v3782
    %v3784 = vlaneseq
    %v3785 = vshrl.u32 %v3784, 7
    %v3786 = vsub.s32 2, %v3785
    %v3787 = vrot.slane %v3028, %v3786
    %v3788 = vlaneseq
    %v3789 = vshrl.u32 %v3788, 7
    %v3790 = vsub.s32 3, %v3789
    %v3791 = vrot.slane %v3028, %v3790
    %v3792 = vlaneseq
    %v3793 = vshrl.u32 %v3792, 7
    %v3794 = vsub.s32 4, %v3793
    %v3795 = vrot.slane %v3028, %v3794
    %v3796 = vlaneseq
    %v3797 = vshrl.u32 %v3796, 7
    %v3798 = vsub.s32 5, %v3797
    %v3799 = vrot.slane %v3028, %v3798
    %v3800 = vlaneseq
    %v3801 = vshrl.u32 %v3800, 7
    %v3802 = vsub.s32 6, %v3801
    %v3803 = vrot.slane %v3028, %v3802
    %v3804 = vlaneseq
    %v3805 = vshrl.u32 %v3804, 7
    %v3806 = vsub.s32 7, %v3805
    %v3807 = vrot.slane %v3028, %v3806
    %v3808 = vlaneseq
    %v3809 = vshrl.u32 %v3808, 7
    %v3810 = vsub.s32 0, %v3809
    %v3811 = vrot.slane %v3029, %v3810
    %v3812 = vlaneseq
    %v3813 = vshrl.u32 %v3812, 7
    %v3814 = vsub.s32 1, %v3813
    %v3815 = vrot.slane %v3029, %v3814
    %v3816 = vlaneseq
    %v3817 = vshrl.u32 %v3816, 7
    %v3818 = vsub.s32 2, %v3817
    %v3819 = vrot.slane %v3029, %v3818
    %v3820 = vlaneseq
    %v3821 = vshrl.u32 %v3820, 7
    %v3822 = vsub.s32 3, %v3821
    %v3823 = vrot.slane %v3029, %v3822
    %v3824 = vlaneseq
    %v3825 = vshrl.u32 %v3824, 7
    %v3826 = vsub.s32 4, %v3825
    %v3827 = vrot.slane %v3029, %v3826
    %v3828 = vlaneseq
    %v3829 = vshrl.u32 %v3828, 7
    %v3830 = vsub.s32 5, %v3829
    %v3831 = vrot.slane %v3029, %v3830
    %v3832 = vlaneseq
    %v3833 = vshrl.u32 %v3832, 7
    %v3834 = vsub.s32 6, %v3833
    %v3835 = vrot.slane %v3029, %v3834
    %v3836 = vlaneseq
    %v3837 = vshrl.u32 %v3836, 7
    %v3838 = vsub.s32 7, %v3837
    %v3839 = vrot.slane %v3029, %v3838
    %v3840 = vlaneseq
    %v3841 = vshrl.u32 %v3840, 7
    %v3842 = vsub.s32 0, %v3841
    %v3843 = vrot.slane %v3030, %v3842
    %v3844 = vlaneseq
    %v3845 = vshrl.u32 %v3844, 7
    %v3846 = vsub.s32 1, %v3845
    %v3847 = vrot.slane %v3030, %v3846
    %v3848 = vlaneseq
    %v3849 = vshrl.u32 %v3848, 7
    %v3850 = vsub.s32 2, %v3849
    %v3851 = vrot.slane %v3030, %v3850
    %v3852 = vlaneseq
    %v3853 = vshrl.u32 %v3852, 7
    %v3854 = vsub.s32 3, %v3853
    %v3855 = vrot.slane %v3030, %v3854
    %v3856 = vlaneseq
    %v3857 = vshrl.u32 %v3856, 7
    %v3858 = vsub.s32 4, %v3857
    %v3859 = vrot.slane %v3030, %v3858
    %v3860 = vlaneseq
    %v3861 = vshrl.u32 %v3860, 7
    %v3862 = vsub.s32 5, %v3861
    %v3863 = vrot.slane %v3030, %v3862
    %v3864 = vlaneseq
    %v3865 = vshrl.u32 %v3864, 7
    %v3866 = vsub.s32 6, %v3865
    %v3867 = vrot.slane %v3030, %v3866
    %v3868 = vlaneseq
    %v3869 = vshrl.u32 %v3868, 7
    %v3870 = vsub.s32 7, %v3869
    %v3871 = vrot.slane %v3030, %v3870
    %v3872 = vlaneseq
    %v3873 = vshrl.u32 %v3872, 7
    %v3874 = vsub.s32 0, %v3873
    %v3875 = vrot.slane %v3031, %v3874
    %v3876 = vlaneseq
    %v3877 = vshrl.u32 %v3876, 7
    %v3878 = vsub.s32 1, %v3877
    %v3879 = vrot.slane %v3031, %v3878
    %v3880 = vlaneseq
    %v3881 = vshrl.u32 %v3880, 7
    %v3882 = vsub.s32 2, %v3881
    %v3883 = vrot.slane %v3031, %v3882
    %v3884 = vlaneseq
    %v3885 = vshrl.u32 %v3884, 7
    %v3886 = vsub.s32 3, %v3885
    %v3887 = vrot.slane %v3031, %v3886
    %v3888 = vlaneseq
    %v3889 = vshrl.u32 %v3888, 7
    %v3890 = vsub.s32 4, %v3889
    %v3891 = vrot.slane %v3031, %v3890
    %v3892 = vlaneseq
    %v3893 = vshrl.u32 %v3892, 7
    %v3894 = vsub.s32 5, %v3893
    %v3895 = vrot.slane %v3031, %v3894
    %v3896 = vlaneseq
    %v3897 = vshrl.u32 %v3896, 7
    %v3898 = vsub.s32 6, %v3897
    %v3899 = vrot.slane %v3031, %v3898
    %v3900 = vlaneseq
    %v3901 = vshrl.u32 %v3900, 7
    %v3902 = vsub.s32 7, %v3901
    %v3903 = vrot.slane %v3031, %v3902
    %v3904 = vlaneseq
    %v3905 = vshrl.u32 %v3904, 7
    %v3906 = vsub.s32 0, %v3905
    %v3907 = vrot.slane %v3032, %v3906
    %v3908 = vlaneseq
    %v3909 = vshrl.u32 %v3908, 7
    %v3910 = vsub.s32 1, %v3909
    %v3911 = vrot.slane %v3032, %v3910
    %v3912 = vlaneseq
    %v3913 = vshrl.u32 %v3912, 7
    %v3914 = vsub.s32 2, %v3913
    %v3915 = vrot.slane %v3032, %v3914
    %v3916 = vlaneseq
    %v3917 = vshrl.u32 %v3916, 7
    %v3918 = vsub.s32 3, %v3917
    %v3919 = vrot.slane %v3032, %v3918
    %v3920 = vlaneseq
    %v3921 = vshrl.u32 %v3920, 7
    %v3922 = vsub.s32 4, %v3921
    %v3923 = vrot.slane %v3032, %v3922
    %v3924 = vlaneseq
    %v3925 = vshrl.u32 %v3924, 7
    %v3926 = vsub.s32 5, %v3925
    %v3927 = vrot.slane %v3032, %v3926
    %v3928 = vlaneseq
    %v3929 = vshrl.u32 %v3928, 7
    %v3930 = vsub.s32 6, %v3929
    %v3931 = vrot.slane %v3032, %v3930
    %v3932 = vlaneseq
    %v3933 = vshrl.u32 %v3932, 7
    %v3934 = vsub.s32 7, %v3933
    %v3935 = vrot.slane %v3032, %v3934
    %v3936 = vlaneseq
    %v3937 = vshrl.u32 %v3936, 7
    %v3938 = vsub.s32 0, %v3937
    %v3939 = vrot.slane %v3033, %v3938
    %v3940 = vlaneseq
    %v3941 = vshrl.u32 %v3940, 7
    %v3942 = vsub.s32 1, %v3941
    %v3943 = vrot.slane %v3033, %v3942
    %v3944 = vlaneseq
    %v3945 = vshrl.u32 %v3944, 7
    %v3946 = vsub.s32 2, %v3945
    %v3947 = vrot.slane %v3033, %v3946
    %v3948 = vlaneseq
    %v3949 = vshrl.u32 %v3948, 7
    %v3950 = vsub.s32 3, %v3949
    %v3951 = vrot.slane %v3033, %v3950
    %v3952 = vlaneseq
    %v3953 = vshrl.u32 %v3952, 7
    %v3954 = vsub.s32 4, %v3953
    %v3955 = vrot.slane %v3033, %v3954
    %v3956 = vlaneseq
    %v3957 = vshrl.u32 %v3956, 7
    %v3958 = vsub.s32 5, %v3957
    %v3959 = vrot.slane %v3033, %v3958
    %v3960 = vlaneseq
    %v3961 = vshrl.u32 %v3960, 7
    %v3962 = vsub.s32 6, %v3961
    %v3963 = vrot.slane %v3033, %v3962
    %v3964 = vlaneseq
    %v3965 = vshrl.u32 %v3964, 7
    %v3966 = vsub.s32 7, %v3965
    %v3967 = vrot.slane %v3033, %v3966
    %v3968 = vlaneseq
    %v3969 = vshrl.u32 %v3968, 7
    %v3970 = vsub.s32 0, %v3969
    %v3971 = vrot.slane %v3034, %v3970
    %v3972 = vlaneseq
    %v3973 = vshrl.u32 %v3972, 7
    %v3974 = vsub.s32 1, %v3973
    %v3975 = vrot.slane %v3034, %v3974
    %v3976 = vlaneseq
    %v3977 = vshrl.u32 %v3976, 7
    %v3978 = vsub.s32 2, %v3977
    %v3979 = vrot.slane %v3034, %v3978
    %v3980 = vlaneseq
    %v3981 = vshrl.u32 %v3980, 7
    %v3982 = vsub.s32 3, %v3981
    %v3983 = vrot.slane %v3034, %v3982
    %v3984 = vlaneseq
    %v3985 = vshrl.u32 %v3984, 7
    %v3986 = vsub.s32 4, %v3985
    %v3987 = vrot.slane %v3034, %v3986
    %v3988 = vlaneseq
    %v3989 = vshrl.u32 %v3988, 7
    %v3990 = vsub.s32 5, %v3989
    %v3991 = vrot.slane %v3034, %v3990
    %v3992 = vlaneseq
    %v3993 = vshrl.u32 %v3992, 7
    %v3994 = vsub.s32 6, %v3993
    %v3995 = vrot.slane %v3034, %v3994
    %v3996 = vlaneseq
    %v3997 = vshrl.u32 %v3996, 7
    %v3998 = vsub.s32 7, %v3997
    %v3999 = vrot.slane %v3034, %v3998
    %v4000 = vlaneseq
    %v4001 = vshrl.u32 %v4000, 7
    %v4002 = vsub.s32 0, %v4001
    %v4003 = vrot.slane %v3035, %v4002
    %v4004 = vlaneseq
    %v4005 = vshrl.u32 %v4004, 7
    %v4006 = vsub.s32 1, %v4005
    %v4007 = vrot.slane %v3035, %v4006
    %v4008 = vlaneseq
    %v4009 = vshrl.u32 %v4008, 7
    %v4010 = vsub.s32 2, %v4009
    %v4011 = vrot.slane %v3035, %v4010
    %v4012 = vlaneseq
    %v4013 = vshrl.u32 %v4012, 7
    %v4014 = vsub.s32 3, %v4013
    %v4015 = vrot.slane %v3035, %v4014
    %v4016 = vlaneseq
    %v4017 = vshrl.u32 %v4016, 7
    %v4018 = vsub.s32 4, %v4017
    %v4019 = vrot.slane %v3035, %v4018
    %v4020 = vlaneseq
    %v4021 = vshrl.u32 %v4020, 7
    %v4022 = vsub.s32 5, %v4021
    %v4023 = vrot.slane %v3035, %v4022
    %v4024 = vlaneseq
    %v4025 = vshrl.u32 %v4024, 7
    %v4026 = vsub.s32 6, %v4025
    %v4027 = vrot.slane %v3035, %v4026
    %v4028 = vlaneseq
    %v4029 = vshrl.u32 %v4028, 7
    %v4030 = vsub.s32 7, %v4029
    %v4031 = vrot.slane %v3035, %v4030
    %v4032 = vlaneseq
    %v4033 = vshrl.u32 %v4032, 7
    %v4034 = vsub.s32 0, %v4033
    %v4035 = vrot.slane %v3036, %v4034
    %v4036 = vlaneseq
    %v4037 = vshrl.u32 %v4036, 7
    %v4038 = vsub.s32 1, %v4037
    %v4039 = vrot.slane %v3036, %v4038
    %v4040 = vlaneseq
    %v4041 = vshrl.u32 %v4040, 7
    %v4042 = vsub.s32 2, %v4041
    %v4043 = vrot.slane %v3036, %v4042
    %v4044 = vlaneseq
    %v4045 = vshrl.u32 %v4044, 7
    %v4046 = vsub.s32 3, %v4045
    %v4047 = vrot.slane %v3036, %v4046
    %v4048 = vlaneseq
    %v4049 = vshrl.u32 %v4048, 7
    %v4050 = vsub.s32 4, %v4049
    %v4051 = vrot.slane %v3036, %v4050
    %v4052 = vlaneseq
    %v4053 = vshrl.u32 %v4052, 7
    %v4054 = vsub.s32 5, %v4053
    %v4055 = vrot.slane %v3036, %v4054
    %v4056 = vlaneseq
    %v4057 = vshrl.u32 %v4056, 7
    %v4058 = vsub.s32 6, %v4057
    %v4059 = vrot.slane %v3036, %v4058
    %v4060 = vlaneseq
    %v4061 = vshrl.u32 %v4060, 7
    %v4062 = vsub.s32 7, %v4061
    %v4063 = vrot.slane %v3036, %v4062
    %v4064 = vlaneseq
    %v4065 = vshrl.u32 %v4064, 7
    %v4066 = vsub.s32 0, %v4065
    %v4067 = vrot.slane %v3037, %v4066
    %v4068 = vlaneseq
    %v4069 = vshrl.u32 %v4068, 7
    %v4070 = vsub.s32 1, %v4069
    %v4071 = vrot.slane %v3037, %v4070
    %v4072 = vlaneseq
    %v4073 = vshrl.u32 %v4072, 7
    %v4074 = vsub.s32 2, %v4073
    %v4075 = vrot.slane %v3037, %v4074
    %v4076 = vlaneseq
    %v4077 = vshrl.u32 %v4076, 7
    %v4078 = vsub.s32 3, %v4077
    %v4079 = vrot.slane %v3037, %v4078
    %v4080 = vlaneseq
    %v4081 = vshrl.u32 %v4080, 7
    %v4082 = vsub.s32 4, %v4081
    %v4083 = vrot.slane %v3037, %v4082
    %v4084 = vlaneseq
    %v4085 = vshrl.u32 %v4084, 7
    %v4086 = vsub.s32 5, %v4085
    %v4087 = vrot.slane %v3037, %v4086
    %v4088 = vlaneseq
    %v4089 = vshrl.u32 %v4088, 7
    %v4090 = vsub.s32 6, %v4089
    %v4091 = vrot.slane %v3037, %v4090
    %v4092 = vlaneseq
    %v4093 = vshrl.u32 %v4092, 7
    %v4094 = vsub.s32 7, %v4093
    %v4095 = vrot.slane %v3037, %v4094
    %v4096 = vlaneseq
    %v4097 = vshrl.u32 %v4096, 7
    %v4098 = vsub.s32 0, %v4097
    %v4099 = vrot.slane %v3038, %v4098
    %v4100 = vlaneseq
    %v4101 = vshrl.u32 %v4100, 7
    %v4102 = vsub.s32 1, %v4101
    %v4103 = vrot.slane %v3038, %v4102
    %v4104 = vlaneseq
    %v4105 = vshrl.u32 %v4104, 7
    %v4106 = vsub.s32 2, %v4105
    %v4107 = vrot.slane %v3038, %v4106
    %v4108 = vlaneseq
    %v4109 = vshrl.u32 %v4108, 7
    %v4110 = vsub.s32 3, %v4109
    %v4111 = vrot.slane %v3038, %v4110
    %v4112 = vlaneseq
    %v4113 = vshrl.u32 %v4112, 7
    %v4114 = vsub.s32 4, %v4113
    %v4115 = vrot.slane %v3038, %v4114
    %v4116 = vlaneseq
    %v4117 = vshrl.u32 %v4116, 7
    %v4118 = vsub.s32 5, %v4117
    %v4119 = vrot.slane %v3038, %v4118
    %v4120 = vlaneseq
    %v4121 = vshrl.u32 %v4120, 7
    %v4122 = vsub.s32 6, %v4121
    %v4123 = vrot.slane %v3038, %v4122
    %v4124 = vlaneseq
    %v4125 = vshrl.u32 %v4124, 7
    %v4126 = vsub.s32 7, %v4125
    %v4127 = vrot.slane %v3038, %v4126
    %v4128 = vlaneseq
    %v4129 = vshrl.u32 %v4128, 7
    %v4130 = vsub.s32 0, %v4129
    %v4131 = vrot.slane %v3039, %v4130
    %v4132 = vlaneseq
    %v4133 = vshrl.u32 %v4132, 7
    %v4134 = vsub.s32 1, %v4133
    %v4135 = vrot.slane %v3039, %v4134
    %v4136 = vlaneseq
    %v4137 = vshrl.u32 %v4136, 7
    %v4138 = vsub.s32 2, %v4137
    %v4139 = vrot.slane %v3039, %v4138
    %v4140 = vlaneseq
    %v4141 = vshrl.u32 %v4140, 7
    %v4142 = vsub.s32 3, %v4141
    %v4143 = vrot.slane %v3039, %v4142
    %v4144 = vlaneseq
    %v4145 = vshrl.u32 %v4144, 7
    %v4146 = vsub.s32 4, %v4145
    %v4147 = vrot.slane %v3039, %v4146
    %v4148 = vlaneseq
    %v4149 = vshrl.u32 %v4148, 7
    %v4150 = vsub.s32 5, %v4149
    %v4151 = vrot.slane %v3039, %v4150
    %v4152 = vlaneseq
    %v4153 = vshrl.u32 %v4152, 7
    %v4154 = vsub.s32 6, %v4153
    %v4155 = vrot.slane %v3039, %v4154
    %v4156 = vlaneseq
    %v4157 = vshrl.u32 %v4156, 7
    %v4158 = vsub.s32 7, %v4157
    %v4159 = vrot.slane %v3039, %v4158
    %v4160 = vlaneseq
    %v4161 = vshrl.u32 %v4160, 7
    %v4162 = vsub.s32 0, %v4161
    %v4163 = vrot.slane %v3040, %v4162
    %v4164 = vlaneseq
    %v4165 = vshrl.u32 %v4164, 7
    %v4166 = vsub.s32 1, %v4165
    %v4167 = vrot.slane %v3040, %v4166
    %v4168 = vlaneseq
    %v4169 = vshrl.u32 %v4168, 7
    %v4170 = vsub.s32 2, %v4169
    %v4171 = vrot.slane %v3040, %v4170
    %v4172 = vlaneseq
    %v4173 = vshrl.u32 %v4172, 7
    %v4174 = vsub.s32 3, %v4173
    %v4175 = vrot.slane %v3040, %v4174
    %v4176 = vlaneseq
    %v4177 = vshrl.u32 %v4176, 7
    %v4178 = vsub.s32 4, %v4177
    %v4179 = vrot.slane %v3040, %v4178
    %v4180 = vlaneseq
    %v4181 = vshrl.u32 %v4180, 7
    %v4182 = vsub.s32 5, %v4181
    %v4183 = vrot.slane %v3040, %v4182
    %v4184 = vlaneseq
    %v4185 = vshrl.u32 %v4184, 7
    %v4186 = vsub.s32 6, %v4185
    %v4187 = vrot.slane %v3040, %v4186
    %v4188 = vlaneseq
    %v4189 = vshrl.u32 %v4188, 7
    %v4190 = vsub.s32 7, %v4189
    %v4191 = vrot.slane %v3040, %v4190
    %v4192 = vlaneseq
    %v4193 = vshrl.u32 %v4192, 7
    %v4194 = vsub.s32 0, %v4193
    %v4195 = vrot.slane %v3041, %v4194
    %v4196 = vlaneseq
    %v4197 = vshrl.u32 %v4196, 7
    %v4198 = vsub.s32 1, %v4197
    %v4199 = vrot.slane %v3041, %v4198
    %v4200 = vlaneseq
    %v4201 = vshrl.u32 %v4200, 7
    %v4202 = vsub.s32 2, %v4201
    %v4203 = vrot.slane %v3041, %v4202
    %v4204 = vlaneseq
    %v4205 = vshrl.u32 %v4204, 7
    %v4206 = vsub.s32 3, %v4205
    %v4207 = vrot.slane %v3041, %v4206
    %v4208 = vlaneseq
    %v4209 = vshrl.u32 %v4208, 7
    %v4210 = vsub.s32 4, %v4209
    %v4211 = vrot.slane %v3041, %v4210
    %v4212 = vlaneseq
    %v4213 = vshrl.u32 %v4212, 7
    %v4214 = vsub.s32 5, %v4213
    %v4215 = vrot.slane %v3041, %v4214
    %v4216 = vlaneseq
    %v4217 = vshrl.u32 %v4216, 7
    %v4218 = vsub.s32 6, %v4217
    %v4219 = vrot.slane %v3041, %v4218
    %v4220 = vlaneseq
    %v4221 = vshrl.u32 %v4220, 7
    %v4222 = vsub.s32 7, %v4221
    %v4223 = vrot.slane %v3041, %v4222
    %v4224 = vlaneseq
    %v4225 = vshrl.u32 %v4224, 7
    %v4226 = vsub.s32 0, %v4225
    %v4227 = vrot.slane %v3042, %v4226
    %v4228 = vlaneseq
    %v4229 = vshrl.u32 %v4228, 7
    %v4230 = vsub.s32 1, %v4229
    %v4231 = vrot.slane %v3042, %v4230
    %v4232 = vlaneseq
    %v4233 = vshrl.u32 %v4232, 7
    %v4234 = vsub.s32 2, %v4233
    %v4235 = vrot.slane %v3042, %v4234
    %v4236 = vlaneseq
    %v4237 = vshrl.u32 %v4236, 7
    %v4238 = vsub.s32 3, %v4237
    %v4239 = vrot.slane %v3042, %v4238
    %v4240 = vlaneseq
    %v4241 = vshrl.u32 %v4240, 7
    %v4242 = vsub.s32 4, %v4241
    %v4243 = vrot.slane %v3042, %v4242
    %v4244 = vlaneseq
    %v4245 = vshrl.u32 %v4244, 7
    %v4246 = vsub.s32 5, %v4245
    %v4247 = vrot.slane %v3042, %v4246
    %v4248 = vlaneseq
    %v4249 = vshrl.u32 %v4248, 7
    %v4250 = vsub.s32 6, %v4249
    %v4251 = vrot.slane %v3042, %v4250
    %v4252 = vlaneseq
    %v4253 = vshrl.u32 %v4252, 7
    %v4254 = vsub.s32 7, %v4253
    %v4255 = vrot.slane %v3042, %v4254
    %v4256 = vlaneseq
    %v4257 = vshrl.u32 %v4256, 7
    %v4258 = vsub.s32 0, %v4257
    %v4259 = vrot.slane %v3043, %v4258
    %v4260 = vlaneseq
    %v4261 = vshrl.u32 %v4260, 7
    %v4262 = vsub.s32 1, %v4261
    %v4263 = vrot.slane %v3043, %v4262
    %v4264 = vlaneseq
    %v4265 = vshrl.u32 %v4264, 7
    %v4266 = vsub.s32 2, %v4265
    %v4267 = vrot.slane %v3043, %v4266
    %v4268 = vlaneseq
    %v4269 = vshrl.u32 %v4268, 7
    %v4270 = vsub.s32 3, %v4269
    %v4271 = vrot.slane %v3043, %v4270
    %v4272 = vlaneseq
    %v4273 = vshrl.u32 %v4272, 7
    %v4274 = vsub.s32 4, %v4273
    %v4275 = vrot.slane %v3043, %v4274
    %v4276 = vlaneseq
    %v4277 = vshrl.u32 %v4276, 7
    %v4278 = vsub.s32 5, %v4277
    %v4279 = vrot.slane %v3043, %v4278
    %v4280 = vlaneseq
    %v4281 = vshrl.u32 %v4280, 7
    %v4282 = vsub.s32 6, %v4281
    %v4283 = vrot.slane %v3043, %v4282
    %v4284 = vlaneseq
    %v4285 = vshrl.u32 %v4284, 7
    %v4286 = vsub.s32 7, %v4285
    %v4287 = vrot.slane %v3043, %v4286
    %v4288 = vlaneseq
    %v4289 = vshrl.u32 %v4288, 7
    %v4290 = vsub.s32 0, %v4289
    %v4291 = vrot.slane %v3044, %v4290
    %v4292 = vlaneseq
    %v4293 = vshrl.u32 %v4292, 7
    %v4294 = vsub.s32 1, %v4293
    %v4295 = vrot.slane %v3044, %v4294
    %v4296 = vlaneseq
    %v4297 = vshrl.u32 %v4296, 7
    %v4298 = vsub.s32 2, %v4297
    %v4299 = vrot.slane %v3044, %v4298
    %v4300 = vlaneseq
    %v4301 = vshrl.u32 %v4300, 7
    %v4302 = vsub.s32 3, %v4301
    %v4303 = vrot.slane %v3044, %v4302
    %v4304 = vlaneseq
    %v4305 = vshrl.u32 %v4304, 7
    %v4306 = vsub.s32 4, %v4305
    %v4307 = vrot.slane %v3044, %v4306
    %v4308 = vlaneseq
    %v4309 = vshrl.u32 %v4308, 7
    %v4310 = vsub.s32 5, %v4309
    %v4311 = vrot.slane %v3044, %v4310
    %v4312 = vlaneseq
    %v4313 = vshrl.u32 %v4312, 7
    %v4314 = vsub.s32 6, %v4313
    %v4315 = vrot.slane %v3044, %v4314
    %v4316 = vlaneseq
    %v4317 = vshrl.u32 %v4316, 7
    %v4318 = vsub.s32 7, %v4317
    %v4319 = vrot.slane %v3044, %v4318
    %v4320 = vlaneseq
    %v4321 = vshrl.u32 %v4320, 7
    %v4322 = vsub.s32 0, %v4321
    %v4323 = vrot.slane %v3045, %v4322
    %v4324 = vlaneseq
    %v4325 = vshrl.u32 %v4324, 7
    %v4326 = vsub.s32 1, %v4325
    %v4327 = vrot.slane %v3045, %v4326
    %v4328 = vlaneseq
    %v4329 = vshrl.u32 %v4328, 7
    %v4330 = vsub.s32 2, %v4329
    %v4331 = vrot.slane %v3045, %v4330
    %v4332 = vlaneseq
    %v4333 = vshrl.u32 %v4332, 7
    %v4334 = vsub.s32 3, %v4333
    %v4335 = vrot.slane %v3045, %v4334
    %v4336 = vlaneseq
    %v4337 = vshrl.u32 %v4336, 7
    %v4338 = vsub.s32 4, %v4337
    %v4339 = vrot.slane %v3045, %v4338
    %v4340 = vlaneseq
    %v4341 = vshrl.u32 %v4340, 7
    %v4342 = vsub.s32 5, %v4341
    %v4343 = vrot.slane %v3045, %v4342
    %v4344 = vlaneseq
    %v4345 = vshrl.u32 %v4344, 7
    %v4346 = vsub.s32 6, %v4345
    %v4347 = vrot.slane %v3045, %v4346
    %v4348 = vlaneseq
    %v4349 = vshrl.u32 %v4348, 7
    %v4350 = vsub.s32 7, %v4349
    %v4351 = vrot.slane %v3045, %v4350
    %v4352 = vlaneseq
    %v4353 = vshrl.u32 %v4352, 7
    %v4354 = vsub.s32 0, %v4353
    %v4355 = vrot.slane %v3046, %v4354
    %v4356 = vlaneseq
    %v4357 = vshrl.u32 %v4356, 7
    %v4358 = vsub.s32 1, %v4357
    %v4359 = vrot.slane %v3046, %v4358
    %v4360 = vlaneseq
    %v4361 = vshrl.u32 %v4360, 7
    %v4362 = vsub.s32 2, %v4361
    %v4363 = vrot.slane %v3046, %v4362
    %v4364 = vlaneseq
    %v4365 = vshrl.u32 %v4364, 7
    %v4366 = vsub.s32 3, %v4365
    %v4367 = vrot.slane %v3046, %v4366
    %v4368 = vlaneseq
    %v4369 = vshrl.u32 %v4368, 7
    %v4370 = vsub.s32 4, %v4369
    %v4371 = vrot.slane %v3046, %v4370
    %v4372 = vlaneseq
    %v4373 = vshrl.u32 %v4372, 7
    %v4374 = vsub.s32 5, %v4373
    %v4375 = vrot.slane %v3046, %v4374
    %v4376 = vlaneseq
    %v4377 = vshrl.u32 %v4376, 7
    %v4378 = vsub.s32 6, %v4377
    %v4379 = vrot.slane %v3046, %v4378
    %v4380 = vlaneseq
    %v4381 = vshrl.u32 %v4380, 7
    %v4382 = vsub.s32 7, %v4381
    %v4383 = vrot.slane %v3046, %v4382
    %v4384 = vlaneseq
    %v4385 = vshrl.u32 %v4384, 7
    %v4386 = vsub.s32 0, %v4385
    %v4387 = vrot.slane %v3047, %v4386
    %v4388 = vlaneseq
    %v4389 = vshrl.u32 %v4388, 7
    %v4390 = vsub.s32 1, %v4389
    %v4391 = vrot.slane %v3047, %v4390
    %v4392 = vlaneseq
    %v4393 = vshrl.u32 %v4392, 7
    %v4394 = vsub.s32 2, %v4393
    %v4395 = vrot.slane %v3047, %v4394
    %v4396 = vlaneseq
    %v4397 = vshrl.u32 %v4396, 7
    %v4398 = vsub.s32 3, %v4397
    %v4399 = vrot.slane %v3047, %v4398
    %v4400 = vlaneseq
    %v4401 = vshrl.u32 %v4400, 7
    %v4402 = vsub.s32 4, %v4401
    %v4403 = vrot.slane %v3047, %v4402
    %v4404 = vlaneseq
    %v4405 = vshrl.u32 %v4404, 7
    %v4406 = vsub.s32 5, %v4405
    %v4407 = vrot.slane %v3047, %v4406
    %v4408 = vlaneseq
    %v4409 = vshrl.u32 %v4408, 7
    %v4410 = vsub.s32 6, %v4409
    %v4411 = vrot.slane %v3047, %v4410
    %v4412 = vlaneseq
    %v4413 = vshrl.u32 %v4412, 7
    %v4414 = vsub.s32 7, %v4413
    %v4415 = vrot.slane %v3047, %v4414
    %v4416 = vlaneseq
    %v4417 = vshrl.u32 %v4416, 7
    %v4418 = vsub.s32 0, %v4417
    %v4419 = vrot.slane %v3048, %v4418
    %v4420 = vlaneseq
    %v4421 = vshrl.u32 %v4420, 7
    %v4422 = vsub.s32 1, %v4421
    %v4423 = vrot.slane %v3048, %v4422
    %v4424 = vlaneseq
    %v4425 = vshrl.u32 %v4424, 7
    %v4426 = vsub.s32 2, %v4425
    %v4427 = vrot.slane %v3048, %v4426
    %v4428 = vlaneseq
    %v4429 = vshrl.u32 %v4428, 7
    %v4430 = vsub.s32 3, %v4429
    %v4431 = vrot.slane %v3048, %v4430
    %v4432 = vlaneseq
    %v4433 = vshrl.u32 %v4432, 7
    %v4434 = vsub.s32 4, %v4433
    %v4435 = vrot.slane %v3048, %v4434
    %v4436 = vlaneseq
    %v4437 = vshrl.u32 %v4436, 7
    %v4438 = vsub.s32 5, %v4437
    %v4439 = vrot.slane %v3048, %v4438
    %v4440 = vlaneseq
    %v4441 = vshrl.u32 %v4440, 7
    %v4442 = vsub.s32 6, %v4441
    %v4443 = vrot.slane %v3048, %v4442
    %v4444 = vlaneseq
    %v4445 = vshrl.u32 %v4444, 7
    %v4446 = vsub.s32 7, %v4445
    %v4447 = vrot.slane %v3048, %v4446
    %v4448 = vlaneseq
    %v4449 = vshrl.u32 %v4448, 7
    %v4450 = vsub.s32 0, %v4449
    %v4451 = vrot.slane %v3049, %v4450
    %v4452 = vlaneseq
    %v4453 = vshrl.u32 %v4452, 7
    %v4454 = vsub.s32 1, %v4453
    %v4455 = vrot.slane %v3049, %v4454
    %v4456 = vlaneseq
    %v4457 = vshrl.u32 %v4456, 7
    %v4458 = vsub.s32 2, %v4457
    %v4459 = vrot.slane %v3049, %v4458
    %v4460 = vlaneseq
    %v4461 = vshrl.u32 %v4460, 7
    %v4462 = vsub.s32 3, %v4461
    %v4463 = vrot.slane %v3049, %v4462
    %v4464 = vlaneseq
    %v4465 = vshrl.u32 %v4464, 7
    %v4466 = vsub.s32 4, %v4465
    %v4467 = vrot.slane %v3049, %v4466
    %v4468 = vlaneseq
    %v4469 = vshrl.u32 %v4468, 7
    %v4470 = vsub.s32 5, %v4469
    %v4471 = vrot.slane %v3049, %v4470
    %v4472 = vlaneseq
    %v4473 = vshrl.u32 %v4472, 7
    %v4474 = vsub.s32 6, %v4473
    %v4475 = vrot.slane %v3049, %v4474
    %v4476 = vlaneseq
    %v4477 = vshrl.u32 %v4476, 7
    %v4478 = vsub.s32 7, %v4477
    %v4479 = vrot.slane %v3049, %v4478
    %v4480 = vlaneseq
    %v4481 = vshrl.u32 %v4480, 7
    %v4482 = vsub.s32 0, %v4481
    %v4483 = vrot.slane %v3050, %v4482
    %v4484 = vlaneseq
    %v4485 = vshrl.u32 %v4484, 7
    %v4486 = vsub.s32 1, %v4485
    %v4487 = vrot.slane %v3050, %v4486
    %v4488 = vlaneseq
    %v4489 = vshrl.u32 %v4488, 7
    %v4490 = vsub.s32 2, %v4489
    %v4491 = vrot.slane %v3050, %v4490
    %v4492 = vlaneseq
    %v4493 = vshrl.u32 %v4492, 7
    %v4494 = vsub.s32 3, %v4493
    %v4495 = vrot.slane %v3050, %v4494
    %v4496 = vlaneseq
    %v4497 = vshrl.u32 %v4496, 7
    %v4498 = vsub.s32 4, %v4497
    %v4499 = vrot.slane %v3050, %v4498
    %v4500 = vlaneseq
    %v4501 = vshrl.u32 %v4500, 7
    %v4502 = vsub.s32 5, %v4501
    %v4503 = vrot.slane %v3050, %v4502
    %v4504 = vlaneseq
    %v4505 = vshrl.u32 %v4504, 7
    %v4506 = vsub.s32 6, %v4505
    %v4507 = vrot.slane %v3050, %v4506
    %v4508 = vlaneseq
    %v4509 = vshrl.u32 %v4508, 7
    %v4510 = vsub.s32 7, %v4509
    %v4511 = vrot.slane %v3050, %v4510
    %v4512 = vlaneseq
    %v4513 = vshrl.u32 %v4512, 7
    %v4514 = vsub.s32 0, %v4513
    %v4515 = vrot.slane %v3051, %v4514
    %v4516 = vlaneseq
    %v4517 = vshrl.u32 %v4516, 7
    %v4518 = vsub.s32 1, %v4517
    %v4519 = vrot.slane %v3051, %v4518
    %v4520 = vlaneseq
    %v4521 = vshrl.u32 %v4520, 7
    %v4522 = vsub.s32 2, %v4521
    %v4523 = vrot.slane %v3051, %v4522
    %v4524 = vlaneseq
    %v4525 = vshrl.u32 %v4524, 7
    %v4526 = vsub.s32 3, %v4525
    %v4527 = vrot.slane %v3051, %v4526
    %v4528 = vlaneseq
    %v4529 = vshrl.u32 %v4528, 7
    %v4530 = vsub.s32 4, %v4529
    %v4531 = vrot.slane %v3051, %v4530
    %v4532 = vlaneseq
    %v4533 = vshrl.u32 %v4532, 7
    %v4534 = vsub.s32 5, %v4533
    %v4535 = vrot.slane %v3051, %v4534
    %v4536 = vlaneseq
    %v4537 = vshrl.u32 %v4536, 7
    %v4538 = vsub.s32 6, %v4537
    %v4539 = vrot.slane %v3051, %v4538
    %v4540 = vlaneseq
    %v4541 = vshrl.u32 %v4540, 7
    %v4542 = vsub.s32 7, %v4541
    %v4543 = vrot.slane %v3051, %v4542
    %v4544 = vlaneseq
    %v4545 = vshrl.u32 %v4544, 7
    %v4546 = vsub.s32 0, %v4545
    %v4547 = vrot.slane %v3052, %v4546
    %v4548 = vlaneseq
    %v4549 = vshrl.u32 %v4548, 7
    %v4550 = vsub.s32 1, %v4549
    %v4551 = vrot.slane %v3052, %v4550
    %v4552 = vlaneseq
    %v4553 = vshrl.u32 %v4552, 7
    %v4554 = vsub.s32 2, %v4553
    %v4555 = vrot.slane %v3052, %v4554
    %v4556 = vlaneseq
    %v4557 = vshrl.u32 %v4556, 7
    %v4558 = vsub.s32 3, %v4557
    %v4559 = vrot.slane %v3052, %v4558
    %v4560 = vlaneseq
    %v4561 = vshrl.u32 %v4560, 7
    %v4562 = vsub.s32 4, %v4561
    %v4563 = vrot.slane %v3052, %v4562
    %v4564 = vlaneseq
    %v4565 = vshrl.u32 %v4564, 7
    %v4566 = vsub.s32 5, %v4565
    %v4567 = vrot.slane %v3052, %v4566
    %v4568 = vlaneseq
    %v4569 = vshrl.u32 %v4568, 7
    %v4570 = vsub.s32 6, %v4569
    %v4571 = vrot.slane %v3052, %v4570
    %v4572 = vlaneseq
    %v4573 = vshrl.u32 %v4572, 7
    %v4574 = vsub.s32 7, %v4573
    %v4575 = vrot.slane %v3052, %v4574
    %v4576 = vlaneseq
    %v4577 = vshrl.u32 %v4576, 7
    %v4578 = vsub.s32 0, %v4577
    %v4579 = vrot.slane %v3053, %v4578
    %v4580 = vlaneseq
    %v4581 = vshrl.u32 %v4580, 7
    %v4582 = vsub.s32 1, %v4581
    %v4583 = vrot.slane %v3053, %v4582
    %v4584 = vlaneseq
    %v4585 = vshrl.u32 %v4584, 7
    %v4586 = vsub.s32 2, %v4585
    %v4587 = vrot.slane %v3053, %v4586
    %v4588 = vlaneseq
    %v4589 = vshrl.u32 %v4588, 7
    %v4590 = vsub.s32 3, %v4589
    %v4591 = vrot.slane %v3053, %v4590
    %v4592 = vlaneseq
    %v4593 = vshrl.u32 %v4592, 7
    %v4594 = vsub.s32 4, %v4593
    %v4595 = vrot.slane %v3053, %v4594
    %v4596 = vlaneseq
    %v4597 = vshrl.u32 %v4596, 7
    %v4598 = vsub.s32 5, %v4597
    %v4599 = vrot.slane %v3053, %v4598
    %v4600 = vlaneseq
    %v4601 = vshrl.u32 %v4600, 7
    %v4602 = vsub.s32 6, %v4601
    %v4603 = vrot.slane %v3053, %v4602
    %v4604 = vlaneseq
    %v4605 = vshrl.u32 %v4604, 7
    %v4606 = vsub.s32 7, %v4605
    %v4607 = vrot.slane %v3053, %v4606
    %v4608 = vlaneseq
    %v4609 = vshrl.u32 %v4608, 7
    %v4610 = vsub.s32 0, %v4609
    %v4611 = vrot.slane %v3054, %v4610
    %v4612 = vlaneseq
    %v4613 = vshrl.u32 %v4612, 7
    %v4614 = vsub.s32 1, %v4613
    %v4615 = vrot.slane %v3054, %v4614
    %v4616 = vlaneseq
    %v4617 = vshrl.u32 %v4616, 7
    %v4618 = vsub.s32 2, %v4617
    %v4619 = vrot.slane %v3054, %v4618
    %v4620 = vlaneseq
    %v4621 = vshrl.u32 %v4620, 7
    %v4622 = vsub.s32 3, %v4621
    %v4623 = vrot.slane %v3054, %v4622
    %v4624 = vlaneseq
    %v4625 = vshrl.u32 %v4624, 7
    %v4626 = vsub.s32 4, %v4625
    %v4627 = vrot.slane %v3054, %v4626
    %v4628 = vlaneseq
    %v4629 = vshrl.u32 %v4628, 7
    %v4630 = vsub.s32 5, %v4629
    %v4631 = vrot.slane %v3054, %v4630
    %v4632 = vlaneseq
    %v4633 = vshrl.u32 %v4632, 7
    %v4634 = vsub.s32 6, %v4633
    %v4635 = vrot.slane %v3054, %v4634
    %v4636 = vlaneseq
    %v4637 = vshrl.u32 %v4636, 7
    %v4638 = vsub.s32 7, %v4637
    %v4639 = vrot.slane %v3054, %v4638
    %v4640 = vlaneseq
    %v4641 = vshrl.u32 %v4640, 7
    %v4642 = vsub.s32 0, %v4641
    %v4643 = vrot.slane %v3055, %v4642
    %v4644 = vlaneseq
    %v4645 = vshrl.u32 %v4644, 7
    %v4646 = vsub.s32 1, %v4645
    %v4647 = vrot.slane %v3055, %v4646
    %v4648 = vlaneseq
    %v4649 = vshrl.u32 %v4648, 7
    %v4650 = vsub.s32 2, %v4649
    %v4651 = vrot.slane %v3055, %v4650
    %v4652 = vlaneseq
    %v4653 = vshrl.u32 %v4652, 7
    %v4654 = vsub.s32 3, %v4653
    %v4655 = vrot.slane %v3055, %v4654
    %v4656 = vlaneseq
    %v4657 = vshrl.u32 %v4656, 7
    %v4658 = vsub.s32 4, %v4657
    %v4659 = vrot.slane %v3055, %v4658
    %v4660 = vlaneseq
    %v4661 = vshrl.u32 %v4660, 7
    %v4662 = vsub.s32 5, %v4661
    %v4663 = vrot.slane %v3055, %v4662
    %v4664 = vlaneseq
    %v4665 = vshrl.u32 %v4664, 7
    %v4666 = vsub.s32 6, %v4665
    %v4667 = vrot.slane %v3055, %v4666
    %v4668 = vlaneseq
    %v4669 = vshrl.u32 %v4668, 7
    %v4670 = vsub.s32 7, %v4669
    %v4671 = vrot.slane %v3055, %v4670
    %v4672 = vlaneseq
    %v4673 = vshrl.u32 %v4672, 7
    %v4674 = vsub.s32 0, %v4673
    %v4675 = vrot.slane %v3056, %v4674
    %v4676 = vlaneseq
    %v4677 = vshrl.u32 %v4676, 7
    %v4678 = vsub.s32 1, %v4677
    %v4679 = vrot.slane %v3056, %v4678
    %v4680 = vlaneseq
    %v4681 = vshrl.u32 %v4680, 7
    %v4682 = vsub.s32 2, %v4681
    %v4683 = vrot.slane %v3056, %v4682
    %v4684 = vlaneseq
    %v4685 = vshrl.u32 %v4684, 7
    %v4686 = vsub.s32 3, %v4685
    %v4687 = vrot.slane %v3056, %v4686
    %v4688 = vlaneseq
    %v4689 = vshrl.u32 %v4688, 7
    %v4690 = vsub.s32 4, %v4689
    %v4691 = vrot.slane %v3056, %v4690
    %v4692 = vlaneseq
    %v4693 = vshrl.u32 %v4692, 7
    %v4694 = vsub.s32 5, %v4693
    %v4695 = vrot.slane %v3056, %v4694
    %v4696 = vlaneseq
    %v4697 = vshrl.u32 %v4696, 7
    %v4698 = vsub.s32 6, %v4697
    %v4699 = vrot.slane %v3056, %v4698
    %v4700 = vlaneseq
    %v4701 = vshrl.u32 %v4700, 7
    %v4702 = vsub.s32 7, %v4701
    %v4703 = vrot.slane %v3056, %v4702
    %v4704 = vlaneseq
    %v4705 = vshrl.u32 %v4704, 7
    %v4706 = vsub.s32 0, %v4705
    %v4707 = vrot.slane %v3057, %v4706
    %v4708 = vlaneseq
    %v4709 = vshrl.u32 %v4708, 7
    %v4710 = vsub.s32 1, %v4709
    %v4711 = vrot.slane %v3057, %v4710
    %v4712 = vlaneseq
    %v4713 = vshrl.u32 %v4712, 7
    %v4714 = vsub.s32 2, %v4713
    %v4715 = vrot.slane %v3057, %v4714
    %v4716 = vlaneseq
    %v4717 = vshrl.u32 %v4716, 7
    %v4718 = vsub.s32 3, %v4717
    %v4719 = vrot.slane %v3057, %v4718
    %v4720 = vlaneseq
    %v4721 = vshrl.u32 %v4720, 7
    %v4722 = vsub.s32 4, %v4721
    %v4723 = vrot.slane %v3057, %v4722
    %v4724 = vlaneseq
    %v4725 = vshrl.u32 %v4724, 7
    %v4726 = vsub.s32 5, %v4725
    %v4727 = vrot.slane %v3057, %v4726
    %v4728 = vlaneseq
    %v4729 = vshrl.u32 %v4728, 7
    %v4730 = vsub.s32 6, %v4729
    %v4731 = vrot.slane %v3057, %v4730
    %v4732 = vlaneseq
    %v4733 = vshrl.u32 %v4732, 7
    %v4734 = vsub.s32 7, %v4733
    %v4735 = vrot.slane %v3057, %v4734
    %v4736 = vlaneseq
    %v4737 = vshrl.u32 %v4736, 7
    %v4738 = vsub.s32 0, %v4737
    %v4739 = vrot.slane %v3058, %v4738
    %v4740 = vlaneseq
    %v4741 = vshrl.u32 %v4740, 7
    %v4742 = vsub.s32 1, %v4741
    %v4743 = vrot.slane %v3058, %v4742
    %v4744 = vlaneseq
    %v4745 = vshrl.u32 %v4744, 7
    %v4746 = vsub.s32 2, %v4745
    %v4747 = vrot.slane %v3058, %v4746
    %v4748 = vlaneseq
    %v4749 = vshrl.u32 %v4748, 7
    %v4750 = vsub.s32 3, %v4749
    %v4751 = vrot.slane %v3058, %v4750
    %v4752 = vlaneseq
    %v4753 = vshrl.u32 %v4752, 7
    %v4754 = vsub.s32 4, %v4753
    %v4755 = vrot.slane %v3058, %v4754
    %v4756 = vlaneseq
    %v4757 = vshrl.u32 %v4756, 7
    %v4758 = vsub.s32 5, %v4757
    %v4759 = vrot.slane %v3058, %v4758
    %v4760 = vlaneseq
    %v4761 = vshrl.u32 %v4760, 7
    %v4762 = vsub.s32 6, %v4761
    %v4763 = vrot.slane %v3058, %v4762
    %v4764 = vlaneseq
    %v4765 = vshrl.u32 %v4764, 7
    %v4766 = vsub.s32 7, %v4765
    %v4767 = vrot.slane %v3058, %v4766
    %v4768 = vlaneseq
    %v4769 = vshrl.u32 %v4768, 7
    %v4770 = vsub.s32 0, %v4769
    %v4771 = vrot.slane %v3059, %v4770
    %v4772 = vlaneseq
    %v4773 = vshrl.u32 %v4772, 7
    %v4774 = vsub.s32 1, %v4773
    %v4775 = vrot.slane %v3059, %v4774
    %v4776 = vlaneseq
    %v4777 = vshrl.u32 %v4776, 7
    %v4778 = vsub.s32 2, %v4777
    %v4779 = vrot.slane %v3059, %v4778
    %v4780 = vlaneseq
    %v4781 = vshrl.u32 %v4780, 7
    %v4782 = vsub.s32 3, %v4781
    %v4783 = vrot.slane %v3059, %v4782
    %v4784 = vlaneseq
    %v4785 = vshrl.u32 %v4784, 7
    %v4786 = vsub.s32 4, %v4785
    %v4787 = vrot.slane %v3059, %v4786
    %v4788 = vlaneseq
    %v4789 = vshrl.u32 %v4788, 7
    %v4790 = vsub.s32 5, %v4789
    %v4791 = vrot.slane %v3059, %v4790
    %v4792 = vlaneseq
    %v4793 = vshrl.u32 %v4792, 7
    %v4794 = vsub.s32 6, %v4793
    %v4795 = vrot.slane %v3059, %v4794
    %v4796 = vlaneseq
    %v4797 = vshrl.u32 %v4796, 7
    %v4798 = vsub.s32 7, %v4797
    %v4799 = vrot.slane %v3059, %v4798
    %v4800 = vlaneseq
    %v4801 = vshrl.u32 %v4800, 7
    %v4802 = vsub.s32 0, %v4801
    %v4803 = vrot.slane %v3060, %v4802
    %v4804 = vlaneseq
    %v4805 = vshrl.u32 %v4804, 7
    %v4806 = vsub.s32 1, %v4805
    %v4807 = vrot.slane %v3060, %v4806
    %v4808 = vlaneseq
    %v4809 = vshrl.u32 %v4808, 7
    %v4810 = vsub.s32 2, %v4809
    %v4811 = vrot.slane %v3060, %v4810
    %v4812 = vlaneseq
    %v4813 = vshrl.u32 %v4812, 7
    %v4814 = vsub.s32 3, %v4813
    %v4815 = vrot.slane %v3060, %v4814
    %v4816 = vlaneseq
    %v4817 = vshrl.u32 %v4816, 7
    %v4818 = vsub.s32 4, %v4817
    %v4819 = vrot.slane %v3060, %v4818
    %v4820 = vlaneseq
    %v4821 = vshrl.u32 %v4820, 7
    %v4822 = vsub.s32 5, %v4821
    %v4823 = vrot.slane %v3060, %v4822
    %v4824 = vlaneseq
    %v4825 = vshrl.u32 %v4824, 7
    %v4826 = vsub.s32 6, %v4825
    %v4827 = vrot.slane %v3060, %v4826
    %v4828 = vlaneseq
    %v4829 = vshrl.u32 %v4828, 7
    %v4830 = vsub.s32 7, %v4829
    %v4831 = vrot.slane %v3060, %v4830
    %v4832 = vlaneseq
    %v4833 = vshrl.u32 %v4832, 7
    %v4834 = vsub.s32 0, %v4833
    %v4835 = vrot.slane %v3061, %v4834
    %v4836 = vlaneseq
    %v4837 = vshrl.u32 %v4836, 7
    %v4838 = vsub.s32 1, %v4837
    %v4839 = vrot.slane %v3061, %v4838
    %v4840 = vlaneseq
    %v4841 = vshrl.u32 %v4840, 7
    %v4842 = vsub.s32 2, %v4841
    %v4843 = vrot.slane %v3061, %v4842
    %v4844 = vlaneseq
    %v4845 = vshrl.u32 %v4844, 7
    %v4846 = vsub.s32 3, %v4845
    %v4847 = vrot.slane %v3061, %v4846
    %v4848 = vlaneseq
    %v4849 = vshrl.u32 %v4848, 7
    %v4850 = vsub.s32 4, %v4849
    %v4851 = vrot.slane %v3061, %v4850
    %v4852 = vlaneseq
    %v4853 = vshrl.u32 %v4852, 7
    %v4854 = vsub.s32 5, %v4853
    %v4855 = vrot.slane %v3061, %v4854
    %v4856 = vlaneseq
    %v4857 = vshrl.u32 %v4856, 7
    %v4858 = vsub.s32 6, %v4857
    %v4859 = vrot.slane %v3061, %v4858
    %v4860 = vlaneseq
    %v4861 = vshrl.u32 %v4860, 7
    %v4862 = vsub.s32 7, %v4861
    %v4863 = vrot.slane %v3061, %v4862
    %v4864 = vlaneseq
    %v4865 = vshrl.u32 %v4864, 7
    %v4866 = vsub.s32 0, %v4865
    %v4867 = vrot.slane %v3062, %v4866
    %v4868 = vlaneseq
    %v4869 = vshrl.u32 %v4868, 7
    %v4870 = vsub.s32 1, %v4869
    %v4871 = vrot.slane %v3062, %v4870
    %v4872 = vlaneseq
    %v4873 = vshrl.u32 %v4872, 7
    %v4874 = vsub.s32 2, %v4873
    %v4875 = vrot.slane %v3062, %v4874
    %v4876 = vlaneseq
    %v4877 = vshrl.u32 %v4876, 7
    %v4878 = vsub.s32 3, %v4877
    %v4879 = vrot.slane %v3062, %v4878
    %v4880 = vlaneseq
    %v4881 = vshrl.u32 %v4880, 7
    %v4882 = vsub.s32 4, %v4881
    %v4883 = vrot.slane %v3062, %v4882
    %v4884 = vlaneseq
    %v4885 = vshrl.u32 %v4884, 7
    %v4886 = vsub.s32 5, %v4885
    %v4887 = vrot.slane %v3062, %v4886
    %v4888 = vlaneseq
    %v4889 = vshrl.u32 %v4888, 7
    %v4890 = vsub.s32 6, %v4889
    %v4891 = vrot.slane %v3062, %v4890
    %v4892 = vlaneseq
    %v4893 = vshrl.u32 %v4892, 7
    %v4894 = vsub.s32 7, %v4893
    %v4895 = vrot.slane %v3062, %v4894
    %v4896 = vlaneseq
    %v4897 = vshrl.u32 %v4896, 7
    %v4898 = vsub.s32 0, %v4897
    %v4899 = vrot.slane %v3063, %v4898
    %v4900 = vlaneseq
    %v4901 = vshrl.u32 %v4900, 7
    %v4902 = vsub.s32 1, %v4901
    %v4903 = vrot.slane %v3063, %v4902
    %v4904 = vlaneseq
    %v4905 = vshrl.u32 %v4904, 7
    %v4906 = vsub.s32 2, %v4905
    %v4907 = vrot.slane %v3063, %v4906
    %v4908 = vlaneseq
    %v4909 = vshrl.u32 %v4908, 7
    %v4910 = vsub.s32 3, %v4909
    %v4911 = vrot.slane %v3063, %v4910
    %v4912 = vlaneseq
    %v4913 = vshrl.u32 %v4912, 7
    %v4914 = vsub.s32 4, %v4913
    %v4915 = vrot.slane %v3063, %v4914
    %v4916 = vlaneseq
    %v4917 = vshrl.u32 %v4916, 7
    %v4918 = vsub.s32 5, %v4917
    %v4919 = vrot.slane %v3063, %v4918
    %v4920 = vlaneseq
    %v4921 = vshrl.u32 %v4920, 7
    %v4922 = vsub.s32 6, %v4921
    %v4923 = vrot.slane %v3063, %v4922
    %v4924 = vlaneseq
    %v4925 = vshrl.u32 %v4924, 7
    %v4926 = vsub.s32 7, %v4925
    %v4927 = vrot.slane %v3063, %v4926
    %v4928 = vlaneseq
    %v4929 = vshrl.u32 %v4928, 7
    %v4930 = vsub.s32 0, %v4929
    %v4931 = vrot.slane %v3064, %v4930
    %v4932 = vlaneseq
    %v4933 = vshrl.u32 %v4932, 7
    %v4934 = vsub.s32 1, %v4933
    %v4935 = vrot.slane %v3064, %v4934
    %v4936 = vlaneseq
    %v4937 = vshrl.u32 %v4936, 7
    %v4938 = vsub.s32 2, %v4937
    %v4939 = vrot.slane %v3064, %v4938
    %v4940 = vlaneseq
    %v4941 = vshrl.u32 %v4940, 7
    %v4942 = vsub.s32 3, %v4941
    %v4943 = vrot.slane %v3064, %v4942
    %v4944 = vlaneseq
    %v4945 = vshrl.u32 %v4944, 7
    %v4946 = vsub.s32 4, %v4945
    %v4947 = vrot.slane %v3064, %v4946
    %v4948 = vlaneseq
    %v4949 = vshrl.u32 %v4948, 7
    %v4950 = vsub.s32 5, %v4949
    %v4951 = vrot.slane %v3064, %v4950
    %v4952 = vlaneseq
    %v4953 = vshrl.u32 %v4952, 7
    %v4954 = vsub.s32 6, %v4953
    %v4955 = vrot.slane %v3064, %v4954
    %v4956 = vlaneseq
    %v4957 = vshrl.u32 %v4956, 7
    %v4958 = vsub.s32 7, %v4957
    %v4959 = vrot.slane %v3064, %v4958
    %v4960 = vlaneseq
    %v4961 = vshrl.u32 %v4960, 7
    %v4962 = vsub.s32 0, %v4961
    %v4963 = vrot.slane %v3065, %v4962
    %v4964 = vlaneseq
    %v4965 = vshrl.u32 %v4964, 7
    %v4966 = vsub.s32 1, %v4965
    %v4967 = vrot.slane %v3065, %v4966
    %v4968 = vlaneseq
    %v4969 = vshrl.u32 %v4968, 7
    %v4970 = vsub.s32 2, %v4969
    %v4971 = vrot.slane %v3065, %v4970
    %v4972 = vlaneseq
    %v4973 = vshrl.u32 %v4972, 7
    %v4974 = vsub.s32 3, %v4973
    %v4975 = vrot.slane %v3065, %v4974
    %v4976 = vlaneseq
    %v4977 = vshrl.u32 %v4976, 7
    %v4978 = vsub.s32 4, %v4977
    %v4979 = vrot.slane %v3065, %v4978
    %v4980 = vlaneseq
    %v4981 = vshrl.u32 %v4980, 7
    %v4982 = vsub.s32 5, %v4981
    %v4983 = vrot.slane %v3065, %v4982
    %v4984 = vlaneseq
    %v4985 = vshrl.u32 %v4984, 7
    %v4986 = vsub.s32 6, %v4985
    %v4987 = vrot.slane %v3065, %v4986
    %v4988 = vlaneseq
    %v4989 = vshrl.u32 %v4988, 7
    %v4990 = vsub.s32 7, %v4989
    %v4991 = vrot.slane %v3065, %v4990
    %v4992 = vlaneseq
    %v4993 = vshrl.u32 %v4992, 7
    %v4994 = vsub.s32 0, %v4993
    %v4995 = vrot.slane %v3066, %v4994
    %v4996 = vlaneseq
    %v4997 = vshrl.u32 %v4996, 7
    %v4998 = vsub.s32 1, %v4997
    %v4999 = vrot.slane %v3066, %v4998
    %v5000 = vlaneseq
    %v5001 = vshrl.u32 %v5000, 7
    %v5002 = vsub.s32 2, %v5001
    %v5003 = vrot.slane %v3066, %v5002
    %v5004 = vlaneseq
    %v5005 = vshrl.u32 %v5004, 7
    %v5006 = vsub.s32 3, %v5005
    %v5007 = vrot.slane %v3066, %v5006
    %v5008 = vlaneseq
    %v5009 = vshrl.u32 %v5008, 7
    %v5010 = vsub.s32 4, %v5009
    %v5011 = vrot.slane %v3066, %v5010
    %v5012 = vlaneseq
    %v5013 = vshrl.u32 %v5012, 7
    %v5014 = vsub.s32 5, %v5013
    %v5015 = vrot.slane %v3066, %v5014
    %v5016 = vlaneseq
    %v5017 = vshrl.u32 %v5016, 7
    %v5018 = vsub.s32 6, %v5017
    %v5019 = vrot.slane %v3066, %v5018
    %v5020 = vlaneseq
    %v5021 = vshrl.u32 %v5020, 7
    %v5022 = vsub.s32 7, %v5021
    %v5023 = vrot.slane %v3066, %v5022
    %v5024 = vlaneseq
    %v5025 = vshrl.u32 %v5024, 7
    %v5026 = vsub.s32 0, %v5025
    %v5027 = vrot.slane %v3067, %v5026
    %v5028 = vlaneseq
    %v5029 = vshrl.u32 %v5028, 7
    %v5030 = vsub.s32 1, %v5029
    %v5031 = vrot.slane %v3067, %v5030
    %v5032 = vlaneseq
    %v5033 = vshrl.u32 %v5032, 7
    %v5034 = vsub.s32 2, %v5033
    %v5035 = vrot.slane %v3067, %v5034
    %v5036 = vlaneseq
    %v5037 = vshrl.u32 %v5036, 7
    %v5038 = vsub.s32 3, %v5037
    %v5039 = vrot.slane %v3067, %v5038
    %v5040 = vlaneseq
    %v5041 = vshrl.u32 %v5040, 7
    %v5042 = vsub.s32 4, %v5041
    %v5043 = vrot.slane %v3067, %v5042
    %v5044 = vlaneseq
    %v5045 = vshrl.u32 %v5044, 7
    %v5046 = vsub.s32 5, %v5045
    %v5047 = vrot.slane %v3067, %v5046
    %v5048 = vlaneseq
    %v5049 = vshrl.u32 %v5048, 7
    %v5050 = vsub.s32 6, %v5049
    %v5051 = vrot.slane %v3067, %v5050
    %v5052 = vlaneseq
    %v5053 = vshrl.u32 %v5052, 7
    %v5054 = vsub.s32 7, %v5053
    %v5055 = vrot.slane %v3067, %v5054
    %v5056 = vlaneseq
    %v5057 = vshrl.u32 %v5056, 7
    %v5058 = vsub.s32 0, %v5057
    %v5059 = vrot.slane %v3068, %v5058
    %v5060 = vlaneseq
    %v5061 = vshrl.u32 %v5060, 7
    %v5062 = vsub.s32 1, %v5061
    %v5063 = vrot.slane %v3068, %v5062
    %v5064 = vlaneseq
    %v5065 = vshrl.u32 %v5064, 7
    %v5066 = vsub.s32 2, %v5065
    %v5067 = vrot.slane %v3068, %v5066
    %v5068 = vlaneseq
    %v5069 = vshrl.u32 %v5068, 7
    %v5070 = vsub.s32 3, %v5069
    %v5071 = vrot.slane %v3068, %v5070
    %v5072 = vlaneseq
    %v5073 = vshrl.u32 %v5072, 7
    %v5074 = vsub.s32 4, %v5073
    %v5075 = vrot.slane %v3068, %v5074
    %v5076 = vlaneseq
    %v5077 = vshrl.u32 %v5076, 7
    %v5078 = vsub.s32 5, %v5077
    %v5079 = vrot.slane %v3068, %v5078
    %v5080 = vlaneseq
    %v5081 = vshrl.u32 %v5080, 7
    %v5082 = vsub.s32 6, %v5081
    %v5083 = vrot.slane %v3068, %v5082
    %v5084 = vlaneseq
    %v5085 = vshrl.u32 %v5084, 7
    %v5086 = vsub.s32 7, %v5085
    %v5087 = vrot.slane %v3068, %v5086
    %v5088 = vlaneseq
    %v5089 = vshrl.u32 %v5088, 7
    %v5090 = vsub.s32 0, %v5089
    %v5091 = vrot.slane %v3069, %v5090
    %v5092 = vlaneseq
    %v5093 = vshrl.u32 %v5092, 7
    %v5094 = vsub.s32 1, %v5093
    %v5095 = vrot.slane %v3069, %v5094
    %v5096 = vlaneseq
    %v5097 = vshrl.u32 %v5096, 7
    %v5098 = vsub.s32 2, %v5097
    %v5099 = vrot.slane %v3069, %v5098
    %v5100 = vlaneseq
    %v5101 = vshrl.u32 %v5100, 7
    %v5102 = vsub.s32 3, %v5101
    %v5103 = vrot.slane %v3069, %v5102
    %v5104 = vlaneseq
    %v5105 = vshrl.u32 %v5104, 7
    %v5106 = vsub.s32 4, %v5105
    %v5107 = vrot.slane %v3069, %v5106
    %v5108 = vlaneseq
    %v5109 = vshrl.u32 %v5108, 7
    %v5110 = vsub.s32 5, %v5109
    %v5111 = vrot.slane %v3069, %v5110
    %v5112 = vlaneseq
    %v5113 = vshrl.u32 %v5112, 7
    %v5114 = vsub.s32 6, %v5113
    %v5115 = vrot.slane %v3069, %v5114
    %v5116 = vlaneseq
    %v5117 = vshrl.u32 %v5116, 7
    %v5118 = vsub.s32 7, %v5117
    %v5119 = vrot.slane %v3069, %v5118
    %v5120 = vlaneseq
    %v5121 = vshrl.u32 %v5120, 7
    %v5122 = vsub.s32 0, %v5121
    %v5123 = vrot.slane %v3070, %v5122
    %v5124 = vlaneseq
    %v5125 = vshrl.u32 %v5124, 7
    %v5126 = vsub.s32 1, %v5125
    %v5127 = vrot.slane %v3070, %v5126
    %v5128 = vlaneseq
    %v5129 = vshrl.u32 %v5128, 7
    %v5130 = vsub.s32 2, %v5129
    %v5131 = vrot.slane %v3070, %v5130
    %v5132 = vlaneseq
    %v5133 = vshrl.u32 %v5132, 7
    %v5134 = vsub.s32 3, %v5133
    %v5135 = vrot.slane %v3070, %v5134
    %v5136 = vlaneseq
    %v5137 = vshrl.u32 %v5136, 7
    %v5138 = vsub.s32 4, %v5137
    %v5139 = vrot.slane %v3070, %v5138
    %v5140 = vlaneseq
    %v5141 = vshrl.u32 %v5140, 7
    %v5142 = vsub.s32 5, %v5141
    %v5143 = vrot.slane %v3070, %v5142
    %v5144 = vlaneseq
    %v5145 = vshrl.u32 %v5144, 7
    %v5146 = vsub.s32 6, %v5145
    %v5147 = vrot.slane %v3070, %v5146
    %v5148 = vlaneseq
    %v5149 = vshrl.u32 %v5148, 7
    %v5150 = vsub.s32 7, %v5149
    %v5151 = vrot.slane %v3070, %v5150
    %v5152 = vlaneseq
    %v5153 = vshrl.u32 %v5152, 7
    %v5154 = vsub.s32 0, %v5153
    %v5155 = vrot.slane %v3071, %v5154
    %v5156 = vlaneseq
    %v5157 = vshrl.u32 %v5156, 7
    %v5158 = vsub.s32 1, %v5157
    %v5159 = vrot.slane %v3071, %v5158
    %v5160 = vlaneseq
    %v5161 = vshrl.u32 %v5160, 7
    %v5162 = vsub.s32 2, %v5161
    %v5163 = vrot.slane %v3071, %v5162
    %v5164 = vlaneseq
    %v5165 = vshrl.u32 %v5164, 7
    %v5166 = vsub.s32 3, %v5165
    %v5167 = vrot.slane %v3071, %v5166
    %v5168 = vlaneseq
    %v5169 = vshrl.u32 %v5168, 7
    %v5170 = vsub.s32 4, %v5169
    %v5171 = vrot.slane %v3071, %v5170
    %v5172 = vlaneseq
    %v5173 = vshrl.u32 %v5172, 7
    %v5174 = vsub.s32 5, %v5173
    %v5175 = vrot.slane %v3071, %v5174
    %v5176 = vlaneseq
    %v5177 = vshrl.u32 %v5176, 7
    %v5178 = vsub.s32 6, %v5177
    %v5179 = vrot.slane %v3071, %v5178
    %v5180 = vlaneseq
    %v5181 = vshrl.u32 %v5180, 7
    %v5182 = vsub.s32 7, %v5181
    %v5183 = vrot.slane %v3071, %v5182
    %v5184 = vlaneseq
    %v5185 = vshrl.u32 %v5184, 7
    %v5186 = vsub.s32 0, %v5185
    %v5187 = vrot.slane %v3072, %v5186
    %v5188 = vlaneseq
    %v5189 = vshrl.u32 %v5188, 7
    %v5190 = vsub.s32 1, %v5189
    %v5191 = vrot.slane %v3072, %v5190
    %v5192 = vlaneseq
    %v5193 = vshrl.u32 %v5192, 7
    %v5194 = vsub.s32 2, %v5193
    %v5195 = vrot.slane %v3072, %v5194
    %v5196 = vlaneseq
    %v5197 = vshrl.u32 %v5196, 7
    %v5198 = vsub.s32 3, %v5197
    %v5199 = vrot.slane %v3072, %v5198
    %v5200 = vlaneseq
    %v5201 = vshrl.u32 %v5200, 7
    %v5202 = vsub.s32 4, %v5201
    %v5203 = vrot.slane %v3072, %v5202
    %v5204 = vlaneseq
    %v5205 = vshrl.u32 %v5204, 7
    %v5206 = vsub.s32 5, %v5205
    %v5207 = vrot.slane %v3072, %v5206
    %v5208 = vlaneseq
    %v5209 = vshrl.u32 %v5208, 7
    %v5210 = vsub.s32 6, %v5209
    %v5211 = vrot.slane %v3072, %v5210
    %v5212 = vlaneseq
    %v5213 = vshrl.u32 %v5212, 7
    %v5214 = vsub.s32 7, %v5213
    %v5215 = vrot.slane %v3072, %v5214
    %v5216 = vlaneseq
    %v5217 = vshrl.u32 %v5216, 7
    %v5218 = vsub.s32 0, %v5217
    %v5219 = vrot.slane %v3073, %v5218
    %v5220 = vlaneseq
    %v5221 = vshrl.u32 %v5220, 7
    %v5222 = vsub.s32 1, %v5221
    %v5223 = vrot.slane %v3073, %v5222
    %v5224 = vlaneseq
    %v5225 = vshrl.u32 %v5224, 7
    %v5226 = vsub.s32 2, %v5225
    %v5227 = vrot.slane %v3073, %v5226
    %v5228 = vlaneseq
    %v5229 = vshrl.u32 %v5228, 7
    %v5230 = vsub.s32 3, %v5229
    %v5231 = vrot.slane %v3073, %v5230
    %v5232 = vlaneseq
    %v5233 = vshrl.u32 %v5232, 7
    %v5234 = vsub.s32 4, %v5233
    %v5235 = vrot.slane %v3073, %v5234
    %v5236 = vlaneseq
    %v5237 = vshrl.u32 %v5236, 7
    %v5238 = vsub.s32 5, %v5237
    %v5239 = vrot.slane %v3073, %v5238
    %v5240 = vlaneseq
    %v5241 = vshrl.u32 %v5240, 7
    %v5242 = vsub.s32 6, %v5241
    %v5243 = vrot.slane %v3073, %v5242
    %v5244 = vlaneseq
    %v5245 = vshrl.u32 %v5244, 7
    %v5246 = vsub.s32 7, %v5245
    %v5247 = vrot.slane %v3073, %v5246
    %v5248 = vlaneseq
    %v5249 = vshrl.u32 %v5248, 7
    %v5250 = vsub.s32 0, %v5249
    %v5251 = vrot.slane %v3074, %v5250
    %v5252 = vlaneseq
    %v5253 = vshrl.u32 %v5252, 7
    %v5254 = vsub.s32 1, %v5253
    %v5255 = vrot.slane %v3074, %v5254
    %v5256 = vlaneseq
    %v5257 = vshrl.u32 %v5256, 7
    %v5258 = vsub.s32 2, %v5257
    %v5259 = vrot.slane %v3074, %v5258
    %v5260 = vlaneseq
    %v5261 = vshrl.u32 %v5260, 7
    %v5262 = vsub.s32 3, %v5261
    %v5263 = vrot.slane %v3074, %v5262
    %v5264 = vlaneseq
    %v5265 = vshrl.u32 %v5264, 7
    %v5266 = vsub.s32 4, %v5265
    %v5267 = vrot.slane %v3074, %v5266
    %v5268 = vlaneseq
    %v5269 = vshrl.u32 %v5268, 7
    %v5270 = vsub.s32 5, %v5269
    %v5271 = vrot.slane %v3074, %v5270
    %v5272 = vlaneseq
    %v5273 = vshrl.u32 %v5272, 7
    %v5274 = vsub.s32 6, %v5273
    %v5275 = vrot.slane %v3074, %v5274
    %v5276 = vlaneseq
    %v5277 = vshrl.u32 %v5276, 7
    %v5278 = vsub.s32 7, %v5277
    %v5279 = vrot.slane %v3074, %v5278
    %v5280 = vlaneseq
    %v5281 = vshrl.u32 %v5280, 7
    %v5282 = vsub.s32 0, %v5281
    %v5283 = vrot.slane %v3075, %v5282
    %v5284 = vlaneseq
    %v5285 = vshrl.u32 %v5284, 7
    %v5286 = vsub.s32 1, %v5285
    %v5287 = vrot.slane %v3075, %v5286
    %v5288 = vlaneseq
    %v5289 = vshrl.u32 %v5288, 7
    %v5290 = vsub.s32 2, %v5289
    %v5291 = vrot.slane %v3075, %v5290
    %v5292 = vlaneseq
    %v5293 = vshrl.u32 %v5292, 7
    %v5294 = vsub.s32 3, %v5293
    %v5295 = vrot.slane %v3075, %v5294
    %v5296 = vlaneseq
    %v5297 = vshrl.u32 %v5296, 7
    %v5298 = vsub.s32 4, %v5297
    %v5299 = vrot.slane %v3075, %v5298
    %v5300 = vlaneseq
    %v5301 = vshrl.u32 %v5300, 7
    %v5302 = vsub.s32 5, %v5301
    %v5303 = vrot.slane %v3075, %v5302
    %v5304 = vlaneseq
    %v5305 = vshrl.u32 %v5304, 7
    %v5306 = vsub.s32 6, %v5305
    %v5307 = vrot.slane %v3075, %v5306
    %v5308 = vlaneseq
    %v5309 = vshrl.u32 %v5308, 7
    %v5310 = vsub.s32 7, %v5309
    %v5311 = vrot.slane %v3075, %v5310
    %v5312 = vlaneseq
    %v5313 = vshrl.u32 %v5312, 7
    %v5314 = vsub.s32 0, %v5313
    %v5315 = vrot.slane %v3076, %v5314
    %v5316 = vlaneseq
    %v5317 = vshrl.u32 %v5316, 7
    %v5318 = vsub.s32 1, %v5317
    %v5319 = vrot.slane %v3076, %v5318
    %v5320 = vlaneseq
    %v5321 = vshrl.u32 %v5320, 7
    %v5322 = vsub.s32 2, %v5321
    %v5323 = vrot.slane %v3076, %v5322
    %v5324 = vlaneseq
    %v5325 = vshrl.u32 %v5324, 7
    %v5326 = vsub.s32 3, %v5325
    %v5327 = vrot.slane %v3076, %v5326
    %v5328 = vlaneseq
    %v5329 = vshrl.u32 %v5328, 7
    %v5330 = vsub.s32 4, %v5329
    %v5331 = vrot.slane %v3076, %v5330
    %v5332 = vlaneseq
    %v5333 = vshrl.u32 %v5332, 7
    %v5334 = vsub.s32 5, %v5333
    %v5335 = vrot.slane %v3076, %v5334
    %v5336 = vlaneseq
    %v5337 = vshrl.u32 %v5336, 7
    %v5338 = vsub.s32 6, %v5337
    %v5339 = vrot.slane %v3076, %v5338
    %v5340 = vlaneseq
    %v5341 = vshrl.u32 %v5340, 7
    %v5342 = vsub.s32 7, %v5341
    %v5343 = vrot.slane %v3076, %v5342
    %v5344 = vlaneseq
    %v5345 = vshrl.u32 %v5344, 7
    %v5346 = vsub.s32 0, %v5345
    %v5347 = vrot.slane %v3077, %v5346
    %v5348 = vlaneseq
    %v5349 = vshrl.u32 %v5348, 7
    %v5350 = vsub.s32 1, %v5349
    %v5351 = vrot.slane %v3077, %v5350
    %v5352 = vlaneseq
    %v5353 = vshrl.u32 %v5352, 7
    %v5354 = vsub.s32 2, %v5353
    %v5355 = vrot.slane %v3077, %v5354
    %v5356 = vlaneseq
    %v5357 = vshrl.u32 %v5356, 7
    %v5358 = vsub.s32 3, %v5357
    %v5359 = vrot.slane %v3077, %v5358
    %v5360 = vlaneseq
    %v5361 = vshrl.u32 %v5360, 7
    %v5362 = vsub.s32 4, %v5361
    %v5363 = vrot.slane %v3077, %v5362
    %v5364 = vlaneseq
    %v5365 = vshrl.u32 %v5364, 7
    %v5366 = vsub.s32 5, %v5365
    %v5367 = vrot.slane %v3077, %v5366
    %v5368 = vlaneseq
    %v5369 = vshrl.u32 %v5368, 7
    %v5370 = vsub.s32 6, %v5369
    %v5371 = vrot.slane %v3077, %v5370
    %v5372 = vlaneseq
    %v5373 = vshrl.u32 %v5372, 7
    %v5374 = vsub.s32 7, %v5373
    %v5375 = vrot.slane %v3077, %v5374
    %v5376 = vlaneseq
    %v5377 = vshrl.u32 %v5376, 7
    %v5378 = vsub.s32 0, %v5377
    %v5379 = vrot.slane %v3078, %v5378
    %v5380 = vlaneseq
    %v5381 = vshrl.u32 %v5380, 7
    %v5382 = vsub.s32 1, %v5381
    %v5383 = vrot.slane %v3078, %v5382
    %v5384 = vlaneseq
    %v5385 = vshrl.u32 %v5384, 7
    %v5386 = vsub.s32 2, %v5385
    %v5387 = vrot.slane %v3078, %v5386
    %v5388 = vlaneseq
    %v5389 = vshrl.u32 %v5388, 7
    %v5390 = vsub.s32 3, %v5389
    %v5391 = vrot.slane %v3078, %v5390
    %v5392 = vlaneseq
    %v5393 = vshrl.u32 %v5392, 7
    %v5394 = vsub.s32 4, %v5393
    %v5395 = vrot.slane %v3078, %v5394
    %v5396 = vlaneseq
    %v5397 = vshrl.u32 %v5396, 7
    %v5398 = vsub.s32 5, %v5397
    %v5399 = vrot.slane %v3078, %v5398
    %v5400 = vlaneseq
    %v5401 = vshrl.u32 %v5400, 7
    %v5402 = vsub.s32 6, %v5401
    %v5403 = vrot.slane %v3078, %v5402
    %v5404 = vlaneseq
    %v5405 = vshrl.u32 %v5404, 7
    %v5406 = vsub.s32 7, %v5405
    %v5407 = vrot.slane %v3078, %v5406
    %v5408 = vlaneseq
    %v5409 = vshrl.u32 %v5408, 7
    %v5410 = vsub.s32 0, %v5409
    %v5411 = vrot.slane %v3079, %v5410
    %v5412 = vlaneseq
    %v5413 = vshrl.u32 %v5412, 7
    %v5414 = vsub.s32 1, %v5413
    %v5415 = vrot.slane %v3079, %v5414
    %v5416 = vlaneseq
    %v5417 = vshrl.u32 %v5416, 7
    %v5418 = vsub.s32 2, %v5417
    %v5419 = vrot.slane %v3079, %v5418
    %v5420 = vlaneseq
    %v5421 = vshrl.u32 %v5420, 7
    %v5422 = vsub.s32 3, %v5421
    %v5423 = vrot.slane %v3079, %v5422
    %v5424 = vlaneseq
    %v5425 = vshrl.u32 %v5424, 7
    %v5426 = vsub.s32 4, %v5425
    %v5427 = vrot.slane %v3079, %v5426
    %v5428 = vlaneseq
    %v5429 = vshrl.u32 %v5428, 7
    %v5430 = vsub.s32 5, %v5429
    %v5431 = vrot.slane %v3079, %v5430
    %v5432 = vlaneseq
    %v5433 = vshrl.u32 %v5432, 7
    %v5434 = vsub.s32 6, %v5433
    %v5435 = vrot.slane %v3079, %v5434
    %v5436 = vlaneseq
    %v5437 = vshrl.u32 %v5436, 7
    %v5438 = vsub.s32 7, %v5437
    %v5439 = vrot.slane %v3079, %v5438
    %v5440 = vlaneseq
    %v5441 = vshrl.u32 %v5440, 7
    %v5442 = vsub.s32 0, %v5441
    %v5443 = vrot.slane %v3080, %v5442
    %v5444 = vlaneseq
    %v5445 = vshrl.u32 %v5444, 7
    %v5446 = vsub.s32 1, %v5445
    %v5447 = vrot.slane %v3080, %v5446
    %v5448 = vlaneseq
    %v5449 = vshrl.u32 %v5448, 7
    %v5450 = vsub.s32 2, %v5449
    %v5451 = vrot.slane %v3080, %v5450
    %v5452 = vlaneseq
    %v5453 = vshrl.u32 %v5452, 7
    %v5454 = vsub.s32 3, %v5453
    %v5455 = vrot.slane %v3080, %v5454
    %v5456 = vlaneseq
    %v5457 = vshrl.u32 %v5456, 7
    %v5458 = vsub.s32 4, %v5457
    %v5459 = vrot.slane %v3080, %v5458
    %v5460 = vlaneseq
    %v5461 = vshrl.u32 %v5460, 7
    %v5462 = vsub.s32 5, %v5461
    %v5463 = vrot.slane %v3080, %v5462
    %v5464 = vlaneseq
    %v5465 = vshrl.u32 %v5464, 7
    %v5466 = vsub.s32 6, %v5465
    %v5467 = vrot.slane %v3080, %v5466
    %v5468 = vlaneseq
    %v5469 = vshrl.u32 %v5468, 7
    %v5470 = vsub.s32 7, %v5469
    %v5471 = vrot.slane %v3080, %v5470
    %v5472 = vlaneseq
    %v5473 = vshrl.u32 %v5472, 7
    %v5474 = vsub.s32 0, %v5473
    %v5475 = vrot.slane %v3081, %v5474
    %v5476 = vlaneseq
    %v5477 = vshrl.u32 %v5476, 7
    %v5478 = vsub.s32 1, %v5477
    %v5479 = vrot.slane %v3081, %v5478
    %v5480 = vlaneseq
    %v5481 = vshrl.u32 %v5480, 7
    %v5482 = vsub.s32 2, %v5481
    %v5483 = vrot.slane %v3081, %v5482
    %v5484 = vlaneseq
    %v5485 = vshrl.u32 %v5484, 7
    %v5486 = vsub.s32 3, %v5485
    %v5487 = vrot.slane %v3081, %v5486
    %v5488 = vlaneseq
    %v5489 = vshrl.u32 %v5488, 7
    %v5490 = vsub.s32 4, %v5489
    %v5491 = vrot.slane %v3081, %v5490
    %v5492 = vlaneseq
    %v5493 = vshrl.u32 %v5492, 7
    %v5494 = vsub.s32 5, %v5493
    %v5495 = vrot.slane %v3081, %v5494
    %v5496 = vlaneseq
    %v5497 = vshrl.u32 %v5496, 7
    %v5498 = vsub.s32 6, %v5497
    %v5499 = vrot.slane %v3081, %v5498
    %v5500 = vlaneseq
    %v5501 = vshrl.u32 %v5500, 7
    %v5502 = vsub.s32 7, %v5501
    %v5503 = vrot.slane %v3081, %v5502
    %v5504 = vlaneseq
    %v5505 = vshrl.u32 %v5504, 7
    %v5506 = vsub.s32 0, %v5505
    %v5507 = vrot.slane %v3082, %v5506
    %v5508 = vlaneseq
    %v5509 = vshrl.u32 %v5508, 7
    %v5510 = vsub.s32 1, %v5509
    %v5511 = vrot.slane %v3082, %v5510
    %v5512 = vlaneseq
    %v5513 = vshrl.u32 %v5512, 7
    %v5514 = vsub.s32 2, %v5513
    %v5515 = vrot.slane %v3082, %v5514
    %v5516 = vlaneseq
    %v5517 = vshrl.u32 %v5516, 7
    %v5518 = vsub.s32 3, %v5517
    %v5519 = vrot.slane %v3082, %v5518
    %v5520 = vlaneseq
    %v5521 = vshrl.u32 %v5520, 7
    %v5522 = vsub.s32 4, %v5521
    %v5523 = vrot.slane %v3082, %v5522
    %v5524 = vlaneseq
    %v5525 = vshrl.u32 %v5524, 7
    %v5526 = vsub.s32 5, %v5525
    %v5527 = vrot.slane %v3082, %v5526
    %v5528 = vlaneseq
    %v5529 = vshrl.u32 %v5528, 7
    %v5530 = vsub.s32 6, %v5529
    %v5531 = vrot.slane %v3082, %v5530
    %v5532 = vlaneseq
    %v5533 = vshrl.u32 %v5532, 7
    %v5534 = vsub.s32 7, %v5533
    %v5535 = vrot.slane %v3082, %v5534
    %v5536 = vlaneseq
    %v5537 = vshrl.u32 %v5536, 7
    %v5538 = vsub.s32 0, %v5537
    %v5539 = vrot.slane %v3083, %v5538
    %v5540 = vlaneseq
    %v5541 = vshrl.u32 %v5540, 7
    %v5542 = vsub.s32 1, %v5541
    %v5543 = vrot.slane %v3083, %v5542
    %v5544 = vlaneseq
    %v5545 = vshrl.u32 %v5544, 7
    %v5546 = vsub.s32 2, %v5545
    %v5547 = vrot.slane %v3083, %v5546
    %v5548 = vlaneseq
    %v5549 = vshrl.u32 %v5548, 7
    %v5550 = vsub.s32 3, %v5549
    %v5551 = vrot.slane %v3083, %v5550
    %v5552 = vlaneseq
    %v5553 = vshrl.u32 %v5552, 7
    %v5554 = vsub.s32 4, %v5553
    %v5555 = vrot.slane %v3083, %v5554
    %v5556 = vlaneseq
    %v5557 = vshrl.u32 %v5556, 7
    %v5558 = vsub.s32 5, %v5557
    %v5559 = vrot.slane %v3083, %v5558
    %v5560 = vlaneseq
    %v5561 = vshrl.u32 %v5560, 7
    %v5562 = vsub.s32 6, %v5561
    %v5563 = vrot.slane %v3083, %v5562
    %v5564 = vlaneseq
    %v5565 = vshrl.u32 %v5564, 7
    %v5566 = vsub.s32 7, %v5565
    %v5567 = vrot.slane %v3083, %v5566
    %v5568 = vlaneseq
    %v5569 = vshrl.u32 %v5568, 7
    %v5570 = vsub.s32 0, %v5569
    %v5571 = vrot.slane %v3084, %v5570
    %v5572 = vlaneseq
    %v5573 = vshrl.u32 %v5572, 7
    %v5574 = vsub.s32 1, %v5573
    %v5575 = vrot.slane %v3084, %v5574
    %v5576 = vlaneseq
    %v5577 = vshrl.u32 %v5576, 7
    %v5578 = vsub.s32 2, %v5577
    %v5579 = vrot.slane %v3084, %v5578
    %v5580 = vlaneseq
    %v5581 = vshrl.u32 %v5580, 7
    %v5582 = vsub.s32 3, %v5581
    %v5583 = vrot.slane %v3084, %v5582
    %v5584 = vlaneseq
    %v5585 = vshrl.u32 %v5584, 7
    %v5586 = vsub.s32 4, %v5585
    %v5587 = vrot.slane %v3084, %v5586
    %v5588 = vlaneseq
    %v5589 = vshrl.u32 %v5588, 7
    %v5590 = vsub.s32 5, %v5589
    %v5591 = vrot.slane %v3084, %v5590
    %v5592 = vlaneseq
    %v5593 = vshrl.u32 %v5592, 7
    %v5594 = vsub.s32 6, %v5593
    %v5595 = vrot.slane %v3084, %v5594
    %v5596 = vlaneseq
    %v5597 = vshrl.u32 %v5596, 7
    %v5598 = vsub.s32 7, %v5597
    %v5599 = vrot.slane %v3084, %v5598
    %v5600 = vlaneseq
    %v5601 = vshrl.u32 %v5600, 7
    %v5602 = vsub.s32 0, %v5601
    %v5603 = vrot.slane %v3085, %v5602
    %v5604 = vlaneseq
    %v5605 = vshrl.u32 %v5604, 7
    %v5606 = vsub.s32 1, %v5605
    %v5607 = vrot.slane %v3085, %v5606
    %v5608 = vlaneseq
    %v5609 = vshrl.u32 %v5608, 7
    %v5610 = vsub.s32 2, %v5609
    %v5611 = vrot.slane %v3085, %v5610
    %v5612 = vlaneseq
    %v5613 = vshrl.u32 %v5612, 7
    %v5614 = vsub.s32 3, %v5613
    %v5615 = vrot.slane %v3085, %v5614
    %v5616 = vlaneseq
    %v5617 = vshrl.u32 %v5616, 7
    %v5618 = vsub.s32 4, %v5617
    %v5619 = vrot.slane %v3085, %v5618
    %v5620 = vlaneseq
    %v5621 = vshrl.u32 %v5620, 7
    %v5622 = vsub.s32 5, %v5621
    %v5623 = vrot.slane %v3085, %v5622
    %v5624 = vlaneseq
    %v5625 = vshrl.u32 %v5624, 7
    %v5626 = vsub.s32 6, %v5625
    %v5627 = vrot.slane %v3085, %v5626
    %v5628 = vlaneseq
    %v5629 = vshrl.u32 %v5628, 7
    %v5630 = vsub.s32 7, %v5629
    %v5631 = vrot.slane %v3085, %v5630
    %v5632 = vlaneseq
    %v5633 = vshrl.u32 %v5632, 7
    %v5634 = vsub.s32 0, %v5633
    %v5635 = vrot.slane %v3086, %v5634
    %v5636 = vlaneseq
    %v5637 = vshrl.u32 %v5636, 7
    %v5638 = vsub.s32 1, %v5637
    %v5639 = vrot.slane %v3086, %v5638
    %v5640 = vlaneseq
    %v5641 = vshrl.u32 %v5640, 7
    %v5642 = vsub.s32 2, %v5641
    %v5643 = vrot.slane %v3086, %v5642
    %v5644 = vlaneseq
    %v5645 = vshrl.u32 %v5644, 7
    %v5646 = vsub.s32 3, %v5645
    %v5647 = vrot.slane %v3086, %v5646
    %v5648 = vlaneseq
    %v5649 = vshrl.u32 %v5648, 7
    %v5650 = vsub.s32 4, %v5649
    %v5651 = vrot.slane %v3086, %v5650
    %v5652 = vlaneseq
    %v5653 = vshrl.u32 %v5652, 7
    %v5654 = vsub.s32 5, %v5653
    %v5655 = vrot.slane %v3086, %v5654
    %v5656 = vlaneseq
    %v5657 = vshrl.u32 %v5656, 7
    %v5658 = vsub.s32 6, %v5657
    %v5659 = vrot.slane %v3086, %v5658
    %v5660 = vlaneseq
    %v5661 = vshrl.u32 %v5660, 7
    %v5662 = vsub.s32 7, %v5661
    %v5663 = vrot.slane %v3086, %v5662
    %v5664 = vlaneseq
    %v5665 = vshrl.u32 %v5664, 7
    %v5666 = vsub.s32 0, %v5665
    %v5667 = vrot.slane %v3087, %v5666
    %v5668 = vlaneseq
    %v5669 = vshrl.u32 %v5668, 7
    %v5670 = vsub.s32 1, %v5669
    %v5671 = vrot.slane %v3087, %v5670
    %v5672 = vlaneseq
    %v5673 = vshrl.u32 %v5672, 7
    %v5674 = vsub.s32 2, %v5673
    %v5675 = vrot.slane %v3087, %v5674
    %v5676 = vlaneseq
    %v5677 = vshrl.u32 %v5676, 7
    %v5678 = vsub.s32 3, %v5677
    %v5679 = vrot.slane %v3087, %v5678
    %v5680 = vlaneseq
    %v5681 = vshrl.u32 %v5680, 7
    %v5682 = vsub.s32 4, %v5681
    %v5683 = vrot.slane %v3087, %v5682
    %v5684 = vlaneseq
    %v5685 = vshrl.u32 %v5684, 7
    %v5686 = vsub.s32 5, %v5685
    %v5687 = vrot.slane %v3087, %v5686
    %v5688 = vlaneseq
    %v5689 = vshrl.u32 %v5688, 7
    %v5690 = vsub.s32 6, %v5689
    %v5691 = vrot.slane %v3087, %v5690
    %v5692 = vlaneseq
    %v5693 = vshrl.u32 %v5692, 7
    %v5694 = vsub.s32 7, %v5693
    %v5695 = vrot.slane %v3087, %v5694
    %v5696 = vlaneseq
    %v5697 = vshrl.u32 %v5696, 7
    %v5698 = vsub.s32 0, %v5697
    %v5699 = vrot.slane %v3088, %v5698
    %v5700 = vlaneseq
    %v5701 = vshrl.u32 %v5700, 7
    %v5702 = vsub.s32 1, %v5701
    %v5703 = vrot.slane %v3088, %v5702
    %v5704 = vlaneseq
    %v5705 = vshrl.u32 %v5704, 7
    %v5706 = vsub.s32 2, %v5705
    %v5707 = vrot.slane %v3088, %v5706
    %v5708 = vlaneseq
    %v5709 = vshrl.u32 %v5708, 7
    %v5710 = vsub.s32 3, %v5709
    %v5711 = vrot.slane %v3088, %v5710
    %v5712 = vlaneseq
    %v5713 = vshrl.u32 %v5712, 7
    %v5714 = vsub.s32 4, %v5713
    %v5715 = vrot.slane %v3088, %v5714
    %v5716 = vlaneseq
    %v5717 = vshrl.u32 %v5716, 7
    %v5718 = vsub.s32 5, %v5717
    %v5719 = vrot.slane %v3088, %v5718
    %v5720 = vlaneseq
    %v5721 = vshrl.u32 %v5720, 7
    %v5722 = vsub.s32 6, %v5721
    %v5723 = vrot.slane %v3088, %v5722
    %v5724 = vlaneseq
    %v5725 = vshrl.u32 %v5724, 7
    %v5726 = vsub.s32 7, %v5725
    %v5727 = vrot.slane %v3088, %v5726
    %v5728 = vlaneseq
    %v5729 = vshrl.u32 %v5728, 7
    %v5730 = vsub.s32 0, %v5729
    %v5731 = vrot.slane %v3089, %v5730
    %v5732 = vlaneseq
    %v5733 = vshrl.u32 %v5732, 7
    %v5734 = vsub.s32 1, %v5733
    %v5735 = vrot.slane %v3089, %v5734
    %v5736 = vlaneseq
    %v5737 = vshrl.u32 %v5736, 7
    %v5738 = vsub.s32 2, %v5737
    %v5739 = vrot.slane %v3089, %v5738
    %v5740 = vlaneseq
    %v5741 = vshrl.u32 %v5740, 7
    %v5742 = vsub.s32 3, %v5741
    %v5743 = vrot.slane %v3089, %v5742
    %v5744 = vlaneseq
    %v5745 = vshrl.u32 %v5744, 7
    %v5746 = vsub.s32 4, %v5745
    %v5747 = vrot.slane %v3089, %v5746
    %v5748 = vlaneseq
    %v5749 = vshrl.u32 %v5748, 7
    %v5750 = vsub.s32 5, %v5749
    %v5751 = vrot.slane %v3089, %v5750
    %v5752 = vlaneseq
    %v5753 = vshrl.u32 %v5752, 7
    %v5754 = vsub.s32 6, %v5753
    %v5755 = vrot.slane %v3089, %v5754
    %v5756 = vlaneseq
    %v5757 = vshrl.u32 %v5756, 7
    %v5758 = vsub.s32 7, %v5757
    %v5759 = vrot.slane %v3089, %v5758
    %v5760 = vlaneseq
    %v5761 = vshrl.u32 %v5760, 7
    %v5762 = vsub.s32 0, %v5761
    %v5763 = vrot.slane %v3090, %v5762
    %v5764 = vlaneseq
    %v5765 = vshrl.u32 %v5764, 7
    %v5766 = vsub.s32 1, %v5765
    %v5767 = vrot.slane %v3090, %v5766
    %v5768 = vlaneseq
    %v5769 = vshrl.u32 %v5768, 7
    %v5770 = vsub.s32 2, %v5769
    %v5771 = vrot.slane %v3090, %v5770
    %v5772 = vlaneseq
    %v5773 = vshrl.u32 %v5772, 7
    %v5774 = vsub.s32 3, %v5773
    %v5775 = vrot.slane %v3090, %v5774
    %v5776 = vlaneseq
    %v5777 = vshrl.u32 %v5776, 7
    %v5778 = vsub.s32 4, %v5777
    %v5779 = vrot.slane %v3090, %v5778
    %v5780 = vlaneseq
    %v5781 = vshrl.u32 %v5780, 7
    %v5782 = vsub.s32 5, %v5781
    %v5783 = vrot.slane %v3090, %v5782
    %v5784 = vlaneseq
    %v5785 = vshrl.u32 %v5784, 7
    %v5786 = vsub.s32 6, %v5785
    %v5787 = vrot.slane %v3090, %v5786
    %v5788 = vlaneseq
    %v5789 = vshrl.u32 %v5788, 7
    %v5790 = vsub.s32 7, %v5789
    %v5791 = vrot.slane %v3090, %v5790
    %v5792 = vlaneseq
    %v5793 = vshrl.u32 %v5792, 7
    %v5794 = vsub.s32 0, %v5793
    %v5795 = vrot.slane %v3091, %v5794
    %v5796 = vlaneseq
    %v5797 = vshrl.u32 %v5796, 7
    %v5798 = vsub.s32 1, %v5797
    %v5799 = vrot.slane %v3091, %v5798
    %v5800 = vlaneseq
    %v5801 = vshrl.u32 %v5800, 7
    %v5802 = vsub.s32 2, %v5801
    %v5803 = vrot.slane %v3091, %v5802
    %v5804 = vlaneseq
    %v5805 = vshrl.u32 %v5804, 7
    %v5806 = vsub.s32 3, %v5805
    %v5807 = vrot.slane %v3091, %v5806
    %v5808 = vlaneseq
    %v5809 = vshrl.u32 %v5808, 7
    %v5810 = vsub.s32 4, %v5809
    %v5811 = vrot.slane %v3091, %v5810
    %v5812 = vlaneseq
    %v5813 = vshrl.u32 %v5812, 7
    %v5814 = vsub.s32 5, %v5813
    %v5815 = vrot.slane %v3091, %v5814
    %v5816 = vlaneseq
    %v5817 = vshrl.u32 %v5816, 7
    %v5818 = vsub.s32 6, %v5817
    %v5819 = vrot.slane %v3091, %v5818
    %v5820 = vlaneseq
    %v5821 = vshrl.u32 %v5820, 7
    %v5822 = vsub.s32 7, %v5821
    %v5823 = vrot.slane %v3091, %v5822
    %v5824 = vlaneseq
    %v5825 = vshrl.u32 %v5824, 7
    %v5826 = vsub.s32 0, %v5825
    %v5827 = vrot.slane %v3092, %v5826
    %v5828 = vlaneseq
    %v5829 = vshrl.u32 %v5828, 7
    %v5830 = vsub.s32 1, %v5829
    %v5831 = vrot.slane %v3092, %v5830
    %v5832 = vlaneseq
    %v5833 = vshrl.u32 %v5832, 7
    %v5834 = vsub.s32 2, %v5833
    %v5835 = vrot.slane %v3092, %v5834
    %v5836 = vlaneseq
    %v5837 = vshrl.u32 %v5836, 7
    %v5838 = vsub.s32 3, %v5837
    %v5839 = vrot.slane %v3092, %v5838
    %v5840 = vlaneseq
    %v5841 = vshrl.u32 %v5840, 7
    %v5842 = vsub.s32 4, %v5841
    %v5843 = vrot.slane %v3092, %v5842
    %v5844 = vlaneseq
    %v5845 = vshrl.u32 %v5844, 7
    %v5846 = vsub.s32 5, %v5845
    %v5847 = vrot.slane %v3092, %v5846
    %v5848 = vlaneseq
    %v5849 = vshrl.u32 %v5848, 7
    %v5850 = vsub.s32 6, %v5849
    %v5851 = vrot.slane %v3092, %v5850
    %v5852 = vlaneseq
    %v5853 = vshrl.u32 %v5852, 7
    %v5854 = vsub.s32 7, %v5853
    %v5855 = vrot.slane %v3092, %v5854
    %v5856 = vlaneseq
    %v5857 = vshrl.u32 %v5856, 7
    %v5858 = vsub.s32 0, %v5857
    %v5859 = vrot.slane %v3093, %v5858
    %v5860 = vlaneseq
    %v5861 = vshrl.u32 %v5860, 7
    %v5862 = vsub.s32 1, %v5861
    %v5863 = vrot.slane %v3093, %v5862
    %v5864 = vlaneseq
    %v5865 = vshrl.u32 %v5864, 7
    %v5866 = vsub.s32 2, %v5865
    %v5867 = vrot.slane %v3093, %v5866
    %v5868 = vlaneseq
    %v5869 = vshrl.u32 %v5868, 7
    %v5870 = vsub.s32 3, %v5869
    %v5871 = vrot.slane %v3093, %v5870
    %v5872 = vlaneseq
    %v5873 = vshrl.u32 %v5872, 7
    %v5874 = vsub.s32 4, %v5873
    %v5875 = vrot.slane %v3093, %v5874
    %v5876 = vlaneseq
    %v5877 = vshrl.u32 %v5876, 7
    %v5878 = vsub.s32 5, %v5877
    %v5879 = vrot.slane %v3093, %v5878
    %v5880 = vlaneseq
    %v5881 = vshrl.u32 %v5880, 7
    %v5882 = vsub.s32 6, %v5881
    %v5883 = vrot.slane %v3093, %v5882
    %v5884 = vlaneseq
    %v5885 = vshrl.u32 %v5884, 7
    %v5886 = vsub.s32 7, %v5885
    %v5887 = vrot.slane %v3093, %v5886
    %v5888 = vlaneseq
    %v5889 = vshrl.u32 %v5888, 7
    %v5890 = vsub.s32 0, %v5889
    %v5891 = vrot.slane %v3094, %v5890
    %v5892 = vlaneseq
    %v5893 = vshrl.u32 %v5892, 7
    %v5894 = vsub.s32 1, %v5893
    %v5895 = vrot.slane %v3094, %v5894
    %v5896 = vlaneseq
    %v5897 = vshrl.u32 %v5896, 7
    %v5898 = vsub.s32 2, %v5897
    %v5899 = vrot.slane %v3094, %v5898
    %v5900 = vlaneseq
    %v5901 = vshrl.u32 %v5900, 7
    %v5902 = vsub.s32 3, %v5901
    %v5903 = vrot.slane %v3094, %v5902
    %v5904 = vlaneseq
    %v5905 = vshrl.u32 %v5904, 7
    %v5906 = vsub.s32 4, %v5905
    %v5907 = vrot.slane %v3094, %v5906
    %v5908 = vlaneseq
    %v5909 = vshrl.u32 %v5908, 7
    %v5910 = vsub.s32 5, %v5909
    %v5911 = vrot.slane %v3094, %v5910
    %v5912 = vlaneseq
    %v5913 = vshrl.u32 %v5912, 7
    %v5914 = vsub.s32 6, %v5913
    %v5915 = vrot.slane %v3094, %v5914
    %v5916 = vlaneseq
    %v5917 = vshrl.u32 %v5916, 7
    %v5918 = vsub.s32 7, %v5917
    %v5919 = vrot.slane %v3094, %v5918
    %v5920 = vlaneseq
    %v5921 = vshrl.u32 %v5920, 7
    %v5922 = vsub.s32 0, %v5921
    %v5923 = vrot.slane %v3095, %v5922
    %v5924 = vlaneseq
    %v5925 = vshrl.u32 %v5924, 7
    %v5926 = vsub.s32 1, %v5925
    %v5927 = vrot.slane %v3095, %v5926
    %v5928 = vlaneseq
    %v5929 = vshrl.u32 %v5928, 7
    %v5930 = vsub.s32 2, %v5929
    %v5931 = vrot.slane %v3095, %v5930
    %v5932 = vlaneseq
    %v5933 = vshrl.u32 %v5932, 7
    %v5934 = vsub.s32 3, %v5933
    %v5935 = vrot.slane %v3095, %v5934
    %v5936 = vlaneseq
    %v5937 = vshrl.u32 %v5936, 7
    %v5938 = vsub.s32 4, %v5937
    %v5939 = vrot.slane %v3095, %v5938
    %v5940 = vlaneseq
    %v5941 = vshrl.u32 %v5940, 7
    %v5942 = vsub.s32 5, %v5941
    %v5943 = vrot.slane %v3095, %v5942
    %v5944 = vlaneseq
    %v5945 = vshrl.u32 %v5944, 7
    %v5946 = vsub.s32 6, %v5945
    %v5947 = vrot.slane %v3095, %v5946
    %v5948 = vlaneseq
    %v5949 = vshrl.u32 %v5948, 7
    %v5950 = vsub.s32 7, %v5949
    %v5951 = vrot.slane %v3095, %v5950
    %v5952 = vlaneseq
    %v5953 = vshrl.u32 %v5952, 7
    %v5954 = vsub.s32 0, %v5953
    %v5955 = vrot.slane %v3096, %v5954
    %v5956 = vlaneseq
    %v5957 = vshrl.u32 %v5956, 7
    %v5958 = vsub.s32 1, %v5957
    %v5959 = vrot.slane %v3096, %v5958
    %v5960 = vlaneseq
    %v5961 = vshrl.u32 %v5960, 7
    %v5962 = vsub.s32 2, %v5961
    %v5963 = vrot.slane %v3096, %v5962
    %v5964 = vlaneseq
    %v5965 = vshrl.u32 %v5964, 7
    %v5966 = vsub.s32 3, %v5965
    %v5967 = vrot.slane %v3096, %v5966
    %v5968 = vlaneseq
    %v5969 = vshrl.u32 %v5968, 7
    %v5970 = vsub.s32 4, %v5969
    %v5971 = vrot.slane %v3096, %v5970
    %v5972 = vlaneseq
    %v5973 = vshrl.u32 %v5972, 7
    %v5974 = vsub.s32 5, %v5973
    %v5975 = vrot.slane %v3096, %v5974
    %v5976 = vlaneseq
    %v5977 = vshrl.u32 %v5976, 7
    %v5978 = vsub.s32 6, %v5977
    %v5979 = vrot.slane %v3096, %v5978
    %v5980 = vlaneseq
    %v5981 = vshrl.u32 %v5980, 7
    %v5982 = vsub.s32 7, %v5981
    %v5983 = vrot.slane %v3096, %v5982
    %v5984 = vlaneseq
    %v5985 = vshrl.u32 %v5984, 7
    %v5986 = vsub.s32 0, %v5985
    %v5987 = vrot.slane %v3097, %v5986
    %v5988 = vlaneseq
    %v5989 = vshrl.u32 %v5988, 7
    %v5990 = vsub.s32 1, %v5989
    %v5991 = vrot.slane %v3097, %v5990
    %v5992 = vlaneseq
    %v5993 = vshrl.u32 %v5992, 7
    %v5994 = vsub.s32 2, %v5993
    %v5995 = vrot.slane %v3097, %v5994
    %v5996 = vlaneseq
    %v5997 = vshrl.u32 %v5996, 7
    %v5998 = vsub.s32 3, %v5997
    %v5999 = vrot.slane %v3097, %v5998
    %v6000 = vlaneseq
    %v6001 = vshrl.u32 %v6000, 7
    %v6002 = vsub.s32 4, %v6001
    %v6003 = vrot.slane %v3097, %v6002
    %v6004 = vlaneseq
    %v6005 = vshrl.u32 %v6004, 7
    %v6006 = vsub.s32 5, %v6005
    %v6007 = vrot.slane %v3097, %v6006
    %v6008 = vlaneseq
    %v6009 = vshrl.u32 %v6008, 7
    %v6010 = vsub.s32 6, %v6009
    %v6011 = vrot.slane %v3097, %v6010
    %v6012 = vlaneseq
    %v6013 = vshrl.u32 %v6012, 7
    %v6014 = vsub.s32 7, %v6013
    %v6015 = vrot.slane %v3097, %v6014
    %v6016 = vlaneseq
    %v6017 = vshrl.u32 %v6016, 7
    %v6018 = vsub.s32 0, %v6017
    %v6019 = vrot.slane %v3098, %v6018
    %v6020 = vlaneseq
    %v6021 = vshrl.u32 %v6020, 7
    %v6022 = vsub.s32 1, %v6021
    %v6023 = vrot.slane %v3098, %v6022
    %v6024 = vlaneseq
    %v6025 = vshrl.u32 %v6024, 7
    %v6026 = vsub.s32 2, %v6025
    %v6027 = vrot.slane %v3098, %v6026
    %v6028 = vlaneseq
    %v6029 = vshrl.u32 %v6028, 7
    %v6030 = vsub.s32 3, %v6029
    %v6031 = vrot.slane %v3098, %v6030
    %v6032 = vlaneseq
    %v6033 = vshrl.u32 %v6032, 7
    %v6034 = vsub.s32 4, %v6033
    %v6035 = vrot.slane %v3098, %v6034
    %v6036 = vlaneseq
    %v6037 = vshrl.u32 %v6036, 7
    %v6038 = vsub.s32 5, %v6037
    %v6039 = vrot.slane %v3098, %v6038
    %v6040 = vlaneseq
    %v6041 = vshrl.u32 %v6040, 7
    %v6042 = vsub.s32 6, %v6041
    %v6043 = vrot.slane %v3098, %v6042
    %v6044 = vlaneseq
    %v6045 = vshrl.u32 %v6044, 7
    %v6046 = vsub.s32 7, %v6045
    %v6047 = vrot.slane %v3098, %v6046
    %v6048 = vlaneseq
    %v6049 = vshrl.u32 %v6048, 7
    %v6050 = vsub.s32 0, %v6049
    %v6051 = vrot.slane %v3099, %v6050
    %v6052 = vlaneseq
    %v6053 = vshrl.u32 %v6052, 7
    %v6054 = vsub.s32 1, %v6053
    %v6055 = vrot.slane %v3099, %v6054
    %v6056 = vlaneseq
    %v6057 = vshrl.u32 %v6056, 7
    %v6058 = vsub.s32 2, %v6057
    %v6059 = vrot.slane %v3099, %v6058
    %v6060 = vlaneseq
    %v6061 = vshrl.u32 %v6060, 7
    %v6062 = vsub.s32 3, %v6061
    %v6063 = vrot.slane %v3099, %v6062
    %v6064 = vlaneseq
    %v6065 = vshrl.u32 %v6064, 7
    %v6066 = vsub.s32 4, %v6065
    %v6067 = vrot.slane %v3099, %v6066
    %v6068 = vlaneseq
    %v6069 = vshrl.u32 %v6068, 7
    %v6070 = vsub.s32 5, %v6069
    %v6071 = vrot.slane %v3099, %v6070
    %v6072 = vlaneseq
    %v6073 = vshrl.u32 %v6072, 7
    %v6074 = vsub.s32 6, %v6073
    %v6075 = vrot.slane %v3099, %v6074
    %v6076 = vlaneseq
    %v6077 = vshrl.u32 %v6076, 7
    %v6078 = vsub.s32 7, %v6077
    %v6079 = vrot.slane %v3099, %v6078
    %v6080 = vlaneseq
    %v6081 = vshrl.u32 %v6080, 7
    %v6082 = vsub.s32 0, %v6081
    %v6083 = vrot.slane %v3100, %v6082
    %v6084 = vlaneseq
    %v6085 = vshrl.u32 %v6084, 7
    %v6086 = vsub.s32 1, %v6085
    %v6087 = vrot.slane %v3100, %v6086
    %v6088 = vlaneseq
    %v6089 = vshrl.u32 %v6088, 7
    %v6090 = vsub.s32 2, %v6089
    %v6091 = vrot.slane %v3100, %v6090
    %v6092 = vlaneseq
    %v6093 = vshrl.u32 %v6092, 7
    %v6094 = vsub.s32 3, %v6093
    %v6095 = vrot.slane %v3100, %v6094
    %v6096 = vlaneseq
    %v6097 = vshrl.u32 %v6096, 7
    %v6098 = vsub.s32 4, %v6097
    %v6099 = vrot.slane %v3100, %v6098
    %v6100 = vlaneseq
    %v6101 = vshrl.u32 %v6100, 7
    %v6102 = vsub.s32 5, %v6101
    %v6103 = vrot.slane %v3100, %v6102
    %v6104 = vlaneseq
    %v6105 = vshrl.u32 %v6104, 7
    %v6106 = vsub.s32 6, %v6105
    %v6107 = vrot.slane %v3100, %v6106
    %v6108 = vlaneseq
    %v6109 = vshrl.u32 %v6108, 7
    %v6110 = vsub.s32 7, %v6109
    %v6111 = vrot.slane %v3100, %v6110
    %v6112 = vlaneseq
    %v6113 = vshrl.u32 %v6112, 7
    %v6114 = vsub.s32 0, %v6113
    %v6115 = vrot.slane %v3101, %v6114
    %v6116 = vlaneseq
    %v6117 = vshrl.u32 %v6116, 7
    %v6118 = vsub.s32 1, %v6117
    %v6119 = vrot.slane %v3101, %v6118
    %v6120 = vlaneseq
    %v6121 = vshrl.u32 %v6120, 7
    %v6122 = vsub.s32 2, %v6121
    %v6123 = vrot.slane %v3101, %v6122
    %v6124 = vlaneseq
    %v6125 = vshrl.u32 %v6124, 7
    %v6126 = vsub.s32 3, %v6125
    %v6127 = vrot.slane %v3101, %v6126
    %v6128 = vlaneseq
    %v6129 = vshrl.u32 %v6128, 7
    %v6130 = vsub.s32 4, %v6129
    %v6131 = vrot.slane %v3101, %v6130
    %v6132 = vlaneseq
    %v6133 = vshrl.u32 %v6132, 7
    %v6134 = vsub.s32 5, %v6133
    %v6135 = vrot.slane %v3101, %v6134
    %v6136 = vlaneseq
    %v6137 = vshrl.u32 %v6136, 7
    %v6138 = vsub.s32 6, %v6137
    %v6139 = vrot.slane %v3101, %v6138
    %v6140 = vlaneseq
    %v6141 = vshrl.u32 %v6140, 7
    %v6142 = vsub.s32 7, %v6141
    %v6143 = vrot.slane %v3101, %v6142
    %v6144 = vlaneseq
    %v6145 = vshrl.u32 %v6144, 7
    %v6146 = vsub.s32 0, %v6145
    %v6147 = vrot.slane %v3102, %v6146
    %v6148 = vlaneseq
    %v6149 = vshrl.u32 %v6148, 7
    %v6150 = vsub.s32 1, %v6149
    %v6151 = vrot.slane %v3102, %v6150
    %v6152 = vlaneseq
    %v6153 = vshrl.u32 %v6152, 7
    %v6154 = vsub.s32 2, %v6153
    %v6155 = vrot.slane %v3102, %v6154
    %v6156 = vlaneseq
    %v6157 = vshrl.u32 %v6156, 7
    %v6158 = vsub.s32 3, %v6157
    %v6159 = vrot.slane %v3102, %v6158
    %v6160 = vlaneseq
    %v6161 = vshrl.u32 %v6160, 7
    %v6162 = vsub.s32 4, %v6161
    %v6163 = vrot.slane %v3102, %v6162
    %v6164 = vlaneseq
    %v6165 = vshrl.u32 %v6164, 7
    %v6166 = vsub.s32 5, %v6165
    %v6167 = vrot.slane %v3102, %v6166
    %v6168 = vlaneseq
    %v6169 = vshrl.u32 %v6168, 7
    %v6170 = vsub.s32 6, %v6169
    %v6171 = vrot.slane %v3102, %v6170
    %v6172 = vlaneseq
    %v6173 = vshrl.u32 %v6172, 7
    %v6174 = vsub.s32 7, %v6173
    %v6175 = vrot.slane %v3102, %v6174
    %v6176 = vlaneseq
    %v6177 = vshrl.u32 %v6176, 7
    %v6178 = vsub.s32 0, %v6177
    %v6179 = vrot.slane %v3103, %v6178
    %v6180 = vlaneseq
    %v6181 = vshrl.u32 %v6180, 7
    %v6182 = vsub.s32 1, %v6181
    %v6183 = vrot.slane %v3103, %v6182
    %v6184 = vlaneseq
    %v6185 = vshrl.u32 %v6184, 7
    %v6186 = vsub.s32 2, %v6185
    %v6187 = vrot.slane %v3103, %v6186
    %v6188 = vlaneseq
    %v6189 = vshrl.u32 %v6188, 7
    %v6190 = vsub.s32 3, %v6189
    %v6191 = vrot.slane %v3103, %v6190
    %v6192 = vlaneseq
    %v6193 = vshrl.u32 %v6192, 7
    %v6194 = vsub.s32 4, %v6193
    %v6195 = vrot.slane %v3103, %v6194
    %v6196 = vlaneseq
    %v6197 = vshrl.u32 %v6196, 7
    %v6198 = vsub.s32 5, %v6197
    %v6199 = vrot.slane %v3103, %v6198
    %v6200 = vlaneseq
    %v6201 = vshrl.u32 %v6200, 7
    %v6202 = vsub.s32 6, %v6201
    %v6203 = vrot.slane %v3103, %v6202
    %v6204 = vlaneseq
    %v6205 = vshrl.u32 %v6204, 7
    %v6206 = vsub.s32 7, %v6205
    %v6207 = vrot.slane %v3103, %v6206
    %v6208 = vlaneseq
    %v6209 = vshrl.u32 %v6208, 7
    %v6210 = vsub.s32 0, %v6209
    %v6211 = vrot.slane %v3104, %v6210
    %v6212 = vlaneseq
    %v6213 = vshrl.u32 %v6212, 7
    %v6214 = vsub.s32 1, %v6213
    %v6215 = vrot.slane %v3104, %v6214
    %v6216 = vlaneseq
    %v6217 = vshrl.u32 %v6216, 7
    %v6218 = vsub.s32 2, %v6217
    %v6219 = vrot.slane %v3104, %v6218
    %v6220 = vlaneseq
    %v6221 = vshrl.u32 %v6220, 7
    %v6222 = vsub.s32 3, %v6221
    %v6223 = vrot.slane %v3104, %v6222
    %v6224 = vlaneseq
    %v6225 = vshrl.u32 %v6224, 7
    %v6226 = vsub.s32 4, %v6225
    %v6227 = vrot.slane %v3104, %v6226
    %v6228 = vlaneseq
    %v6229 = vshrl.u32 %v6228, 7
    %v6230 = vsub.s32 5, %v6229
    %v6231 = vrot.slane %v3104, %v6230
    %v6232 = vlaneseq
    %v6233 = vshrl.u32 %v6232, 7
    %v6234 = vsub.s32 6, %v6233
    %v6235 = vrot.slane %v3104, %v6234
    %v6236 = vlaneseq
    %v6237 = vshrl.u32 %v6236, 7
    %v6238 = vsub.s32 7, %v6237
    %v6239 = vrot.slane %v3104, %v6238
    %v6240 = vlaneseq
    %v6241 = vshrl.u32 %v6240, 7
    %v6242 = vsub.s32 0, %v6241
    %v6243 = vrot.slane %v3105, %v6242
    %v6244 = vlaneseq
    %v6245 = vshrl.u32 %v6244, 7
    %v6246 = vsub.s32 1, %v6245
    %v6247 = vrot.slane %v3105, %v6246
    %v6248 = vlaneseq
    %v6249 = vshrl.u32 %v6248, 7
    %v6250 = vsub.s32 2, %v6249
    %v6251 = vrot.slane %v3105, %v6250
    %v6252 = vlaneseq
    %v6253 = vshrl.u32 %v6252, 7
    %v6254 = vsub.s32 3, %v6253
    %v6255 = vrot.slane %v3105, %v6254
    %v6256 = vlaneseq
    %v6257 = vshrl.u32 %v6256, 7
    %v6258 = vsub.s32 4, %v6257
    %v6259 = vrot.slane %v3105, %v6258
    %v6260 = vlaneseq
    %v6261 = vshrl.u32 %v6260, 7
    %v6262 = vsub.s32 5, %v6261
    %v6263 = vrot.slane %v3105, %v6262
    %v6264 = vlaneseq
    %v6265 = vshrl.u32 %v6264, 7
    %v6266 = vsub.s32 6, %v6265
    %v6267 = vrot.slane %v3105, %v6266
    %v6268 = vlaneseq
    %v6269 = vshrl.u32 %v6268, 7
    %v6270 = vsub.s32 7, %v6269
    %v6271 = vrot.slane %v3105, %v6270
    %v6272 = vlaneseq
    %v6273 = vshrl.u32 %v6272, 7
    %v6274 = vsub.s32 0, %v6273
    %v6275 = vrot.slane %v3106, %v6274
    %v6276 = vlaneseq
    %v6277 = vshrl.u32 %v6276, 7
    %v6278 = vsub.s32 1, %v6277
    %v6279 = vrot.slane %v3106, %v6278
    %v6280 = vlaneseq
    %v6281 = vshrl.u32 %v6280, 7
    %v6282 = vsub.s32 2, %v6281
    %v6283 = vrot.slane %v3106, %v6282
    %v6284 = vlaneseq
    %v6285 = vshrl.u32 %v6284, 7
    %v6286 = vsub.s32 3, %v6285
    %v6287 = vrot.slane %v3106, %v6286
    %v6288 = vlaneseq
    %v6289 = vshrl.u32 %v6288, 7
    %v6290 = vsub.s32 4, %v6289
    %v6291 = vrot.slane %v3106, %v6290
    %v6292 = vlaneseq
    %v6293 = vshrl.u32 %v6292, 7
    %v6294 = vsub.s32 5, %v6293
    %v6295 = vrot.slane %v3106, %v6294
    %v6296 = vlaneseq
    %v6297 = vshrl.u32 %v6296, 7
    %v6298 = vsub.s32 6, %v6297
    %v6299 = vrot.slane %v3106, %v6298
    %v6300 = vlaneseq
    %v6301 = vshrl.u32 %v6300, 7
    %v6302 = vsub.s32 7, %v6301
    %v6303 = vrot.slane %v3106, %v6302
    %v6304 = vlaneseq
    %v6305 = vshrl.u32 %v6304, 7
    %v6306 = vsub.s32 0, %v6305
    %v6307 = vrot.slane %v3107, %v6306
    %v6308 = vlaneseq
    %v6309 = vshrl.u32 %v6308, 7
    %v6310 = vsub.s32 1, %v6309
    %v6311 = vrot.slane %v3107, %v6310
    %v6312 = vlaneseq
    %v6313 = vshrl.u32 %v6312, 7
    %v6314 = vsub.s32 2, %v6313
    %v6315 = vrot.slane %v3107, %v6314
    %v6316 = vlaneseq
    %v6317 = vshrl.u32 %v6316, 7
    %v6318 = vsub.s32 3, %v6317
    %v6319 = vrot.slane %v3107, %v6318
    %v6320 = vlaneseq
    %v6321 = vshrl.u32 %v6320, 7
    %v6322 = vsub.s32 4, %v6321
    %v6323 = vrot.slane %v3107, %v6322
    %v6324 = vlaneseq
    %v6325 = vshrl.u32 %v6324, 7
    %v6326 = vsub.s32 5, %v6325
    %v6327 = vrot.slane %v3107, %v6326
    %v6328 = vlaneseq
    %v6329 = vshrl.u32 %v6328, 7
    %v6330 = vsub.s32 6, %v6329
    %v6331 = vrot.slane %v3107, %v6330
    %v6332 = vlaneseq
    %v6333 = vshrl.u32 %v6332, 7
    %v6334 = vsub.s32 7, %v6333
    %v6335 = vrot.slane %v3107, %v6334
    %v6336 = vlaneseq
    %v6337 = vshrl.u32 %v6336, 7
    %v6338 = vsub.s32 0, %v6337
    %v6339 = vrot.slane %v3108, %v6338
    %v6340 = vlaneseq
    %v6341 = vshrl.u32 %v6340, 7
    %v6342 = vsub.s32 1, %v6341
    %v6343 = vrot.slane %v3108, %v6342
    %v6344 = vlaneseq
    %v6345 = vshrl.u32 %v6344, 7
    %v6346 = vsub.s32 2, %v6345
    %v6347 = vrot.slane %v3108, %v6346
    %v6348 = vlaneseq
    %v6349 = vshrl.u32 %v6348, 7
    %v6350 = vsub.s32 3, %v6349
    %v6351 = vrot.slane %v3108, %v6350
    %v6352 = vlaneseq
    %v6353 = vshrl.u32 %v6352, 7
    %v6354 = vsub.s32 4, %v6353
    %v6355 = vrot.slane %v3108, %v6354
    %v6356 = vlaneseq
    %v6357 = vshrl.u32 %v6356, 7
    %v6358 = vsub.s32 5, %v6357
    %v6359 = vrot.slane %v3108, %v6358
    %v6360 = vlaneseq
    %v6361 = vshrl.u32 %v6360, 7
    %v6362 = vsub.s32 6, %v6361
    %v6363 = vrot.slane %v3108, %v6362
    %v6364 = vlaneseq
    %v6365 = vshrl.u32 %v6364, 7
    %v6366 = vsub.s32 7, %v6365
    %v6367 = vrot.slane %v3108, %v6366
    %v6368 = vlaneseq
    %v6369 = vshrl.u32 %v6368, 7
    %v6370 = vsub.s32 0, %v6369
    %v6371 = vrot.slane %v3109, %v6370
    %v6372 = vlaneseq
    %v6373 = vshrl.u32 %v6372, 7
    %v6374 = vsub.s32 1, %v6373
    %v6375 = vrot.slane %v3109, %v6374
    %v6376 = vlaneseq
    %v6377 = vshrl.u32 %v6376, 7
    %v6378 = vsub.s32 2, %v6377
    %v6379 = vrot.slane %v3109, %v6378
    %v6380 = vlaneseq
    %v6381 = vshrl.u32 %v6380, 7
    %v6382 = vsub.s32 3, %v6381
    %v6383 = vrot.slane %v3109, %v6382
    %v6384 = vlaneseq
    %v6385 = vshrl.u32 %v6384, 7
    %v6386 = vsub.s32 4, %v6385
    %v6387 = vrot.slane %v3109, %v6386
    %v6388 = vlaneseq
    %v6389 = vshrl.u32 %v6388, 7
    %v6390 = vsub.s32 5, %v6389
    %v6391 = vrot.slane %v3109, %v6390
    %v6392 = vlaneseq
    %v6393 = vshrl.u32 %v6392, 7
    %v6394 = vsub.s32 6, %v6393
    %v6395 = vrot.slane %v3109, %v6394
    %v6396 = vlaneseq
    %v6397 = vshrl.u32 %v6396, 7
    %v6398 = vsub.s32 7, %v6397
    %v6399 = vrot.slane %v3109, %v6398
    %v6400 = vlaneseq
    %v6401 = vshrl.u32 %v6400, 7
    %v6402 = vsub.s32 0, %v6401
    %v6403 = vrot.slane %v3110, %v6402
    %v6404 = vlaneseq
    %v6405 = vshrl.u32 %v6404, 7
    %v6406 = vsub.s32 1, %v6405
    %v6407 = vrot.slane %v3110, %v6406
    %v6408 = vlaneseq
    %v6409 = vshrl.u32 %v6408, 7
    %v6410 = vsub.s32 2, %v6409
    %v6411 = vrot.slane %v3110, %v6410
    %v6412 = vlaneseq
    %v6413 = vshrl.u32 %v6412, 7
    %v6414 = vsub.s32 3, %v6413
    %v6415 = vrot.slane %v3110, %v6414
    %v6416 = vlaneseq
    %v6417 = vshrl.u32 %v6416, 7
    %v6418 = vsub.s32 4, %v6417
    %v6419 = vrot.slane %v3110, %v6418
    %v6420 = vlaneseq
    %v6421 = vshrl.u32 %v6420, 7
    %v6422 = vsub.s32 5, %v6421
    %v6423 = vrot.slane %v3110, %v6422
    %v6424 = vlaneseq
    %v6425 = vshrl.u32 %v6424, 7
    %v6426 = vsub.s32 6, %v6425
    %v6427 = vrot.slane %v3110, %v6426
    %v6428 = vlaneseq
    %v6429 = vshrl.u32 %v6428, 7
    %v6430 = vsub.s32 7, %v6429
    %v6431 = vrot.slane %v3110, %v6430
    %v6432 = vlaneseq
    %v6433 = vshrl.u32 %v6432, 7
    %v6434 = vsub.s32 0, %v6433
    %v6435 = vrot.slane %v3111, %v6434
    %v6436 = vlaneseq
    %v6437 = vshrl.u32 %v6436, 7
    %v6438 = vsub.s32 1, %v6437
    %v6439 = vrot.slane %v3111, %v6438
    %v6440 = vlaneseq
    %v6441 = vshrl.u32 %v6440, 7
    %v6442 = vsub.s32 2, %v6441
    %v6443 = vrot.slane %v3111, %v6442
    %v6444 = vlaneseq
    %v6445 = vshrl.u32 %v6444, 7
    %v6446 = vsub.s32 3, %v6445
    %v6447 = vrot.slane %v3111, %v6446
    %v6448 = vlaneseq
    %v6449 = vshrl.u32 %v6448, 7
    %v6450 = vsub.s32 4, %v6449
    %v6451 = vrot.slane %v3111, %v6450
    %v6452 = vlaneseq
    %v6453 = vshrl.u32 %v6452, 7
    %v6454 = vsub.s32 5, %v6453
    %v6455 = vrot.slane %v3111, %v6454
    %v6456 = vlaneseq
    %v6457 = vshrl.u32 %v6456, 7
    %v6458 = vsub.s32 6, %v6457
    %v6459 = vrot.slane %v3111, %v6458
    %v6460 = vlaneseq
    %v6461 = vshrl.u32 %v6460, 7
    %v6462 = vsub.s32 7, %v6461
    %v6463 = vrot.slane %v3111, %v6462
    %v6464 = vlaneseq
    %v6465 = vshrl.u32 %v6464, 7
    %v6466 = vsub.s32 0, %v6465
    %v6467 = vrot.slane %v3112, %v6466
    %v6468 = vlaneseq
    %v6469 = vshrl.u32 %v6468, 7
    %v6470 = vsub.s32 1, %v6469
    %v6471 = vrot.slane %v3112, %v6470
    %v6472 = vlaneseq
    %v6473 = vshrl.u32 %v6472, 7
    %v6474 = vsub.s32 2, %v6473
    %v6475 = vrot.slane %v3112, %v6474
    %v6476 = vlaneseq
    %v6477 = vshrl.u32 %v6476, 7
    %v6478 = vsub.s32 3, %v6477
    %v6479 = vrot.slane %v3112, %v6478
    %v6480 = vlaneseq
    %v6481 = vshrl.u32 %v6480, 7
    %v6482 = vsub.s32 4, %v6481
    %v6483 = vrot.slane %v3112, %v6482
    %v6484 = vlaneseq
    %v6485 = vshrl.u32 %v6484, 7
    %v6486 = vsub.s32 5, %v6485
    %v6487 = vrot.slane %v3112, %v6486
    %v6488 = vlaneseq
    %v6489 = vshrl.u32 %v6488, 7
    %v6490 = vsub.s32 6, %v6489
    %v6491 = vrot.slane %v3112, %v6490
    %v6492 = vlaneseq
    %v6493 = vshrl.u32 %v6492, 7
    %v6494 = vsub.s32 7, %v6493
    %v6495 = vrot.slane %v3112, %v6494
    %v6496 = vlaneseq
    %v6497 = vshrl.u32 %v6496, 7
    %v6498 = vsub.s32 0, %v6497
    %v6499 = vrot.slane %v3113, %v6498
    %v6500 = vlaneseq
    %v6501 = vshrl.u32 %v6500, 7
    %v6502 = vsub.s32 1, %v6501
    %v6503 = vrot.slane %v3113, %v6502
    %v6504 = vlaneseq
    %v6505 = vshrl.u32 %v6504, 7
    %v6506 = vsub.s32 2, %v6505
    %v6507 = vrot.slane %v3113, %v6506
    %v6508 = vlaneseq
    %v6509 = vshrl.u32 %v6508, 7
    %v6510 = vsub.s32 3, %v6509
    %v6511 = vrot.slane %v3113, %v6510
    %v6512 = vlaneseq
    %v6513 = vshrl.u32 %v6512, 7
    %v6514 = vsub.s32 4, %v6513
    %v6515 = vrot.slane %v3113, %v6514
    %v6516 = vlaneseq
    %v6517 = vshrl.u32 %v6516, 7
    %v6518 = vsub.s32 5, %v6517
    %v6519 = vrot.slane %v3113, %v6518
    %v6520 = vlaneseq
    %v6521 = vshrl.u32 %v6520, 7
    %v6522 = vsub.s32 6, %v6521
    %v6523 = vrot.slane %v3113, %v6522
    %v6524 = vlaneseq
    %v6525 = vshrl.u32 %v6524, 7
    %v6526 = vsub.s32 7, %v6525
    %v6527 = vrot.slane %v3113, %v6526
    %v6528 = vlaneseq
    %v6529 = vshrl.u32 %v6528, 7
    %v6530 = vsub.s32 0, %v6529
    %v6531 = vrot.slane %v3114, %v6530
    %v6532 = vlaneseq
    %v6533 = vshrl.u32 %v6532, 7
    %v6534 = vsub.s32 1, %v6533
    %v6535 = vrot.slane %v3114, %v6534
    %v6536 = vlaneseq
    %v6537 = vshrl.u32 %v6536, 7
    %v6538 = vsub.s32 2, %v6537
    %v6539 = vrot.slane %v3114, %v6538
    %v6540 = vlaneseq
    %v6541 = vshrl.u32 %v6540, 7
    %v6542 = vsub.s32 3, %v6541
    %v6543 = vrot.slane %v3114, %v6542
    %v6544 = vlaneseq
    %v6545 = vshrl.u32 %v6544, 7
    %v6546 = vsub.s32 4, %v6545
    %v6547 = vrot.slane %v3114, %v6546
    %v6548 = vlaneseq
    %v6549 = vshrl.u32 %v6548, 7
    %v6550 = vsub.s32 5, %v6549
    %v6551 = vrot.slane %v3114, %v6550
    %v6552 = vlaneseq
    %v6553 = vshrl.u32 %v6552, 7
    %v6554 = vsub.s32 6, %v6553
    %v6555 = vrot.slane %v3114, %v6554
    %v6556 = vlaneseq
    %v6557 = vshrl.u32 %v6556, 7
    %v6558 = vsub.s32 7, %v6557
    %v6559 = vrot.slane %v3114, %v6558
    %v6560 = vlaneseq
    %v6561 = vshrl.u32 %v6560, 7
    %v6562 = vsub.s32 0, %v6561
    %v6563 = vrot.slane %v3115, %v6562
    %v6564 = vlaneseq
    %v6565 = vshrl.u32 %v6564, 7
    %v6566 = vsub.s32 1, %v6565
    %v6567 = vrot.slane %v3115, %v6566
    %v6568 = vlaneseq
    %v6569 = vshrl.u32 %v6568, 7
    %v6570 = vsub.s32 2, %v6569
    %v6571 = vrot.slane %v3115, %v6570
    %v6572 = vlaneseq
    %v6573 = vshrl.u32 %v6572, 7
    %v6574 = vsub.s32 3, %v6573
    %v6575 = vrot.slane %v3115, %v6574
    %v6576 = vlaneseq
    %v6577 = vshrl.u32 %v6576, 7
    %v6578 = vsub.s32 4, %v6577
    %v6579 = vrot.slane %v3115, %v6578
    %v6580 = vlaneseq
    %v6581 = vshrl.u32 %v6580, 7
    %v6582 = vsub.s32 5, %v6581
    %v6583 = vrot.slane %v3115, %v6582
    %v6584 = vlaneseq
    %v6585 = vshrl.u32 %v6584, 7
    %v6586 = vsub.s32 6, %v6585
    %v6587 = vrot.slane %v3115, %v6586
    %v6588 = vlaneseq
    %v6589 = vshrl.u32 %v6588, 7
    %v6590 = vsub.s32 7, %v6589
    %v6591 = vrot.slane %v3115, %v6590
    %v6592 = vlaneseq
    %v6593 = vshrl.u32 %v6592, 7
    %v6594 = vsub.s32 0, %v6593
    %v6595 = vrot.slane %v3116, %v6594
    %v6596 = vlaneseq
    %v6597 = vshrl.u32 %v6596, 7
    %v6598 = vsub.s32 1, %v6597
    %v6599 = vrot.slane %v3116, %v6598
    %v6600 = vlaneseq
    %v6601 = vshrl.u32 %v6600, 7
    %v6602 = vsub.s32 2, %v6601
    %v6603 = vrot.slane %v3116, %v6602
    %v6604 = vlaneseq
    %v6605 = vshrl.u32 %v6604, 7
    %v6606 = vsub.s32 3, %v6605
    %v6607 = vrot.slane %v3116, %v6606
    %v6608 = vlaneseq
    %v6609 = vshrl.u32 %v6608, 7
    %v6610 = vsub.s32 4, %v6609
    %v6611 = vrot.slane %v3116, %v6610
    %v6612 = vlaneseq
    %v6613 = vshrl.u32 %v6612, 7
    %v6614 = vsub.s32 5, %v6613
    %v6615 = vrot.slane %v3116, %v6614
    %v6616 = vlaneseq
    %v6617 = vshrl.u32 %v6616, 7
    %v6618 = vsub.s32 6, %v6617
    %v6619 = vrot.slane %v3116, %v6618
    %v6620 = vlaneseq
    %v6621 = vshrl.u32 %v6620, 7
    %v6622 = vsub.s32 7, %v6621
    %v6623 = vrot.slane %v3116, %v6622
    %v6624 = vlaneseq
    %v6625 = vshrl.u32 %v6624, 7
    %v6626 = vsub.s32 0, %v6625
    %v6627 = vrot.slane %v3117, %v6626
    %v6628 = vlaneseq
    %v6629 = vshrl.u32 %v6628, 7
    %v6630 = vsub.s32 1, %v6629
    %v6631 = vrot.slane %v3117, %v6630
    %v6632 = vlaneseq
    %v6633 = vshrl.u32 %v6632, 7
    %v6634 = vsub.s32 2, %v6633
    %v6635 = vrot.slane %v3117, %v6634
    %v6636 = vlaneseq
    %v6637 = vshrl.u32 %v6636, 7
    %v6638 = vsub.s32 3, %v6637
    %v6639 = vrot.slane %v3117, %v6638
    %v6640 = vlaneseq
    %v6641 = vshrl.u32 %v6640, 7
    %v6642 = vsub.s32 4, %v6641
    %v6643 = vrot.slane %v3117, %v6642
    %v6644 = vlaneseq
    %v6645 = vshrl.u32 %v6644, 7
    %v6646 = vsub.s32 5, %v6645
    %v6647 = vrot.slane %v3117, %v6646
    %v6648 = vlaneseq
    %v6649 = vshrl.u32 %v6648, 7
    %v6650 = vsub.s32 6, %v6649
    %v6651 = vrot.slane %v3117, %v6650
    %v6652 = vlaneseq
    %v6653 = vshrl.u32 %v6652, 7
    %v6654 = vsub.s32 7, %v6653
    %v6655 = vrot.slane %v3117, %v6654
    %v6656 = vlaneseq
    %v6657 = vshrl.u32 %v6656, 7
    %v6658 = vsub.s32 0, %v6657
    %v6659 = vrot.slane %v3118, %v6658
    %v6660 = vlaneseq
    %v6661 = vshrl.u32 %v6660, 7
    %v6662 = vsub.s32 1, %v6661
    %v6663 = vrot.slane %v3118, %v6662
    %v6664 = vlaneseq
    %v6665 = vshrl.u32 %v6664, 7
    %v6666 = vsub.s32 2, %v6665
    %v6667 = vrot.slane %v3118, %v6666
    %v6668 = vlaneseq
    %v6669 = vshrl.u32 %v6668, 7
    %v6670 = vsub.s32 3, %v6669
    %v6671 = vrot.slane %v3118, %v6670
    %v6672 = vlaneseq
    %v6673 = vshrl.u32 %v6672, 7
    %v6674 = vsub.s32 4, %v6673
    %v6675 = vrot.slane %v3118, %v6674
    %v6676 = vlaneseq
    %v6677 = vshrl.u32 %v6676, 7
    %v6678 = vsub.s32 5, %v6677
    %v6679 = vrot.slane %v3118, %v6678
    %v6680 = vlaneseq
    %v6681 = vshrl.u32 %v6680, 7
    %v6682 = vsub.s32 6, %v6681
    %v6683 = vrot.slane %v3118, %v6682
    %v6684 = vlaneseq
    %v6685 = vshrl.u32 %v6684, 7
    %v6686 = vsub.s32 7, %v6685
    %v6687 = vrot.slane %v3118, %v6686
    %v6688 = vlaneseq
    %v6689 = vshrl.u32 %v6688, 7
    %v6690 = vsub.s32 0, %v6689
    %v6691 = vrot.slane %v3119, %v6690
    %v6692 = vlaneseq
    %v6693 = vshrl.u32 %v6692, 7
    %v6694 = vsub.s32 1, %v6693
    %v6695 = vrot.slane %v3119, %v6694
    %v6696 = vlaneseq
    %v6697 = vshrl.u32 %v6696, 7
    %v6698 = vsub.s32 2, %v6697
    %v6699 = vrot.slane %v3119, %v6698
    %v6700 = vlaneseq
    %v6701 = vshrl.u32 %v6700, 7
    %v6702 = vsub.s32 3, %v6701
    %v6703 = vrot.slane %v3119, %v6702
    %v6704 = vlaneseq
    %v6705 = vshrl.u32 %v6704, 7
    %v6706 = vsub.s32 4, %v6705
    %v6707 = vrot.slane %v3119, %v6706
    %v6708 = vlaneseq
    %v6709 = vshrl.u32 %v6708, 7
    %v6710 = vsub.s32 5, %v6709
    %v6711 = vrot.slane %v3119, %v6710
    %v6712 = vlaneseq
    %v6713 = vshrl.u32 %v6712, 7
    %v6714 = vsub.s32 6, %v6713
    %v6715 = vrot.slane %v3119, %v6714
    %v6716 = vlaneseq
    %v6717 = vshrl.u32 %v6716, 7
    %v6718 = vsub.s32 7, %v6717
    %v6719 = vrot.slane %v3119, %v6718
    %v6720 = vlaneseq
    %v6721 = vshrl.u32 %v6720, 7
    %v6722 = vsub.s32 0, %v6721
    %v6723 = vrot.slane %v3120, %v6722
    %v6724 = vlaneseq
    %v6725 = vshrl.u32 %v6724, 7
    %v6726 = vsub.s32 1, %v6725
    %v6727 = vrot.slane %v3120, %v6726
    %v6728 = vlaneseq
    %v6729 = vshrl.u32 %v6728, 7
    %v6730 = vsub.s32 2, %v6729
    %v6731 = vrot.slane %v3120, %v6730
    %v6732 = vlaneseq
    %v6733 = vshrl.u32 %v6732, 7
    %v6734 = vsub.s32 3, %v6733
    %v6735 = vrot.slane %v3120, %v6734
    %v6736 = vlaneseq
    %v6737 = vshrl.u32 %v6736, 7
    %v6738 = vsub.s32 4, %v6737
    %v6739 = vrot.slane %v3120, %v6738
    %v6740 = vlaneseq
    %v6741 = vshrl.u32 %v6740, 7
    %v6742 = vsub.s32 5, %v6741
    %v6743 = vrot.slane %v3120, %v6742
    %v6744 = vlaneseq
    %v6745 = vshrl.u32 %v6744, 7
    %v6746 = vsub.s32 6, %v6745
    %v6747 = vrot.slane %v3120, %v6746
    %v6748 = vlaneseq
    %v6749 = vshrl.u32 %v6748, 7
    %v6750 = vsub.s32 7, %v6749
    %v6751 = vrot.slane %v3120, %v6750
    %v6752 = vlaneseq
    %v6753 = vshrl.u32 %v6752, 7
    %v6754 = vsub.s32 0, %v6753
    %v6755 = vrot.slane %v3121, %v6754
    %v6756 = vlaneseq
    %v6757 = vshrl.u32 %v6756, 7
    %v6758 = vsub.s32 1, %v6757
    %v6759 = vrot.slane %v3121, %v6758
    %v6760 = vlaneseq
    %v6761 = vshrl.u32 %v6760, 7
    %v6762 = vsub.s32 2, %v6761
    %v6763 = vrot.slane %v3121, %v6762
    %v6764 = vlaneseq
    %v6765 = vshrl.u32 %v6764, 7
    %v6766 = vsub.s32 3, %v6765
    %v6767 = vrot.slane %v3121, %v6766
    %v6768 = vlaneseq
    %v6769 = vshrl.u32 %v6768, 7
    %v6770 = vsub.s32 4, %v6769
    %v6771 = vrot.slane %v3121, %v6770
    %v6772 = vlaneseq
    %v6773 = vshrl.u32 %v6772, 7
    %v6774 = vsub.s32 5, %v6773
    %v6775 = vrot.slane %v3121, %v6774
    %v6776 = vlaneseq
    %v6777 = vshrl.u32 %v6776, 7
    %v6778 = vsub.s32 6, %v6777
    %v6779 = vrot.slane %v3121, %v6778
    %v6780 = vlaneseq
    %v6781 = vshrl.u32 %v6780, 7
    %v6782 = vsub.s32 7, %v6781
    %v6783 = vrot.slane %v3121, %v6782
    %v6784 = vlaneseq
    %v6785 = vshrl.u32 %v6784, 7
    %v6786 = vsub.s32 0, %v6785
    %v6787 = vrot.slane %v3122, %v6786
    %v6788 = vlaneseq
    %v6789 = vshrl.u32 %v6788, 7
    %v6790 = vsub.s32 1, %v6789
    %v6791 = vrot.slane %v3122, %v6790
    %v6792 = vlaneseq
    %v6793 = vshrl.u32 %v6792, 7
    %v6794 = vsub.s32 2, %v6793
    %v6795 = vrot.slane %v3122, %v6794
    %v6796 = vlaneseq
    %v6797 = vshrl.u32 %v6796, 7
    %v6798 = vsub.s32 3, %v6797
    %v6799 = vrot.slane %v3122, %v6798
    %v6800 = vlaneseq
    %v6801 = vshrl.u32 %v6800, 7
    %v6802 = vsub.s32 4, %v6801
    %v6803 = vrot.slane %v3122, %v6802
    %v6804 = vlaneseq
    %v6805 = vshrl.u32 %v6804, 7
    %v6806 = vsub.s32 5, %v6805
    %v6807 = vrot.slane %v3122, %v6806
    %v6808 = vlaneseq
    %v6809 = vshrl.u32 %v6808, 7
    %v6810 = vsub.s32 6, %v6809
    %v6811 = vrot.slane %v3122, %v6810
    %v6812 = vlaneseq
    %v6813 = vshrl.u32 %v6812, 7
    %v6814 = vsub.s32 7, %v6813
    %v6815 = vrot.slane %v3122, %v6814
    %v6816 = vlaneseq
    %v6817 = vshrl.u32 %v6816, 7
    %v6818 = vsub.s32 0, %v6817
    %v6819 = vrot.slane %v3123, %v6818
    %v6820 = vlaneseq
    %v6821 = vshrl.u32 %v6820, 7
    %v6822 = vsub.s32 1, %v6821
    %v6823 = vrot.slane %v3123, %v6822
    %v6824 = vlaneseq
    %v6825 = vshrl.u32 %v6824, 7
    %v6826 = vsub.s32 2, %v6825
    %v6827 = vrot.slane %v3123, %v6826
    %v6828 = vlaneseq
    %v6829 = vshrl.u32 %v6828, 7
    %v6830 = vsub.s32 3, %v6829
    %v6831 = vrot.slane %v3123, %v6830
    %v6832 = vlaneseq
    %v6833 = vshrl.u32 %v6832, 7
    %v6834 = vsub.s32 4, %v6833
    %v6835 = vrot.slane %v3123, %v6834
    %v6836 = vlaneseq
    %v6837 = vshrl.u32 %v6836, 7
    %v6838 = vsub.s32 5, %v6837
    %v6839 = vrot.slane %v3123, %v6838
    %v6840 = vlaneseq
    %v6841 = vshrl.u32 %v6840, 7
    %v6842 = vsub.s32 6, %v6841
    %v6843 = vrot.slane %v3123, %v6842
    %v6844 = vlaneseq
    %v6845 = vshrl.u32 %v6844, 7
    %v6846 = vsub.s32 7, %v6845
    %v6847 = vrot.slane %v3123, %v6846
    %v6848 = vlaneseq
    %v6849 = vshrl.u32 %v6848, 7
    %v6850 = vsub.s32 0, %v6849
    %v6851 = vrot.slane %v3124, %v6850
    %v6852 = vlaneseq
    %v6853 = vshrl.u32 %v6852, 7
    %v6854 = vsub.s32 1, %v6853
    %v6855 = vrot.slane %v3124, %v6854
    %v6856 = vlaneseq
    %v6857 = vshrl.u32 %v6856, 7
    %v6858 = vsub.s32 2, %v6857
    %v6859 = vrot.slane %v3124, %v6858
    %v6860 = vlaneseq
    %v6861 = vshrl.u32 %v6860, 7
    %v6862 = vsub.s32 3, %v6861
    %v6863 = vrot.slane %v3124, %v6862
    %v6864 = vlaneseq
    %v6865 = vshrl.u32 %v6864, 7
    %v6866 = vsub.s32 4, %v6865
    %v6867 = vrot.slane %v3124, %v6866
    %v6868 = vlaneseq
    %v6869 = vshrl.u32 %v6868, 7
    %v6870 = vsub.s32 5, %v6869
    %v6871 = vrot.slane %v3124, %v6870
    %v6872 = vlaneseq
    %v6873 = vshrl.u32 %v6872, 7
    %v6874 = vsub.s32 6, %v6873
    %v6875 = vrot.slane %v3124, %v6874
    %v6876 = vlaneseq
    %v6877 = vshrl.u32 %v6876, 7
    %v6878 = vsub.s32 7, %v6877
    %v6879 = vrot.slane %v3124, %v6878
    %v6880 = vlaneseq
    %v6881 = vshrl.u32 %v6880, 7
    %v6882 = vsub.s32 0, %v6881
    %v6883 = vrot.slane %v3125, %v6882
    %v6884 = vlaneseq
    %v6885 = vshrl.u32 %v6884, 7
    %v6886 = vsub.s32 1, %v6885
    %v6887 = vrot.slane %v3125, %v6886
    %v6888 = vlaneseq
    %v6889 = vshrl.u32 %v6888, 7
    %v6890 = vsub.s32 2, %v6889
    %v6891 = vrot.slane %v3125, %v6890
    %v6892 = vlaneseq
    %v6893 = vshrl.u32 %v6892, 7
    %v6894 = vsub.s32 3, %v6893
    %v6895 = vrot.slane %v3125, %v6894
    %v6896 = vlaneseq
    %v6897 = vshrl.u32 %v6896, 7
    %v6898 = vsub.s32 4, %v6897
    %v6899 = vrot.slane %v3125, %v6898
    %v6900 = vlaneseq
    %v6901 = vshrl.u32 %v6900, 7
    %v6902 = vsub.s32 5, %v6901
    %v6903 = vrot.slane %v3125, %v6902
    %v6904 = vlaneseq
    %v6905 = vshrl.u32 %v6904, 7
    %v6906 = vsub.s32 6, %v6905
    %v6907 = vrot.slane %v3125, %v6906
    %v6908 = vlaneseq
    %v6909 = vshrl.u32 %v6908, 7
    %v6910 = vsub.s32 7, %v6909
    %v6911 = vrot.slane %v3125, %v6910
    %v6912 = vlaneseq
    %v6913 = vshrl.u32 %v6912, 7
    %v6914 = vsub.s32 0, %v6913
    %v6915 = vrot.slane %v3126, %v6914
    %v6916 = vlaneseq
    %v6917 = vshrl.u32 %v6916, 7
    %v6918 = vsub.s32 1, %v6917
    %v6919 = vrot.slane %v3126, %v6918
    %v6920 = vlaneseq
    %v6921 = vshrl.u32 %v6920, 7
    %v6922 = vsub.s32 2, %v6921
    %v6923 = vrot.slane %v3126, %v6922
    %v6924 = vlaneseq
    %v6925 = vshrl.u32 %v6924, 7
    %v6926 = vsub.s32 3, %v6925
    %v6927 = vrot.slane %v3126, %v6926
    %v6928 = vlaneseq
    %v6929 = vshrl.u32 %v6928, 7
    %v6930 = vsub.s32 4, %v6929
    %v6931 = vrot.slane %v3126, %v6930
    %v6932 = vlaneseq
    %v6933 = vshrl.u32 %v6932, 7
    %v6934 = vsub.s32 5, %v6933
    %v6935 = vrot.slane %v3126, %v6934
    %v6936 = vlaneseq
    %v6937 = vshrl.u32 %v6936, 7
    %v6938 = vsub.s32 6, %v6937
    %v6939 = vrot.slane %v3126, %v6938
    %v6940 = vlaneseq
    %v6941 = vshrl.u32 %v6940, 7
    %v6942 = vsub.s32 7, %v6941
    %v6943 = vrot.slane %v3126, %v6942
    %v6944 = vlaneseq
    %v6945 = vshrl.u32 %v6944, 7
    %v6946 = vsub.s32 0, %v6945
    %v6947 = vrot.slane %v3127, %v6946
    %v6948 = vlaneseq
    %v6949 = vshrl.u32 %v6948, 7
    %v6950 = vsub.s32 1, %v6949
    %v6951 = vrot.slane %v3127, %v6950
    %v6952 = vlaneseq
    %v6953 = vshrl.u32 %v6952, 7
    %v6954 = vsub.s32 2, %v6953
    %v6955 = vrot.slane %v3127, %v6954
    %v6956 = vlaneseq
    %v6957 = vshrl.u32 %v6956, 7
    %v6958 = vsub.s32 3, %v6957
    %v6959 = vrot.slane %v3127, %v6958
    %v6960 = vlaneseq
    %v6961 = vshrl.u32 %v6960, 7
    %v6962 = vsub.s32 4, %v6961
    %v6963 = vrot.slane %v3127, %v6962
    %v6964 = vlaneseq
    %v6965 = vshrl.u32 %v6964, 7
    %v6966 = vsub.s32 5, %v6965
    %v6967 = vrot.slane %v3127, %v6966
    %v6968 = vlaneseq
    %v6969 = vshrl.u32 %v6968, 7
    %v6970 = vsub.s32 6, %v6969
    %v6971 = vrot.slane %v3127, %v6970
    %v6972 = vlaneseq
    %v6973 = vshrl.u32 %v6972, 7
    %v6974 = vsub.s32 7, %v6973
    %v6975 = vrot.slane %v3127, %v6974
    %v6976 = vlaneseq
    %v6977 = vshrl.u32 %v6976, 7
    %v6978 = vsub.s32 0, %v6977
    %v6979 = vrot.slane %v3128, %v6978
    %v6980 = vlaneseq
    %v6981 = vshrl.u32 %v6980, 7
    %v6982 = vsub.s32 1, %v6981
    %v6983 = vrot.slane %v3128, %v6982
    %v6984 = vlaneseq
    %v6985 = vshrl.u32 %v6984, 7
    %v6986 = vsub.s32 2, %v6985
    %v6987 = vrot.slane %v3128, %v6986
    %v6988 = vlaneseq
    %v6989 = vshrl.u32 %v6988, 7
    %v6990 = vsub.s32 3, %v6989
    %v6991 = vrot.slane %v3128, %v6990
    %v6992 = vlaneseq
    %v6993 = vshrl.u32 %v6992, 7
    %v6994 = vsub.s32 4, %v6993
    %v6995 = vrot.slane %v3128, %v6994
    %v6996 = vlaneseq
    %v6997 = vshrl.u32 %v6996, 7
    %v6998 = vsub.s32 5, %v6997
    %v6999 = vrot.slane %v3128, %v6998
    %v7000 = vlaneseq
    %v7001 = vshrl.u32 %v7000, 7
    %v7002 = vsub.s32 6, %v7001
    %v7003 = vrot.slane %v3128, %v7002
    %v7004 = vlaneseq
    %v7005 = vshrl.u32 %v7004, 7
    %v7006 = vsub.s32 7, %v7005
    %v7007 = vrot.slane %v3128, %v7006
    %v7008 = vlaneseq
    %v7009 = vshrl.u32 %v7008, 7
    %v7010 = vsub.s32 0, %v7009
    %v7011 = vrot.slane %v3129, %v7010
    %v7012 = vlaneseq
    %v7013 = vshrl.u32 %v7012, 7
    %v7014 = vsub.s32 1, %v7013
    %v7015 = vrot.slane %v3129, %v7014
    %v7016 = vlaneseq
    %v7017 = vshrl.u32 %v7016, 7
    %v7018 = vsub.s32 2, %v7017
    %v7019 = vrot.slane %v3129, %v7018
    %v7020 = vlaneseq
    %v7021 = vshrl.u32 %v7020, 7
    %v7022 = vsub.s32 3, %v7021
    %v7023 = vrot.slane %v3129, %v7022
    %v7024 = vlaneseq
    %v7025 = vshrl.u32 %v7024, 7
    %v7026 = vsub.s32 4, %v7025
    %v7027 = vrot.slane %v3129, %v7026
    %v7028 = vlaneseq
    %v7029 = vshrl.u32 %v7028, 7
    %v7030 = vsub.s32 5, %v7029
    %v7031 = vrot.slane %v3129, %v7030
    %v7032 = vlaneseq
    %v7033 = vshrl.u32 %v7032, 7
    %v7034 = vsub.s32 6, %v7033
    %v7035 = vrot.slane %v3129, %v7034
    %v7036 = vlaneseq
    %v7037 = vshrl.u32 %v7036, 7
    %v7038 = vsub.s32 7, %v7037
    %v7039 = vrot.slane %v3129, %v7038
    %v7040 = vlaneseq
    %v7041 = vshrl.u32 %v7040, 7
    %v7042 = vsub.s32 0, %v7041
    %v7043 = vrot.slane %v3130, %v7042
    %v7044 = vlaneseq
    %v7045 = vshrl.u32 %v7044, 7
    %v7046 = vsub.s32 1, %v7045
    %v7047 = vrot.slane %v3130, %v7046
    %v7048 = vlaneseq
    %v7049 = vshrl.u32 %v7048, 7
    %v7050 = vsub.s32 2, %v7049
    %v7051 = vrot.slane %v3130, %v7050
    %v7052 = vlaneseq
    %v7053 = vshrl.u32 %v7052, 7
    %v7054 = vsub.s32 3, %v7053
    %v7055 = vrot.slane %v3130, %v7054
    %v7056 = vlaneseq
    %v7057 = vshrl.u32 %v7056, 7
    %v7058 = vsub.s32 4, %v7057
    %v7059 = vrot.slane %v3130, %v7058
    %v7060 = vlaneseq
    %v7061 = vshrl.u32 %v7060, 7
    %v7062 = vsub.s32 5, %v7061
    %v7063 = vrot.slane %v3130, %v7062
    %v7064 = vlaneseq
    %v7065 = vshrl.u32 %v7064, 7
    %v7066 = vsub.s32 6, %v7065
    %v7067 = vrot.slane %v3130, %v7066
    %v7068 = vlaneseq
    %v7069 = vshrl.u32 %v7068, 7
    %v7070 = vsub.s32 7, %v7069
    %v7071 = vrot.slane %v3130, %v7070
    %v7072 = vlaneseq
    %v7073 = vshrl.u32 %v7072, 7
    %v7074 = vsub.s32 0, %v7073
    %v7075 = vrot.slane %v3131, %v7074
    %v7076 = vlaneseq
    %v7077 = vshrl.u32 %v7076, 7
    %v7078 = vsub.s32 1, %v7077
    %v7079 = vrot.slane %v3131, %v7078
    %v7080 = vlaneseq
    %v7081 = vshrl.u32 %v7080, 7
    %v7082 = vsub.s32 2, %v7081
    %v7083 = vrot.slane %v3131, %v7082
    %v7084 = vlaneseq
    %v7085 = vshrl.u32 %v7084, 7
    %v7086 = vsub.s32 3, %v7085
    %v7087 = vrot.slane %v3131, %v7086
    %v7088 = vlaneseq
    %v7089 = vshrl.u32 %v7088, 7
    %v7090 = vsub.s32 4, %v7089
    %v7091 = vrot.slane %v3131, %v7090
    %v7092 = vlaneseq
    %v7093 = vshrl.u32 %v7092, 7
    %v7094 = vsub.s32 5, %v7093
    %v7095 = vrot.slane %v3131, %v7094
    %v7096 = vlaneseq
    %v7097 = vshrl.u32 %v7096, 7
    %v7098 = vsub.s32 6, %v7097
    %v7099 = vrot.slane %v3131, %v7098
    %v7100 = vlaneseq
    %v7101 = vshrl.u32 %v7100, 7
    %v7102 = vsub.s32 7, %v7101
    %v7103 = vrot.slane %v3131, %v7102
    %v7104 = vlaneseq
    %v7105 = vshrl.u32 %v7104, 7
    %v7106 = vsub.s32 0, %v7105
    %v7107 = vrot.slane %v3132, %v7106
    %v7108 = vlaneseq
    %v7109 = vshrl.u32 %v7108, 7
    %v7110 = vsub.s32 1, %v7109
    %v7111 = vrot.slane %v3132, %v7110
    %v7112 = vlaneseq
    %v7113 = vshrl.u32 %v7112, 7
    %v7114 = vsub.s32 2, %v7113
    %v7115 = vrot.slane %v3132, %v7114
    %v7116 = vlaneseq
    %v7117 = vshrl.u32 %v7116, 7
    %v7118 = vsub.s32 3, %v7117
    %v7119 = vrot.slane %v3132, %v7118
    %v7120 = vlaneseq
    %v7121 = vshrl.u32 %v7120, 7
    %v7122 = vsub.s32 4, %v7121
    %v7123 = vrot.slane %v3132, %v7122
    %v7124 = vlaneseq
    %v7125 = vshrl.u32 %v7124, 7
    %v7126 = vsub.s32 5, %v7125
    %v7127 = vrot.slane %v3132, %v7126
    %v7128 = vlaneseq
    %v7129 = vshrl.u32 %v7128, 7
    %v7130 = vsub.s32 6, %v7129
    %v7131 = vrot.slane %v3132, %v7130
    %v7132 = vlaneseq
    %v7133 = vshrl.u32 %v7132, 7
    %v7134 = vsub.s32 7, %v7133
    %v7135 = vrot.slane %v3132, %v7134
    %v7136 = vlaneseq
    %v7137 = vshrl.u32 %v7136, 7
    %v7138 = vsub.s32 0, %v7137
    %v7139 = vrot.slane %v3133, %v7138
    %v7140 = vlaneseq
    %v7141 = vshrl.u32 %v7140, 7
    %v7142 = vsub.s32 1, %v7141
    %v7143 = vrot.slane %v3133, %v7142
    %v7144 = vlaneseq
    %v7145 = vshrl.u32 %v7144, 7
    %v7146 = vsub.s32 2, %v7145
    %v7147 = vrot.slane %v3133, %v7146
    %v7148 = vlaneseq
    %v7149 = vshrl.u32 %v7148, 7
    %v7150 = vsub.s32 3, %v7149
    %v7151 = vrot.slane %v3133, %v7150
    %v7152 = vlaneseq
    %v7153 = vshrl.u32 %v7152, 7
    %v7154 = vsub.s32 4, %v7153
    %v7155 = vrot.slane %v3133, %v7154
    %v7156 = vlaneseq
    %v7157 = vshrl.u32 %v7156, 7
    %v7158 = vsub.s32 5, %v7157
    %v7159 = vrot.slane %v3133, %v7158
    %v7160 = vlaneseq
    %v7161 = vshrl.u32 %v7160, 7
    %v7162 = vsub.s32 6, %v7161
    %v7163 = vrot.slane %v3133, %v7162
    %v7164 = vlaneseq
    %v7165 = vshrl.u32 %v7164, 7
    %v7166 = vsub.s32 7, %v7165
    %v7167 = vrot.slane %v3133, %v7166
    %v7168 = vlaneseq
    %v7169 = vshrl.u32 %v7168, 7
    %v7170 = vsub.s32 0, %v7169
    %v7171 = vrot.slane %v3134, %v7170
    %v7172 = vlaneseq
    %v7173 = vshrl.u32 %v7172, 7
    %v7174 = vsub.s32 1, %v7173
    %v7175 = vrot.slane %v3134, %v7174
    %v7176 = vlaneseq
    %v7177 = vshrl.u32 %v7176, 7
    %v7178 = vsub.s32 2, %v7177
    %v7179 = vrot.slane %v3134, %v7178
    %v7180 = vlaneseq
    %v7181 = vshrl.u32 %v7180, 7
    %v7182 = vsub.s32 3, %v7181
    %v7183 = vrot.slane %v3134, %v7182
    %v7184 = vlaneseq
    %v7185 = vshrl.u32 %v7184, 7
    %v7186 = vsub.s32 4, %v7185
    %v7187 = vrot.slane %v3134, %v7186
    %v7188 = vlaneseq
    %v7189 = vshrl.u32 %v7188, 7
    %v7190 = vsub.s32 5, %v7189
    %v7191 = vrot.slane %v3134, %v7190
    %v7192 = vlaneseq
    %v7193 = vshrl.u32 %v7192, 7
    %v7194 = vsub.s32 6, %v7193
    %v7195 = vrot.slane %v3134, %v7194
    %v7196 = vlaneseq
    %v7197 = vshrl.u32 %v7196, 7
    %v7198 = vsub.s32 7, %v7197
    %v7199 = vrot.slane %v3134, %v7198
    %v7200 = vlaneseq
    %v7201 = vshrl.u32 %v7200, 7
    %v7202 = vsub.s32 0, %v7201
    %v7203 = vrot.slane %v3135, %v7202
    %v7204 = vlaneseq
    %v7205 = vshrl.u32 %v7204, 7
    %v7206 = vsub.s32 1, %v7205
    %v7207 = vrot.slane %v3135, %v7206
    %v7208 = vlaneseq
    %v7209 = vshrl.u32 %v7208, 7
    %v7210 = vsub.s32 2, %v7209
    %v7211 = vrot.slane %v3135, %v7210
    %v7212 = vlaneseq
    %v7213 = vshrl.u32 %v7212, 7
    %v7214 = vsub.s32 3, %v7213
    %v7215 = vrot.slane %v3135, %v7214
    %v7216 = vlaneseq
    %v7217 = vshrl.u32 %v7216, 7
    %v7218 = vsub.s32 4, %v7217
    %v7219 = vrot.slane %v3135, %v7218
    %v7220 = vlaneseq
    %v7221 = vshrl.u32 %v7220, 7
    %v7222 = vsub.s32 5, %v7221
    %v7223 = vrot.slane %v3135, %v7222
    %v7224 = vlaneseq
    %v7225 = vshrl.u32 %v7224, 7
    %v7226 = vsub.s32 6, %v7225
    %v7227 = vrot.slane %v3135, %v7226
    %v7228 = vlaneseq
    %v7229 = vshrl.u32 %v7228, 7
    %v7230 = vsub.s32 7, %v7229
    %v7231 = vrot.slane %v3135, %v7230
    %v7232 = vlaneseq
    %v7233 = vshrl.u32 %v7232, 7
    %v7234 = vsub.s32 0, %v7233
    %v7235 = vrot.slane %v3136, %v7234
    %v7236 = vlaneseq
    %v7237 = vshrl.u32 %v7236, 7
    %v7238 = vsub.s32 1, %v7237
    %v7239 = vrot.slane %v3136, %v7238
    %v7240 = vlaneseq
    %v7241 = vshrl.u32 %v7240, 7
    %v7242 = vsub.s32 2, %v7241
    %v7243 = vrot.slane %v3136, %v7242
    %v7244 = vlaneseq
    %v7245 = vshrl.u32 %v7244, 7
    %v7246 = vsub.s32 3, %v7245
    %v7247 = vrot.slane %v3136, %v7246
    %v7248 = vlaneseq
    %v7249 = vshrl.u32 %v7248, 7
    %v7250 = vsub.s32 4, %v7249
    %v7251 = vrot.slane %v3136, %v7250
    %v7252 = vlaneseq
    %v7253 = vshrl.u32 %v7252, 7
    %v7254 = vsub.s32 5, %v7253
    %v7255 = vrot.slane %v3136, %v7254
    %v7256 = vlaneseq
    %v7257 = vshrl.u32 %v7256, 7
    %v7258 = vsub.s32 6, %v7257
    %v7259 = vrot.slane %v3136, %v7258
    %v7260 = vlaneseq
    %v7261 = vshrl.u32 %v7260, 7
    %v7262 = vsub.s32 7, %v7261
    %v7263 = vrot.slane %v3136, %v7262
    %v7264 = vlaneseq
    %v7265 = vshrl.u32 %v7264, 7
    %v7266 = vsub.s32 0, %v7265
    %v7267 = vrot.slane %v3137, %v7266
    %v7268 = vlaneseq
    %v7269 = vshrl.u32 %v7268, 7
    %v7270 = vsub.s32 1, %v7269
    %v7271 = vrot.slane %v3137, %v7270
    %v7272 = vlaneseq
    %v7273 = vshrl.u32 %v7272, 7
    %v7274 = vsub.s32 2, %v7273
    %v7275 = vrot.slane %v3137, %v7274
    %v7276 = vlaneseq
    %v7277 = vshrl.u32 %v7276, 7
    %v7278 = vsub.s32 3, %v7277
    %v7279 = vrot.slane %v3137, %v7278
    %v7280 = vlaneseq
    %v7281 = vshrl.u32 %v7280, 7
    %v7282 = vsub.s32 4, %v7281
    %v7283 = vrot.slane %v3137, %v7282
    %v7284 = vlaneseq
    %v7285 = vshrl.u32 %v7284, 7
    %v7286 = vsub.s32 5, %v7285
    %v7287 = vrot.slane %v3137, %v7286
    %v7288 = vlaneseq
    %v7289 = vshrl.u32 %v7288, 7
    %v7290 = vsub.s32 6, %v7289
    %v7291 = vrot.slane %v3137, %v7290
    %v7292 = vlaneseq
    %v7293 = vshrl.u32 %v7292, 7
    %v7294 = vsub.s32 7, %v7293
    %v7295 = vrot.slane %v3137, %v7294
    %v7296 = vcombine.low %v3267, %v3271
    %v7297 = vcombine.low %v3275, %v3279
    %v7298 = vcombine.low %v3283, %v3287
    %v7299 = vcombine.low %v3291, %v3295
    %v7301 = vunpack.c.l.s4 1966171168
    %v7302 = vunpack.c.0.s8 %v7301
    %v7303 = vlaneseq
    %v7304 = vshrl.u32 %v7303, 7
    %v7305 = vsub.s32 %v7302, %v7304
    %v7306 = vrot.slane %v7296, %v7305
    %v7308 = vunpack.c.l.s4 1966171168
    %v7309 = vunpack.c.0.s8 %v7308
    %v7310 = vlaneseq
    %v7311 = vshrl.u32 %v7310, 7
    %v7312 = vsub.s32 %v7309, %v7311
    %v7313 = vrot.slane %v7297, %v7312
    %v7315 = vunpack.c.l.s4 1966171168
    %v7316 = vunpack.c.0.s8 %v7315
    %v7317 = vlaneseq
    %v7318 = vshrl.u32 %v7317, 7
    %v7319 = vsub.s32 %v7316, %v7318
    %v7320 = vrot.slane %v7298, %v7319
    %v7322 = vunpack.c.l.s4 1966171168
    %v7323 = vunpack.c.0.s8 %v7322
    %v7324 = vlaneseq
    %v7325 = vshrl.u32 %v7324, 7
    %v7326 = vsub.s32 %v7323, %v7325
    %v7327 = vrot.slane %v7299, %v7326
    %v7328 = vcombine.low %v7306, %v7313
    %v7329 = vcombine.low %v7320, %v7327
    %v7331 = vunpack.c.l.s4 1966171168
    %v7332 = vunpack.c.0.s8 %v7331
    %v7333 = vlaneseq
    %v7334 = vshrl.u32 %v7333, 7
    %v7335 = vsub.s32 %v7332, %v7334
    %v7336 = vrot.slane %v7328, %v7335
    %v7338 = vunpack.c.l.s4 1966171168
    %v7339 = vunpack.c.0.s8 %v7338
    %v7340 = vlaneseq
    %v7341 = vshrl.u32 %v7340, 7
    %v7342 = vsub.s32 %v7339, %v7341
    %v7343 = vrot.slane %v7329, %v7342
    %v7344 = vcombine.low %v7336, %v7343
    %v7345 = vcombine.low %v3299, %v3303
    %v7346 = vcombine.low %v3307, %v3311
    %v7347 = vcombine.low %v3315, %v3319
    %v7348 = vcombine.low %v3323, %v3327
    %v7350 = vunpack.c.l.s4 1966171168
    %v7351 = vunpack.c.0.s8 %v7350
    %v7352 = vlaneseq
    %v7353 = vshrl.u32 %v7352, 7
    %v7354 = vsub.s32 %v7351, %v7353
    %v7355 = vrot.slane %v7345, %v7354
    %v7357 = vunpack.c.l.s4 1966171168
    %v7358 = vunpack.c.0.s8 %v7357
    %v7359 = vlaneseq
    %v7360 = vshrl.u32 %v7359, 7
    %v7361 = vsub.s32 %v7358, %v7360
    %v7362 = vrot.slane %v7346, %v7361
    %v7364 = vunpack.c.l.s4 1966171168
    %v7365 = vunpack.c.0.s8 %v7364
    %v7366 = vlaneseq
    %v7367 = vshrl.u32 %v7366, 7
    %v7368 = vsub.s32 %v7365, %v7367
    %v7369 = vrot.slane %v7347, %v7368
    %v7371 = vunpack.c.l.s4 1966171168
    %v7372 = vunpack.c.0.s8 %v7371
    %v7373 = vlaneseq
    %v7374 = vshrl.u32 %v7373, 7
    %v7375 = vsub.s32 %v7372, %v7374
    %v7376 = vrot.slane %v7348, %v7375
    %v7377 = vcombine.low %v7355, %v7362
    %v7378 = vcombine.low %v7369, %v7376
    %v7380 = vunpack.c.l.s4 1966171168
    %v7381 = vunpack.c.0.s8 %v7380
    %v7382 = vlaneseq
    %v7383 = vshrl.u32 %v7382, 7
    %v7384 = vsub.s32 %v7381, %v7383
    %v7385 = vrot.slane %v7377, %v7384
    %v7387 = vunpack.c.l.s4 1966171168
    %v7388 = vunpack.c.0.s8 %v7387
    %v7389 = vlaneseq
    %v7390 = vshrl.u32 %v7389, 7
    %v7391 = vsub.s32 %v7388, %v7390
    %v7392 = vrot.slane %v7378, %v7391
    %v7393 = vcombine.low %v7385, %v7392
    %v7394 = vcombine.low %v3331, %v3335
    %v7395 = vcombine.low %v3339, %v3343
    %v7396 = vcombine.low %v3347, %v3351
    %v7397 = vcombine.low %v3355, %v3359
    %v7399 = vunpack.c.l.s4 1966171168
    %v7400 = vunpack.c.0.s8 %v7399
    %v7401 = vlaneseq
    %v7402 = vshrl.u32 %v7401, 7
    %v7403 = vsub.s32 %v7400, %v7402
    %v7404 = vrot.slane %v7394, %v7403
    %v7406 = vunpack.c.l.s4 1966171168
    %v7407 = vunpack.c.0.s8 %v7406
    %v7408 = vlaneseq
    %v7409 = vshrl.u32 %v7408, 7
    %v7410 = vsub.s32 %v7407, %v7409
    %v7411 = vrot.slane %v7395, %v7410
    %v7413 = vunpack.c.l.s4 1966171168
    %v7414 = vunpack.c.0.s8 %v7413
    %v7415 = vlaneseq
    %v7416 = vshrl.u32 %v7415, 7
    %v7417 = vsub.s32 %v7414, %v7416
    %v7418 = vrot.slane %v7396, %v7417
    %v7420 = vunpack.c.l.s4 1966171168
    %v7421 = vunpack.c.0.s8 %v7420
    %v7422 = vlaneseq
    %v7423 = vshrl.u32 %v7422, 7
    %v7424 = vsub.s32 %v7421, %v7423
    %v7425 = vrot.slane %v7397, %v7424
    %v7426 = vcombine.low %v7404, %v7411
    %v7427 = vcombine.low %v7418, %v7425
    %v7429 = vunpack.c.l.s4 1966171168
    %v7430 = vunpack.c.0.s8 %v7429
    %v7431 = vlaneseq
    %v7432 = vshrl.u32 %v7431, 7
    %v7433 = vsub.s32 %v7430, %v7432
    %v7434 = vrot.slane %v7426, %v7433
    %v7436 = vunpack.c.l.s4 1966171168
    %v7437 = vunpack.c.0.s8 %v7436
    %v7438 = vlaneseq
    %v7439 = vshrl.u32 %v7438, 7
    %v7440 = vsub.s32 %v7437, %v7439
    %v7441 = vrot.slane %v7427, %v7440
    %v7442 = vcombine.low %v7434, %v7441
    %v7443 = vcombine.low %v3363, %v3367
    %v7444 = vcombine.low %v3371, %v3375
    %v7445 = vcombine.low %v3379, %v3383
    %v7446 = vcombine.low %v3387, %v3391
    %v7448 = vunpack.c.l.s4 1966171168
    %v7449 = vunpack.c.0.s8 %v7448
    %v7450 = vlaneseq
    %v7451 = vshrl.u32 %v7450, 7
    %v7452 = vsub.s32 %v7449, %v7451
    %v7453 = vrot.slane %v7443, %v7452
    %v7455 = vunpack.c.l.s4 1966171168
    %v7456 = vunpack.c.0.s8 %v7455
    %v7457 = vlaneseq
    %v7458 = vshrl.u32 %v7457, 7
    %v7459 = vsub.s32 %v7456, %v7458
    %v7460 = vrot.slane %v7444, %v7459
    %v7462 = vunpack.c.l.s4 1966171168
    %v7463 = vunpack.c.0.s8 %v7462
    %v7464 = vlaneseq
    %v7465 = vshrl.u32 %v7464, 7
    %v7466 = vsub.s32 %v7463, %v7465
    %v7467 = vrot.slane %v7445, %v7466
    %v7469 = vunpack.c.l.s4 1966171168
    %v7470 = vunpack.c.0.s8 %v7469
    %v7471 = vlaneseq
    %v7472 = vshrl.u32 %v7471, 7
    %v7473 = vsub.s32 %v7470, %v7472
    %v7474 = vrot.slane %v7446, %v7473
    %v7475 = vcombine.low %v7453, %v7460
    %v7476 = vcombine.low %v7467, %v7474
    %v7478 = vunpack.c.l.s4 1966171168
    %v7479 = vunpack.c.0.s8 %v7478
    %v7480 = vlaneseq
    %v7481 = vshrl.u32 %v7480, 7
    %v7482 = vsub.s32 %v7479, %v7481
    %v7483 = vrot.slane %v7475, %v7482
    %v7485 = vunpack.c.l.s4 1966171168
    %v7486 = vunpack.c.0.s8 %v7485
    %v7487 = vlaneseq
    %v7488 = vshrl.u32 %v7487, 7
    %v7489 = vsub.s32 %v7486, %v7488
    %v7490 = vrot.slane %v7476, %v7489
    %v7491 = vcombine.low %v7483, %v7490
    %v7492 = vcombine.low %v3395, %v3399
    %v7493 = vcombine.low %v3403, %v3407
    %v7494 = vcombine.low %v3411, %v3415
    %v7495 = vcombine.low %v3419, %v3423
    %v7497 = vunpack.c.l.s4 1966171168
    %v7498 = vunpack.c.0.s8 %v7497
    %v7499 = vlaneseq
    %v7500 = vshrl.u32 %v7499, 7
    %v7501 = vsub.s32 %v7498, %v7500
    %v7502 = vrot.slane %v7492, %v7501
    %v7504 = vunpack.c.l.s4 1966171168
    %v7505 = vunpack.c.0.s8 %v7504
    %v7506 = vlaneseq
    %v7507 = vshrl.u32 %v7506, 7
    %v7508 = vsub.s32 %v7505, %v7507
    %v7509 = vrot.slane %v7493, %v7508
    %v7511 = vunpack.c.l.s4 1966171168
    %v7512 = vunpack.c.0.s8 %v7511
    %v7513 = vlaneseq
    %v7514 = vshrl.u32 %v7513, 7
    %v7515 = vsub.s32 %v7512, %v7514
    %v7516 = vrot.slane %v7494, %v7515
    %v7518 = vunpack.c.l.s4 1966171168
    %v7519 = vunpack.c.0.s8 %v7518
    %v7520 = vlaneseq
    %v7521 = vshrl.u32 %v7520, 7
    %v7522 = vsub.s32 %v7519, %v7521
    %v7523 = vrot.slane %v7495, %v7522
    %v7524 = vcombine.low %v7502, %v7509
    %v7525 = vcombine.low %v7516, %v7523
    %v7527 = vunpack.c.l.s4 1966171168
    %v7528 = vunpack.c.0.s8 %v7527
    %v7529 = vlaneseq
    %v7530 = vshrl.u32 %v7529, 7
    %v7531 = vsub.s32 %v7528, %v7530
    %v7532 = vrot.slane %v7524, %v7531
    %v7534 = vunpack.c.l.s4 1966171168
    %v7535 = vunpack.c.0.s8 %v7534
    %v7536 = vlaneseq
    %v7537 = vshrl.u32 %v7536, 7
    %v7538 = vsub.s32 %v7535, %v7537
    %v7539 = vrot.slane %v7525, %v7538
    %v7540 = vcombine.low %v7532, %v7539
    %v7541 = vcombine.low %v3427, %v3431
    %v7542 = vcombine.low %v3435, %v3439
    %v7543 = vcombine.low %v3443, %v3447
    %v7544 = vcombine.low %v3451, %v3455
    %v7546 = vunpack.c.l.s4 1966171168
    %v7547 = vunpack.c.0.s8 %v7546
    %v7548 = vlaneseq
    %v7549 = vshrl.u32 %v7548, 7
    %v7550 = vsub.s32 %v7547, %v7549
    %v7551 = vrot.slane %v7541, %v7550
    %v7553 = vunpack.c.l.s4 1966171168
    %v7554 = vunpack.c.0.s8 %v7553
    %v7555 = vlaneseq
    %v7556 = vshrl.u32 %v7555, 7
    %v7557 = vsub.s32 %v7554, %v7556
    %v7558 = vrot.slane %v7542, %v7557
    %v7560 = vunpack.c.l.s4 1966171168
    %v7561 = vunpack.c.0.s8 %v7560
    %v7562 = vlaneseq
    %v7563 = vshrl.u32 %v7562, 7
    %v7564 = vsub.s32 %v7561, %v7563
    %v7565 = vrot.slane %v7543, %v7564
    %v7567 = vunpack.c.l.s4 1966171168
    %v7568 = vunpack.c.0.s8 %v7567
    %v7569 = vlaneseq
    %v7570 = vshrl.u32 %v7569, 7
    %v7571 = vsub.s32 %v7568, %v7570
    %v7572 = vrot.slane %v7544, %v7571
    %v7573 = vcombine.low %v7551, %v7558
    %v7574 = vcombine.low %v7565, %v7572
    %v7576 = vunpack.c.l.s4 1966171168
    %v7577 = vunpack.c.0.s8 %v7576
    %v7578 = vlaneseq
    %v7579 = vshrl.u32 %v7578, 7
    %v7580 = vsub.s32 %v7577, %v7579
    %v7581 = vrot.slane %v7573, %v7580
    %v7583 = vunpack.c.l.s4 1966171168
    %v7584 = vunpack.c.0.s8 %v7583
    %v7585 = vlaneseq
    %v7586 = vshrl.u32 %v7585, 7
    %v7587 = vsub.s32 %v7584, %v7586
    %v7588 = vrot.slane %v7574, %v7587
    %v7589 = vcombine.low %v7581, %v7588
    %v7590 = vcombine.low %v3459, %v3463
    %v7591 = vcombine.low %v3467, %v3471
    %v7592 = vcombine.low %v3475, %v3479
    %v7593 = vcombine.low %v3483, %v3487
    %v7595 = vunpack.c.l.s4 1966171168
    %v7596 = vunpack.c.0.s8 %v7595
    %v7597 = vlaneseq
    %v7598 = vshrl.u32 %v7597, 7
    %v7599 = vsub.s32 %v7596, %v7598
    %v7600 = vrot.slane %v7590, %v7599
    %v7602 = vunpack.c.l.s4 1966171168
    %v7603 = vunpack.c.0.s8 %v7602
    %v7604 = vlaneseq
    %v7605 = vshrl.u32 %v7604, 7
    %v7606 = vsub.s32 %v7603, %v7605
    %v7607 = vrot.slane %v7591, %v7606
    %v7609 = vunpack.c.l.s4 1966171168
    %v7610 = vunpack.c.0.s8 %v7609
    %v7611 = vlaneseq
    %v7612 = vshrl.u32 %v7611, 7
    %v7613 = vsub.s32 %v7610, %v7612
    %v7614 = vrot.slane %v7592, %v7613
    %v7616 = vunpack.c.l.s4 1966171168
    %v7617 = vunpack.c.0.s8 %v7616
    %v7618 = vlaneseq
    %v7619 = vshrl.u32 %v7618, 7
    %v7620 = vsub.s32 %v7617, %v7619
    %v7621 = vrot.slane %v7593, %v7620
    %v7622 = vcombine.low %v7600, %v7607
    %v7623 = vcombine.low %v7614, %v7621
    %v7625 = vunpack.c.l.s4 1966171168
    %v7626 = vunpack.c.0.s8 %v7625
    %v7627 = vlaneseq
    %v7628 = vshrl.u32 %v7627, 7
    %v7629 = vsub.s32 %v7626, %v7628
    %v7630 = vrot.slane %v7622, %v7629
    %v7632 = vunpack.c.l.s4 1966171168
    %v7633 = vunpack.c.0.s8 %v7632
    %v7634 = vlaneseq
    %v7635 = vshrl.u32 %v7634, 7
    %v7636 = vsub.s32 %v7633, %v7635
    %v7637 = vrot.slane %v7623, %v7636
    %v7638 = vcombine.low %v7630, %v7637
    %v7639 = vcombine.low %v3491, %v3495
    %v7640 = vcombine.low %v3499, %v3503
    %v7641 = vcombine.low %v3507, %v3511
    %v7642 = vcombine.low %v3515, %v3519
    %v7644 = vunpack.c.l.s4 1966171168
    %v7645 = vunpack.c.0.s8 %v7644
    %v7646 = vlaneseq
    %v7647 = vshrl.u32 %v7646, 7
    %v7648 = vsub.s32 %v7645, %v7647
    %v7649 = vrot.slane %v7639, %v7648
    %v7651 = vunpack.c.l.s4 1966171168
    %v7652 = vunpack.c.0.s8 %v7651
    %v7653 = vlaneseq
    %v7654 = vshrl.u32 %v7653, 7
    %v7655 = vsub.s32 %v7652, %v7654
    %v7656 = vrot.slane %v7640, %v7655
    %v7658 = vunpack.c.l.s4 1966171168
    %v7659 = vunpack.c.0.s8 %v7658
    %v7660 = vlaneseq
    %v7661 = vshrl.u32 %v7660, 7
    %v7662 = vsub.s32 %v7659, %v7661
    %v7663 = vrot.slane %v7641, %v7662
    %v7665 = vunpack.c.l.s4 1966171168
    %v7666 = vunpack.c.0.s8 %v7665
    %v7667 = vlaneseq
    %v7668 = vshrl.u32 %v7667, 7
    %v7669 = vsub.s32 %v7666, %v7668
    %v7670 = vrot.slane %v7642, %v7669
    %v7671 = vcombine.low %v7649, %v7656
    %v7672 = vcombine.low %v7663, %v7670
    %v7674 = vunpack.c.l.s4 1966171168
    %v7675 = vunpack.c.0.s8 %v7674
    %v7676 = vlaneseq
    %v7677 = vshrl.u32 %v7676, 7
    %v7678 = vsub.s32 %v7675, %v7677
    %v7679 = vrot.slane %v7671, %v7678
    %v7681 = vunpack.c.l.s4 1966171168
    %v7682 = vunpack.c.0.s8 %v7681
    %v7683 = vlaneseq
    %v7684 = vshrl.u32 %v7683, 7
    %v7685 = vsub.s32 %v7682, %v7684
    %v7686 = vrot.slane %v7672, %v7685
    %v7687 = vcombine.low %v7679, %v7686
    %v7688 = vcombine.low %v3523, %v3527
    %v7689 = vcombine.low %v3531, %v3535
    %v7690 = vcombine.low %v3539, %v3543
    %v7691 = vcombine.low %v3547, %v3551
    %v7693 = vunpack.c.l.s4 1966171168
    %v7694 = vunpack.c.0.s8 %v7693
    %v7695 = vlaneseq
    %v7696 = vshrl.u32 %v7695, 7
    %v7697 = vsub.s32 %v7694, %v7696
    %v7698 = vrot.slane %v7688, %v7697
    %v7700 = vunpack.c.l.s4 1966171168
    %v7701 = vunpack.c.0.s8 %v7700
    %v7702 = vlaneseq
    %v7703 = vshrl.u32 %v7702, 7
    %v7704 = vsub.s32 %v7701, %v7703
    %v7705 = vrot.slane %v7689, %v7704
    %v7707 = vunpack.c.l.s4 1966171168
    %v7708 = vunpack.c.0.s8 %v7707
    %v7709 = vlaneseq
    %v7710 = vshrl.u32 %v7709, 7
    %v7711 = vsub.s32 %v7708, %v7710
    %v7712 = vrot.slane %v7690, %v7711
    %v7714 = vunpack.c.l.s4 1966171168
    %v7715 = vunpack.c.0.s8 %v7714
    %v7716 = vlaneseq
    %v7717 = vshrl.u32 %v7716, 7
    %v7718 = vsub.s32 %v7715, %v7717
    %v7719 = vrot.slane %v7691, %v7718
    %v7720 = vcombine.low %v7698, %v7705
    %v7721 = vcombine.low %v7712, %v7719
    %v7723 = vunpack.c.l.s4 1966171168
    %v7724 = vunpack.c.0.s8 %v7723
    %v7725 = vlaneseq
    %v7726 = vshrl.u32 %v7725, 7
    %v7727 = vsub.s32 %v7724, %v7726
    %v7728 = vrot.slane %v7720, %v7727
    %v7730 = vunpack.c.l.s4 1966171168
    %v7731 = vunpack.c.0.s8 %v7730
    %v7732 = vlaneseq
    %v7733 = vshrl.u32 %v7732, 7
    %v7734 = vsub.s32 %v7731, %v7733
    %v7735 = vrot.slane %v7721, %v7734
    %v7736 = vcombine.low %v7728, %v7735
    %v7737 = vcombine.low %v3555, %v3559
    %v7738 = vcombine.low %v3563, %v3567
    %v7739 = vcombine.low %v3571, %v3575
    %v7740 = vcombine.low %v3579, %v3583
    %v7742 = vunpack.c.l.s4 1966171168
    %v7743 = vunpack.c.0.s8 %v7742
    %v7744 = vlaneseq
    %v7745 = vshrl.u32 %v7744, 7
    %v7746 = vsub.s32 %v7743, %v7745
    %v7747 = vrot.slane %v7737, %v7746
    %v7749 = vunpack.c.l.s4 1966171168
    %v7750 = vunpack.c.0.s8 %v7749
    %v7751 = vlaneseq
    %v7752 = vshrl.u32 %v7751, 7
    %v7753 = vsub.s32 %v7750, %v7752
    %v7754 = vrot.slane %v7738, %v7753
    %v7756 = vunpack.c.l.s4 1966171168
    %v7757 = vunpack.c.0.s8 %v7756
    %v7758 = vlaneseq
    %v7759 = vshrl.u32 %v7758, 7
    %v7760 = vsub.s32 %v7757, %v7759
    %v7761 = vrot.slane %v7739, %v7760
    %v7763 = vunpack.c.l.s4 1966171168
    %v7764 = vunpack.c.0.s8 %v7763
    %v7765 = vlaneseq
    %v7766 = vshrl.u32 %v7765, 7
    %v7767 = vsub.s32 %v7764, %v7766
    %v7768 = vrot.slane %v7740, %v7767
    %v7769 = vcombine.low %v7747, %v7754
    %v7770 = vcombine.low %v7761, %v7768
    %v7772 = vunpack.c.l.s4 1966171168
    %v7773 = vunpack.c.0.s8 %v7772
    %v7774 = vlaneseq
    %v7775 = vshrl.u32 %v7774, 7
    %v7776 = vsub.s32 %v7773, %v7775
    %v7777 = vrot.slane %v7769, %v7776
    %v7779 = vunpack.c.l.s4 1966171168
    %v7780 = vunpack.c.0.s8 %v7779
    %v7781 = vlaneseq
    %v7782 = vshrl.u32 %v7781, 7
    %v7783 = vsub.s32 %v7780, %v7782
    %v7784 = vrot.slane %v7770, %v7783
    %v7785 = vcombine.low %v7777, %v7784
    %v7786 = vcombine.low %v3587, %v3591
    %v7787 = vcombine.low %v3595, %v3599
    %v7788 = vcombine.low %v3603, %v3607
    %v7789 = vcombine.low %v3611, %v3615
    %v7791 = vunpack.c.l.s4 1966171168
    %v7792 = vunpack.c.0.s8 %v7791
    %v7793 = vlaneseq
    %v7794 = vshrl.u32 %v7793, 7
    %v7795 = vsub.s32 %v7792, %v7794
    %v7796 = vrot.slane %v7786, %v7795
    %v7798 = vunpack.c.l.s4 1966171168
    %v7799 = vunpack.c.0.s8 %v7798
    %v7800 = vlaneseq
    %v7801 = vshrl.u32 %v7800, 7
    %v7802 = vsub.s32 %v7799, %v7801
    %v7803 = vrot.slane %v7787, %v7802
    %v7805 = vunpack.c.l.s4 1966171168
    %v7806 = vunpack.c.0.s8 %v7805
    %v7807 = vlaneseq
    %v7808 = vshrl.u32 %v7807, 7
    %v7809 = vsub.s32 %v7806, %v7808
    %v7810 = vrot.slane %v7788, %v7809
    %v7812 = vunpack.c.l.s4 1966171168
    %v7813 = vunpack.c.0.s8 %v7812
    %v7814 = vlaneseq
    %v7815 = vshrl.u32 %v7814, 7
    %v7816 = vsub.s32 %v7813, %v7815
    %v7817 = vrot.slane %v7789, %v7816
    %v7818 = vcombine.low %v7796, %v7803
    %v7819 = vcombine.low %v7810, %v7817
    %v7821 = vunpack.c.l.s4 1966171168
    %v7822 = vunpack.c.0.s8 %v7821
    %v7823 = vlaneseq
    %v7824 = vshrl.u32 %v7823, 7
    %v7825 = vsub.s32 %v7822, %v7824
    %v7826 = vrot.slane %v7818, %v7825
    %v7828 = vunpack.c.l.s4 1966171168
    %v7829 = vunpack.c.0.s8 %v7828
    %v7830 = vlaneseq
    %v7831 = vshrl.u32 %v7830, 7
    %v7832 = vsub.s32 %v7829, %v7831
    %v7833 = vrot.slane %v7819, %v7832
    %v7834 = vcombine.low %v7826, %v7833
    %v7835 = vcombine.low %v3619, %v3623
    %v7836 = vcombine.low %v3627, %v3631
    %v7837 = vcombine.low %v3635, %v3639
    %v7838 = vcombine.low %v3643, %v3647
    %v7840 = vunpack.c.l.s4 1966171168
    %v7841 = vunpack.c.0.s8 %v7840
    %v7842 = vlaneseq
    %v7843 = vshrl.u32 %v7842, 7
    %v7844 = vsub.s32 %v7841, %v7843
    %v7845 = vrot.slane %v7835, %v7844
    %v7847 = vunpack.c.l.s4 1966171168
    %v7848 = vunpack.c.0.s8 %v7847
    %v7849 = vlaneseq
    %v7850 = vshrl.u32 %v7849, 7
    %v7851 = vsub.s32 %v7848, %v7850
    %v7852 = vrot.slane %v7836, %v7851
    %v7854 = vunpack.c.l.s4 1966171168
    %v7855 = vunpack.c.0.s8 %v7854
    %v7856 = vlaneseq
    %v7857 = vshrl.u32 %v7856, 7
    %v7858 = vsub.s32 %v7855, %v7857
    %v7859 = vrot.slane %v7837, %v7858
    %v7861 = vunpack.c.l.s4 1966171168
    %v7862 = vunpack.c.0.s8 %v7861
    %v7863 = vlaneseq
    %v7864 = vshrl.u32 %v7863, 7
    %v7865 = vsub.s32 %v7862, %v7864
    %v7866 = vrot.slane %v7838, %v7865
    %v7867 = vcombine.low %v7845, %v7852
    %v7868 = vcombine.low %v7859, %v7866
    %v7870 = vunpack.c.l.s4 1966171168
    %v7871 = vunpack.c.0.s8 %v7870
    %v7872 = vlaneseq
    %v7873 = vshrl.u32 %v7872, 7
    %v7874 = vsub.s32 %v7871, %v7873
    %v7875 = vrot.slane %v7867, %v7874
    %v7877 = vunpack.c.l.s4 1966171168
    %v7878 = vunpack.c.0.s8 %v7877
    %v7879 = vlaneseq
    %v7880 = vshrl.u32 %v7879, 7
    %v7881 = vsub.s32 %v7878, %v7880
    %v7882 = vrot.slane %v7868, %v7881
    %v7883 = vcombine.low %v7875, %v7882
    %v7884 = vcombine.low %v3651, %v3655
    %v7885 = vcombine.low %v3659, %v3663
    %v7886 = vcombine.low %v3667, %v3671
    %v7887 = vcombine.low %v3675, %v3679
    %v7889 = vunpack.c.l.s4 1966171168
    %v7890 = vunpack.c.0.s8 %v7889
    %v7891 = vlaneseq
    %v7892 = vshrl.u32 %v7891, 7
    %v7893 = vsub.s32 %v7890, %v7892
    %v7894 = vrot.slane %v7884, %v7893
    %v7896 = vunpack.c.l.s4 1966171168
    %v7897 = vunpack.c.0.s8 %v7896
    %v7898 = vlaneseq
    %v7899 = vshrl.u32 %v7898, 7
    %v7900 = vsub.s32 %v7897, %v7899
    %v7901 = vrot.slane %v7885, %v7900
    %v7903 = vunpack.c.l.s4 1966171168
    %v7904 = vunpack.c.0.s8 %v7903
    %v7905 = vlaneseq
    %v7906 = vshrl.u32 %v7905, 7
    %v7907 = vsub.s32 %v7904, %v7906
    %v7908 = vrot.slane %v7886, %v7907
    %v7910 = vunpack.c.l.s4 1966171168
    %v7911 = vunpack.c.0.s8 %v7910
    %v7912 = vlaneseq
    %v7913 = vshrl.u32 %v7912, 7
    %v7914 = vsub.s32 %v7911, %v7913
    %v7915 = vrot.slane %v7887, %v7914
    %v7916 = vcombine.low %v7894, %v7901
    %v7917 = vcombine.low %v7908, %v7915
    %v7919 = vunpack.c.l.s4 1966171168
    %v7920 = vunpack.c.0.s8 %v7919
    %v7921 = vlaneseq
    %v7922 = vshrl.u32 %v7921, 7
    %v7923 = vsub.s32 %v7920, %v7922
    %v7924 = vrot.slane %v7916, %v7923
    %v7926 = vunpack.c.l.s4 1966171168
    %v7927 = vunpack.c.0.s8 %v7926
    %v7928 = vlaneseq
    %v7929 = vshrl.u32 %v7928, 7
    %v7930 = vsub.s32 %v7927, %v7929
    %v7931 = vrot.slane %v7917, %v7930
    %v7932 = vcombine.low %v7924, %v7931
    %v7933 = vcombine.low %v3683, %v3687
    %v7934 = vcombine.low %v3691, %v3695
    %v7935 = vcombine.low %v3699, %v3703
    %v7936 = vcombine.low %v3707, %v3711
    %v7938 = vunpack.c.l.s4 1966171168
    %v7939 = vunpack.c.0.s8 %v7938
    %v7940 = vlaneseq
    %v7941 = vshrl.u32 %v7940, 7
    %v7942 = vsub.s32 %v7939, %v7941
    %v7943 = vrot.slane %v7933, %v7942
    %v7945 = vunpack.c.l.s4 1966171168
    %v7946 = vunpack.c.0.s8 %v7945
    %v7947 = vlaneseq
    %v7948 = vshrl.u32 %v7947, 7
    %v7949 = vsub.s32 %v7946, %v7948
    %v7950 = vrot.slane %v7934, %v7949
    %v7952 = vunpack.c.l.s4 1966171168
    %v7953 = vunpack.c.0.s8 %v7952
    %v7954 = vlaneseq
    %v7955 = vshrl.u32 %v7954, 7
    %v7956 = vsub.s32 %v7953, %v7955
    %v7957 = vrot.slane %v7935, %v7956
    %v7959 = vunpack.c.l.s4 1966171168
    %v7960 = vunpack.c.0.s8 %v7959
    %v7961 = vlaneseq
    %v7962 = vshrl.u32 %v7961, 7
    %v7963 = vsub.s32 %v7960, %v7962
    %v7964 = vrot.slane %v7936, %v7963
    %v7965 = vcombine.low %v7943, %v7950
    %v7966 = vcombine.low %v7957, %v7964
    %v7968 = vunpack.c.l.s4 1966171168
    %v7969 = vunpack.c.0.s8 %v7968
    %v7970 = vlaneseq
    %v7971 = vshrl.u32 %v7970, 7
    %v7972 = vsub.s32 %v7969, %v7971
    %v7973 = vrot.slane %v7965, %v7972
    %v7975 = vunpack.c.l.s4 1966171168
    %v7976 = vunpack.c.0.s8 %v7975
    %v7977 = vlaneseq
    %v7978 = vshrl.u32 %v7977, 7
    %v7979 = vsub.s32 %v7976, %v7978
    %v7980 = vrot.slane %v7966, %v7979
    %v7981 = vcombine.low %v7973, %v7980
    %v7982 = vcombine.low %v3715, %v3719
    %v7983 = vcombine.low %v3723, %v3727
    %v7984 = vcombine.low %v3731, %v3735
    %v7985 = vcombine.low %v3739, %v3743
    %v7987 = vunpack.c.l.s4 1966171168
    %v7988 = vunpack.c.0.s8 %v7987
    %v7989 = vlaneseq
    %v7990 = vshrl.u32 %v7989, 7
    %v7991 = vsub.s32 %v7988, %v7990
    %v7992 = vrot.slane %v7982, %v7991
    %v7994 = vunpack.c.l.s4 1966171168
    %v7995 = vunpack.c.0.s8 %v7994
    %v7996 = vlaneseq
    %v7997 = vshrl.u32 %v7996, 7
    %v7998 = vsub.s32 %v7995, %v7997
    %v7999 = vrot.slane %v7983, %v7998
    %v8001 = vunpack.c.l.s4 1966171168
    %v8002 = vunpack.c.0.s8 %v8001
    %v8003 = vlaneseq
    %v8004 = vshrl.u32 %v8003, 7
    %v8005 = vsub.s32 %v8002, %v8004
    %v8006 = vrot.slane %v7984, %v8005
    %v8008 = vunpack.c.l.s4 1966171168
    %v8009 = vunpack.c.0.s8 %v8008
    %v8010 = vlaneseq
    %v8011 = vshrl.u32 %v8010, 7
    %v8012 = vsub.s32 %v8009, %v8011
    %v8013 = vrot.slane %v7985, %v8012
    %v8014 = vcombine.low %v7992, %v7999
    %v8015 = vcombine.low %v8006, %v8013
    %v8017 = vunpack.c.l.s4 1966171168
    %v8018 = vunpack.c.0.s8 %v8017
    %v8019 = vlaneseq
    %v8020 = vshrl.u32 %v8019, 7
    %v8021 = vsub.s32 %v8018, %v8020
    %v8022 = vrot.slane %v8014, %v8021
    %v8024 = vunpack.c.l.s4 1966171168
    %v8025 = vunpack.c.0.s8 %v8024
    %v8026 = vlaneseq
    %v8027 = vshrl.u32 %v8026, 7
    %v8028 = vsub.s32 %v8025, %v8027
    %v8029 = vrot.slane %v8015, %v8028
    %v8030 = vcombine.low %v8022, %v8029
    %v8031 = vcombine.low %v3747, %v3751
    %v8032 = vcombine.low %v3755, %v3759
    %v8033 = vcombine.low %v3763, %v3767
    %v8034 = vcombine.low %v3771, %v3775
    %v8036 = vunpack.c.l.s4 1966171168
    %v8037 = vunpack.c.0.s8 %v8036
    %v8038 = vlaneseq
    %v8039 = vshrl.u32 %v8038, 7
    %v8040 = vsub.s32 %v8037, %v8039
    %v8041 = vrot.slane %v8031, %v8040
    %v8043 = vunpack.c.l.s4 1966171168
    %v8044 = vunpack.c.0.s8 %v8043
    %v8045 = vlaneseq
    %v8046 = vshrl.u32 %v8045, 7
    %v8047 = vsub.s32 %v8044, %v8046
    %v8048 = vrot.slane %v8032, %v8047
    %v8050 = vunpack.c.l.s4 1966171168
    %v8051 = vunpack.c.0.s8 %v8050
    %v8052 = vlaneseq
    %v8053 = vshrl.u32 %v8052, 7
    %v8054 = vsub.s32 %v8051, %v8053
    %v8055 = vrot.slane %v8033, %v8054
    %v8057 = vunpack.c.l.s4 1966171168
    %v8058 = vunpack.c.0.s8 %v8057
    %v8059 = vlaneseq
    %v8060 = vshrl.u32 %v8059, 7
    %v8061 = vsub.s32 %v8058, %v8060
    %v8062 = vrot.slane %v8034, %v8061
    %v8063 = vcombine.low %v8041, %v8048
    %v8064 = vcombine.low %v8055, %v8062
    %v8066 = vunpack.c.l.s4 1966171168
    %v8067 = vunpack.c.0.s8 %v8066
    %v8068 = vlaneseq
    %v8069 = vshrl.u32 %v8068, 7
    %v8070 = vsub.s32 %v8067, %v8069
    %v8071 = vrot.slane %v8063, %v8070
    %v8073 = vunpack.c.l.s4 1966171168
    %v8074 = vunpack.c.0.s8 %v8073
    %v8075 = vlaneseq
    %v8076 = vshrl.u32 %v8075, 7
    %v8077 = vsub.s32 %v8074, %v8076
    %v8078 = vrot.slane %v8064, %v8077
    %v8079 = vcombine.low %v8071, %v8078
    %v8080 = vcombine.low %v3779, %v3783
    %v8081 = vcombine.low %v3787, %v3791
    %v8082 = vcombine.low %v3795, %v3799
    %v8083 = vcombine.low %v3803, %v3807
    %v8085 = vunpack.c.l.s4 1966171168
    %v8086 = vunpack.c.0.s8 %v8085
    %v8087 = vlaneseq
    %v8088 = vshrl.u32 %v8087, 7
    %v8089 = vsub.s32 %v8086, %v8088
    %v8090 = vrot.slane %v8080, %v8089
    %v8092 = vunpack.c.l.s4 1966171168
    %v8093 = vunpack.c.0.s8 %v8092
    %v8094 = vlaneseq
    %v8095 = vshrl.u32 %v8094, 7
    %v8096 = vsub.s32 %v8093, %v8095
    %v8097 = vrot.slane %v8081, %v8096
    %v8099 = vunpack.c.l.s4 1966171168
    %v8100 = vunpack.c.0.s8 %v8099
    %v8101 = vlaneseq
    %v8102 = vshrl.u32 %v8101, 7
    %v8103 = vsub.s32 %v8100, %v8102
    %v8104 = vrot.slane %v8082, %v8103
    %v8106 = vunpack.c.l.s4 1966171168
    %v8107 = vunpack.c.0.s8 %v8106
    %v8108 = vlaneseq
    %v8109 = vshrl.u32 %v8108, 7
    %v8110 = vsub.s32 %v8107, %v8109
    %v8111 = vrot.slane %v8083, %v8110
    %v8112 = vcombine.low %v8090, %v8097
    %v8113 = vcombine.low %v8104, %v8111
    %v8115 = vunpack.c.l.s4 1966171168
    %v8116 = vunpack.c.0.s8 %v8115
    %v8117 = vlaneseq
    %v8118 = vshrl.u32 %v8117, 7
    %v8119 = vsub.s32 %v8116, %v8118
    %v8120 = vrot.slane %v8112, %v8119
    %v8122 = vunpack.c.l.s4 1966171168
    %v8123 = vunpack.c.0.s8 %v8122
    %v8124 = vlaneseq
    %v8125 = vshrl.u32 %v8124, 7
    %v8126 = vsub.s32 %v8123, %v8125
    %v8127 = vrot.slane %v8113, %v8126
    %v8128 = vcombine.low %v8120, %v8127
    %v8129 = vcombine.low %v3811, %v3815
    %v8130 = vcombine.low %v3819, %v3823
    %v8131 = vcombine.low %v3827, %v3831
    %v8132 = vcombine.low %v3835, %v3839
    %v8134 = vunpack.c.l.s4 1966171168
    %v8135 = vunpack.c.0.s8 %v8134
    %v8136 = vlaneseq
    %v8137 = vshrl.u32 %v8136, 7
    %v8138 = vsub.s32 %v8135, %v8137
    %v8139 = vrot.slane %v8129, %v8138
    %v8141 = vunpack.c.l.s4 1966171168
    %v8142 = vunpack.c.0.s8 %v8141
    %v8143 = vlaneseq
    %v8144 = vshrl.u32 %v8143, 7
    %v8145 = vsub.s32 %v8142, %v8144
    %v8146 = vrot.slane %v8130, %v8145
    %v8148 = vunpack.c.l.s4 1966171168
    %v8149 = vunpack.c.0.s8 %v8148
    %v8150 = vlaneseq
    %v8151 = vshrl.u32 %v8150, 7
    %v8152 = vsub.s32 %v8149, %v8151
    %v8153 = vrot.slane %v8131, %v8152
    %v8155 = vunpack.c.l.s4 1966171168
    %v8156 = vunpack.c.0.s8 %v8155
    %v8157 = vlaneseq
    %v8158 = vshrl.u32 %v8157, 7
    %v8159 = vsub.s32 %v8156, %v8158
    %v8160 = vrot.slane %v8132, %v8159
    %v8161 = vcombine.low %v8139, %v8146
    %v8162 = vcombine.low %v8153, %v8160
    %v8164 = vunpack.c.l.s4 1966171168
    %v8165 = vunpack.c.0.s8 %v8164
    %v8166 = vlaneseq
    %v8167 = vshrl.u32 %v8166, 7
    %v8168 = vsub.s32 %v8165, %v8167
    %v8169 = vrot.slane %v8161, %v8168
    %v8171 = vunpack.c.l.s4 1966171168
    %v8172 = vunpack.c.0.s8 %v8171
    %v8173 = vlaneseq
    %v8174 = vshrl.u32 %v8173, 7
    %v8175 = vsub.s32 %v8172, %v8174
    %v8176 = vrot.slane %v8162, %v8175
    %v8177 = vcombine.low %v8169, %v8176
    %v8178 = vcombine.low %v3843, %v3847
    %v8179 = vcombine.low %v3851, %v3855
    %v8180 = vcombine.low %v3859, %v3863
    %v8181 = vcombine.low %v3867, %v3871
    %v8183 = vunpack.c.l.s4 1966171168
    %v8184 = vunpack.c.0.s8 %v8183
    %v8185 = vlaneseq
    %v8186 = vshrl.u32 %v8185, 7
    %v8187 = vsub.s32 %v8184, %v8186
    %v8188 = vrot.slane %v8178, %v8187
    %v8190 = vunpack.c.l.s4 1966171168
    %v8191 = vunpack.c.0.s8 %v8190
    %v8192 = vlaneseq
    %v8193 = vshrl.u32 %v8192, 7
    %v8194 = vsub.s32 %v8191, %v8193
    %v8195 = vrot.slane %v8179, %v8194
    %v8197 = vunpack.c.l.s4 1966171168
    %v8198 = vunpack.c.0.s8 %v8197
    %v8199 = vlaneseq
    %v8200 = vshrl.u32 %v8199, 7
    %v8201 = vsub.s32 %v8198, %v8200
    %v8202 = vrot.slane %v8180, %v8201
    %v8204 = vunpack.c.l.s4 1966171168
    %v8205 = vunpack.c.0.s8 %v8204
    %v8206 = vlaneseq
    %v8207 = vshrl.u32 %v8206, 7
    %v8208 = vsub.s32 %v8205, %v8207
    %v8209 = vrot.slane %v8181, %v8208
    %v8210 = vcombine.low %v8188, %v8195
    %v8211 = vcombine.low %v8202, %v8209
    %v8213 = vunpack.c.l.s4 1966171168
    %v8214 = vunpack.c.0.s8 %v8213
    %v8215 = vlaneseq
    %v8216 = vshrl.u32 %v8215, 7
    %v8217 = vsub.s32 %v8214, %v8216
    %v8218 = vrot.slane %v8210, %v8217
    %v8220 = vunpack.c.l.s4 1966171168
    %v8221 = vunpack.c.0.s8 %v8220
    %v8222 = vlaneseq
    %v8223 = vshrl.u32 %v8222, 7
    %v8224 = vsub.s32 %v8221, %v8223
    %v8225 = vrot.slane %v8211, %v8224
    %v8226 = vcombine.low %v8218, %v8225
    %v8227 = vcombine.low %v3875, %v3879
    %v8228 = vcombine.low %v3883, %v3887
    %v8229 = vcombine.low %v3891, %v3895
    %v8230 = vcombine.low %v3899, %v3903
    %v8232 = vunpack.c.l.s4 1966171168
    %v8233 = vunpack.c.0.s8 %v8232
    %v8234 = vlaneseq
    %v8235 = vshrl.u32 %v8234, 7
    %v8236 = vsub.s32 %v8233, %v8235
    %v8237 = vrot.slane %v8227, %v8236
    %v8239 = vunpack.c.l.s4 1966171168
    %v8240 = vunpack.c.0.s8 %v8239
    %v8241 = vlaneseq
    %v8242 = vshrl.u32 %v8241, 7
    %v8243 = vsub.s32 %v8240, %v8242
    %v8244 = vrot.slane %v8228, %v8243
    %v8246 = vunpack.c.l.s4 1966171168
    %v8247 = vunpack.c.0.s8 %v8246
    %v8248 = vlaneseq
    %v8249 = vshrl.u32 %v8248, 7
    %v8250 = vsub.s32 %v8247, %v8249
    %v8251 = vrot.slane %v8229, %v8250
    %v8253 = vunpack.c.l.s4 1966171168
    %v8254 = vunpack.c.0.s8 %v8253
    %v8255 = vlaneseq
    %v8256 = vshrl.u32 %v8255, 7
    %v8257 = vsub.s32 %v8254, %v8256
    %v8258 = vrot.slane %v8230, %v8257
    %v8259 = vcombine.low %v8237, %v8244
    %v8260 = vcombine.low %v8251, %v8258
    %v8262 = vunpack.c.l.s4 1966171168
    %v8263 = vunpack.c.0.s8 %v8262
    %v8264 = vlaneseq
    %v8265 = vshrl.u32 %v8264, 7
    %v8266 = vsub.s32 %v8263, %v8265
    %v8267 = vrot.slane %v8259, %v8266
    %v8269 = vunpack.c.l.s4 1966171168
    %v8270 = vunpack.c.0.s8 %v8269
    %v8271 = vlaneseq
    %v8272 = vshrl.u32 %v8271, 7
    %v8273 = vsub.s32 %v8270, %v8272
    %v8274 = vrot.slane %v8260, %v8273
    %v8275 = vcombine.low %v8267, %v8274
    %v8276 = vcombine.low %v3907, %v3911
    %v8277 = vcombine.low %v3915, %v3919
    %v8278 = vcombine.low %v3923, %v3927
    %v8279 = vcombine.low %v3931, %v3935
    %v8281 = vunpack.c.l.s4 1966171168
    %v8282 = vunpack.c.0.s8 %v8281
    %v8283 = vlaneseq
    %v8284 = vshrl.u32 %v8283, 7
    %v8285 = vsub.s32 %v8282, %v8284
    %v8286 = vrot.slane %v8276, %v8285
    %v8288 = vunpack.c.l.s4 1966171168
    %v8289 = vunpack.c.0.s8 %v8288
    %v8290 = vlaneseq
    %v8291 = vshrl.u32 %v8290, 7
    %v8292 = vsub.s32 %v8289, %v8291
    %v8293 = vrot.slane %v8277, %v8292
    %v8295 = vunpack.c.l.s4 1966171168
    %v8296 = vunpack.c.0.s8 %v8295
    %v8297 = vlaneseq
    %v8298 = vshrl.u32 %v8297, 7
    %v8299 = vsub.s32 %v8296, %v8298
    %v8300 = vrot.slane %v8278, %v8299
    %v8302 = vunpack.c.l.s4 1966171168
    %v8303 = vunpack.c.0.s8 %v8302
    %v8304 = vlaneseq
    %v8305 = vshrl.u32 %v8304, 7
    %v8306 = vsub.s32 %v8303, %v8305
    %v8307 = vrot.slane %v8279, %v8306
    %v8308 = vcombine.low %v8286, %v8293
    %v8309 = vcombine.low %v8300, %v8307
    %v8311 = vunpack.c.l.s4 1966171168
    %v8312 = vunpack.c.0.s8 %v8311
    %v8313 = vlaneseq
    %v8314 = vshrl.u32 %v8313, 7
    %v8315 = vsub.s32 %v8312, %v8314
    %v8316 = vrot.slane %v8308, %v8315
    %v8318 = vunpack.c.l.s4 1966171168
    %v8319 = vunpack.c.0.s8 %v8318
    %v8320 = vlaneseq
    %v8321 = vshrl.u32 %v8320, 7
    %v8322 = vsub.s32 %v8319, %v8321
    %v8323 = vrot.slane %v8309, %v8322
    %v8324 = vcombine.low %v8316, %v8323
    %v8325 = vcombine.low %v3939, %v3943
    %v8326 = vcombine.low %v3947, %v3951
    %v8327 = vcombine.low %v3955, %v3959
    %v8328 = vcombine.low %v3963, %v3967
    %v8330 = vunpack.c.l.s4 1966171168
    %v8331 = vunpack.c.0.s8 %v8330
    %v8332 = vlaneseq
    %v8333 = vshrl.u32 %v8332, 7
    %v8334 = vsub.s32 %v8331, %v8333
    %v8335 = vrot.slane %v8325, %v8334
    %v8337 = vunpack.c.l.s4 1966171168
    %v8338 = vunpack.c.0.s8 %v8337
    %v8339 = vlaneseq
    %v8340 = vshrl.u32 %v8339, 7
    %v8341 = vsub.s32 %v8338, %v8340
    %v8342 = vrot.slane %v8326, %v8341
    %v8344 = vunpack.c.l.s4 1966171168
    %v8345 = vunpack.c.0.s8 %v8344
    %v8346 = vlaneseq
    %v8347 = vshrl.u32 %v8346, 7
    %v8348 = vsub.s32 %v8345, %v8347
    %v8349 = vrot.slane %v8327, %v8348
    %v8351 = vunpack.c.l.s4 1966171168
    %v8352 = vunpack.c.0.s8 %v8351
    %v8353 = vlaneseq
    %v8354 = vshrl.u32 %v8353, 7
    %v8355 = vsub.s32 %v8352, %v8354
    %v8356 = vrot.slane %v8328, %v8355
    %v8357 = vcombine.low %v8335, %v8342
    %v8358 = vcombine.low %v8349, %v8356
    %v8360 = vunpack.c.l.s4 1966171168
    %v8361 = vunpack.c.0.s8 %v8360
    %v8362 = vlaneseq
    %v8363 = vshrl.u32 %v8362, 7
    %v8364 = vsub.s32 %v8361, %v8363
    %v8365 = vrot.slane %v8357, %v8364
    %v8367 = vunpack.c.l.s4 1966171168
    %v8368 = vunpack.c.0.s8 %v8367
    %v8369 = vlaneseq
    %v8370 = vshrl.u32 %v8369, 7
    %v8371 = vsub.s32 %v8368, %v8370
    %v8372 = vrot.slane %v8358, %v8371
    %v8373 = vcombine.low %v8365, %v8372
    %v8374 = vcombine.low %v3971, %v3975
    %v8375 = vcombine.low %v3979, %v3983
    %v8376 = vcombine.low %v3987, %v3991
    %v8377 = vcombine.low %v3995, %v3999
    %v8379 = vunpack.c.l.s4 1966171168
    %v8380 = vunpack.c.0.s8 %v8379
    %v8381 = vlaneseq
    %v8382 = vshrl.u32 %v8381, 7
    %v8383 = vsub.s32 %v8380, %v8382
    %v8384 = vrot.slane %v8374, %v8383
    %v8386 = vunpack.c.l.s4 1966171168
    %v8387 = vunpack.c.0.s8 %v8386
    %v8388 = vlaneseq
    %v8389 = vshrl.u32 %v8388, 7
    %v8390 = vsub.s32 %v8387, %v8389
    %v8391 = vrot.slane %v8375, %v8390
    %v8393 = vunpack.c.l.s4 1966171168
    %v8394 = vunpack.c.0.s8 %v8393
    %v8395 = vlaneseq
    %v8396 = vshrl.u32 %v8395, 7
    %v8397 = vsub.s32 %v8394, %v8396
    %v8398 = vrot.slane %v8376, %v8397
    %v8400 = vunpack.c.l.s4 1966171168
    %v8401 = vunpack.c.0.s8 %v8400
    %v8402 = vlaneseq
    %v8403 = vshrl.u32 %v8402, 7
    %v8404 = vsub.s32 %v8401, %v8403
    %v8405 = vrot.slane %v8377, %v8404
    %v8406 = vcombine.low %v8384, %v8391
    %v8407 = vcombine.low %v8398, %v8405
    %v8409 = vunpack.c.l.s4 1966171168
    %v8410 = vunpack.c.0.s8 %v8409
    %v8411 = vlaneseq
    %v8412 = vshrl.u32 %v8411, 7
    %v8413 = vsub.s32 %v8410, %v8412
    %v8414 = vrot.slane %v8406, %v8413
    %v8416 = vunpack.c.l.s4 1966171168
    %v8417 = vunpack.c.0.s8 %v8416
    %v8418 = vlaneseq
    %v8419 = vshrl.u32 %v8418, 7
    %v8420 = vsub.s32 %v8417, %v8419
    %v8421 = vrot.slane %v8407, %v8420
    %v8422 = vcombine.low %v8414, %v8421
    %v8423 = vcombine.low %v4003, %v4007
    %v8424 = vcombine.low %v4011, %v4015
    %v8425 = vcombine.low %v4019, %v4023
    %v8426 = vcombine.low %v4027, %v4031
    %v8428 = vunpack.c.l.s4 1966171168
    %v8429 = vunpack.c.0.s8 %v8428
    %v8430 = vlaneseq
    %v8431 = vshrl.u32 %v8430, 7
    %v8432 = vsub.s32 %v8429, %v8431
    %v8433 = vrot.slane %v8423, %v8432
    %v8435 = vunpack.c.l.s4 1966171168
    %v8436 = vunpack.c.0.s8 %v8435
    %v8437 = vlaneseq
    %v8438 = vshrl.u32 %v8437, 7
    %v8439 = vsub.s32 %v8436, %v8438
    %v8440 = vrot.slane %v8424, %v8439
    %v8442 = vunpack.c.l.s4 1966171168
    %v8443 = vunpack.c.0.s8 %v8442
    %v8444 = vlaneseq
    %v8445 = vshrl.u32 %v8444, 7
    %v8446 = vsub.s32 %v8443, %v8445
    %v8447 = vrot.slane %v8425, %v8446
    %v8449 = vunpack.c.l.s4 1966171168
    %v8450 = vunpack.c.0.s8 %v8449
    %v8451 = vlaneseq
    %v8452 = vshrl.u32 %v8451, 7
    %v8453 = vsub.s32 %v8450, %v8452
    %v8454 = vrot.slane %v8426, %v8453
    %v8455 = vcombine.low %v8433, %v8440
    %v8456 = vcombine.low %v8447, %v8454
    %v8458 = vunpack.c.l.s4 1966171168
    %v8459 = vunpack.c.0.s8 %v8458
    %v8460 = vlaneseq
    %v8461 = vshrl.u32 %v8460, 7
    %v8462 = vsub.s32 %v8459, %v8461
    %v8463 = vrot.slane %v8455, %v8462
    %v8465 = vunpack.c.l.s4 1966171168
    %v8466 = vunpack.c.0.s8 %v8465
    %v8467 = vlaneseq
    %v8468 = vshrl.u32 %v8467, 7
    %v8469 = vsub.s32 %v8466, %v8468
    %v8470 = vrot.slane %v8456, %v8469
    %v8471 = vcombine.low %v8463, %v8470
    %v8472 = vcombine.low %v4035, %v4039
    %v8473 = vcombine.low %v4043, %v4047
    %v8474 = vcombine.low %v4051, %v4055
    %v8475 = vcombine.low %v4059, %v4063
    %v8477 = vunpack.c.l.s4 1966171168
    %v8478 = vunpack.c.0.s8 %v8477
    %v8479 = vlaneseq
    %v8480 = vshrl.u32 %v8479, 7
    %v8481 = vsub.s32 %v8478, %v8480
    %v8482 = vrot.slane %v8472, %v8481
    %v8484 = vunpack.c.l.s4 1966171168
    %v8485 = vunpack.c.0.s8 %v8484
    %v8486 = vlaneseq
    %v8487 = vshrl.u32 %v8486, 7
    %v8488 = vsub.s32 %v8485, %v8487
    %v8489 = vrot.slane %v8473, %v8488
    %v8491 = vunpack.c.l.s4 1966171168
    %v8492 = vunpack.c.0.s8 %v8491
    %v8493 = vlaneseq
    %v8494 = vshrl.u32 %v8493, 7
    %v8495 = vsub.s32 %v8492, %v8494
    %v8496 = vrot.slane %v8474, %v8495
    %v8498 = vunpack.c.l.s4 1966171168
    %v8499 = vunpack.c.0.s8 %v8498
    %v8500 = vlaneseq
    %v8501 = vshrl.u32 %v8500, 7
    %v8502 = vsub.s32 %v8499, %v8501
    %v8503 = vrot.slane %v8475, %v8502
    %v8504 = vcombine.low %v8482, %v8489
    %v8505 = vcombine.low %v8496, %v8503
    %v8507 = vunpack.c.l.s4 1966171168
    %v8508 = vunpack.c.0.s8 %v8507
    %v8509 = vlaneseq
    %v8510 = vshrl.u32 %v8509, 7
    %v8511 = vsub.s32 %v8508, %v8510
    %v8512 = vrot.slane %v8504, %v8511
    %v8514 = vunpack.c.l.s4 1966171168
    %v8515 = vunpack.c.0.s8 %v8514
    %v8516 = vlaneseq
    %v8517 = vshrl.u32 %v8516, 7
    %v8518 = vsub.s32 %v8515, %v8517
    %v8519 = vrot.slane %v8505, %v8518
    %v8520 = vcombine.low %v8512, %v8519
    %v8521 = vcombine.low %v4067, %v4071
    %v8522 = vcombine.low %v4075, %v4079
    %v8523 = vcombine.low %v4083, %v4087
    %v8524 = vcombine.low %v4091, %v4095
    %v8526 = vunpack.c.l.s4 1966171168
    %v8527 = vunpack.c.0.s8 %v8526
    %v8528 = vlaneseq
    %v8529 = vshrl.u32 %v8528, 7
    %v8530 = vsub.s32 %v8527, %v8529
    %v8531 = vrot.slane %v8521, %v8530
    %v8533 = vunpack.c.l.s4 1966171168
    %v8534 = vunpack.c.0.s8 %v8533
    %v8535 = vlaneseq
    %v8536 = vshrl.u32 %v8535, 7
    %v8537 = vsub.s32 %v8534, %v8536
    %v8538 = vrot.slane %v8522, %v8537
    %v8540 = vunpack.c.l.s4 1966171168
    %v8541 = vunpack.c.0.s8 %v8540
    %v8542 = vlaneseq
    %v8543 = vshrl.u32 %v8542, 7
    %v8544 = vsub.s32 %v8541, %v8543
    %v8545 = vrot.slane %v8523, %v8544
    %v8547 = vunpack.c.l.s4 1966171168
    %v8548 = vunpack.c.0.s8 %v8547
    %v8549 = vlaneseq
    %v8550 = vshrl.u32 %v8549, 7
    %v8551 = vsub.s32 %v8548, %v8550
    %v8552 = vrot.slane %v8524, %v8551
    %v8553 = vcombine.low %v8531, %v8538
    %v8554 = vcombine.low %v8545, %v8552
    %v8556 = vunpack.c.l.s4 1966171168
    %v8557 = vunpack.c.0.s8 %v8556
    %v8558 = vlaneseq
    %v8559 = vshrl.u32 %v8558, 7
    %v8560 = vsub.s32 %v8557, %v8559
    %v8561 = vrot.slane %v8553, %v8560
    %v8563 = vunpack.c.l.s4 1966171168
    %v8564 = vunpack.c.0.s8 %v8563
    %v8565 = vlaneseq
    %v8566 = vshrl.u32 %v8565, 7
    %v8567 = vsub.s32 %v8564, %v8566
    %v8568 = vrot.slane %v8554, %v8567
    %v8569 = vcombine.low %v8561, %v8568
    %v8570 = vcombine.low %v4099, %v4103
    %v8571 = vcombine.low %v4107, %v4111
    %v8572 = vcombine.low %v4115, %v4119
    %v8573 = vcombine.low %v4123, %v4127
    %v8575 = vunpack.c.l.s4 1966171168
    %v8576 = vunpack.c.0.s8 %v8575
    %v8577 = vlaneseq
    %v8578 = vshrl.u32 %v8577, 7
    %v8579 = vsub.s32 %v8576, %v8578
    %v8580 = vrot.slane %v8570, %v8579
    %v8582 = vunpack.c.l.s4 1966171168
    %v8583 = vunpack.c.0.s8 %v8582
    %v8584 = vlaneseq
    %v8585 = vshrl.u32 %v8584, 7
    %v8586 = vsub.s32 %v8583, %v8585
    %v8587 = vrot.slane %v8571, %v8586
    %v8589 = vunpack.c.l.s4 1966171168
    %v8590 = vunpack.c.0.s8 %v8589
    %v8591 = vlaneseq
    %v8592 = vshrl.u32 %v8591, 7
    %v8593 = vsub.s32 %v8590, %v8592
    %v8594 = vrot.slane %v8572, %v8593
    %v8596 = vunpack.c.l.s4 1966171168
    %v8597 = vunpack.c.0.s8 %v8596
    %v8598 = vlaneseq
    %v8599 = vshrl.u32 %v8598, 7
    %v8600 = vsub.s32 %v8597, %v8599
    %v8601 = vrot.slane %v8573, %v8600
    %v8602 = vcombine.low %v8580, %v8587
    %v8603 = vcombine.low %v8594, %v8601
    %v8605 = vunpack.c.l.s4 1966171168
    %v8606 = vunpack.c.0.s8 %v8605
    %v8607 = vlaneseq
    %v8608 = vshrl.u32 %v8607, 7
    %v8609 = vsub.s32 %v8606, %v8608
    %v8610 = vrot.slane %v8602, %v8609
    %v8612 = vunpack.c.l.s4 1966171168
    %v8613 = vunpack.c.0.s8 %v8612
    %v8614 = vlaneseq
    %v8615 = vshrl.u32 %v8614, 7
    %v8616 = vsub.s32 %v8613, %v8615
    %v8617 = vrot.slane %v8603, %v8616
    %v8618 = vcombine.low %v8610, %v8617
    %v8619 = vcombine.low %v4131, %v4135
    %v8620 = vcombine.low %v4139, %v4143
    %v8621 = vcombine.low %v4147, %v4151
    %v8622 = vcombine.low %v4155, %v4159
    %v8624 = vunpack.c.l.s4 1966171168
    %v8625 = vunpack.c.0.s8 %v8624
    %v8626 = vlaneseq
    %v8627 = vshrl.u32 %v8626, 7
    %v8628 = vsub.s32 %v8625, %v8627
    %v8629 = vrot.slane %v8619, %v8628
    %v8631 = vunpack.c.l.s4 1966171168
    %v8632 = vunpack.c.0.s8 %v8631
    %v8633 = vlaneseq
    %v8634 = vshrl.u32 %v8633, 7
    %v8635 = vsub.s32 %v8632, %v8634
    %v8636 = vrot.slane %v8620, %v8635
    %v8638 = vunpack.c.l.s4 1966171168
    %v8639 = vunpack.c.0.s8 %v8638
    %v8640 = vlaneseq
    %v8641 = vshrl.u32 %v8640, 7
    %v8642 = vsub.s32 %v8639, %v8641
    %v8643 = vrot.slane %v8621, %v8642
    %v8645 = vunpack.c.l.s4 1966171168
    %v8646 = vunpack.c.0.s8 %v8645
    %v8647 = vlaneseq
    %v8648 = vshrl.u32 %v8647, 7
    %v8649 = vsub.s32 %v8646, %v8648
    %v8650 = vrot.slane %v8622, %v8649
    %v8651 = vcombine.low %v8629, %v8636
    %v8652 = vcombine.low %v8643, %v8650
    %v8654 = vunpack.c.l.s4 1966171168
    %v8655 = vunpack.c.0.s8 %v8654
    %v8656 = vlaneseq
    %v8657 = vshrl.u32 %v8656, 7
    %v8658 = vsub.s32 %v8655, %v8657
    %v8659 = vrot.slane %v8651, %v8658
    %v8661 = vunpack.c.l.s4 1966171168
    %v8662 = vunpack.c.0.s8 %v8661
    %v8663 = vlaneseq
    %v8664 = vshrl.u32 %v8663, 7
    %v8665 = vsub.s32 %v8662, %v8664
    %v8666 = vrot.slane %v8652, %v8665
    %v8667 = vcombine.low %v8659, %v8666
    %v8668 = vcombine.low %v4163, %v4167
    %v8669 = vcombine.low %v4171, %v4175
    %v8670 = vcombine.low %v4179, %v4183
    %v8671 = vcombine.low %v4187, %v4191
    %v8673 = vunpack.c.l.s4 1966171168
    %v8674 = vunpack.c.0.s8 %v8673
    %v8675 = vlaneseq
    %v8676 = vshrl.u32 %v8675, 7
    %v8677 = vsub.s32 %v8674, %v8676
    %v8678 = vrot.slane %v8668, %v8677
    %v8680 = vunpack.c.l.s4 1966171168
    %v8681 = vunpack.c.0.s8 %v8680
    %v8682 = vlaneseq
    %v8683 = vshrl.u32 %v8682, 7
    %v8684 = vsub.s32 %v8681, %v8683
    %v8685 = vrot.slane %v8669, %v8684
    %v8687 = vunpack.c.l.s4 1966171168
    %v8688 = vunpack.c.0.s8 %v8687
    %v8689 = vlaneseq
    %v8690 = vshrl.u32 %v8689, 7
    %v8691 = vsub.s32 %v8688, %v8690
    %v8692 = vrot.slane %v8670, %v8691
    %v8694 = vunpack.c.l.s4 1966171168
    %v8695 = vunpack.c.0.s8 %v8694
    %v8696 = vlaneseq
    %v8697 = vshrl.u32 %v8696, 7
    %v8698 = vsub.s32 %v8695, %v8697
    %v8699 = vrot.slane %v8671, %v8698
    %v8700 = vcombine.low %v8678, %v8685
    %v8701 = vcombine.low %v8692, %v8699
    %v8703 = vunpack.c.l.s4 1966171168
    %v8704 = vunpack.c.0.s8 %v8703
    %v8705 = vlaneseq
    %v8706 = vshrl.u32 %v8705, 7
    %v8707 = vsub.s32 %v8704, %v8706
    %v8708 = vrot.slane %v8700, %v8707
    %v8710 = vunpack.c.l.s4 1966171168
    %v8711 = vunpack.c.0.s8 %v8710
    %v8712 = vlaneseq
    %v8713 = vshrl.u32 %v8712, 7
    %v8714 = vsub.s32 %v8711, %v8713
    %v8715 = vrot.slane %v8701, %v8714
    %v8716 = vcombine.low %v8708, %v8715
    %v8717 = vcombine.low %v4195, %v4199
    %v8718 = vcombine.low %v4203, %v4207
    %v8719 = vcombine.low %v4211, %v4215
    %v8720 = vcombine.low %v4219, %v4223
    %v8722 = vunpack.c.l.s4 1966171168
    %v8723 = vunpack.c.0.s8 %v8722
    %v8724 = vlaneseq
    %v8725 = vshrl.u32 %v8724, 7
    %v8726 = vsub.s32 %v8723, %v8725
    %v8727 = vrot.slane %v8717, %v8726
    %v8729 = vunpack.c.l.s4 1966171168
    %v8730 = vunpack.c.0.s8 %v8729
    %v8731 = vlaneseq
    %v8732 = vshrl.u32 %v8731, 7
    %v8733 = vsub.s32 %v8730, %v8732
    %v8734 = vrot.slane %v8718, %v8733
    %v8736 = vunpack.c.l.s4 1966171168
    %v8737 = vunpack.c.0.s8 %v8736
    %v8738 = vlaneseq
    %v8739 = vshrl.u32 %v8738, 7
    %v8740 = vsub.s32 %v8737, %v8739
    %v8741 = vrot.slane %v8719, %v8740
    %v8743 = vunpack.c.l.s4 1966171168
    %v8744 = vunpack.c.0.s8 %v8743
    %v8745 = vlaneseq
    %v8746 = vshrl.u32 %v8745, 7
    %v8747 = vsub.s32 %v8744, %v8746
    %v8748 = vrot.slane %v8720, %v8747
    %v8749 = vcombine.low %v8727, %v8734
    %v8750 = vcombine.low %v8741, %v8748
    %v8752 = vunpack.c.l.s4 1966171168
    %v8753 = vunpack.c.0.s8 %v8752
    %v8754 = vlaneseq
    %v8755 = vshrl.u32 %v8754, 7
    %v8756 = vsub.s32 %v8753, %v8755
    %v8757 = vrot.slane %v8749, %v8756
    %v8759 = vunpack.c.l.s4 1966171168
    %v8760 = vunpack.c.0.s8 %v8759
    %v8761 = vlaneseq
    %v8762 = vshrl.u32 %v8761, 7
    %v8763 = vsub.s32 %v8760, %v8762
    %v8764 = vrot.slane %v8750, %v8763
    %v8765 = vcombine.low %v8757, %v8764
    %v8766 = vcombine.low %v4227, %v4231
    %v8767 = vcombine.low %v4235, %v4239
    %v8768 = vcombine.low %v4243, %v4247
    %v8769 = vcombine.low %v4251, %v4255
    %v8771 = vunpack.c.l.s4 1966171168
    %v8772 = vunpack.c.0.s8 %v8771
    %v8773 = vlaneseq
    %v8774 = vshrl.u32 %v8773, 7
    %v8775 = vsub.s32 %v8772, %v8774
    %v8776 = vrot.slane %v8766, %v8775
    %v8778 = vunpack.c.l.s4 1966171168
    %v8779 = vunpack.c.0.s8 %v8778
    %v8780 = vlaneseq
    %v8781 = vshrl.u32 %v8780, 7
    %v8782 = vsub.s32 %v8779, %v8781
    %v8783 = vrot.slane %v8767, %v8782
    %v8785 = vunpack.c.l.s4 1966171168
    %v8786 = vunpack.c.0.s8 %v8785
    %v8787 = vlaneseq
    %v8788 = vshrl.u32 %v8787, 7
    %v8789 = vsub.s32 %v8786, %v8788
    %v8790 = vrot.slane %v8768, %v8789
    %v8792 = vunpack.c.l.s4 1966171168
    %v8793 = vunpack.c.0.s8 %v8792
    %v8794 = vlaneseq
    %v8795 = vshrl.u32 %v8794, 7
    %v8796 = vsub.s32 %v8793, %v8795
    %v8797 = vrot.slane %v8769, %v8796
    %v8798 = vcombine.low %v8776, %v8783
    %v8799 = vcombine.low %v8790, %v8797
    %v8801 = vunpack.c.l.s4 1966171168
    %v8802 = vunpack.c.0.s8 %v8801
    %v8803 = vlaneseq
    %v8804 = vshrl.u32 %v8803, 7
    %v8805 = vsub.s32 %v8802, %v8804
    %v8806 = vrot.slane %v8798, %v8805
    %v8808 = vunpack.c.l.s4 1966171168
    %v8809 = vunpack.c.0.s8 %v8808
    %v8810 = vlaneseq
    %v8811 = vshrl.u32 %v8810, 7
    %v8812 = vsub.s32 %v8809, %v8811
    %v8813 = vrot.slane %v8799, %v8812
    %v8814 = vcombine.low %v8806, %v8813
    %v8815 = vcombine.low %v4259, %v4263
    %v8816 = vcombine.low %v4267, %v4271
    %v8817 = vcombine.low %v4275, %v4279
    %v8818 = vcombine.low %v4283, %v4287
    %v8820 = vunpack.c.l.s4 1966171168
    %v8821 = vunpack.c.0.s8 %v8820
    %v8822 = vlaneseq
    %v8823 = vshrl.u32 %v8822, 7
    %v8824 = vsub.s32 %v8821, %v8823
    %v8825 = vrot.slane %v8815, %v8824
    %v8827 = vunpack.c.l.s4 1966171168
    %v8828 = vunpack.c.0.s8 %v8827
    %v8829 = vlaneseq
    %v8830 = vshrl.u32 %v8829, 7
    %v8831 = vsub.s32 %v8828, %v8830
    %v8832 = vrot.slane %v8816, %v8831
    %v8834 = vunpack.c.l.s4 1966171168
    %v8835 = vunpack.c.0.s8 %v8834
    %v8836 = vlaneseq
    %v8837 = vshrl.u32 %v8836, 7
    %v8838 = vsub.s32 %v8835, %v8837
    %v8839 = vrot.slane %v8817, %v8838
    %v8841 = vunpack.c.l.s4 1966171168
    %v8842 = vunpack.c.0.s8 %v8841
    %v8843 = vlaneseq
    %v8844 = vshrl.u32 %v8843, 7
    %v8845 = vsub.s32 %v8842, %v8844
    %v8846 = vrot.slane %v8818, %v8845
    %v8847 = vcombine.low %v8825, %v8832
    %v8848 = vcombine.low %v8839, %v8846
    %v8850 = vunpack.c.l.s4 1966171168
    %v8851 = vunpack.c.0.s8 %v8850
    %v8852 = vlaneseq
    %v8853 = vshrl.u32 %v8852, 7
    %v8854 = vsub.s32 %v8851, %v8853
    %v8855 = vrot.slane %v8847, %v8854
    %v8857 = vunpack.c.l.s4 1966171168
    %v8858 = vunpack.c.0.s8 %v8857
    %v8859 = vlaneseq
    %v8860 = vshrl.u32 %v8859, 7
    %v8861 = vsub.s32 %v8858, %v8860
    %v8862 = vrot.slane %v8848, %v8861
    %v8863 = vcombine.low %v8855, %v8862
    %v8864 = vcombine.low %v4291, %v4295
    %v8865 = vcombine.low %v4299, %v4303
    %v8866 = vcombine.low %v4307, %v4311
    %v8867 = vcombine.low %v4315, %v4319
    %v8869 = vunpack.c.l.s4 1966171168
    %v8870 = vunpack.c.0.s8 %v8869
    %v8871 = vlaneseq
    %v8872 = vshrl.u32 %v8871, 7
    %v8873 = vsub.s32 %v8870, %v8872
    %v8874 = vrot.slane %v8864, %v8873
    %v8876 = vunpack.c.l.s4 1966171168
    %v8877 = vunpack.c.0.s8 %v8876
    %v8878 = vlaneseq
    %v8879 = vshrl.u32 %v8878, 7
    %v8880 = vsub.s32 %v8877, %v8879
    %v8881 = vrot.slane %v8865, %v8880
    %v8883 = vunpack.c.l.s4 1966171168
    %v8884 = vunpack.c.0.s8 %v8883
    %v8885 = vlaneseq
    %v8886 = vshrl.u32 %v8885, 7
    %v8887 = vsub.s32 %v8884, %v8886
    %v8888 = vrot.slane %v8866, %v8887
    %v8890 = vunpack.c.l.s4 1966171168
    %v8891 = vunpack.c.0.s8 %v8890
    %v8892 = vlaneseq
    %v8893 = vshrl.u32 %v8892, 7
    %v8894 = vsub.s32 %v8891, %v8893
    %v8895 = vrot.slane %v8867, %v8894
    %v8896 = vcombine.low %v8874, %v8881
    %v8897 = vcombine.low %v8888, %v8895
    %v8899 = vunpack.c.l.s4 1966171168
    %v8900 = vunpack.c.0.s8 %v8899
    %v8901 = vlaneseq
    %v8902 = vshrl.u32 %v8901, 7
    %v8903 = vsub.s32 %v8900, %v8902
    %v8904 = vrot.slane %v8896, %v8903
    %v8906 = vunpack.c.l.s4 1966171168
    %v8907 = vunpack.c.0.s8 %v8906
    %v8908 = vlaneseq
    %v8909 = vshrl.u32 %v8908, 7
    %v8910 = vsub.s32 %v8907, %v8909
    %v8911 = vrot.slane %v8897, %v8910
    %v8912 = vcombine.low %v8904, %v8911
    %v8913 = vcombine.low %v4323, %v4327
    %v8914 = vcombine.low %v4331, %v4335
    %v8915 = vcombine.low %v4339, %v4343
    %v8916 = vcombine.low %v4347, %v4351
    %v8918 = vunpack.c.l.s4 1966171168
    %v8919 = vunpack.c.0.s8 %v8918
    %v8920 = vlaneseq
    %v8921 = vshrl.u32 %v8920, 7
    %v8922 = vsub.s32 %v8919, %v8921
    %v8923 = vrot.slane %v8913, %v8922
    %v8925 = vunpack.c.l.s4 1966171168
    %v8926 = vunpack.c.0.s8 %v8925
    %v8927 = vlaneseq
    %v8928 = vshrl.u32 %v8927, 7
    %v8929 = vsub.s32 %v8926, %v8928
    %v8930 = vrot.slane %v8914, %v8929
    %v8932 = vunpack.c.l.s4 1966171168
    %v8933 = vunpack.c.0.s8 %v8932
    %v8934 = vlaneseq
    %v8935 = vshrl.u32 %v8934, 7
    %v8936 = vsub.s32 %v8933, %v8935
    %v8937 = vrot.slane %v8915, %v8936
    %v8939 = vunpack.c.l.s4 1966171168
    %v8940 = vunpack.c.0.s8 %v8939
    %v8941 = vlaneseq
    %v8942 = vshrl.u32 %v8941, 7
    %v8943 = vsub.s32 %v8940, %v8942
    %v8944 = vrot.slane %v8916, %v8943
    %v8945 = vcombine.low %v8923, %v8930
    %v8946 = vcombine.low %v8937, %v8944
    %v8948 = vunpack.c.l.s4 1966171168
    %v8949 = vunpack.c.0.s8 %v8948
    %v8950 = vlaneseq
    %v8951 = vshrl.u32 %v8950, 7
    %v8952 = vsub.s32 %v8949, %v8951
    %v8953 = vrot.slane %v8945, %v8952
    %v8955 = vunpack.c.l.s4 1966171168
    %v8956 = vunpack.c.0.s8 %v8955
    %v8957 = vlaneseq
    %v8958 = vshrl.u32 %v8957, 7
    %v8959 = vsub.s32 %v8956, %v8958
    %v8960 = vrot.slane %v8946, %v8959
    %v8961 = vcombine.low %v8953, %v8960
    %v8962 = vcombine.low %v4355, %v4359
    %v8963 = vcombine.low %v4363, %v4367
    %v8964 = vcombine.low %v4371, %v4375
    %v8965 = vcombine.low %v4379, %v4383
    %v8967 = vunpack.c.l.s4 1966171168
    %v8968 = vunpack.c.0.s8 %v8967
    %v8969 = vlaneseq
    %v8970 = vshrl.u32 %v8969, 7
    %v8971 = vsub.s32 %v8968, %v8970
    %v8972 = vrot.slane %v8962, %v8971
    %v8974 = vunpack.c.l.s4 1966171168
    %v8975 = vunpack.c.0.s8 %v8974
    %v8976 = vlaneseq
    %v8977 = vshrl.u32 %v8976, 7
    %v8978 = vsub.s32 %v8975, %v8977
    %v8979 = vrot.slane %v8963, %v8978
    %v8981 = vunpack.c.l.s4 1966171168
    %v8982 = vunpack.c.0.s8 %v8981
    %v8983 = vlaneseq
    %v8984 = vshrl.u32 %v8983, 7
    %v8985 = vsub.s32 %v8982, %v8984
    %v8986 = vrot.slane %v8964, %v8985
    %v8988 = vunpack.c.l.s4 1966171168
    %v8989 = vunpack.c.0.s8 %v8988
    %v8990 = vlaneseq
    %v8991 = vshrl.u32 %v8990, 7
    %v8992 = vsub.s32 %v8989, %v8991
    %v8993 = vrot.slane %v8965, %v8992
    %v8994 = vcombine.low %v8972, %v8979
    %v8995 = vcombine.low %v8986, %v8993
    %v8997 = vunpack.c.l.s4 1966171168
    %v8998 = vunpack.c.0.s8 %v8997
    %v8999 = vlaneseq
    %v9000 = vshrl.u32 %v8999, 7
    %v9001 = vsub.s32 %v8998, %v9000
    %v9002 = vrot.slane %v8994, %v9001
    %v9004 = vunpack.c.l.s4 1966171168
    %v9005 = vunpack.c.0.s8 %v9004
    %v9006 = vlaneseq
    %v9007 = vshrl.u32 %v9006, 7
    %v9008 = vsub.s32 %v9005, %v9007
    %v9009 = vrot.slane %v8995, %v9008
    %v9010 = vcombine.low %v9002, %v9009
    %v9011 = vcombine.low %v4387, %v4391
    %v9012 = vcombine.low %v4395, %v4399
    %v9013 = vcombine.low %v4403, %v4407
    %v9014 = vcombine.low %v4411, %v4415
    %v9016 = vunpack.c.l.s4 1966171168
    %v9017 = vunpack.c.0.s8 %v9016
    %v9018 = vlaneseq
    %v9019 = vshrl.u32 %v9018, 7
    %v9020 = vsub.s32 %v9017, %v9019
    %v9021 = vrot.slane %v9011, %v9020
    %v9023 = vunpack.c.l.s4 1966171168
    %v9024 = vunpack.c.0.s8 %v9023
    %v9025 = vlaneseq
    %v9026 = vshrl.u32 %v9025, 7
    %v9027 = vsub.s32 %v9024, %v9026
    %v9028 = vrot.slane %v9012, %v9027
    %v9030 = vunpack.c.l.s4 1966171168
    %v9031 = vunpack.c.0.s8 %v9030
    %v9032 = vlaneseq
    %v9033 = vshrl.u32 %v9032, 7
    %v9034 = vsub.s32 %v9031, %v9033
    %v9035 = vrot.slane %v9013, %v9034
    %v9037 = vunpack.c.l.s4 1966171168
    %v9038 = vunpack.c.0.s8 %v9037
    %v9039 = vlaneseq
    %v9040 = vshrl.u32 %v9039, 7
    %v9041 = vsub.s32 %v9038, %v9040
    %v9042 = vrot.slane %v9014, %v9041
    %v9043 = vcombine.low %v9021, %v9028
    %v9044 = vcombine.low %v9035, %v9042
    %v9046 = vunpack.c.l.s4 1966171168
    %v9047 = vunpack.c.0.s8 %v9046
    %v9048 = vlaneseq
    %v9049 = vshrl.u32 %v9048, 7
    %v9050 = vsub.s32 %v9047, %v9049
    %v9051 = vrot.slane %v9043, %v9050
    %v9053 = vunpack.c.l.s4 1966171168
    %v9054 = vunpack.c.0.s8 %v9053
    %v9055 = vlaneseq
    %v9056 = vshrl.u32 %v9055, 7
    %v9057 = vsub.s32 %v9054, %v9056
    %v9058 = vrot.slane %v9044, %v9057
    %v9059 = vcombine.low %v9051, %v9058
    %v9060 = vcombine.low %v4419, %v4423
    %v9061 = vcombine.low %v4427, %v4431
    %v9062 = vcombine.low %v4435, %v4439
    %v9063 = vcombine.low %v4443, %v4447
    %v9065 = vunpack.c.l.s4 1966171168
    %v9066 = vunpack.c.0.s8 %v9065
    %v9067 = vlaneseq
    %v9068 = vshrl.u32 %v9067, 7
    %v9069 = vsub.s32 %v9066, %v9068
    %v9070 = vrot.slane %v9060, %v9069
    %v9072 = vunpack.c.l.s4 1966171168
    %v9073 = vunpack.c.0.s8 %v9072
    %v9074 = vlaneseq
    %v9075 = vshrl.u32 %v9074, 7
    %v9076 = vsub.s32 %v9073, %v9075
    %v9077 = vrot.slane %v9061, %v9076
    %v9079 = vunpack.c.l.s4 1966171168
    %v9080 = vunpack.c.0.s8 %v9079
    %v9081 = vlaneseq
    %v9082 = vshrl.u32 %v9081, 7
    %v9083 = vsub.s32 %v9080, %v9082
    %v9084 = vrot.slane %v9062, %v9083
    %v9086 = vunpack.c.l.s4 1966171168
    %v9087 = vunpack.c.0.s8 %v9086
    %v9088 = vlaneseq
    %v9089 = vshrl.u32 %v9088, 7
    %v9090 = vsub.s32 %v9087, %v9089
    %v9091 = vrot.slane %v9063, %v9090
    %v9092 = vcombine.low %v9070, %v9077
    %v9093 = vcombine.low %v9084, %v9091
    %v9095 = vunpack.c.l.s4 1966171168
    %v9096 = vunpack.c.0.s8 %v9095
    %v9097 = vlaneseq
    %v9098 = vshrl.u32 %v9097, 7
    %v9099 = vsub.s32 %v9096, %v9098
    %v9100 = vrot.slane %v9092, %v9099
    %v9102 = vunpack.c.l.s4 1966171168
    %v9103 = vunpack.c.0.s8 %v9102
    %v9104 = vlaneseq
    %v9105 = vshrl.u32 %v9104, 7
    %v9106 = vsub.s32 %v9103, %v9105
    %v9107 = vrot.slane %v9093, %v9106
    %v9108 = vcombine.low %v9100, %v9107
    %v9109 = vcombine.low %v4451, %v4455
    %v9110 = vcombine.low %v4459, %v4463
    %v9111 = vcombine.low %v4467, %v4471
    %v9112 = vcombine.low %v4475, %v4479
    %v9114 = vunpack.c.l.s4 1966171168
    %v9115 = vunpack.c.0.s8 %v9114
    %v9116 = vlaneseq
    %v9117 = vshrl.u32 %v9116, 7
    %v9118 = vsub.s32 %v9115, %v9117
    %v9119 = vrot.slane %v9109, %v9118
    %v9121 = vunpack.c.l.s4 1966171168
    %v9122 = vunpack.c.0.s8 %v9121
    %v9123 = vlaneseq
    %v9124 = vshrl.u32 %v9123, 7
    %v9125 = vsub.s32 %v9122, %v9124
    %v9126 = vrot.slane %v9110, %v9125
    %v9128 = vunpack.c.l.s4 1966171168
    %v9129 = vunpack.c.0.s8 %v9128
    %v9130 = vlaneseq
    %v9131 = vshrl.u32 %v9130, 7
    %v9132 = vsub.s32 %v9129, %v9131
    %v9133 = vrot.slane %v9111, %v9132
    %v9135 = vunpack.c.l.s4 1966171168
    %v9136 = vunpack.c.0.s8 %v9135
    %v9137 = vlaneseq
    %v9138 = vshrl.u32 %v9137, 7
    %v9139 = vsub.s32 %v9136, %v9138
    %v9140 = vrot.slane %v9112, %v9139
    %v9141 = vcombine.low %v9119, %v9126
    %v9142 = vcombine.low %v9133, %v9140
    %v9144 = vunpack.c.l.s4 1966171168
    %v9145 = vunpack.c.0.s8 %v9144
    %v9146 = vlaneseq
    %v9147 = vshrl.u32 %v9146, 7
    %v9148 = vsub.s32 %v9145, %v9147
    %v9149 = vrot.slane %v9141, %v9148
    %v9151 = vunpack.c.l.s4 1966171168
    %v9152 = vunpack.c.0.s8 %v9151
    %v9153 = vlaneseq
    %v9154 = vshrl.u32 %v9153, 7
    %v9155 = vsub.s32 %v9152, %v9154
    %v9156 = vrot.slane %v9142, %v9155
    %v9157 = vcombine.low %v9149, %v9156
    %v9158 = vcombine.low %v4483, %v4487
    %v9159 = vcombine.low %v4491, %v4495
    %v9160 = vcombine.low %v4499, %v4503
    %v9161 = vcombine.low %v4507, %v4511
    %v9163 = vunpack.c.l.s4 1966171168
    %v9164 = vunpack.c.0.s8 %v9163
    %v9165 = vlaneseq
    %v9166 = vshrl.u32 %v9165, 7
    %v9167 = vsub.s32 %v9164, %v9166
    %v9168 = vrot.slane %v9158, %v9167
    %v9170 = vunpack.c.l.s4 1966171168
    %v9171 = vunpack.c.0.s8 %v9170
    %v9172 = vlaneseq
    %v9173 = vshrl.u32 %v9172, 7
    %v9174 = vsub.s32 %v9171, %v9173
    %v9175 = vrot.slane %v9159, %v9174
    %v9177 = vunpack.c.l.s4 1966171168
    %v9178 = vunpack.c.0.s8 %v9177
    %v9179 = vlaneseq
    %v9180 = vshrl.u32 %v9179, 7
    %v9181 = vsub.s32 %v9178, %v9180
    %v9182 = vrot.slane %v9160, %v9181
    %v9184 = vunpack.c.l.s4 1966171168
    %v9185 = vunpack.c.0.s8 %v9184
    %v9186 = vlaneseq
    %v9187 = vshrl.u32 %v9186, 7
    %v9188 = vsub.s32 %v9185, %v9187
    %v9189 = vrot.slane %v9161, %v9188
    %v9190 = vcombine.low %v9168, %v9175
    %v9191 = vcombine.low %v9182, %v9189
    %v9193 = vunpack.c.l.s4 1966171168
    %v9194 = vunpack.c.0.s8 %v9193
    %v9195 = vlaneseq
    %v9196 = vshrl.u32 %v9195, 7
    %v9197 = vsub.s32 %v9194, %v9196
    %v9198 = vrot.slane %v9190, %v9197
    %v9200 = vunpack.c.l.s4 1966171168
    %v9201 = vunpack.c.0.s8 %v9200
    %v9202 = vlaneseq
    %v9203 = vshrl.u32 %v9202, 7
    %v9204 = vsub.s32 %v9201, %v9203
    %v9205 = vrot.slane %v9191, %v9204
    %v9206 = vcombine.low %v9198, %v9205
    %v9207 = vcombine.low %v4515, %v4519
    %v9208 = vcombine.low %v4523, %v4527
    %v9209 = vcombine.low %v4531, %v4535
    %v9210 = vcombine.low %v4539, %v4543
    %v9212 = vunpack.c.l.s4 1966171168
    %v9213 = vunpack.c.0.s8 %v9212
    %v9214 = vlaneseq
    %v9215 = vshrl.u32 %v9214, 7
    %v9216 = vsub.s32 %v9213, %v9215
    %v9217 = vrot.slane %v9207, %v9216
    %v9219 = vunpack.c.l.s4 1966171168
    %v9220 = vunpack.c.0.s8 %v9219
    %v9221 = vlaneseq
    %v9222 = vshrl.u32 %v9221, 7
    %v9223 = vsub.s32 %v9220, %v9222
    %v9224 = vrot.slane %v9208, %v9223
    %v9226 = vunpack.c.l.s4 1966171168
    %v9227 = vunpack.c.0.s8 %v9226
    %v9228 = vlaneseq
    %v9229 = vshrl.u32 %v9228, 7
    %v9230 = vsub.s32 %v9227, %v9229
    %v9231 = vrot.slane %v9209, %v9230
    %v9233 = vunpack.c.l.s4 1966171168
    %v9234 = vunpack.c.0.s8 %v9233
    %v9235 = vlaneseq
    %v9236 = vshrl.u32 %v9235, 7
    %v9237 = vsub.s32 %v9234, %v9236
    %v9238 = vrot.slane %v9210, %v9237
    %v9239 = vcombine.low %v9217, %v9224
    %v9240 = vcombine.low %v9231, %v9238
    %v9242 = vunpack.c.l.s4 1966171168
    %v9243 = vunpack.c.0.s8 %v9242
    %v9244 = vlaneseq
    %v9245 = vshrl.u32 %v9244, 7
    %v9246 = vsub.s32 %v9243, %v9245
    %v9247 = vrot.slane %v9239, %v9246
    %v9249 = vunpack.c.l.s4 1966171168
    %v9250 = vunpack.c.0.s8 %v9249
    %v9251 = vlaneseq
    %v9252 = vshrl.u32 %v9251, 7
    %v9253 = vsub.s32 %v9250, %v9252
    %v9254 = vrot.slane %v9240, %v9253
    %v9255 = vcombine.low %v9247, %v9254
    %v9256 = vcombine.low %v4547, %v4551
    %v9257 = vcombine.low %v4555, %v4559
    %v9258 = vcombine.low %v4563, %v4567
    %v9259 = vcombine.low %v4571, %v4575
    %v9261 = vunpack.c.l.s4 1966171168
    %v9262 = vunpack.c.0.s8 %v9261
    %v9263 = vlaneseq
    %v9264 = vshrl.u32 %v9263, 7
    %v9265 = vsub.s32 %v9262, %v9264
    %v9266 = vrot.slane %v9256, %v9265
    %v9268 = vunpack.c.l.s4 1966171168
    %v9269 = vunpack.c.0.s8 %v9268
    %v9270 = vlaneseq
    %v9271 = vshrl.u32 %v9270, 7
    %v9272 = vsub.s32 %v9269, %v9271
    %v9273 = vrot.slane %v9257, %v9272
    %v9275 = vunpack.c.l.s4 1966171168
    %v9276 = vunpack.c.0.s8 %v9275
    %v9277 = vlaneseq
    %v9278 = vshrl.u32 %v9277, 7
    %v9279 = vsub.s32 %v9276, %v9278
    %v9280 = vrot.slane %v9258, %v9279
    %v9282 = vunpack.c.l.s4 1966171168
    %v9283 = vunpack.c.0.s8 %v9282
    %v9284 = vlaneseq
    %v9285 = vshrl.u32 %v9284, 7
    %v9286 = vsub.s32 %v9283, %v9285
    %v9287 = vrot.slane %v9259, %v9286
    %v9288 = vcombine.low %v9266, %v9273
    %v9289 = vcombine.low %v9280, %v9287
    %v9291 = vunpack.c.l.s4 1966171168
    %v9292 = vunpack.c.0.s8 %v9291
    %v9293 = vlaneseq
    %v9294 = vshrl.u32 %v9293, 7
    %v9295 = vsub.s32 %v9292, %v9294
    %v9296 = vrot.slane %v9288, %v9295
    %v9298 = vunpack.c.l.s4 1966171168
    %v9299 = vunpack.c.0.s8 %v9298
    %v9300 = vlaneseq
    %v9301 = vshrl.u32 %v9300, 7
    %v9302 = vsub.s32 %v9299, %v9301
    %v9303 = vrot.slane %v9289, %v9302
    %v9304 = vcombine.low %v9296, %v9303
    %v9305 = vcombine.low %v4579, %v4583
    %v9306 = vcombine.low %v4587, %v4591
    %v9307 = vcombine.low %v4595, %v4599
    %v9308 = vcombine.low %v4603, %v4607
    %v9310 = vunpack.c.l.s4 1966171168
    %v9311 = vunpack.c.0.s8 %v9310
    %v9312 = vlaneseq
    %v9313 = vshrl.u32 %v9312, 7
    %v9314 = vsub.s32 %v9311, %v9313
    %v9315 = vrot.slane %v9305, %v9314
    %v9317 = vunpack.c.l.s4 1966171168
    %v9318 = vunpack.c.0.s8 %v9317
    %v9319 = vlaneseq
    %v9320 = vshrl.u32 %v9319, 7
    %v9321 = vsub.s32 %v9318, %v9320
    %v9322 = vrot.slane %v9306, %v9321
    %v9324 = vunpack.c.l.s4 1966171168
    %v9325 = vunpack.c.0.s8 %v9324
    %v9326 = vlaneseq
    %v9327 = vshrl.u32 %v9326, 7
    %v9328 = vsub.s32 %v9325, %v9327
    %v9329 = vrot.slane %v9307, %v9328
    %v9331 = vunpack.c.l.s4 1966171168
    %v9332 = vunpack.c.0.s8 %v9331
    %v9333 = vlaneseq
    %v9334 = vshrl.u32 %v9333, 7
    %v9335 = vsub.s32 %v9332, %v9334
    %v9336 = vrot.slane %v9308, %v9335
    %v9337 = vcombine.low %v9315, %v9322
    %v9338 = vcombine.low %v9329, %v9336
    %v9340 = vunpack.c.l.s4 1966171168
    %v9341 = vunpack.c.0.s8 %v9340
    %v9342 = vlaneseq
    %v9343 = vshrl.u32 %v9342, 7
    %v9344 = vsub.s32 %v9341, %v9343
    %v9345 = vrot.slane %v9337, %v9344
    %v9347 = vunpack.c.l.s4 1966171168
    %v9348 = vunpack.c.0.s8 %v9347
    %v9349 = vlaneseq
    %v9350 = vshrl.u32 %v9349, 7
    %v9351 = vsub.s32 %v9348, %v9350
    %v9352 = vrot.slane %v9338, %v9351
    %v9353 = vcombine.low %v9345, %v9352
    %v9354 = vcombine.low %v4611, %v4615
    %v9355 = vcombine.low %v4619, %v4623
    %v9356 = vcombine.low %v4627, %v4631
    %v9357 = vcombine.low %v4635, %v4639
    %v9359 = vunpack.c.l.s4 1966171168
    %v9360 = vunpack.c.0.s8 %v9359
    %v9361 = vlaneseq
    %v9362 = vshrl.u32 %v9361, 7
    %v9363 = vsub.s32 %v9360, %v9362
    %v9364 = vrot.slane %v9354, %v9363
    %v9366 = vunpack.c.l.s4 1966171168
    %v9367 = vunpack.c.0.s8 %v9366
    %v9368 = vlaneseq
    %v9369 = vshrl.u32 %v9368, 7
    %v9370 = vsub.s32 %v9367, %v9369
    %v9371 = vrot.slane %v9355, %v9370
    %v9373 = vunpack.c.l.s4 1966171168
    %v9374 = vunpack.c.0.s8 %v9373
    %v9375 = vlaneseq
    %v9376 = vshrl.u32 %v9375, 7
    %v9377 = vsub.s32 %v9374, %v9376
    %v9378 = vrot.slane %v9356, %v9377
    %v9380 = vunpack.c.l.s4 1966171168
    %v9381 = vunpack.c.0.s8 %v9380
    %v9382 = vlaneseq
    %v9383 = vshrl.u32 %v9382, 7
    %v9384 = vsub.s32 %v9381, %v9383
    %v9385 = vrot.slane %v9357, %v9384
    %v9386 = vcombine.low %v9364, %v9371
    %v9387 = vcombine.low %v9378, %v9385
    %v9389 = vunpack.c.l.s4 1966171168
    %v9390 = vunpack.c.0.s8 %v9389
    %v9391 = vlaneseq
    %v9392 = vshrl.u32 %v9391, 7
    %v9393 = vsub.s32 %v9390, %v9392
    %v9394 = vrot.slane %v9386, %v9393
    %v9396 = vunpack.c.l.s4 1966171168
    %v9397 = vunpack.c.0.s8 %v9396
    %v9398 = vlaneseq
    %v9399 = vshrl.u32 %v9398, 7
    %v9400 = vsub.s32 %v9397, %v9399
    %v9401 = vrot.slane %v9387, %v9400
    %v9402 = vcombine.low %v9394, %v9401
    %v9403 = vcombine.low %v4643, %v4647
    %v9404 = vcombine.low %v4651, %v4655
    %v9405 = vcombine.low %v4659, %v4663
    %v9406 = vcombine.low %v4667, %v4671
    %v9408 = vunpack.c.l.s4 1966171168
    %v9409 = vunpack.c.0.s8 %v9408
    %v9410 = vlaneseq
    %v9411 = vshrl.u32 %v9410, 7
    %v9412 = vsub.s32 %v9409, %v9411
    %v9413 = vrot.slane %v9403, %v9412
    %v9415 = vunpack.c.l.s4 1966171168
    %v9416 = vunpack.c.0.s8 %v9415
    %v9417 = vlaneseq
    %v9418 = vshrl.u32 %v9417, 7
    %v9419 = vsub.s32 %v9416, %v9418
    %v9420 = vrot.slane %v9404, %v9419
    %v9422 = vunpack.c.l.s4 1966171168
    %v9423 = vunpack.c.0.s8 %v9422
    %v9424 = vlaneseq
    %v9425 = vshrl.u32 %v9424, 7
    %v9426 = vsub.s32 %v9423, %v9425
    %v9427 = vrot.slane %v9405, %v9426
    %v9429 = vunpack.c.l.s4 1966171168
    %v9430 = vunpack.c.0.s8 %v9429
    %v9431 = vlaneseq
    %v9432 = vshrl.u32 %v9431, 7
    %v9433 = vsub.s32 %v9430, %v9432
    %v9434 = vrot.slane %v9406, %v9433
    %v9435 = vcombine.low %v9413, %v9420
    %v9436 = vcombine.low %v9427, %v9434
    %v9438 = vunpack.c.l.s4 1966171168
    %v9439 = vunpack.c.0.s8 %v9438
    %v9440 = vlaneseq
    %v9441 = vshrl.u32 %v9440, 7
    %v9442 = vsub.s32 %v9439, %v9441
    %v9443 = vrot.slane %v9435, %v9442
    %v9445 = vunpack.c.l.s4 1966171168
    %v9446 = vunpack.c.0.s8 %v9445
    %v9447 = vlaneseq
    %v9448 = vshrl.u32 %v9447, 7
    %v9449 = vsub.s32 %v9446, %v9448
    %v9450 = vrot.slane %v9436, %v9449
    %v9451 = vcombine.low %v9443, %v9450
    %v9452 = vcombine.low %v4675, %v4679
    %v9453 = vcombine.low %v4683, %v4687
    %v9454 = vcombine.low %v4691, %v4695
    %v9455 = vcombine.low %v4699, %v4703
    %v9457 = vunpack.c.l.s4 1966171168
    %v9458 = vunpack.c.0.s8 %v9457
    %v9459 = vlaneseq
    %v9460 = vshrl.u32 %v9459, 7
    %v9461 = vsub.s32 %v9458, %v9460
    %v9462 = vrot.slane %v9452, %v9461
    %v9464 = vunpack.c.l.s4 1966171168
    %v9465 = vunpack.c.0.s8 %v9464
    %v9466 = vlaneseq
    %v9467 = vshrl.u32 %v9466, 7
    %v9468 = vsub.s32 %v9465, %v9467
    %v9469 = vrot.slane %v9453, %v9468
    %v9471 = vunpack.c.l.s4 1966171168
    %v9472 = vunpack.c.0.s8 %v9471
    %v9473 = vlaneseq
    %v9474 = vshrl.u32 %v9473, 7
    %v9475 = vsub.s32 %v9472, %v9474
    %v9476 = vrot.slane %v9454, %v9475
    %v9478 = vunpack.c.l.s4 1966171168
    %v9479 = vunpack.c.0.s8 %v9478
    %v9480 = vlaneseq
    %v9481 = vshrl.u32 %v9480, 7
    %v9482 = vsub.s32 %v9479, %v9481
    %v9483 = vrot.slane %v9455, %v9482
    %v9484 = vcombine.low %v9462, %v9469
    %v9485 = vcombine.low %v9476, %v9483
    %v9487 = vunpack.c.l.s4 1966171168
    %v9488 = vunpack.c.0.s8 %v9487
    %v9489 = vlaneseq
    %v9490 = vshrl.u32 %v9489, 7
    %v9491 = vsub.s32 %v9488, %v9490
    %v9492 = vrot.slane %v9484, %v9491
    %v9494 = vunpack.c.l.s4 1966171168
    %v9495 = vunpack.c.0.s8 %v9494
    %v9496 = vlaneseq
    %v9497 = vshrl.u32 %v9496, 7
    %v9498 = vsub.s32 %v9495, %v9497
    %v9499 = vrot.slane %v9485, %v9498
    %v9500 = vcombine.low %v9492, %v9499
    %v9501 = vcombine.low %v4707, %v4711
    %v9502 = vcombine.low %v4715, %v4719
    %v9503 = vcombine.low %v4723, %v4727
    %v9504 = vcombine.low %v4731, %v4735
    %v9506 = vunpack.c.l.s4 1966171168
    %v9507 = vunpack.c.0.s8 %v9506
    %v9508 = vlaneseq
    %v9509 = vshrl.u32 %v9508, 7
    %v9510 = vsub.s32 %v9507, %v9509
    %v9511 = vrot.slane %v9501, %v9510
    %v9513 = vunpack.c.l.s4 1966171168
    %v9514 = vunpack.c.0.s8 %v9513
    %v9515 = vlaneseq
    %v9516 = vshrl.u32 %v9515, 7
    %v9517 = vsub.s32 %v9514, %v9516
    %v9518 = vrot.slane %v9502, %v9517
    %v9520 = vunpack.c.l.s4 1966171168
    %v9521 = vunpack.c.0.s8 %v9520
    %v9522 = vlaneseq
    %v9523 = vshrl.u32 %v9522, 7
    %v9524 = vsub.s32 %v9521, %v9523
    %v9525 = vrot.slane %v9503, %v9524
    %v9527 = vunpack.c.l.s4 1966171168
    %v9528 = vunpack.c.0.s8 %v9527
    %v9529 = vlaneseq
    %v9530 = vshrl.u32 %v9529, 7
    %v9531 = vsub.s32 %v9528, %v9530
    %v9532 = vrot.slane %v9504, %v9531
    %v9533 = vcombine.low %v9511, %v9518
    %v9534 = vcombine.low %v9525, %v9532
    %v9536 = vunpack.c.l.s4 1966171168
    %v9537 = vunpack.c.0.s8 %v9536
    %v9538 = vlaneseq
    %v9539 = vshrl.u32 %v9538, 7
    %v9540 = vsub.s32 %v9537, %v9539
    %v9541 = vrot.slane %v9533, %v9540
    %v9543 = vunpack.c.l.s4 1966171168
    %v9544 = vunpack.c.0.s8 %v9543
    %v9545 = vlaneseq
    %v9546 = vshrl.u32 %v9545, 7
    %v9547 = vsub.s32 %v9544, %v9546
    %v9548 = vrot.slane %v9534, %v9547
    %v9549 = vcombine.low %v9541, %v9548
    %v9550 = vcombine.low %v4739, %v4743
    %v9551 = vcombine.low %v4747, %v4751
    %v9552 = vcombine.low %v4755, %v4759
    %v9553 = vcombine.low %v4763, %v4767
    %v9555 = vunpack.c.l.s4 1966171168
    %v9556 = vunpack.c.0.s8 %v9555
    %v9557 = vlaneseq
    %v9558 = vshrl.u32 %v9557, 7
    %v9559 = vsub.s32 %v9556, %v9558
    %v9560 = vrot.slane %v9550, %v9559
    %v9562 = vunpack.c.l.s4 1966171168
    %v9563 = vunpack.c.0.s8 %v9562
    %v9564 = vlaneseq
    %v9565 = vshrl.u32 %v9564, 7
    %v9566 = vsub.s32 %v9563, %v9565
    %v9567 = vrot.slane %v9551, %v9566
    %v9569 = vunpack.c.l.s4 1966171168
    %v9570 = vunpack.c.0.s8 %v9569
    %v9571 = vlaneseq
    %v9572 = vshrl.u32 %v9571, 7
    %v9573 = vsub.s32 %v9570, %v9572
    %v9574 = vrot.slane %v9552, %v9573
    %v9576 = vunpack.c.l.s4 1966171168
    %v9577 = vunpack.c.0.s8 %v9576
    %v9578 = vlaneseq
    %v9579 = vshrl.u32 %v9578, 7
    %v9580 = vsub.s32 %v9577, %v9579
    %v9581 = vrot.slane %v9553, %v9580
    %v9582 = vcombine.low %v9560, %v9567
    %v9583 = vcombine.low %v9574, %v9581
    %v9585 = vunpack.c.l.s4 1966171168
    %v9586 = vunpack.c.0.s8 %v9585
    %v9587 = vlaneseq
    %v9588 = vshrl.u32 %v9587, 7
    %v9589 = vsub.s32 %v9586, %v9588
    %v9590 = vrot.slane %v9582, %v9589
    %v9592 = vunpack.c.l.s4 1966171168
    %v9593 = vunpack.c.0.s8 %v9592
    %v9594 = vlaneseq
    %v9595 = vshrl.u32 %v9594, 7
    %v9596 = vsub.s32 %v9593, %v9595
    %v9597 = vrot.slane %v9583, %v9596
    %v9598 = vcombine.low %v9590, %v9597
    %v9599 = vcombine.low %v4771, %v4775
    %v9600 = vcombine.low %v4779, %v4783
    %v9601 = vcombine.low %v4787, %v4791
    %v9602 = vcombine.low %v4795, %v4799
    %v9604 = vunpack.c.l.s4 1966171168
    %v9605 = vunpack.c.0.s8 %v9604
    %v9606 = vlaneseq
    %v9607 = vshrl.u32 %v9606, 7
    %v9608 = vsub.s32 %v9605, %v9607
    %v9609 = vrot.slane %v9599, %v9608
    %v9611 = vunpack.c.l.s4 1966171168
    %v9612 = vunpack.c.0.s8 %v9611
    %v9613 = vlaneseq
    %v9614 = vshrl.u32 %v9613, 7
    %v9615 = vsub.s32 %v9612, %v9614
    %v9616 = vrot.slane %v9600, %v9615
    %v9618 = vunpack.c.l.s4 1966171168
    %v9619 = vunpack.c.0.s8 %v9618
    %v9620 = vlaneseq
    %v9621 = vshrl.u32 %v9620, 7
    %v9622 = vsub.s32 %v9619, %v9621
    %v9623 = vrot.slane %v9601, %v9622
    %v9625 = vunpack.c.l.s4 1966171168
    %v9626 = vunpack.c.0.s8 %v9625
    %v9627 = vlaneseq
    %v9628 = vshrl.u32 %v9627, 7
    %v9629 = vsub.s32 %v9626, %v9628
    %v9630 = vrot.slane %v9602, %v9629
    %v9631 = vcombine.low %v9609, %v9616
    %v9632 = vcombine.low %v9623, %v9630
    %v9634 = vunpack.c.l.s4 1966171168
    %v9635 = vunpack.c.0.s8 %v9634
    %v9636 = vlaneseq
    %v9637 = vshrl.u32 %v9636, 7
    %v9638 = vsub.s32 %v9635, %v9637
    %v9639 = vrot.slane %v9631, %v9638
    %v9641 = vunpack.c.l.s4 1966171168
    %v9642 = vunpack.c.0.s8 %v9641
    %v9643 = vlaneseq
    %v9644 = vshrl.u32 %v9643, 7
    %v9645 = vsub.s32 %v9642, %v9644
    %v9646 = vrot.slane %v9632, %v9645
    %v9647 = vcombine.low %v9639, %v9646
    %v9648 = vcombine.low %v4803, %v4807
    %v9649 = vcombine.low %v4811, %v4815
    %v9650 = vcombine.low %v4819, %v4823
    %v9651 = vcombine.low %v4827, %v4831
    %v9653 = vunpack.c.l.s4 1966171168
    %v9654 = vunpack.c.0.s8 %v9653
    %v9655 = vlaneseq
    %v9656 = vshrl.u32 %v9655, 7
    %v9657 = vsub.s32 %v9654, %v9656
    %v9658 = vrot.slane %v9648, %v9657
    %v9660 = vunpack.c.l.s4 1966171168
    %v9661 = vunpack.c.0.s8 %v9660
    %v9662 = vlaneseq
    %v9663 = vshrl.u32 %v9662, 7
    %v9664 = vsub.s32 %v9661, %v9663
    %v9665 = vrot.slane %v9649, %v9664
    %v9667 = vunpack.c.l.s4 1966171168
    %v9668 = vunpack.c.0.s8 %v9667
    %v9669 = vlaneseq
    %v9670 = vshrl.u32 %v9669, 7
    %v9671 = vsub.s32 %v9668, %v9670
    %v9672 = vrot.slane %v9650, %v9671
    %v9674 = vunpack.c.l.s4 1966171168
    %v9675 = vunpack.c.0.s8 %v9674
    %v9676 = vlaneseq
    %v9677 = vshrl.u32 %v9676, 7
    %v9678 = vsub.s32 %v9675, %v9677
    %v9679 = vrot.slane %v9651, %v9678
    %v9680 = vcombine.low %v9658, %v9665
    %v9681 = vcombine.low %v9672, %v9679
    %v9683 = vunpack.c.l.s4 1966171168
    %v9684 = vunpack.c.0.s8 %v9683
    %v9685 = vlaneseq
    %v9686 = vshrl.u32 %v9685, 7
    %v9687 = vsub.s32 %v9684, %v9686
    %v9688 = vrot.slane %v9680, %v9687
    %v9690 = vunpack.c.l.s4 1966171168
    %v9691 = vunpack.c.0.s8 %v9690
    %v9692 = vlaneseq
    %v9693 = vshrl.u32 %v9692, 7
    %v9694 = vsub.s32 %v9691, %v9693
    %v9695 = vrot.slane %v9681, %v9694
    %v9696 = vcombine.low %v9688, %v9695
    %v9697 = vcombine.low %v4835, %v4839
    %v9698 = vcombine.low %v4843, %v4847
    %v9699 = vcombine.low %v4851, %v4855
    %v9700 = vcombine.low %v4859, %v4863
    %v9702 = vunpack.c.l.s4 1966171168
    %v9703 = vunpack.c.0.s8 %v9702
    %v9704 = vlaneseq
    %v9705 = vshrl.u32 %v9704, 7
    %v9706 = vsub.s32 %v9703, %v9705
    %v9707 = vrot.slane %v9697, %v9706
    %v9709 = vunpack.c.l.s4 1966171168
    %v9710 = vunpack.c.0.s8 %v9709
    %v9711 = vlaneseq
    %v9712 = vshrl.u32 %v9711, 7
    %v9713 = vsub.s32 %v9710, %v9712
    %v9714 = vrot.slane %v9698, %v9713
    %v9716 = vunpack.c.l.s4 1966171168
    %v9717 = vunpack.c.0.s8 %v9716
    %v9718 = vlaneseq
    %v9719 = vshrl.u32 %v9718, 7
    %v9720 = vsub.s32 %v9717, %v9719
    %v9721 = vrot.slane %v9699, %v9720
    %v9723 = vunpack.c.l.s4 1966171168
    %v9724 = vunpack.c.0.s8 %v9723
    %v9725 = vlaneseq
    %v9726 = vshrl.u32 %v9725, 7
    %v9727 = vsub.s32 %v9724, %v9726
    %v9728 = vrot.slane %v9700, %v9727
    %v9729 = vcombine.low %v9707, %v9714
    %v9730 = vcombine.low %v9721, %v9728
    %v9732 = vunpack.c.l.s4 1966171168
    %v9733 = vunpack.c.0.s8 %v9732
    %v9734 = vlaneseq
    %v9735 = vshrl.u32 %v9734, 7
    %v9736 = vsub.s32 %v9733, %v9735
    %v9737 = vrot.slane %v9729, %v9736
    %v9739 = vunpack.c.l.s4 1966171168
    %v9740 = vunpack.c.0.s8 %v9739
    %v9741 = vlaneseq
    %v9742 = vshrl.u32 %v9741, 7
    %v9743 = vsub.s32 %v9740, %v9742
    %v9744 = vrot.slane %v9730, %v9743
    %v9745 = vcombine.low %v9737, %v9744
    %v9746 = vcombine.low %v4867, %v4871
    %v9747 = vcombine.low %v4875, %v4879
    %v9748 = vcombine.low %v4883, %v4887
    %v9749 = vcombine.low %v4891, %v4895
    %v9751 = vunpack.c.l.s4 1966171168
    %v9752 = vunpack.c.0.s8 %v9751
    %v9753 = vlaneseq
    %v9754 = vshrl.u32 %v9753, 7
    %v9755 = vsub.s32 %v9752, %v9754
    %v9756 = vrot.slane %v9746, %v9755
    %v9758 = vunpack.c.l.s4 1966171168
    %v9759 = vunpack.c.0.s8 %v9758
    %v9760 = vlaneseq
    %v9761 = vshrl.u32 %v9760, 7
    %v9762 = vsub.s32 %v9759, %v9761
    %v9763 = vrot.slane %v9747, %v9762
    %v9765 = vunpack.c.l.s4 1966171168
    %v9766 = vunpack.c.0.s8 %v9765
    %v9767 = vlaneseq
    %v9768 = vshrl.u32 %v9767, 7
    %v9769 = vsub.s32 %v9766, %v9768
    %v9770 = vrot.slane %v9748, %v9769
    %v9772 = vunpack.c.l.s4 1966171168
    %v9773 = vunpack.c.0.s8 %v9772
    %v9774 = vlaneseq
    %v9775 = vshrl.u32 %v9774, 7
    %v9776 = vsub.s32 %v9773, %v9775
    %v9777 = vrot.slane %v9749, %v9776
    %v9778 = vcombine.low %v9756, %v9763
    %v9779 = vcombine.low %v9770, %v9777
    %v9781 = vunpack.c.l.s4 1966171168
    %v9782 = vunpack.c.0.s8 %v9781
    %v9783 = vlaneseq
    %v9784 = vshrl.u32 %v9783, 7
    %v9785 = vsub.s32 %v9782, %v9784
    %v9786 = vrot.slane %v9778, %v9785
    %v9788 = vunpack.c.l.s4 1966171168
    %v9789 = vunpack.c.0.s8 %v9788
    %v9790 = vlaneseq
    %v9791 = vshrl.u32 %v9790, 7
    %v9792 = vsub.s32 %v9789, %v9791
    %v9793 = vrot.slane %v9779, %v9792
    %v9794 = vcombine.low %v9786, %v9793
    %v9795 = vcombine.low %v4899, %v4903
    %v9796 = vcombine.low %v4907, %v4911
    %v9797 = vcombine.low %v4915, %v4919
    %v9798 = vcombine.low %v4923, %v4927
    %v9800 = vunpack.c.l.s4 1966171168
    %v9801 = vunpack.c.0.s8 %v9800
    %v9802 = vlaneseq
    %v9803 = vshrl.u32 %v9802, 7
    %v9804 = vsub.s32 %v9801, %v9803
    %v9805 = vrot.slane %v9795, %v9804
    %v9807 = vunpack.c.l.s4 1966171168
    %v9808 = vunpack.c.0.s8 %v9807
    %v9809 = vlaneseq
    %v9810 = vshrl.u32 %v9809, 7
    %v9811 = vsub.s32 %v9808, %v9810
    %v9812 = vrot.slane %v9796, %v9811
    %v9814 = vunpack.c.l.s4 1966171168
    %v9815 = vunpack.c.0.s8 %v9814
    %v9816 = vlaneseq
    %v9817 = vshrl.u32 %v9816, 7
    %v9818 = vsub.s32 %v9815, %v9817
    %v9819 = vrot.slane %v9797, %v9818
    %v9821 = vunpack.c.l.s4 1966171168
    %v9822 = vunpack.c.0.s8 %v9821
    %v9823 = vlaneseq
    %v9824 = vshrl.u32 %v9823, 7
    %v9825 = vsub.s32 %v9822, %v9824
    %v9826 = vrot.slane %v9798, %v9825
    %v9827 = vcombine.low %v9805, %v9812
    %v9828 = vcombine.low %v9819, %v9826
    %v9830 = vunpack.c.l.s4 1966171168
    %v9831 = vunpack.c.0.s8 %v9830
    %v9832 = vlaneseq
    %v9833 = vshrl.u32 %v9832, 7
    %v9834 = vsub.s32 %v9831, %v9833
    %v9835 = vrot.slane %v9827, %v9834
    %v9837 = vunpack.c.l.s4 1966171168
    %v9838 = vunpack.c.0.s8 %v9837
    %v9839 = vlaneseq
    %v9840 = vshrl.u32 %v9839, 7
    %v9841 = vsub.s32 %v9838, %v9840
    %v9842 = vrot.slane %v9828, %v9841
    %v9843 = vcombine.low %v9835, %v9842
    %v9844 = vcombine.low %v4931, %v4935
    %v9845 = vcombine.low %v4939, %v4943
    %v9846 = vcombine.low %v4947, %v4951
    %v9847 = vcombine.low %v4955, %v4959
    %v9849 = vunpack.c.l.s4 1966171168
    %v9850 = vunpack.c.0.s8 %v9849
    %v9851 = vlaneseq
    %v9852 = vshrl.u32 %v9851, 7
    %v9853 = vsub.s32 %v9850, %v9852
    %v9854 = vrot.slane %v9844, %v9853
    %v9856 = vunpack.c.l.s4 1966171168
    %v9857 = vunpack.c.0.s8 %v9856
    %v9858 = vlaneseq
    %v9859 = vshrl.u32 %v9858, 7
    %v9860 = vsub.s32 %v9857, %v9859
    %v9861 = vrot.slane %v9845, %v9860
    %v9863 = vunpack.c.l.s4 1966171168
    %v9864 = vunpack.c.0.s8 %v9863
    %v9865 = vlaneseq
    %v9866 = vshrl.u32 %v9865, 7
    %v9867 = vsub.s32 %v9864, %v9866
    %v9868 = vrot.slane %v9846, %v9867
    %v9870 = vunpack.c.l.s4 1966171168
    %v9871 = vunpack.c.0.s8 %v9870
    %v9872 = vlaneseq
    %v9873 = vshrl.u32 %v9872, 7
    %v9874 = vsub.s32 %v9871, %v9873
    %v9875 = vrot.slane %v9847, %v9874
    %v9876 = vcombine.low %v9854, %v9861
    %v9877 = vcombine.low %v9868, %v9875
    %v9879 = vunpack.c.l.s4 1966171168
    %v9880 = vunpack.c.0.s8 %v9879
    %v9881 = vlaneseq
    %v9882 = vshrl.u32 %v9881, 7
    %v9883 = vsub.s32 %v9880, %v9882
    %v9884 = vrot.slane %v9876, %v9883
    %v9886 = vunpack.c.l.s4 1966171168
    %v9887 = vunpack.c.0.s8 %v9886
    %v9888 = vlaneseq
    %v9889 = vshrl.u32 %v9888, 7
    %v9890 = vsub.s32 %v9887, %v9889
    %v9891 = vrot.slane %v9877, %v9890
    %v9892 = vcombine.low %v9884, %v9891
    %v9893 = vcombine.low %v4963, %v4967
    %v9894 = vcombine.low %v4971, %v4975
    %v9895 = vcombine.low %v4979, %v4983
    %v9896 = vcombine.low %v4987, %v4991
    %v9898 = vunpack.c.l.s4 1966171168
    %v9899 = vunpack.c.0.s8 %v9898
    %v9900 = vlaneseq
    %v9901 = vshrl.u32 %v9900, 7
    %v9902 = vsub.s32 %v9899, %v9901
    %v9903 = vrot.slane %v9893, %v9902
    %v9905 = vunpack.c.l.s4 1966171168
    %v9906 = vunpack.c.0.s8 %v9905
    %v9907 = vlaneseq
    %v9908 = vshrl.u32 %v9907, 7
    %v9909 = vsub.s32 %v9906, %v9908
    %v9910 = vrot.slane %v9894, %v9909
    %v9912 = vunpack.c.l.s4 1966171168
    %v9913 = vunpack.c.0.s8 %v9912
    %v9914 = vlaneseq
    %v9915 = vshrl.u32 %v9914, 7
    %v9916 = vsub.s32 %v9913, %v9915
    %v9917 = vrot.slane %v9895, %v9916
    %v9919 = vunpack.c.l.s4 1966171168
    %v9920 = vunpack.c.0.s8 %v9919
    %v9921 = vlaneseq
    %v9922 = vshrl.u32 %v9921, 7
    %v9923 = vsub.s32 %v9920, %v9922
    %v9924 = vrot.slane %v9896, %v9923
    %v9925 = vcombine.low %v9903, %v9910
    %v9926 = vcombine.low %v9917, %v9924
    %v9928 = vunpack.c.l.s4 1966171168
    %v9929 = vunpack.c.0.s8 %v9928
    %v9930 = vlaneseq
    %v9931 = vshrl.u32 %v9930, 7
    %v9932 = vsub.s32 %v9929, %v9931
    %v9933 = vrot.slane %v9925, %v9932
    %v9935 = vunpack.c.l.s4 1966171168
    %v9936 = vunpack.c.0.s8 %v9935
    %v9937 = vlaneseq
    %v9938 = vshrl.u32 %v9937, 7
    %v9939 = vsub.s32 %v9936, %v9938
    %v9940 = vrot.slane %v9926, %v9939
    %v9941 = vcombine.low %v9933, %v9940
    %v9942 = vcombine.low %v4995, %v4999
    %v9943 = vcombine.low %v5003, %v5007
    %v9944 = vcombine.low %v5011, %v5015
    %v9945 = vcombine.low %v5019, %v5023
    %v9947 = vunpack.c.l.s4 1966171168
    %v9948 = vunpack.c.0.s8 %v9947
    %v9949 = vlaneseq
    %v9950 = vshrl.u32 %v9949, 7
    %v9951 = vsub.s32 %v9948, %v9950
    %v9952 = vrot.slane %v9942, %v9951
    %v9954 = vunpack.c.l.s4 1966171168
    %v9955 = vunpack.c.0.s8 %v9954
    %v9956 = vlaneseq
    %v9957 = vshrl.u32 %v9956, 7
    %v9958 = vsub.s32 %v9955, %v9957
    %v9959 = vrot.slane %v9943, %v9958
    %v9961 = vunpack.c.l.s4 1966171168
    %v9962 = vunpack.c.0.s8 %v9961
    %v9963 = vlaneseq
    %v9964 = vshrl.u32 %v9963, 7
    %v9965 = vsub.s32 %v9962, %v9964
    %v9966 = vrot.slane %v9944, %v9965
    %v9968 = vunpack.c.l.s4 1966171168
    %v9969 = vunpack.c.0.s8 %v9968
    %v9970 = vlaneseq
    %v9971 = vshrl.u32 %v9970, 7
    %v9972 = vsub.s32 %v9969, %v9971
    %v9973 = vrot.slane %v9945, %v9972
    %v9974 = vcombine.low %v9952, %v9959
    %v9975 = vcombine.low %v9966, %v9973
    %v9977 = vunpack.c.l.s4 1966171168
    %v9978 = vunpack.c.0.s8 %v9977
    %v9979 = vlaneseq
    %v9980 = vshrl.u32 %v9979, 7
    %v9981 = vsub.s32 %v9978, %v9980
    %v9982 = vrot.slane %v9974, %v9981
    %v9984 = vunpack.c.l.s4 1966171168
    %v9985 = vunpack.c.0.s8 %v9984
    %v9986 = vlaneseq
    %v9987 = vshrl.u32 %v9986, 7
    %v9988 = vsub.s32 %v9985, %v9987
    %v9989 = vrot.slane %v9975, %v9988
    %v9990 = vcombine.low %v9982, %v9989
    %v9991 = vcombine.low %v5027, %v5031
    %v9992 = vcombine.low %v5035, %v5039
    %v9993 = vcombine.low %v5043, %v5047
    %v9994 = vcombine.low %v5051, %v5055
    %v9996 = vunpack.c.l.s4 1966171168
    %v9997 = vunpack.c.0.s8 %v9996
    %v9998 = vlaneseq
    %v9999 = vshrl.u32 %v9998, 7
    %v10000 = vsub.s32 %v9997, %v9999
    %v10001 = vrot.slane %v9991, %v10000
    %v10003 = vunpack.c.l.s4 1966171168
    %v10004 = vunpack.c.0.s8 %v10003
    %v10005 = vlaneseq
    %v10006 = vshrl.u32 %v10005, 7
    %v10007 = vsub.s32 %v10004, %v10006
    %v10008 = vrot.slane %v9992, %v10007
    %v10010 = vunpack.c.l.s4 1966171168
    %v10011 = vunpack.c.0.s8 %v10010
    %v10012 = vlaneseq
    %v10013 = vshrl.u32 %v10012, 7
    %v10014 = vsub.s32 %v10011, %v10013
    %v10015 = vrot.slane %v9993, %v10014
    %v10017 = vunpack.c.l.s4 1966171168
    %v10018 = vunpack.c.0.s8 %v10017
    %v10019 = vlaneseq
    %v10020 = vshrl.u32 %v10019, 7
    %v10021 = vsub.s32 %v10018, %v10020
    %v10022 = vrot.slane %v9994, %v10021
    %v10023 = vcombine.low %v10001, %v10008
    %v10024 = vcombine.low %v10015, %v10022
    %v10026 = vunpack.c.l.s4 1966171168
    %v10027 = vunpack.c.0.s8 %v10026
    %v10028 = vlaneseq
    %v10029 = vshrl.u32 %v10028, 7
    %v10030 = vsub.s32 %v10027, %v10029
    %v10031 = vrot.slane %v10023, %v10030
    %v10033 = vunpack.c.l.s4 1966171168
    %v10034 = vunpack.c.0.s8 %v10033
    %v10035 = vlaneseq
    %v10036 = vshrl.u32 %v10035, 7
    %v10037 = vsub.s32 %v10034, %v10036
    %v10038 = vrot.slane %v10024, %v10037
    %v10039 = vcombine.low %v10031, %v10038
    %v10040 = vcombine.low %v5059, %v5063
    %v10041 = vcombine.low %v5067, %v5071
    %v10042 = vcombine.low %v5075, %v5079
    %v10043 = vcombine.low %v5083, %v5087
    %v10045 = vunpack.c.l.s4 1966171168
    %v10046 = vunpack.c.0.s8 %v10045
    %v10047 = vlaneseq
    %v10048 = vshrl.u32 %v10047, 7
    %v10049 = vsub.s32 %v10046, %v10048
    %v10050 = vrot.slane %v10040, %v10049
    %v10052 = vunpack.c.l.s4 1966171168
    %v10053 = vunpack.c.0.s8 %v10052
    %v10054 = vlaneseq
    %v10055 = vshrl.u32 %v10054, 7
    %v10056 = vsub.s32 %v10053, %v10055
    %v10057 = vrot.slane %v10041, %v10056
    %v10059 = vunpack.c.l.s4 1966171168
    %v10060 = vunpack.c.0.s8 %v10059
    %v10061 = vlaneseq
    %v10062 = vshrl.u32 %v10061, 7
    %v10063 = vsub.s32 %v10060, %v10062
    %v10064 = vrot.slane %v10042, %v10063
    %v10066 = vunpack.c.l.s4 1966171168
    %v10067 = vunpack.c.0.s8 %v10066
    %v10068 = vlaneseq
    %v10069 = vshrl.u32 %v10068, 7
    %v10070 = vsub.s32 %v10067, %v10069
    %v10071 = vrot.slane %v10043, %v10070
    %v10072 = vcombine.low %v10050, %v10057
    %v10073 = vcombine.low %v10064, %v10071
    %v10075 = vunpack.c.l.s4 1966171168
    %v10076 = vunpack.c.0.s8 %v10075
    %v10077 = vlaneseq
    %v10078 = vshrl.u32 %v10077, 7
    %v10079 = vsub.s32 %v10076, %v10078
    %v10080 = vrot.slane %v10072, %v10079
    %v10082 = vunpack.c.l.s4 1966171168
    %v10083 = vunpack.c.0.s8 %v10082
    %v10084 = vlaneseq
    %v10085 = vshrl.u32 %v10084, 7
    %v10086 = vsub.s32 %v10083, %v10085
    %v10087 = vrot.slane %v10073, %v10086
    %v10088 = vcombine.low %v10080, %v10087
    %v10089 = vcombine.low %v5091, %v5095
    %v10090 = vcombine.low %v5099, %v5103
    %v10091 = vcombine.low %v5107, %v5111
    %v10092 = vcombine.low %v5115, %v5119
    %v10094 = vunpack.c.l.s4 1966171168
    %v10095 = vunpack.c.0.s8 %v10094
    %v10096 = vlaneseq
    %v10097 = vshrl.u32 %v10096, 7
    %v10098 = vsub.s32 %v10095, %v10097
    %v10099 = vrot.slane %v10089, %v10098
    %v10101 = vunpack.c.l.s4 1966171168
    %v10102 = vunpack.c.0.s8 %v10101
    %v10103 = vlaneseq
    %v10104 = vshrl.u32 %v10103, 7
    %v10105 = vsub.s32 %v10102, %v10104
    %v10106 = vrot.slane %v10090, %v10105
    %v10108 = vunpack.c.l.s4 1966171168
    %v10109 = vunpack.c.0.s8 %v10108
    %v10110 = vlaneseq
    %v10111 = vshrl.u32 %v10110, 7
    %v10112 = vsub.s32 %v10109, %v10111
    %v10113 = vrot.slane %v10091, %v10112
    %v10115 = vunpack.c.l.s4 1966171168
    %v10116 = vunpack.c.0.s8 %v10115
    %v10117 = vlaneseq
    %v10118 = vshrl.u32 %v10117, 7
    %v10119 = vsub.s32 %v10116, %v10118
    %v10120 = vrot.slane %v10092, %v10119
    %v10121 = vcombine.low %v10099, %v10106
    %v10122 = vcombine.low %v10113, %v10120
    %v10124 = vunpack.c.l.s4 1966171168
    %v10125 = vunpack.c.0.s8 %v10124
    %v10126 = vlaneseq
    %v10127 = vshrl.u32 %v10126, 7
    %v10128 = vsub.s32 %v10125, %v10127
    %v10129 = vrot.slane %v10121, %v10128
    %v10131 = vunpack.c.l.s4 1966171168
    %v10132 = vunpack.c.0.s8 %v10131
    %v10133 = vlaneseq
    %v10134 = vshrl.u32 %v10133, 7
    %v10135 = vsub.s32 %v10132, %v10134
    %v10136 = vrot.slane %v10122, %v10135
    %v10137 = vcombine.low %v10129, %v10136
    %v10138 = vcombine.low %v5123, %v5127
    %v10139 = vcombine.low %v5131, %v5135
    %v10140 = vcombine.low %v5139, %v5143
    %v10141 = vcombine.low %v5147, %v5151
    %v10143 = vunpack.c.l.s4 1966171168
    %v10144 = vunpack.c.0.s8 %v10143
    %v10145 = vlaneseq
    %v10146 = vshrl.u32 %v10145, 7
    %v10147 = vsub.s32 %v10144, %v10146
    %v10148 = vrot.slane %v10138, %v10147
    %v10150 = vunpack.c.l.s4 1966171168
    %v10151 = vunpack.c.0.s8 %v10150
    %v10152 = vlaneseq
    %v10153 = vshrl.u32 %v10152, 7
    %v10154 = vsub.s32 %v10151, %v10153
    %v10155 = vrot.slane %v10139, %v10154
    %v10157 = vunpack.c.l.s4 1966171168
    %v10158 = vunpack.c.0.s8 %v10157
    %v10159 = vlaneseq
    %v10160 = vshrl.u32 %v10159, 7
    %v10161 = vsub.s32 %v10158, %v10160
    %v10162 = vrot.slane %v10140, %v10161
    %v10164 = vunpack.c.l.s4 1966171168
    %v10165 = vunpack.c.0.s8 %v10164
    %v10166 = vlaneseq
    %v10167 = vshrl.u32 %v10166, 7
    %v10168 = vsub.s32 %v10165, %v10167
    %v10169 = vrot.slane %v10141, %v10168
    %v10170 = vcombine.low %v10148, %v10155
    %v10171 = vcombine.low %v10162, %v10169
    %v10173 = vunpack.c.l.s4 1966171168
    %v10174 = vunpack.c.0.s8 %v10173
    %v10175 = vlaneseq
    %v10176 = vshrl.u32 %v10175, 7
    %v10177 = vsub.s32 %v10174, %v10176
    %v10178 = vrot.slane %v10170, %v10177
    %v10180 = vunpack.c.l.s4 1966171168
    %v10181 = vunpack.c.0.s8 %v10180
    %v10182 = vlaneseq
    %v10183 = vshrl.u32 %v10182, 7
    %v10184 = vsub.s32 %v10181, %v10183
    %v10185 = vrot.slane %v10171, %v10184
    %v10186 = vcombine.low %v10178, %v10185
    %v10187 = vcombine.low %v5155, %v5159
    %v10188 = vcombine.low %v5163, %v5167
    %v10189 = vcombine.low %v5171, %v5175
    %v10190 = vcombine.low %v5179, %v5183
    %v10192 = vunpack.c.l.s4 1966171168
    %v10193 = vunpack.c.0.s8 %v10192
    %v10194 = vlaneseq
    %v10195 = vshrl.u32 %v10194, 7
    %v10196 = vsub.s32 %v10193, %v10195
    %v10197 = vrot.slane %v10187, %v10196
    %v10199 = vunpack.c.l.s4 1966171168
    %v10200 = vunpack.c.0.s8 %v10199
    %v10201 = vlaneseq
    %v10202 = vshrl.u32 %v10201, 7
    %v10203 = vsub.s32 %v10200, %v10202
    %v10204 = vrot.slane %v10188, %v10203
    %v10206 = vunpack.c.l.s4 1966171168
    %v10207 = vunpack.c.0.s8 %v10206
    %v10208 = vlaneseq
    %v10209 = vshrl.u32 %v10208, 7
    %v10210 = vsub.s32 %v10207, %v10209
    %v10211 = vrot.slane %v10189, %v10210
    %v10213 = vunpack.c.l.s4 1966171168
    %v10214 = vunpack.c.0.s8 %v10213
    %v10215 = vlaneseq
    %v10216 = vshrl.u32 %v10215, 7
    %v10217 = vsub.s32 %v10214, %v10216
    %v10218 = vrot.slane %v10190, %v10217
    %v10219 = vcombine.low %v10197, %v10204
    %v10220 = vcombine.low %v10211, %v10218
    %v10222 = vunpack.c.l.s4 1966171168
    %v10223 = vunpack.c.0.s8 %v10222
    %v10224 = vlaneseq
    %v10225 = vshrl.u32 %v10224, 7
    %v10226 = vsub.s32 %v10223, %v10225
    %v10227 = vrot.slane %v10219, %v10226
    %v10229 = vunpack.c.l.s4 1966171168
    %v10230 = vunpack.c.0.s8 %v10229
    %v10231 = vlaneseq
    %v10232 = vshrl.u32 %v10231, 7
    %v10233 = vsub.s32 %v10230, %v10232
    %v10234 = vrot.slane %v10220, %v10233
    %v10235 = vcombine.low %v10227, %v10234
    %v10236 = vcombine.low %v5187, %v5191
    %v10237 = vcombine.low %v5195, %v5199
    %v10238 = vcombine.low %v5203, %v5207
    %v10239 = vcombine.low %v5211, %v5215
    %v10241 = vunpack.c.l.s4 1966171168
    %v10242 = vunpack.c.0.s8 %v10241
    %v10243 = vlaneseq
    %v10244 = vshrl.u32 %v10243, 7
    %v10245 = vsub.s32 %v10242, %v10244
    %v10246 = vrot.slane %v10236, %v10245
    %v10248 = vunpack.c.l.s4 1966171168
    %v10249 = vunpack.c.0.s8 %v10248
    %v10250 = vlaneseq
    %v10251 = vshrl.u32 %v10250, 7
    %v10252 = vsub.s32 %v10249, %v10251
    %v10253 = vrot.slane %v10237, %v10252
    %v10255 = vunpack.c.l.s4 1966171168
    %v10256 = vunpack.c.0.s8 %v10255
    %v10257 = vlaneseq
    %v10258 = vshrl.u32 %v10257, 7
    %v10259 = vsub.s32 %v10256, %v10258
    %v10260 = vrot.slane %v10238, %v10259
    %v10262 = vunpack.c.l.s4 1966171168
    %v10263 = vunpack.c.0.s8 %v10262
    %v10264 = vlaneseq
    %v10265 = vshrl.u32 %v10264, 7
    %v10266 = vsub.s32 %v10263, %v10265
    %v10267 = vrot.slane %v10239, %v10266
    %v10268 = vcombine.low %v10246, %v10253
    %v10269 = vcombine.low %v10260, %v10267
    %v10271 = vunpack.c.l.s4 1966171168
    %v10272 = vunpack.c.0.s8 %v10271
    %v10273 = vlaneseq
    %v10274 = vshrl.u32 %v10273, 7
    %v10275 = vsub.s32 %v10272, %v10274
    %v10276 = vrot.slane %v10268, %v10275
    %v10278 = vunpack.c.l.s4 1966171168
    %v10279 = vunpack.c.0.s8 %v10278
    %v10280 = vlaneseq
    %v10281 = vshrl.u32 %v10280, 7
    %v10282 = vsub.s32 %v10279, %v10281
    %v10283 = vrot.slane %v10269, %v10282
    %v10284 = vcombine.low %v10276, %v10283
    %v10285 = vcombine.low %v5219, %v5223
    %v10286 = vcombine.low %v5227, %v5231
    %v10287 = vcombine.low %v5235, %v5239
    %v10288 = vcombine.low %v5243, %v5247
    %v10290 = vunpack.c.l.s4 1966171168
    %v10291 = vunpack.c.0.s8 %v10290
    %v10292 = vlaneseq
    %v10293 = vshrl.u32 %v10292, 7
    %v10294 = vsub.s32 %v10291, %v10293
    %v10295 = vrot.slane %v10285, %v10294
    %v10297 = vunpack.c.l.s4 1966171168
    %v10298 = vunpack.c.0.s8 %v10297
    %v10299 = vlaneseq
    %v10300 = vshrl.u32 %v10299, 7
    %v10301 = vsub.s32 %v10298, %v10300
    %v10302 = vrot.slane %v10286, %v10301
    %v10304 = vunpack.c.l.s4 1966171168
    %v10305 = vunpack.c.0.s8 %v10304
    %v10306 = vlaneseq
    %v10307 = vshrl.u32 %v10306, 7
    %v10308 = vsub.s32 %v10305, %v10307
    %v10309 = vrot.slane %v10287, %v10308
    %v10311 = vunpack.c.l.s4 1966171168
    %v10312 = vunpack.c.0.s8 %v10311
    %v10313 = vlaneseq
    %v10314 = vshrl.u32 %v10313, 7
    %v10315 = vsub.s32 %v10312, %v10314
    %v10316 = vrot.slane %v10288, %v10315
    %v10317 = vcombine.low %v10295, %v10302
    %v10318 = vcombine.low %v10309, %v10316
    %v10320 = vunpack.c.l.s4 1966171168
    %v10321 = vunpack.c.0.s8 %v10320
    %v10322 = vlaneseq
    %v10323 = vshrl.u32 %v10322, 7
    %v10324 = vsub.s32 %v10321, %v10323
    %v10325 = vrot.slane %v10317, %v10324
    %v10327 = vunpack.c.l.s4 1966171168
    %v10328 = vunpack.c.0.s8 %v10327
    %v10329 = vlaneseq
    %v10330 = vshrl.u32 %v10329, 7
    %v10331 = vsub.s32 %v10328, %v10330
    %v10332 = vrot.slane %v10318, %v10331
    %v10333 = vcombine.low %v10325, %v10332
    %v10334 = vcombine.low %v5251, %v5255
    %v10335 = vcombine.low %v5259, %v5263
    %v10336 = vcombine.low %v5267, %v5271
    %v10337 = vcombine.low %v5275, %v5279
    %v10339 = vunpack.c.l.s4 1966171168
    %v10340 = vunpack.c.0.s8 %v10339
    %v10341 = vlaneseq
    %v10342 = vshrl.u32 %v10341, 7
    %v10343 = vsub.s32 %v10340, %v10342
    %v10344 = vrot.slane %v10334, %v10343
    %v10346 = vunpack.c.l.s4 1966171168
    %v10347 = vunpack.c.0.s8 %v10346
    %v10348 = vlaneseq
    %v10349 = vshrl.u32 %v10348, 7
    %v10350 = vsub.s32 %v10347, %v10349
    %v10351 = vrot.slane %v10335, %v10350
    %v10353 = vunpack.c.l.s4 1966171168
    %v10354 = vunpack.c.0.s8 %v10353
    %v10355 = vlaneseq
    %v10356 = vshrl.u32 %v10355, 7
    %v10357 = vsub.s32 %v10354, %v10356
    %v10358 = vrot.slane %v10336, %v10357
    %v10360 = vunpack.c.l.s4 1966171168
    %v10361 = vunpack.c.0.s8 %v10360
    %v10362 = vlaneseq
    %v10363 = vshrl.u32 %v10362, 7
    %v10364 = vsub.s32 %v10361, %v10363
    %v10365 = vrot.slane %v10337, %v10364
    %v10366 = vcombine.low %v10344, %v10351
    %v10367 = vcombine.low %v10358, %v10365
    %v10369 = vunpack.c.l.s4 1966171168
    %v10370 = vunpack.c.0.s8 %v10369
    %v10371 = vlaneseq
    %v10372 = vshrl.u32 %v10371, 7
    %v10373 = vsub.s32 %v10370, %v10372
    %v10374 = vrot.slane %v10366, %v10373
    %v10376 = vunpack.c.l.s4 1966171168
    %v10377 = vunpack.c.0.s8 %v10376
    %v10378 = vlaneseq
    %v10379 = vshrl.u32 %v10378, 7
    %v10380 = vsub.s32 %v10377, %v10379
    %v10381 = vrot.slane %v10367, %v10380
    %v10382 = vcombine.low %v10374, %v10381
    %v10383 = vcombine.low %v5283, %v5287
    %v10384 = vcombine.low %v5291, %v5295
    %v10385 = vcombine.low %v5299, %v5303
    %v10386 = vcombine.low %v5307, %v5311
    %v10388 = vunpack.c.l.s4 1966171168
    %v10389 = vunpack.c.0.s8 %v10388
    %v10390 = vlaneseq
    %v10391 = vshrl.u32 %v10390, 7
    %v10392 = vsub.s32 %v10389, %v10391
    %v10393 = vrot.slane %v10383, %v10392
    %v10395 = vunpack.c.l.s4 1966171168
    %v10396 = vunpack.c.0.s8 %v10395
    %v10397 = vlaneseq
    %v10398 = vshrl.u32 %v10397, 7
    %v10399 = vsub.s32 %v10396, %v10398
    %v10400 = vrot.slane %v10384, %v10399
    %v10402 = vunpack.c.l.s4 1966171168
    %v10403 = vunpack.c.0.s8 %v10402
    %v10404 = vlaneseq
    %v10405 = vshrl.u32 %v10404, 7
    %v10406 = vsub.s32 %v10403, %v10405
    %v10407 = vrot.slane %v10385, %v10406
    %v10409 = vunpack.c.l.s4 1966171168
    %v10410 = vunpack.c.0.s8 %v10409
    %v10411 = vlaneseq
    %v10412 = vshrl.u32 %v10411, 7
    %v10413 = vsub.s32 %v10410, %v10412
    %v10414 = vrot.slane %v10386, %v10413
    %v10415 = vcombine.low %v10393, %v10400
    %v10416 = vcombine.low %v10407, %v10414
    %v10418 = vunpack.c.l.s4 1966171168
    %v10419 = vunpack.c.0.s8 %v10418
    %v10420 = vlaneseq
    %v10421 = vshrl.u32 %v10420, 7
    %v10422 = vsub.s32 %v10419, %v10421
    %v10423 = vrot.slane %v10415, %v10422
    %v10425 = vunpack.c.l.s4 1966171168
    %v10426 = vunpack.c.0.s8 %v10425
    %v10427 = vlaneseq
    %v10428 = vshrl.u32 %v10427, 7
    %v10429 = vsub.s32 %v10426, %v10428
    %v10430 = vrot.slane %v10416, %v10429
    %v10431 = vcombine.low %v10423, %v10430
    %v10432 = vcombine.low %v5315, %v5319
    %v10433 = vcombine.low %v5323, %v5327
    %v10434 = vcombine.low %v5331, %v5335
    %v10435 = vcombine.low %v5339, %v5343
    %v10437 = vunpack.c.l.s4 1966171168
    %v10438 = vunpack.c.0.s8 %v10437
    %v10439 = vlaneseq
    %v10440 = vshrl.u32 %v10439, 7
    %v10441 = vsub.s32 %v10438, %v10440
    %v10442 = vrot.slane %v10432, %v10441
    %v10444 = vunpack.c.l.s4 1966171168
    %v10445 = vunpack.c.0.s8 %v10444
    %v10446 = vlaneseq
    %v10447 = vshrl.u32 %v10446, 7
    %v10448 = vsub.s32 %v10445, %v10447
    %v10449 = vrot.slane %v10433, %v10448
    %v10451 = vunpack.c.l.s4 1966171168
    %v10452 = vunpack.c.0.s8 %v10451
    %v10453 = vlaneseq
    %v10454 = vshrl.u32 %v10453, 7
    %v10455 = vsub.s32 %v10452, %v10454
    %v10456 = vrot.slane %v10434, %v10455
    %v10458 = vunpack.c.l.s4 1966171168
    %v10459 = vunpack.c.0.s8 %v10458
    %v10460 = vlaneseq
    %v10461 = vshrl.u32 %v10460, 7
    %v10462 = vsub.s32 %v10459, %v10461
    %v10463 = vrot.slane %v10435, %v10462
    %v10464 = vcombine.low %v10442, %v10449
    %v10465 = vcombine.low %v10456, %v10463
    %v10467 = vunpack.c.l.s4 1966171168
    %v10468 = vunpack.c.0.s8 %v10467
    %v10469 = vlaneseq
    %v10470 = vshrl.u32 %v10469, 7
    %v10471 = vsub.s32 %v10468, %v10470
    %v10472 = vrot.slane %v10464, %v10471
    %v10474 = vunpack.c.l.s4 1966171168
    %v10475 = vunpack.c.0.s8 %v10474
    %v10476 = vlaneseq
    %v10477 = vshrl.u32 %v10476, 7
    %v10478 = vsub.s32 %v10475, %v10477
    %v10479 = vrot.slane %v10465, %v10478
    %v10480 = vcombine.low %v10472, %v10479
    %v10481 = vcombine.low %v5347, %v5351
    %v10482 = vcombine.low %v5355, %v5359
    %v10483 = vcombine.low %v5363, %v5367
    %v10484 = vcombine.low %v5371, %v5375
    %v10486 = vunpack.c.l.s4 1966171168
    %v10487 = vunpack.c.0.s8 %v10486
    %v10488 = vlaneseq
    %v10489 = vshrl.u32 %v10488, 7
    %v10490 = vsub.s32 %v10487, %v10489
    %v10491 = vrot.slane %v10481, %v10490
    %v10493 = vunpack.c.l.s4 1966171168
    %v10494 = vunpack.c.0.s8 %v10493
    %v10495 = vlaneseq
    %v10496 = vshrl.u32 %v10495, 7
    %v10497 = vsub.s32 %v10494, %v10496
    %v10498 = vrot.slane %v10482, %v10497
    %v10500 = vunpack.c.l.s4 1966171168
    %v10501 = vunpack.c.0.s8 %v10500
    %v10502 = vlaneseq
    %v10503 = vshrl.u32 %v10502, 7
    %v10504 = vsub.s32 %v10501, %v10503
    %v10505 = vrot.slane %v10483, %v10504
    %v10507 = vunpack.c.l.s4 1966171168
    %v10508 = vunpack.c.0.s8 %v10507
    %v10509 = vlaneseq
    %v10510 = vshrl.u32 %v10509, 7
    %v10511 = vsub.s32 %v10508, %v10510
    %v10512 = vrot.slane %v10484, %v10511
    %v10513 = vcombine.low %v10491, %v10498
    %v10514 = vcombine.low %v10505, %v10512
    %v10516 = vunpack.c.l.s4 1966171168
    %v10517 = vunpack.c.0.s8 %v10516
    %v10518 = vlaneseq
    %v10519 = vshrl.u32 %v10518, 7
    %v10520 = vsub.s32 %v10517, %v10519
    %v10521 = vrot.slane %v10513, %v10520
    %v10523 = vunpack.c.l.s4 1966171168
    %v10524 = vunpack.c.0.s8 %v10523
    %v10525 = vlaneseq
    %v10526 = vshrl.u32 %v10525, 7
    %v10527 = vsub.s32 %v10524, %v10526
    %v10528 = vrot.slane %v10514, %v10527
    %v10529 = vcombine.low %v10521, %v10528
    %v10530 = vcombine.low %v5379, %v5383
    %v10531 = vcombine.low %v5387, %v5391
    %v10532 = vcombine.low %v5395, %v5399
    %v10533 = vcombine.low %v5403, %v5407
    %v10535 = vunpack.c.l.s4 1966171168
    %v10536 = vunpack.c.0.s8 %v10535
    %v10537 = vlaneseq
    %v10538 = vshrl.u32 %v10537, 7
    %v10539 = vsub.s32 %v10536, %v10538
    %v10540 = vrot.slane %v10530, %v10539
    %v10542 = vunpack.c.l.s4 1966171168
    %v10543 = vunpack.c.0.s8 %v10542
    %v10544 = vlaneseq
    %v10545 = vshrl.u32 %v10544, 7
    %v10546 = vsub.s32 %v10543, %v10545
    %v10547 = vrot.slane %v10531, %v10546
    %v10549 = vunpack.c.l.s4 1966171168
    %v10550 = vunpack.c.0.s8 %v10549
    %v10551 = vlaneseq
    %v10552 = vshrl.u32 %v10551, 7
    %v10553 = vsub.s32 %v10550, %v10552
    %v10554 = vrot.slane %v10532, %v10553
    %v10556 = vunpack.c.l.s4 1966171168
    %v10557 = vunpack.c.0.s8 %v10556
    %v10558 = vlaneseq
    %v10559 = vshrl.u32 %v10558, 7
    %v10560 = vsub.s32 %v10557, %v10559
    %v10561 = vrot.slane %v10533, %v10560
    %v10562 = vcombine.low %v10540, %v10547
    %v10563 = vcombine.low %v10554, %v10561
    %v10565 = vunpack.c.l.s4 1966171168
    %v10566 = vunpack.c.0.s8 %v10565
    %v10567 = vlaneseq
    %v10568 = vshrl.u32 %v10567, 7
    %v10569 = vsub.s32 %v10566, %v10568
    %v10570 = vrot.slane %v10562, %v10569
    %v10572 = vunpack.c.l.s4 1966171168
    %v10573 = vunpack.c.0.s8 %v10572
    %v10574 = vlaneseq
    %v10575 = vshrl.u32 %v10574, 7
    %v10576 = vsub.s32 %v10573, %v10575
    %v10577 = vrot.slane %v10563, %v10576
    %v10578 = vcombine.low %v10570, %v10577
    %v10579 = vcombine.low %v5411, %v5415
    %v10580 = vcombine.low %v5419, %v5423
    %v10581 = vcombine.low %v5427, %v5431
    %v10582 = vcombine.low %v5435, %v5439
    %v10584 = vunpack.c.l.s4 1966171168
    %v10585 = vunpack.c.0.s8 %v10584
    %v10586 = vlaneseq
    %v10587 = vshrl.u32 %v10586, 7
    %v10588 = vsub.s32 %v10585, %v10587
    %v10589 = vrot.slane %v10579, %v10588
    %v10591 = vunpack.c.l.s4 1966171168
    %v10592 = vunpack.c.0.s8 %v10591
    %v10593 = vlaneseq
    %v10594 = vshrl.u32 %v10593, 7
    %v10595 = vsub.s32 %v10592, %v10594
    %v10596 = vrot.slane %v10580, %v10595
    %v10598 = vunpack.c.l.s4 1966171168
    %v10599 = vunpack.c.0.s8 %v10598
    %v10600 = vlaneseq
    %v10601 = vshrl.u32 %v10600, 7
    %v10602 = vsub.s32 %v10599, %v10601
    %v10603 = vrot.slane %v10581, %v10602
    %v10605 = vunpack.c.l.s4 1966171168
    %v10606 = vunpack.c.0.s8 %v10605
    %v10607 = vlaneseq
    %v10608 = vshrl.u32 %v10607, 7
    %v10609 = vsub.s32 %v10606, %v10608
    %v10610 = vrot.slane %v10582, %v10609
    %v10611 = vcombine.low %v10589, %v10596
    %v10612 = vcombine.low %v10603, %v10610
    %v10614 = vunpack.c.l.s4 1966171168
    %v10615 = vunpack.c.0.s8 %v10614
    %v10616 = vlaneseq
    %v10617 = vshrl.u32 %v10616, 7
    %v10618 = vsub.s32 %v10615, %v10617
    %v10619 = vrot.slane %v10611, %v10618
    %v10621 = vunpack.c.l.s4 1966171168
    %v10622 = vunpack.c.0.s8 %v10621
    %v10623 = vlaneseq
    %v10624 = vshrl.u32 %v10623, 7
    %v10625 = vsub.s32 %v10622, %v10624
    %v10626 = vrot.slane %v10612, %v10625
    %v10627 = vcombine.low %v10619, %v10626
    %v10628 = vcombine.low %v5443, %v5447
    %v10629 = vcombine.low %v5451, %v5455
    %v10630 = vcombine.low %v5459, %v5463
    %v10631 = vcombine.low %v5467, %v5471
    %v10633 = vunpack.c.l.s4 1966171168
    %v10634 = vunpack.c.0.s8 %v10633
    %v10635 = vlaneseq
    %v10636 = vshrl.u32 %v10635, 7
    %v10637 = vsub.s32 %v10634, %v10636
    %v10638 = vrot.slane %v10628, %v10637
    %v10640 = vunpack.c.l.s4 1966171168
    %v10641 = vunpack.c.0.s8 %v10640
    %v10642 = vlaneseq
    %v10643 = vshrl.u32 %v10642, 7
    %v10644 = vsub.s32 %v10641, %v10643
    %v10645 = vrot.slane %v10629, %v10644
    %v10647 = vunpack.c.l.s4 1966171168
    %v10648 = vunpack.c.0.s8 %v10647
    %v10649 = vlaneseq
    %v10650 = vshrl.u32 %v10649, 7
    %v10651 = vsub.s32 %v10648, %v10650
    %v10652 = vrot.slane %v10630, %v10651
    %v10654 = vunpack.c.l.s4 1966171168
    %v10655 = vunpack.c.0.s8 %v10654
    %v10656 = vlaneseq
    %v10657 = vshrl.u32 %v10656, 7
    %v10658 = vsub.s32 %v10655, %v10657
    %v10659 = vrot.slane %v10631, %v10658
    %v10660 = vcombine.low %v10638, %v10645
    %v10661 = vcombine.low %v10652, %v10659
    %v10663 = vunpack.c.l.s4 1966171168
    %v10664 = vunpack.c.0.s8 %v10663
    %v10665 = vlaneseq
    %v10666 = vshrl.u32 %v10665, 7
    %v10667 = vsub.s32 %v10664, %v10666
    %v10668 = vrot.slane %v10660, %v10667
    %v10670 = vunpack.c.l.s4 1966171168
    %v10671 = vunpack.c.0.s8 %v10670
    %v10672 = vlaneseq
    %v10673 = vshrl.u32 %v10672, 7
    %v10674 = vsub.s32 %v10671, %v10673
    %v10675 = vrot.slane %v10661, %v10674
    %v10676 = vcombine.low %v10668, %v10675
    %v10677 = vcombine.low %v5475, %v5479
    %v10678 = vcombine.low %v5483, %v5487
    %v10679 = vcombine.low %v5491, %v5495
    %v10680 = vcombine.low %v5499, %v5503
    %v10682 = vunpack.c.l.s4 1966171168
    %v10683 = vunpack.c.0.s8 %v10682
    %v10684 = vlaneseq
    %v10685 = vshrl.u32 %v10684, 7
    %v10686 = vsub.s32 %v10683, %v10685
    %v10687 = vrot.slane %v10677, %v10686
    %v10689 = vunpack.c.l.s4 1966171168
    %v10690 = vunpack.c.0.s8 %v10689
    %v10691 = vlaneseq
    %v10692 = vshrl.u32 %v10691, 7
    %v10693 = vsub.s32 %v10690, %v10692
    %v10694 = vrot.slane %v10678, %v10693
    %v10696 = vunpack.c.l.s4 1966171168
    %v10697 = vunpack.c.0.s8 %v10696
    %v10698 = vlaneseq
    %v10699 = vshrl.u32 %v10698, 7
    %v10700 = vsub.s32 %v10697, %v10699
    %v10701 = vrot.slane %v10679, %v10700
    %v10703 = vunpack.c.l.s4 1966171168
    %v10704 = vunpack.c.0.s8 %v10703
    %v10705 = vlaneseq
    %v10706 = vshrl.u32 %v10705, 7
    %v10707 = vsub.s32 %v10704, %v10706
    %v10708 = vrot.slane %v10680, %v10707
    %v10709 = vcombine.low %v10687, %v10694
    %v10710 = vcombine.low %v10701, %v10708
    %v10712 = vunpack.c.l.s4 1966171168
    %v10713 = vunpack.c.0.s8 %v10712
    %v10714 = vlaneseq
    %v10715 = vshrl.u32 %v10714, 7
    %v10716 = vsub.s32 %v10713, %v10715
    %v10717 = vrot.slane %v10709, %v10716
    %v10719 = vunpack.c.l.s4 1966171168
    %v10720 = vunpack.c.0.s8 %v10719
    %v10721 = vlaneseq
    %v10722 = vshrl.u32 %v10721, 7
    %v10723 = vsub.s32 %v10720, %v10722
    %v10724 = vrot.slane %v10710, %v10723
    %v10725 = vcombine.low %v10717, %v10724
    %v10726 = vcombine.low %v5507, %v5511
    %v10727 = vcombine.low %v5515, %v5519
    %v10728 = vcombine.low %v5523, %v5527
    %v10729 = vcombine.low %v5531, %v5535
    %v10731 = vunpack.c.l.s4 1966171168
    %v10732 = vunpack.c.0.s8 %v10731
    %v10733 = vlaneseq
    %v10734 = vshrl.u32 %v10733, 7
    %v10735 = vsub.s32 %v10732, %v10734
    %v10736 = vrot.slane %v10726, %v10735
    %v10738 = vunpack.c.l.s4 1966171168
    %v10739 = vunpack.c.0.s8 %v10738
    %v10740 = vlaneseq
    %v10741 = vshrl.u32 %v10740, 7
    %v10742 = vsub.s32 %v10739, %v10741
    %v10743 = vrot.slane %v10727, %v10742
    %v10745 = vunpack.c.l.s4 1966171168
    %v10746 = vunpack.c.0.s8 %v10745
    %v10747 = vlaneseq
    %v10748 = vshrl.u32 %v10747, 7
    %v10749 = vsub.s32 %v10746, %v10748
    %v10750 = vrot.slane %v10728, %v10749
    %v10752 = vunpack.c.l.s4 1966171168
    %v10753 = vunpack.c.0.s8 %v10752
    %v10754 = vlaneseq
    %v10755 = vshrl.u32 %v10754, 7
    %v10756 = vsub.s32 %v10753, %v10755
    %v10757 = vrot.slane %v10729, %v10756
    %v10758 = vcombine.low %v10736, %v10743
    %v10759 = vcombine.low %v10750, %v10757
    %v10761 = vunpack.c.l.s4 1966171168
    %v10762 = vunpack.c.0.s8 %v10761
    %v10763 = vlaneseq
    %v10764 = vshrl.u32 %v10763, 7
    %v10765 = vsub.s32 %v10762, %v10764
    %v10766 = vrot.slane %v10758, %v10765
    %v10768 = vunpack.c.l.s4 1966171168
    %v10769 = vunpack.c.0.s8 %v10768
    %v10770 = vlaneseq
    %v10771 = vshrl.u32 %v10770, 7
    %v10772 = vsub.s32 %v10769, %v10771
    %v10773 = vrot.slane %v10759, %v10772
    %v10774 = vcombine.low %v10766, %v10773
    %v10775 = vcombine.low %v5539, %v5543
    %v10776 = vcombine.low %v5547, %v5551
    %v10777 = vcombine.low %v5555, %v5559
    %v10778 = vcombine.low %v5563, %v5567
    %v10780 = vunpack.c.l.s4 1966171168
    %v10781 = vunpack.c.0.s8 %v10780
    %v10782 = vlaneseq
    %v10783 = vshrl.u32 %v10782, 7
    %v10784 = vsub.s32 %v10781, %v10783
    %v10785 = vrot.slane %v10775, %v10784
    %v10787 = vunpack.c.l.s4 1966171168
    %v10788 = vunpack.c.0.s8 %v10787
    %v10789 = vlaneseq
    %v10790 = vshrl.u32 %v10789, 7
    %v10791 = vsub.s32 %v10788, %v10790
    %v10792 = vrot.slane %v10776, %v10791
    %v10794 = vunpack.c.l.s4 1966171168
    %v10795 = vunpack.c.0.s8 %v10794
    %v10796 = vlaneseq
    %v10797 = vshrl.u32 %v10796, 7
    %v10798 = vsub.s32 %v10795, %v10797
    %v10799 = vrot.slane %v10777, %v10798
    %v10801 = vunpack.c.l.s4 1966171168
    %v10802 = vunpack.c.0.s8 %v10801
    %v10803 = vlaneseq
    %v10804 = vshrl.u32 %v10803, 7
    %v10805 = vsub.s32 %v10802, %v10804
    %v10806 = vrot.slane %v10778, %v10805
    %v10807 = vcombine.low %v10785, %v10792
    %v10808 = vcombine.low %v10799, %v10806
    %v10810 = vunpack.c.l.s4 1966171168
    %v10811 = vunpack.c.0.s8 %v10810
    %v10812 = vlaneseq
    %v10813 = vshrl.u32 %v10812, 7
    %v10814 = vsub.s32 %v10811, %v10813
    %v10815 = vrot.slane %v10807, %v10814
    %v10817 = vunpack.c.l.s4 1966171168
    %v10818 = vunpack.c.0.s8 %v10817
    %v10819 = vlaneseq
    %v10820 = vshrl.u32 %v10819, 7
    %v10821 = vsub.s32 %v10818, %v10820
    %v10822 = vrot.slane %v10808, %v10821
    %v10823 = vcombine.low %v10815, %v10822
    %v10824 = vcombine.low %v5571, %v5575
    %v10825 = vcombine.low %v5579, %v5583
    %v10826 = vcombine.low %v5587, %v5591
    %v10827 = vcombine.low %v5595, %v5599
    %v10829 = vunpack.c.l.s4 1966171168
    %v10830 = vunpack.c.0.s8 %v10829
    %v10831 = vlaneseq
    %v10832 = vshrl.u32 %v10831, 7
    %v10833 = vsub.s32 %v10830, %v10832
    %v10834 = vrot.slane %v10824, %v10833
    %v10836 = vunpack.c.l.s4 1966171168
    %v10837 = vunpack.c.0.s8 %v10836
    %v10838 = vlaneseq
    %v10839 = vshrl.u32 %v10838, 7
    %v10840 = vsub.s32 %v10837, %v10839
    %v10841 = vrot.slane %v10825, %v10840
    %v10843 = vunpack.c.l.s4 1966171168
    %v10844 = vunpack.c.0.s8 %v10843
    %v10845 = vlaneseq
    %v10846 = vshrl.u32 %v10845, 7
    %v10847 = vsub.s32 %v10844, %v10846
    %v10848 = vrot.slane %v10826, %v10847
    %v10850 = vunpack.c.l.s4 1966171168
    %v10851 = vunpack.c.0.s8 %v10850
    %v10852 = vlaneseq
    %v10853 = vshrl.u32 %v10852, 7
    %v10854 = vsub.s32 %v10851, %v10853
    %v10855 = vrot.slane %v10827, %v10854
    %v10856 = vcombine.low %v10834, %v10841
    %v10857 = vcombine.low %v10848, %v10855
    %v10859 = vunpack.c.l.s4 1966171168
    %v10860 = vunpack.c.0.s8 %v10859
    %v10861 = vlaneseq
    %v10862 = vshrl.u32 %v10861, 7
    %v10863 = vsub.s32 %v10860, %v10862
    %v10864 = vrot.slane %v10856, %v10863
    %v10866 = vunpack.c.l.s4 1966171168
    %v10867 = vunpack.c.0.s8 %v10866
    %v10868 = vlaneseq
    %v10869 = vshrl.u32 %v10868, 7
    %v10870 = vsub.s32 %v10867, %v10869
    %v10871 = vrot.slane %v10857, %v10870
    %v10872 = vcombine.low %v10864, %v10871
    %v10873 = vcombine.low %v5603, %v5607
    %v10874 = vcombine.low %v5611, %v5615
    %v10875 = vcombine.low %v5619, %v5623
    %v10876 = vcombine.low %v5627, %v5631
    %v10878 = vunpack.c.l.s4 1966171168
    %v10879 = vunpack.c.0.s8 %v10878
    %v10880 = vlaneseq
    %v10881 = vshrl.u32 %v10880, 7
    %v10882 = vsub.s32 %v10879, %v10881
    %v10883 = vrot.slane %v10873, %v10882
    %v10885 = vunpack.c.l.s4 1966171168
    %v10886 = vunpack.c.0.s8 %v10885
    %v10887 = vlaneseq
    %v10888 = vshrl.u32 %v10887, 7
    %v10889 = vsub.s32 %v10886, %v10888
    %v10890 = vrot.slane %v10874, %v10889
    %v10892 = vunpack.c.l.s4 1966171168
    %v10893 = vunpack.c.0.s8 %v10892
    %v10894 = vlaneseq
    %v10895 = vshrl.u32 %v10894, 7
    %v10896 = vsub.s32 %v10893, %v10895
    %v10897 = vrot.slane %v10875, %v10896
    %v10899 = vunpack.c.l.s4 1966171168
    %v10900 = vunpack.c.0.s8 %v10899
    %v10901 = vlaneseq
    %v10902 = vshrl.u32 %v10901, 7
    %v10903 = vsub.s32 %v10900, %v10902
    %v10904 = vrot.slane %v10876, %v10903
    %v10905 = vcombine.low %v10883, %v10890
    %v10906 = vcombine.low %v10897, %v10904
    %v10908 = vunpack.c.l.s4 1966171168
    %v10909 = vunpack.c.0.s8 %v10908
    %v10910 = vlaneseq
    %v10911 = vshrl.u32 %v10910, 7
    %v10912 = vsub.s32 %v10909, %v10911
    %v10913 = vrot.slane %v10905, %v10912
    %v10915 = vunpack.c.l.s4 1966171168
    %v10916 = vunpack.c.0.s8 %v10915
    %v10917 = vlaneseq
    %v10918 = vshrl.u32 %v10917, 7
    %v10919 = vsub.s32 %v10916, %v10918
    %v10920 = vrot.slane %v10906, %v10919
    %v10921 = vcombine.low %v10913, %v10920
    %v10922 = vcombine.low %v5635, %v5639
    %v10923 = vcombine.low %v5643, %v5647
    %v10924 = vcombine.low %v5651, %v5655
    %v10925 = vcombine.low %v5659, %v5663
    %v10927 = vunpack.c.l.s4 1966171168
    %v10928 = vunpack.c.0.s8 %v10927
    %v10929 = vlaneseq
    %v10930 = vshrl.u32 %v10929, 7
    %v10931 = vsub.s32 %v10928, %v10930
    %v10932 = vrot.slane %v10922, %v10931
    %v10934 = vunpack.c.l.s4 1966171168
    %v10935 = vunpack.c.0.s8 %v10934
    %v10936 = vlaneseq
    %v10937 = vshrl.u32 %v10936, 7
    %v10938 = vsub.s32 %v10935, %v10937
    %v10939 = vrot.slane %v10923, %v10938
    %v10941 = vunpack.c.l.s4 1966171168
    %v10942 = vunpack.c.0.s8 %v10941
    %v10943 = vlaneseq
    %v10944 = vshrl.u32 %v10943, 7
    %v10945 = vsub.s32 %v10942, %v10944
    %v10946 = vrot.slane %v10924, %v10945
    %v10948 = vunpack.c.l.s4 1966171168
    %v10949 = vunpack.c.0.s8 %v10948
    %v10950 = vlaneseq
    %v10951 = vshrl.u32 %v10950, 7
    %v10952 = vsub.s32 %v10949, %v10951
    %v10953 = vrot.slane %v10925, %v10952
    %v10954 = vcombine.low %v10932, %v10939
    %v10955 = vcombine.low %v10946, %v10953
    %v10957 = vunpack.c.l.s4 1966171168
    %v10958 = vunpack.c.0.s8 %v10957
    %v10959 = vlaneseq
    %v10960 = vshrl.u32 %v10959, 7
    %v10961 = vsub.s32 %v10958, %v10960
    %v10962 = vrot.slane %v10954, %v10961
    %v10964 = vunpack.c.l.s4 1966171168
    %v10965 = vunpack.c.0.s8 %v10964
    %v10966 = vlaneseq
    %v10967 = vshrl.u32 %v10966, 7
    %v10968 = vsub.s32 %v10965, %v10967
    %v10969 = vrot.slane %v10955, %v10968
    %v10970 = vcombine.low %v10962, %v10969
    %v10971 = vcombine.low %v5667, %v5671
    %v10972 = vcombine.low %v5675, %v5679
    %v10973 = vcombine.low %v5683, %v5687
    %v10974 = vcombine.low %v5691, %v5695
    %v10976 = vunpack.c.l.s4 1966171168
    %v10977 = vunpack.c.0.s8 %v10976
    %v10978 = vlaneseq
    %v10979 = vshrl.u32 %v10978, 7
    %v10980 = vsub.s32 %v10977, %v10979
    %v10981 = vrot.slane %v10971, %v10980
    %v10983 = vunpack.c.l.s4 1966171168
    %v10984 = vunpack.c.0.s8 %v10983
    %v10985 = vlaneseq
    %v10986 = vshrl.u32 %v10985, 7
    %v10987 = vsub.s32 %v10984, %v10986
    %v10988 = vrot.slane %v10972, %v10987
    %v10990 = vunpack.c.l.s4 1966171168
    %v10991 = vunpack.c.0.s8 %v10990
    %v10992 = vlaneseq
    %v10993 = vshrl.u32 %v10992, 7
    %v10994 = vsub.s32 %v10991, %v10993
    %v10995 = vrot.slane %v10973, %v10994
    %v10997 = vunpack.c.l.s4 1966171168
    %v10998 = vunpack.c.0.s8 %v10997
    %v10999 = vlaneseq
    %v11000 = vshrl.u32 %v10999, 7
    %v11001 = vsub.s32 %v10998, %v11000
    %v11002 = vrot.slane %v10974, %v11001
    %v11003 = vcombine.low %v10981, %v10988
    %v11004 = vcombine.low %v10995, %v11002
    %v11006 = vunpack.c.l.s4 1966171168
    %v11007 = vunpack.c.0.s8 %v11006
    %v11008 = vlaneseq
    %v11009 = vshrl.u32 %v11008, 7
    %v11010 = vsub.s32 %v11007, %v11009
    %v11011 = vrot.slane %v11003, %v11010
    %v11013 = vunpack.c.l.s4 1966171168
    %v11014 = vunpack.c.0.s8 %v11013
    %v11015 = vlaneseq
    %v11016 = vshrl.u32 %v11015, 7
    %v11017 = vsub.s32 %v11014, %v11016
    %v11018 = vrot.slane %v11004, %v11017
    %v11019 = vcombine.low %v11011, %v11018
    %v11020 = vcombine.low %v5699, %v5703
    %v11021 = vcombine.low %v5707, %v5711
    %v11022 = vcombine.low %v5715, %v5719
    %v11023 = vcombine.low %v5723, %v5727
    %v11025 = vunpack.c.l.s4 1966171168
    %v11026 = vunpack.c.0.s8 %v11025
    %v11027 = vlaneseq
    %v11028 = vshrl.u32 %v11027, 7
    %v11029 = vsub.s32 %v11026, %v11028
    %v11030 = vrot.slane %v11020, %v11029
    %v11032 = vunpack.c.l.s4 1966171168
    %v11033 = vunpack.c.0.s8 %v11032
    %v11034 = vlaneseq
    %v11035 = vshrl.u32 %v11034, 7
    %v11036 = vsub.s32 %v11033, %v11035
    %v11037 = vrot.slane %v11021, %v11036
    %v11039 = vunpack.c.l.s4 1966171168
    %v11040 = vunpack.c.0.s8 %v11039
    %v11041 = vlaneseq
    %v11042 = vshrl.u32 %v11041, 7
    %v11043 = vsub.s32 %v11040, %v11042
    %v11044 = vrot.slane %v11022, %v11043
    %v11046 = vunpack.c.l.s4 1966171168
    %v11047 = vunpack.c.0.s8 %v11046
    %v11048 = vlaneseq
    %v11049 = vshrl.u32 %v11048, 7
    %v11050 = vsub.s32 %v11047, %v11049
    %v11051 = vrot.slane %v11023, %v11050
    %v11052 = vcombine.low %v11030, %v11037
    %v11053 = vcombine.low %v11044, %v11051
    %v11055 = vunpack.c.l.s4 1966171168
    %v11056 = vunpack.c.0.s8 %v11055
    %v11057 = vlaneseq
    %v11058 = vshrl.u32 %v11057, 7
    %v11059 = vsub.s32 %v11056, %v11058
    %v11060 = vrot.slane %v11052, %v11059
    %v11062 = vunpack.c.l.s4 1966171168
    %v11063 = vunpack.c.0.s8 %v11062
    %v11064 = vlaneseq
    %v11065 = vshrl.u32 %v11064, 7
    %v11066 = vsub.s32 %v11063, %v11065
    %v11067 = vrot.slane %v11053, %v11066
    %v11068 = vcombine.low %v11060, %v11067
    %v11069 = vcombine.low %v5731, %v5735
    %v11070 = vcombine.low %v5739, %v5743
    %v11071 = vcombine.low %v5747, %v5751
    %v11072 = vcombine.low %v5755, %v5759
    %v11074 = vunpack.c.l.s4 1966171168
    %v11075 = vunpack.c.0.s8 %v11074
    %v11076 = vlaneseq
    %v11077 = vshrl.u32 %v11076, 7
    %v11078 = vsub.s32 %v11075, %v11077
    %v11079 = vrot.slane %v11069, %v11078
    %v11081 = vunpack.c.l.s4 1966171168
    %v11082 = vunpack.c.0.s8 %v11081
    %v11083 = vlaneseq
    %v11084 = vshrl.u32 %v11083, 7
    %v11085 = vsub.s32 %v11082, %v11084
    %v11086 = vrot.slane %v11070, %v11085
    %v11088 = vunpack.c.l.s4 1966171168
    %v11089 = vunpack.c.0.s8 %v11088
    %v11090 = vlaneseq
    %v11091 = vshrl.u32 %v11090, 7
    %v11092 = vsub.s32 %v11089, %v11091
    %v11093 = vrot.slane %v11071, %v11092
    %v11095 = vunpack.c.l.s4 1966171168
    %v11096 = vunpack.c.0.s8 %v11095
    %v11097 = vlaneseq
    %v11098 = vshrl.u32 %v11097, 7
    %v11099 = vsub.s32 %v11096, %v11098
    %v11100 = vrot.slane %v11072, %v11099
    %v11101 = vcombine.low %v11079, %v11086
    %v11102 = vcombine.low %v11093, %v11100
    %v11104 = vunpack.c.l.s4 1966171168
    %v11105 = vunpack.c.0.s8 %v11104
    %v11106 = vlaneseq
    %v11107 = vshrl.u32 %v11106, 7
    %v11108 = vsub.s32 %v11105, %v11107
    %v11109 = vrot.slane %v11101, %v11108
    %v11111 = vunpack.c.l.s4 1966171168
    %v11112 = vunpack.c.0.s8 %v11111
    %v11113 = vlaneseq
    %v11114 = vshrl.u32 %v11113, 7
    %v11115 = vsub.s32 %v11112, %v11114
    %v11116 = vrot.slane %v11102, %v11115
    %v11117 = vcombine.low %v11109, %v11116
    %v11118 = vcombine.low %v5763, %v5767
    %v11119 = vcombine.low %v5771, %v5775
    %v11120 = vcombine.low %v5779, %v5783
    %v11121 = vcombine.low %v5787, %v5791
    %v11123 = vunpack.c.l.s4 1966171168
    %v11124 = vunpack.c.0.s8 %v11123
    %v11125 = vlaneseq
    %v11126 = vshrl.u32 %v11125, 7
    %v11127 = vsub.s32 %v11124, %v11126
    %v11128 = vrot.slane %v11118, %v11127
    %v11130 = vunpack.c.l.s4 1966171168
    %v11131 = vunpack.c.0.s8 %v11130
    %v11132 = vlaneseq
    %v11133 = vshrl.u32 %v11132, 7
    %v11134 = vsub.s32 %v11131, %v11133
    %v11135 = vrot.slane %v11119, %v11134
    %v11137 = vunpack.c.l.s4 1966171168
    %v11138 = vunpack.c.0.s8 %v11137
    %v11139 = vlaneseq
    %v11140 = vshrl.u32 %v11139, 7
    %v11141 = vsub.s32 %v11138, %v11140
    %v11142 = vrot.slane %v11120, %v11141
    %v11144 = vunpack.c.l.s4 1966171168
    %v11145 = vunpack.c.0.s8 %v11144
    %v11146 = vlaneseq
    %v11147 = vshrl.u32 %v11146, 7
    %v11148 = vsub.s32 %v11145, %v11147
    %v11149 = vrot.slane %v11121, %v11148
    %v11150 = vcombine.low %v11128, %v11135
    %v11151 = vcombine.low %v11142, %v11149
    %v11153 = vunpack.c.l.s4 1966171168
    %v11154 = vunpack.c.0.s8 %v11153
    %v11155 = vlaneseq
    %v11156 = vshrl.u32 %v11155, 7
    %v11157 = vsub.s32 %v11154, %v11156
    %v11158 = vrot.slane %v11150, %v11157
    %v11160 = vunpack.c.l.s4 1966171168
    %v11161 = vunpack.c.0.s8 %v11160
    %v11162 = vlaneseq
    %v11163 = vshrl.u32 %v11162, 7
    %v11164 = vsub.s32 %v11161, %v11163
    %v11165 = vrot.slane %v11151, %v11164
    %v11166 = vcombine.low %v11158, %v11165
    %v11167 = vcombine.low %v5795, %v5799
    %v11168 = vcombine.low %v5803, %v5807
    %v11169 = vcombine.low %v5811, %v5815
    %v11170 = vcombine.low %v5819, %v5823
    %v11172 = vunpack.c.l.s4 1966171168
    %v11173 = vunpack.c.0.s8 %v11172
    %v11174 = vlaneseq
    %v11175 = vshrl.u32 %v11174, 7
    %v11176 = vsub.s32 %v11173, %v11175
    %v11177 = vrot.slane %v11167, %v11176
    %v11179 = vunpack.c.l.s4 1966171168
    %v11180 = vunpack.c.0.s8 %v11179
    %v11181 = vlaneseq
    %v11182 = vshrl.u32 %v11181, 7
    %v11183 = vsub.s32 %v11180, %v11182
    %v11184 = vrot.slane %v11168, %v11183
    %v11186 = vunpack.c.l.s4 1966171168
    %v11187 = vunpack.c.0.s8 %v11186
    %v11188 = vlaneseq
    %v11189 = vshrl.u32 %v11188, 7
    %v11190 = vsub.s32 %v11187, %v11189
    %v11191 = vrot.slane %v11169, %v11190
    %v11193 = vunpack.c.l.s4 1966171168
    %v11194 = vunpack.c.0.s8 %v11193
    %v11195 = vlaneseq
    %v11196 = vshrl.u32 %v11195, 7
    %v11197 = vsub.s32 %v11194, %v11196
    %v11198 = vrot.slane %v11170, %v11197
    %v11199 = vcombine.low %v11177, %v11184
    %v11200 = vcombine.low %v11191, %v11198
    %v11202 = vunpack.c.l.s4 1966171168
    %v11203 = vunpack.c.0.s8 %v11202
    %v11204 = vlaneseq
    %v11205 = vshrl.u32 %v11204, 7
    %v11206 = vsub.s32 %v11203, %v11205
    %v11207 = vrot.slane %v11199, %v11206
    %v11209 = vunpack.c.l.s4 1966171168
    %v11210 = vunpack.c.0.s8 %v11209
    %v11211 = vlaneseq
    %v11212 = vshrl.u32 %v11211, 7
    %v11213 = vsub.s32 %v11210, %v11212
    %v11214 = vrot.slane %v11200, %v11213
    %v11215 = vcombine.low %v11207, %v11214
    %v11216 = vcombine.low %v5827, %v5831
    %v11217 = vcombine.low %v5835, %v5839
    %v11218 = vcombine.low %v5843, %v5847
    %v11219 = vcombine.low %v5851, %v5855
    %v11221 = vunpack.c.l.s4 1966171168
    %v11222 = vunpack.c.0.s8 %v11221
    %v11223 = vlaneseq
    %v11224 = vshrl.u32 %v11223, 7
    %v11225 = vsub.s32 %v11222, %v11224
    %v11226 = vrot.slane %v11216, %v11225
    %v11228 = vunpack.c.l.s4 1966171168
    %v11229 = vunpack.c.0.s8 %v11228
    %v11230 = vlaneseq
    %v11231 = vshrl.u32 %v11230, 7
    %v11232 = vsub.s32 %v11229, %v11231
    %v11233 = vrot.slane %v11217, %v11232
    %v11235 = vunpack.c.l.s4 1966171168
    %v11236 = vunpack.c.0.s8 %v11235
    %v11237 = vlaneseq
    %v11238 = vshrl.u32 %v11237, 7
    %v11239 = vsub.s32 %v11236, %v11238
    %v11240 = vrot.slane %v11218, %v11239
    %v11242 = vunpack.c.l.s4 1966171168
    %v11243 = vunpack.c.0.s8 %v11242
    %v11244 = vlaneseq
    %v11245 = vshrl.u32 %v11244, 7
    %v11246 = vsub.s32 %v11243, %v11245
    %v11247 = vrot.slane %v11219, %v11246
    %v11248 = vcombine.low %v11226, %v11233
    %v11249 = vcombine.low %v11240, %v11247
    %v11251 = vunpack.c.l.s4 1966171168
    %v11252 = vunpack.c.0.s8 %v11251
    %v11253 = vlaneseq
    %v11254 = vshrl.u32 %v11253, 7
    %v11255 = vsub.s32 %v11252, %v11254
    %v11256 = vrot.slane %v11248, %v11255
    %v11258 = vunpack.c.l.s4 1966171168
    %v11259 = vunpack.c.0.s8 %v11258
    %v11260 = vlaneseq
    %v11261 = vshrl.u32 %v11260, 7
    %v11262 = vsub.s32 %v11259, %v11261
    %v11263 = vrot.slane %v11249, %v11262
    %v11264 = vcombine.low %v11256, %v11263
    %v11265 = vcombine.low %v5859, %v5863
    %v11266 = vcombine.low %v5867, %v5871
    %v11267 = vcombine.low %v5875, %v5879
    %v11268 = vcombine.low %v5883, %v5887
    %v11270 = vunpack.c.l.s4 1966171168
    %v11271 = vunpack.c.0.s8 %v11270
    %v11272 = vlaneseq
    %v11273 = vshrl.u32 %v11272, 7
    %v11274 = vsub.s32 %v11271, %v11273
    %v11275 = vrot.slane %v11265, %v11274
    %v11277 = vunpack.c.l.s4 1966171168
    %v11278 = vunpack.c.0.s8 %v11277
    %v11279 = vlaneseq
    %v11280 = vshrl.u32 %v11279, 7
    %v11281 = vsub.s32 %v11278, %v11280
    %v11282 = vrot.slane %v11266, %v11281
    %v11284 = vunpack.c.l.s4 1966171168
    %v11285 = vunpack.c.0.s8 %v11284
    %v11286 = vlaneseq
    %v11287 = vshrl.u32 %v11286, 7
    %v11288 = vsub.s32 %v11285, %v11287
    %v11289 = vrot.slane %v11267, %v11288
    %v11291 = vunpack.c.l.s4 1966171168
    %v11292 = vunpack.c.0.s8 %v11291
    %v11293 = vlaneseq
    %v11294 = vshrl.u32 %v11293, 7
    %v11295 = vsub.s32 %v11292, %v11294
    %v11296 = vrot.slane %v11268, %v11295
    %v11297 = vcombine.low %v11275, %v11282
    %v11298 = vcombine.low %v11289, %v11296
    %v11300 = vunpack.c.l.s4 1966171168
    %v11301 = vunpack.c.0.s8 %v11300
    %v11302 = vlaneseq
    %v11303 = vshrl.u32 %v11302, 7
    %v11304 = vsub.s32 %v11301, %v11303
    %v11305 = vrot.slane %v11297, %v11304
    %v11307 = vunpack.c.l.s4 1966171168
    %v11308 = vunpack.c.0.s8 %v11307
    %v11309 = vlaneseq
    %v11310 = vshrl.u32 %v11309, 7
    %v11311 = vsub.s32 %v11308, %v11310
    %v11312 = vrot.slane %v11298, %v11311
    %v11313 = vcombine.low %v11305, %v11312
    %v11314 = vcombine.low %v5891, %v5895
    %v11315 = vcombine.low %v5899, %v5903
    %v11316 = vcombine.low %v5907, %v5911
    %v11317 = vcombine.low %v5915, %v5919
    %v11319 = vunpack.c.l.s4 1966171168
    %v11320 = vunpack.c.0.s8 %v11319
    %v11321 = vlaneseq
    %v11322 = vshrl.u32 %v11321, 7
    %v11323 = vsub.s32 %v11320, %v11322
    %v11324 = vrot.slane %v11314, %v11323
    %v11326 = vunpack.c.l.s4 1966171168
    %v11327 = vunpack.c.0.s8 %v11326
    %v11328 = vlaneseq
    %v11329 = vshrl.u32 %v11328, 7
    %v11330 = vsub.s32 %v11327, %v11329
    %v11331 = vrot.slane %v11315, %v11330
    %v11333 = vunpack.c.l.s4 1966171168
    %v11334 = vunpack.c.0.s8 %v11333
    %v11335 = vlaneseq
    %v11336 = vshrl.u32 %v11335, 7
    %v11337 = vsub.s32 %v11334, %v11336
    %v11338 = vrot.slane %v11316, %v11337
    %v11340 = vunpack.c.l.s4 1966171168
    %v11341 = vunpack.c.0.s8 %v11340
    %v11342 = vlaneseq
    %v11343 = vshrl.u32 %v11342, 7
    %v11344 = vsub.s32 %v11341, %v11343
    %v11345 = vrot.slane %v11317, %v11344
    %v11346 = vcombine.low %v11324, %v11331
    %v11347 = vcombine.low %v11338, %v11345
    %v11349 = vunpack.c.l.s4 1966171168
    %v11350 = vunpack.c.0.s8 %v11349
    %v11351 = vlaneseq
    %v11352 = vshrl.u32 %v11351, 7
    %v11353 = vsub.s32 %v11350, %v11352
    %v11354 = vrot.slane %v11346, %v11353
    %v11356 = vunpack.c.l.s4 1966171168
    %v11357 = vunpack.c.0.s8 %v11356
    %v11358 = vlaneseq
    %v11359 = vshrl.u32 %v11358, 7
    %v11360 = vsub.s32 %v11357, %v11359
    %v11361 = vrot.slane %v11347, %v11360
    %v11362 = vcombine.low %v11354, %v11361
    %v11363 = vcombine.low %v5923, %v5927
    %v11364 = vcombine.low %v5931, %v5935
    %v11365 = vcombine.low %v5939, %v5943
    %v11366 = vcombine.low %v5947, %v5951
    %v11368 = vunpack.c.l.s4 1966171168
    %v11369 = vunpack.c.0.s8 %v11368
    %v11370 = vlaneseq
    %v11371 = vshrl.u32 %v11370, 7
    %v11372 = vsub.s32 %v11369, %v11371
    %v11373 = vrot.slane %v11363, %v11372
    %v11375 = vunpack.c.l.s4 1966171168
    %v11376 = vunpack.c.0.s8 %v11375
    %v11377 = vlaneseq
    %v11378 = vshrl.u32 %v11377, 7
    %v11379 = vsub.s32 %v11376, %v11378
    %v11380 = vrot.slane %v11364, %v11379
    %v11382 = vunpack.c.l.s4 1966171168
    %v11383 = vunpack.c.0.s8 %v11382
    %v11384 = vlaneseq
    %v11385 = vshrl.u32 %v11384, 7
    %v11386 = vsub.s32 %v11383, %v11385
    %v11387 = vrot.slane %v11365, %v11386
    %v11389 = vunpack.c.l.s4 1966171168
    %v11390 = vunpack.c.0.s8 %v11389
    %v11391 = vlaneseq
    %v11392 = vshrl.u32 %v11391, 7
    %v11393 = vsub.s32 %v11390, %v11392
    %v11394 = vrot.slane %v11366, %v11393
    %v11395 = vcombine.low %v11373, %v11380
    %v11396 = vcombine.low %v11387, %v11394
    %v11398 = vunpack.c.l.s4 1966171168
    %v11399 = vunpack.c.0.s8 %v11398
    %v11400 = vlaneseq
    %v11401 = vshrl.u32 %v11400, 7
    %v11402 = vsub.s32 %v11399, %v11401
    %v11403 = vrot.slane %v11395, %v11402
    %v11405 = vunpack.c.l.s4 1966171168
    %v11406 = vunpack.c.0.s8 %v11405
    %v11407 = vlaneseq
    %v11408 = vshrl.u32 %v11407, 7
    %v11409 = vsub.s32 %v11406, %v11408
    %v11410 = vrot.slane %v11396, %v11409
    %v11411 = vcombine.low %v11403, %v11410
    %v11412 = vcombine.low %v5955, %v5959
    %v11413 = vcombine.low %v5963, %v5967
    %v11414 = vcombine.low %v5971, %v5975
    %v11415 = vcombine.low %v5979, %v5983
    %v11417 = vunpack.c.l.s4 1966171168
    %v11418 = vunpack.c.0.s8 %v11417
    %v11419 = vlaneseq
    %v11420 = vshrl.u32 %v11419, 7
    %v11421 = vsub.s32 %v11418, %v11420
    %v11422 = vrot.slane %v11412, %v11421
    %v11424 = vunpack.c.l.s4 1966171168
    %v11425 = vunpack.c.0.s8 %v11424
    %v11426 = vlaneseq
    %v11427 = vshrl.u32 %v11426, 7
    %v11428 = vsub.s32 %v11425, %v11427
    %v11429 = vrot.slane %v11413, %v11428
    %v11431 = vunpack.c.l.s4 1966171168
    %v11432 = vunpack.c.0.s8 %v11431
    %v11433 = vlaneseq
    %v11434 = vshrl.u32 %v11433, 7
    %v11435 = vsub.s32 %v11432, %v11434
    %v11436 = vrot.slane %v11414, %v11435
    %v11438 = vunpack.c.l.s4 1966171168
    %v11439 = vunpack.c.0.s8 %v11438
    %v11440 = vlaneseq
    %v11441 = vshrl.u32 %v11440, 7
    %v11442 = vsub.s32 %v11439, %v11441
    %v11443 = vrot.slane %v11415, %v11442
    %v11444 = vcombine.low %v11422, %v11429
    %v11445 = vcombine.low %v11436, %v11443
    %v11447 = vunpack.c.l.s4 1966171168
    %v11448 = vunpack.c.0.s8 %v11447
    %v11449 = vlaneseq
    %v11450 = vshrl.u32 %v11449, 7
    %v11451 = vsub.s32 %v11448, %v11450
    %v11452 = vrot.slane %v11444, %v11451
    %v11454 = vunpack.c.l.s4 1966171168
    %v11455 = vunpack.c.0.s8 %v11454
    %v11456 = vlaneseq
    %v11457 = vshrl.u32 %v11456, 7
    %v11458 = vsub.s32 %v11455, %v11457
    %v11459 = vrot.slane %v11445, %v11458
    %v11460 = vcombine.low %v11452, %v11459
    %v11461 = vcombine.low %v5987, %v5991
    %v11462 = vcombine.low %v5995, %v5999
    %v11463 = vcombine.low %v6003, %v6007
    %v11464 = vcombine.low %v6011, %v6015
    %v11466 = vunpack.c.l.s4 1966171168
    %v11467 = vunpack.c.0.s8 %v11466
    %v11468 = vlaneseq
    %v11469 = vshrl.u32 %v11468, 7
    %v11470 = vsub.s32 %v11467, %v11469
    %v11471 = vrot.slane %v11461, %v11470
    %v11473 = vunpack.c.l.s4 1966171168
    %v11474 = vunpack.c.0.s8 %v11473
    %v11475 = vlaneseq
    %v11476 = vshrl.u32 %v11475, 7
    %v11477 = vsub.s32 %v11474, %v11476
    %v11478 = vrot.slane %v11462, %v11477
    %v11480 = vunpack.c.l.s4 1966171168
    %v11481 = vunpack.c.0.s8 %v11480
    %v11482 = vlaneseq
    %v11483 = vshrl.u32 %v11482, 7
    %v11484 = vsub.s32 %v11481, %v11483
    %v11485 = vrot.slane %v11463, %v11484
    %v11487 = vunpack.c.l.s4 1966171168
    %v11488 = vunpack.c.0.s8 %v11487
    %v11489 = vlaneseq
    %v11490 = vshrl.u32 %v11489, 7
    %v11491 = vsub.s32 %v11488, %v11490
    %v11492 = vrot.slane %v11464, %v11491
    %v11493 = vcombine.low %v11471, %v11478
    %v11494 = vcombine.low %v11485, %v11492
    %v11496 = vunpack.c.l.s4 1966171168
    %v11497 = vunpack.c.0.s8 %v11496
    %v11498 = vlaneseq
    %v11499 = vshrl.u32 %v11498, 7
    %v11500 = vsub.s32 %v11497, %v11499
    %v11501 = vrot.slane %v11493, %v11500
    %v11503 = vunpack.c.l.s4 1966171168
    %v11504 = vunpack.c.0.s8 %v11503
    %v11505 = vlaneseq
    %v11506 = vshrl.u32 %v11505, 7
    %v11507 = vsub.s32 %v11504, %v11506
    %v11508 = vrot.slane %v11494, %v11507
    %v11509 = vcombine.low %v11501, %v11508
    %v11510 = vcombine.low %v6019, %v6023
    %v11511 = vcombine.low %v6027, %v6031
    %v11512 = vcombine.low %v6035, %v6039
    %v11513 = vcombine.low %v6043, %v6047
    %v11515 = vunpack.c.l.s4 1966171168
    %v11516 = vunpack.c.0.s8 %v11515
    %v11517 = vlaneseq
    %v11518 = vshrl.u32 %v11517, 7
    %v11519 = vsub.s32 %v11516, %v11518
    %v11520 = vrot.slane %v11510, %v11519
    %v11522 = vunpack.c.l.s4 1966171168
    %v11523 = vunpack.c.0.s8 %v11522
    %v11524 = vlaneseq
    %v11525 = vshrl.u32 %v11524, 7
    %v11526 = vsub.s32 %v11523, %v11525
    %v11527 = vrot.slane %v11511, %v11526
    %v11529 = vunpack.c.l.s4 1966171168
    %v11530 = vunpack.c.0.s8 %v11529
    %v11531 = vlaneseq
    %v11532 = vshrl.u32 %v11531, 7
    %v11533 = vsub.s32 %v11530, %v11532
    %v11534 = vrot.slane %v11512, %v11533
    %v11536 = vunpack.c.l.s4 1966171168
    %v11537 = vunpack.c.0.s8 %v11536
    %v11538 = vlaneseq
    %v11539 = vshrl.u32 %v11538, 7
    %v11540 = vsub.s32 %v11537, %v11539
    %v11541 = vrot.slane %v11513, %v11540
    %v11542 = vcombine.low %v11520, %v11527
    %v11543 = vcombine.low %v11534, %v11541
    %v11545 = vunpack.c.l.s4 1966171168
    %v11546 = vunpack.c.0.s8 %v11545
    %v11547 = vlaneseq
    %v11548 = vshrl.u32 %v11547, 7
    %v11549 = vsub.s32 %v11546, %v11548
    %v11550 = vrot.slane %v11542, %v11549
    %v11552 = vunpack.c.l.s4 1966171168
    %v11553 = vunpack.c.0.s8 %v11552
    %v11554 = vlaneseq
    %v11555 = vshrl.u32 %v11554, 7
    %v11556 = vsub.s32 %v11553, %v11555
    %v11557 = vrot.slane %v11543, %v11556
    %v11558 = vcombine.low %v11550, %v11557
    %v11559 = vcombine.low %v6051, %v6055
    %v11560 = vcombine.low %v6059, %v6063
    %v11561 = vcombine.low %v6067, %v6071
    %v11562 = vcombine.low %v6075, %v6079
    %v11564 = vunpack.c.l.s4 1966171168
    %v11565 = vunpack.c.0.s8 %v11564
    %v11566 = vlaneseq
    %v11567 = vshrl.u32 %v11566, 7
    %v11568 = vsub.s32 %v11565, %v11567
    %v11569 = vrot.slane %v11559, %v11568
    %v11571 = vunpack.c.l.s4 1966171168
    %v11572 = vunpack.c.0.s8 %v11571
    %v11573 = vlaneseq
    %v11574 = vshrl.u32 %v11573, 7
    %v11575 = vsub.s32 %v11572, %v11574
    %v11576 = vrot.slane %v11560, %v11575
    %v11578 = vunpack.c.l.s4 1966171168
    %v11579 = vunpack.c.0.s8 %v11578
    %v11580 = vlaneseq
    %v11581 = vshrl.u32 %v11580, 7
    %v11582 = vsub.s32 %v11579, %v11581
    %v11583 = vrot.slane %v11561, %v11582
    %v11585 = vunpack.c.l.s4 1966171168
    %v11586 = vunpack.c.0.s8 %v11585
    %v11587 = vlaneseq
    %v11588 = vshrl.u32 %v11587, 7
    %v11589 = vsub.s32 %v11586, %v11588
    %v11590 = vrot.slane %v11562, %v11589
    %v11591 = vcombine.low %v11569, %v11576
    %v11592 = vcombine.low %v11583, %v11590
    %v11594 = vunpack.c.l.s4 1966171168
    %v11595 = vunpack.c.0.s8 %v11594
    %v11596 = vlaneseq
    %v11597 = vshrl.u32 %v11596, 7
    %v11598 = vsub.s32 %v11595, %v11597
    %v11599 = vrot.slane %v11591, %v11598
    %v11601 = vunpack.c.l.s4 1966171168
    %v11602 = vunpack.c.0.s8 %v11601
    %v11603 = vlaneseq
    %v11604 = vshrl.u32 %v11603, 7
    %v11605 = vsub.s32 %v11602, %v11604
    %v11606 = vrot.slane %v11592, %v11605
    %v11607 = vcombine.low %v11599, %v11606
    %v11608 = vcombine.low %v6083, %v6087
    %v11609 = vcombine.low %v6091, %v6095
    %v11610 = vcombine.low %v6099, %v6103
    %v11611 = vcombine.low %v6107, %v6111
    %v11613 = vunpack.c.l.s4 1966171168
    %v11614 = vunpack.c.0.s8 %v11613
    %v11615 = vlaneseq
    %v11616 = vshrl.u32 %v11615, 7
    %v11617 = vsub.s32 %v11614, %v11616
    %v11618 = vrot.slane %v11608, %v11617
    %v11620 = vunpack.c.l.s4 1966171168
    %v11621 = vunpack.c.0.s8 %v11620
    %v11622 = vlaneseq
    %v11623 = vshrl.u32 %v11622, 7
    %v11624 = vsub.s32 %v11621, %v11623
    %v11625 = vrot.slane %v11609, %v11624
    %v11627 = vunpack.c.l.s4 1966171168
    %v11628 = vunpack.c.0.s8 %v11627
    %v11629 = vlaneseq
    %v11630 = vshrl.u32 %v11629, 7
    %v11631 = vsub.s32 %v11628, %v11630
    %v11632 = vrot.slane %v11610, %v11631
    %v11634 = vunpack.c.l.s4 1966171168
    %v11635 = vunpack.c.0.s8 %v11634
    %v11636 = vlaneseq
    %v11637 = vshrl.u32 %v11636, 7
    %v11638 = vsub.s32 %v11635, %v11637
    %v11639 = vrot.slane %v11611, %v11638
    %v11640 = vcombine.low %v11618, %v11625
    %v11641 = vcombine.low %v11632, %v11639
    %v11643 = vunpack.c.l.s4 1966171168
    %v11644 = vunpack.c.0.s8 %v11643
    %v11645 = vlaneseq
    %v11646 = vshrl.u32 %v11645, 7
    %v11647 = vsub.s32 %v11644, %v11646
    %v11648 = vrot.slane %v11640, %v11647
    %v11650 = vunpack.c.l.s4 1966171168
    %v11651 = vunpack.c.0.s8 %v11650
    %v11652 = vlaneseq
    %v11653 = vshrl.u32 %v11652, 7
    %v11654 = vsub.s32 %v11651, %v11653
    %v11655 = vrot.slane %v11641, %v11654
    %v11656 = vcombine.low %v11648, %v11655
    %v11657 = vcombine.low %v6115, %v6119
    %v11658 = vcombine.low %v6123, %v6127
    %v11659 = vcombine.low %v6131, %v6135
    %v11660 = vcombine.low %v6139, %v6143
    %v11662 = vunpack.c.l.s4 1966171168
    %v11663 = vunpack.c.0.s8 %v11662
    %v11664 = vlaneseq
    %v11665 = vshrl.u32 %v11664, 7
    %v11666 = vsub.s32 %v11663, %v11665
    %v11667 = vrot.slane %v11657, %v11666
    %v11669 = vunpack.c.l.s4 1966171168
    %v11670 = vunpack.c.0.s8 %v11669
    %v11671 = vlaneseq
    %v11672 = vshrl.u32 %v11671, 7
    %v11673 = vsub.s32 %v11670, %v11672
    %v11674 = vrot.slane %v11658, %v11673
    %v11676 = vunpack.c.l.s4 1966171168
    %v11677 = vunpack.c.0.s8 %v11676
    %v11678 = vlaneseq
    %v11679 = vshrl.u32 %v11678, 7
    %v11680 = vsub.s32 %v11677, %v11679
    %v11681 = vrot.slane %v11659, %v11680
    %v11683 = vunpack.c.l.s4 1966171168
    %v11684 = vunpack.c.0.s8 %v11683
    %v11685 = vlaneseq
    %v11686 = vshrl.u32 %v11685, 7
    %v11687 = vsub.s32 %v11684, %v11686
    %v11688 = vrot.slane %v11660, %v11687
    %v11689 = vcombine.low %v11667, %v11674
    %v11690 = vcombine.low %v11681, %v11688
    %v11692 = vunpack.c.l.s4 1966171168
    %v11693 = vunpack.c.0.s8 %v11692
    %v11694 = vlaneseq
    %v11695 = vshrl.u32 %v11694, 7
    %v11696 = vsub.s32 %v11693, %v11695
    %v11697 = vrot.slane %v11689, %v11696
    %v11699 = vunpack.c.l.s4 1966171168
    %v11700 = vunpack.c.0.s8 %v11699
    %v11701 = vlaneseq
    %v11702 = vshrl.u32 %v11701, 7
    %v11703 = vsub.s32 %v11700, %v11702
    %v11704 = vrot.slane %v11690, %v11703
    %v11705 = vcombine.low %v11697, %v11704
    %v11706 = vcombine.low %v6147, %v6151
    %v11707 = vcombine.low %v6155, %v6159
    %v11708 = vcombine.low %v6163, %v6167
    %v11709 = vcombine.low %v6171, %v6175
    %v11711 = vunpack.c.l.s4 1966171168
    %v11712 = vunpack.c.0.s8 %v11711
    %v11713 = vlaneseq
    %v11714 = vshrl.u32 %v11713, 7
    %v11715 = vsub.s32 %v11712, %v11714
    %v11716 = vrot.slane %v11706, %v11715
    %v11718 = vunpack.c.l.s4 1966171168
    %v11719 = vunpack.c.0.s8 %v11718
    %v11720 = vlaneseq
    %v11721 = vshrl.u32 %v11720, 7
    %v11722 = vsub.s32 %v11719, %v11721
    %v11723 = vrot.slane %v11707, %v11722
    %v11725 = vunpack.c.l.s4 1966171168
    %v11726 = vunpack.c.0.s8 %v11725
    %v11727 = vlaneseq
    %v11728 = vshrl.u32 %v11727, 7
    %v11729 = vsub.s32 %v11726, %v11728
    %v11730 = vrot.slane %v11708, %v11729
    %v11732 = vunpack.c.l.s4 1966171168
    %v11733 = vunpack.c.0.s8 %v11732
    %v11734 = vlaneseq
    %v11735 = vshrl.u32 %v11734, 7
    %v11736 = vsub.s32 %v11733, %v11735
    %v11737 = vrot.slane %v11709, %v11736
    %v11738 = vcombine.low %v11716, %v11723
    %v11739 = vcombine.low %v11730, %v11737
    %v11741 = vunpack.c.l.s4 1966171168
    %v11742 = vunpack.c.0.s8 %v11741
    %v11743 = vlaneseq
    %v11744 = vshrl.u32 %v11743, 7
    %v11745 = vsub.s32 %v11742, %v11744
    %v11746 = vrot.slane %v11738, %v11745
    %v11748 = vunpack.c.l.s4 1966171168
    %v11749 = vunpack.c.0.s8 %v11748
    %v11750 = vlaneseq
    %v11751 = vshrl.u32 %v11750, 7
    %v11752 = vsub.s32 %v11749, %v11751
    %v11753 = vrot.slane %v11739, %v11752
    %v11754 = vcombine.low %v11746, %v11753
    %v11755 = vcombine.low %v6179, %v6183
    %v11756 = vcombine.low %v6187, %v6191
    %v11757 = vcombine.low %v6195, %v6199
    %v11758 = vcombine.low %v6203, %v6207
    %v11760 = vunpack.c.l.s4 1966171168
    %v11761 = vunpack.c.0.s8 %v11760
    %v11762 = vlaneseq
    %v11763 = vshrl.u32 %v11762, 7
    %v11764 = vsub.s32 %v11761, %v11763
    %v11765 = vrot.slane %v11755, %v11764
    %v11767 = vunpack.c.l.s4 1966171168
    %v11768 = vunpack.c.0.s8 %v11767
    %v11769 = vlaneseq
    %v11770 = vshrl.u32 %v11769, 7
    %v11771 = vsub.s32 %v11768, %v11770
    %v11772 = vrot.slane %v11756, %v11771
    %v11774 = vunpack.c.l.s4 1966171168
    %v11775 = vunpack.c.0.s8 %v11774
    %v11776 = vlaneseq
    %v11777 = vshrl.u32 %v11776, 7
    %v11778 = vsub.s32 %v11775, %v11777
    %v11779 = vrot.slane %v11757, %v11778
    %v11781 = vunpack.c.l.s4 1966171168
    %v11782 = vunpack.c.0.s8 %v11781
    %v11783 = vlaneseq
    %v11784 = vshrl.u32 %v11783, 7
    %v11785 = vsub.s32 %v11782, %v11784
    %v11786 = vrot.slane %v11758, %v11785
    %v11787 = vcombine.low %v11765, %v11772
    %v11788 = vcombine.low %v11779, %v11786
    %v11790 = vunpack.c.l.s4 1966171168
    %v11791 = vunpack.c.0.s8 %v11790
    %v11792 = vlaneseq
    %v11793 = vshrl.u32 %v11792, 7
    %v11794 = vsub.s32 %v11791, %v11793
    %v11795 = vrot.slane %v11787, %v11794
    %v11797 = vunpack.c.l.s4 1966171168
    %v11798 = vunpack.c.0.s8 %v11797
    %v11799 = vlaneseq
    %v11800 = vshrl.u32 %v11799, 7
    %v11801 = vsub.s32 %v11798, %v11800
    %v11802 = vrot.slane %v11788, %v11801
    %v11803 = vcombine.low %v11795, %v11802
    %v11804 = vcombine.low %v6211, %v6215
    %v11805 = vcombine.low %v6219, %v6223
    %v11806 = vcombine.low %v6227, %v6231
    %v11807 = vcombine.low %v6235, %v6239
    %v11809 = vunpack.c.l.s4 1966171168
    %v11810 = vunpack.c.0.s8 %v11809
    %v11811 = vlaneseq
    %v11812 = vshrl.u32 %v11811, 7
    %v11813 = vsub.s32 %v11810, %v11812
    %v11814 = vrot.slane %v11804, %v11813
    %v11816 = vunpack.c.l.s4 1966171168
    %v11817 = vunpack.c.0.s8 %v11816
    %v11818 = vlaneseq
    %v11819 = vshrl.u32 %v11818, 7
    %v11820 = vsub.s32 %v11817, %v11819
    %v11821 = vrot.slane %v11805, %v11820
    %v11823 = vunpack.c.l.s4 1966171168
    %v11824 = vunpack.c.0.s8 %v11823
    %v11825 = vlaneseq
    %v11826 = vshrl.u32 %v11825, 7
    %v11827 = vsub.s32 %v11824, %v11826
    %v11828 = vrot.slane %v11806, %v11827
    %v11830 = vunpack.c.l.s4 1966171168
    %v11831 = vunpack.c.0.s8 %v11830
    %v11832 = vlaneseq
    %v11833 = vshrl.u32 %v11832, 7
    %v11834 = vsub.s32 %v11831, %v11833
    %v11835 = vrot.slane %v11807, %v11834
    %v11836 = vcombine.low %v11814, %v11821
    %v11837 = vcombine.low %v11828, %v11835
    %v11839 = vunpack.c.l.s4 1966171168
    %v11840 = vunpack.c.0.s8 %v11839
    %v11841 = vlaneseq
    %v11842 = vshrl.u32 %v11841, 7
    %v11843 = vsub.s32 %v11840, %v11842
    %v11844 = vrot.slane %v11836, %v11843
    %v11846 = vunpack.c.l.s4 1966171168
    %v11847 = vunpack.c.0.s8 %v11846
    %v11848 = vlaneseq
    %v11849 = vshrl.u32 %v11848, 7
    %v11850 = vsub.s32 %v11847, %v11849
    %v11851 = vrot.slane %v11837, %v11850
    %v11852 = vcombine.low %v11844, %v11851
    %v11853 = vcombine.low %v6243, %v6247
    %v11854 = vcombine.low %v6251, %v6255
    %v11855 = vcombine.low %v6259, %v6263
    %v11856 = vcombine.low %v6267, %v6271
    %v11858 = vunpack.c.l.s4 1966171168
    %v11859 = vunpack.c.0.s8 %v11858
    %v11860 = vlaneseq
    %v11861 = vshrl.u32 %v11860, 7
    %v11862 = vsub.s32 %v11859, %v11861
    %v11863 = vrot.slane %v11853, %v11862
    %v11865 = vunpack.c.l.s4 1966171168
    %v11866 = vunpack.c.0.s8 %v11865
    %v11867 = vlaneseq
    %v11868 = vshrl.u32 %v11867, 7
    %v11869 = vsub.s32 %v11866, %v11868
    %v11870 = vrot.slane %v11854, %v11869
    %v11872 = vunpack.c.l.s4 1966171168
    %v11873 = vunpack.c.0.s8 %v11872
    %v11874 = vlaneseq
    %v11875 = vshrl.u32 %v11874, 7
    %v11876 = vsub.s32 %v11873, %v11875
    %v11877 = vrot.slane %v11855, %v11876
    %v11879 = vunpack.c.l.s4 1966171168
    %v11880 = vunpack.c.0.s8 %v11879
    %v11881 = vlaneseq
    %v11882 = vshrl.u32 %v11881, 7
    %v11883 = vsub.s32 %v11880, %v11882
    %v11884 = vrot.slane %v11856, %v11883
    %v11885 = vcombine.low %v11863, %v11870
    %v11886 = vcombine.low %v11877, %v11884
    %v11888 = vunpack.c.l.s4 1966171168
    %v11889 = vunpack.c.0.s8 %v11888
    %v11890 = vlaneseq
    %v11891 = vshrl.u32 %v11890, 7
    %v11892 = vsub.s32 %v11889, %v11891
    %v11893 = vrot.slane %v11885, %v11892
    %v11895 = vunpack.c.l.s4 1966171168
    %v11896 = vunpack.c.0.s8 %v11895
    %v11897 = vlaneseq
    %v11898 = vshrl.u32 %v11897, 7
    %v11899 = vsub.s32 %v11896, %v11898
    %v11900 = vrot.slane %v11886, %v11899
    %v11901 = vcombine.low %v11893, %v11900
    %v11902 = vcombine.low %v6275, %v6279
    %v11903 = vcombine.low %v6283, %v6287
    %v11904 = vcombine.low %v6291, %v6295
    %v11905 = vcombine.low %v6299, %v6303
    %v11907 = vunpack.c.l.s4 1966171168
    %v11908 = vunpack.c.0.s8 %v11907
    %v11909 = vlaneseq
    %v11910 = vshrl.u32 %v11909, 7
    %v11911 = vsub.s32 %v11908, %v11910
    %v11912 = vrot.slane %v11902, %v11911
    %v11914 = vunpack.c.l.s4 1966171168
    %v11915 = vunpack.c.0.s8 %v11914
    %v11916 = vlaneseq
    %v11917 = vshrl.u32 %v11916, 7
    %v11918 = vsub.s32 %v11915, %v11917
    %v11919 = vrot.slane %v11903, %v11918
    %v11921 = vunpack.c.l.s4 1966171168
    %v11922 = vunpack.c.0.s8 %v11921
    %v11923 = vlaneseq
    %v11924 = vshrl.u32 %v11923, 7
    %v11925 = vsub.s32 %v11922, %v11924
    %v11926 = vrot.slane %v11904, %v11925
    %v11928 = vunpack.c.l.s4 1966171168
    %v11929 = vunpack.c.0.s8 %v11928
    %v11930 = vlaneseq
    %v11931 = vshrl.u32 %v11930, 7
    %v11932 = vsub.s32 %v11929, %v11931
    %v11933 = vrot.slane %v11905, %v11932
    %v11934 = vcombine.low %v11912, %v11919
    %v11935 = vcombine.low %v11926, %v11933
    %v11937 = vunpack.c.l.s4 1966171168
    %v11938 = vunpack.c.0.s8 %v11937
    %v11939 = vlaneseq
    %v11940 = vshrl.u32 %v11939, 7
    %v11941 = vsub.s32 %v11938, %v11940
    %v11942 = vrot.slane %v11934, %v11941
    %v11944 = vunpack.c.l.s4 1966171168
    %v11945 = vunpack.c.0.s8 %v11944
    %v11946 = vlaneseq
    %v11947 = vshrl.u32 %v11946, 7
    %v11948 = vsub.s32 %v11945, %v11947
    %v11949 = vrot.slane %v11935, %v11948
    %v11950 = vcombine.low %v11942, %v11949
    %v11951 = vcombine.low %v6307, %v6311
    %v11952 = vcombine.low %v6315, %v6319
    %v11953 = vcombine.low %v6323, %v6327
    %v11954 = vcombine.low %v6331, %v6335
    %v11956 = vunpack.c.l.s4 1966171168
    %v11957 = vunpack.c.0.s8 %v11956
    %v11958 = vlaneseq
    %v11959 = vshrl.u32 %v11958, 7
    %v11960 = vsub.s32 %v11957, %v11959
    %v11961 = vrot.slane %v11951, %v11960
    %v11963 = vunpack.c.l.s4 1966171168
    %v11964 = vunpack.c.0.s8 %v11963
    %v11965 = vlaneseq
    %v11966 = vshrl.u32 %v11965, 7
    %v11967 = vsub.s32 %v11964, %v11966
    %v11968 = vrot.slane %v11952, %v11967
    %v11970 = vunpack.c.l.s4 1966171168
    %v11971 = vunpack.c.0.s8 %v11970
    %v11972 = vlaneseq
    %v11973 = vshrl.u32 %v11972, 7
    %v11974 = vsub.s32 %v11971, %v11973
    %v11975 = vrot.slane %v11953, %v11974
    %v11977 = vunpack.c.l.s4 1966171168
    %v11978 = vunpack.c.0.s8 %v11977
    %v11979 = vlaneseq
    %v11980 = vshrl.u32 %v11979, 7
    %v11981 = vsub.s32 %v11978, %v11980
    %v11982 = vrot.slane %v11954, %v11981
    %v11983 = vcombine.low %v11961, %v11968
    %v11984 = vcombine.low %v11975, %v11982
    %v11986 = vunpack.c.l.s4 1966171168
    %v11987 = vunpack.c.0.s8 %v11986
    %v11988 = vlaneseq
    %v11989 = vshrl.u32 %v11988, 7
    %v11990 = vsub.s32 %v11987, %v11989
    %v11991 = vrot.slane %v11983, %v11990
    %v11993 = vunpack.c.l.s4 1966171168
    %v11994 = vunpack.c.0.s8 %v11993
    %v11995 = vlaneseq
    %v11996 = vshrl.u32 %v11995, 7
    %v11997 = vsub.s32 %v11994, %v11996
    %v11998 = vrot.slane %v11984, %v11997
    %v11999 = vcombine.low %v11991, %v11998
    %v12000 = vcombine.low %v6339, %v6343
    %v12001 = vcombine.low %v6347, %v6351
    %v12002 = vcombine.low %v6355, %v6359
    %v12003 = vcombine.low %v6363, %v6367
    %v12005 = vunpack.c.l.s4 1966171168
    %v12006 = vunpack.c.0.s8 %v12005
    %v12007 = vlaneseq
    %v12008 = vshrl.u32 %v12007, 7
    %v12009 = vsub.s32 %v12006, %v12008
    %v12010 = vrot.slane %v12000, %v12009
    %v12012 = vunpack.c.l.s4 1966171168
    %v12013 = vunpack.c.0.s8 %v12012
    %v12014 = vlaneseq
    %v12015 = vshrl.u32 %v12014, 7
    %v12016 = vsub.s32 %v12013, %v12015
    %v12017 = vrot.slane %v12001, %v12016
    %v12019 = vunpack.c.l.s4 1966171168
    %v12020 = vunpack.c.0.s8 %v12019
    %v12021 = vlaneseq
    %v12022 = vshrl.u32 %v12021, 7
    %v12023 = vsub.s32 %v12020, %v12022
    %v12024 = vrot.slane %v12002, %v12023
    %v12026 = vunpack.c.l.s4 1966171168
    %v12027 = vunpack.c.0.s8 %v12026
    %v12028 = vlaneseq
    %v12029 = vshrl.u32 %v12028, 7
    %v12030 = vsub.s32 %v12027, %v12029
    %v12031 = vrot.slane %v12003, %v12030
    %v12032 = vcombine.low %v12010, %v12017
    %v12033 = vcombine.low %v12024, %v12031
    %v12035 = vunpack.c.l.s4 1966171168
    %v12036 = vunpack.c.0.s8 %v12035
    %v12037 = vlaneseq
    %v12038 = vshrl.u32 %v12037, 7
    %v12039 = vsub.s32 %v12036, %v12038
    %v12040 = vrot.slane %v12032, %v12039
    %v12042 = vunpack.c.l.s4 1966171168
    %v12043 = vunpack.c.0.s8 %v12042
    %v12044 = vlaneseq
    %v12045 = vshrl.u32 %v12044, 7
    %v12046 = vsub.s32 %v12043, %v12045
    %v12047 = vrot.slane %v12033, %v12046
    %v12048 = vcombine.low %v12040, %v12047
    %v12049 = vcombine.low %v6371, %v6375
    %v12050 = vcombine.low %v6379, %v6383
    %v12051 = vcombine.low %v6387, %v6391
    %v12052 = vcombine.low %v6395, %v6399
    %v12054 = vunpack.c.l.s4 1966171168
    %v12055 = vunpack.c.0.s8 %v12054
    %v12056 = vlaneseq
    %v12057 = vshrl.u32 %v12056, 7
    %v12058 = vsub.s32 %v12055, %v12057
    %v12059 = vrot.slane %v12049, %v12058
    %v12061 = vunpack.c.l.s4 1966171168
    %v12062 = vunpack.c.0.s8 %v12061
    %v12063 = vlaneseq
    %v12064 = vshrl.u32 %v12063, 7
    %v12065 = vsub.s32 %v12062, %v12064
    %v12066 = vrot.slane %v12050, %v12065
    %v12068 = vunpack.c.l.s4 1966171168
    %v12069 = vunpack.c.0.s8 %v12068
    %v12070 = vlaneseq
    %v12071 = vshrl.u32 %v12070, 7
    %v12072 = vsub.s32 %v12069, %v12071
    %v12073 = vrot.slane %v12051, %v12072
    %v12075 = vunpack.c.l.s4 1966171168
    %v12076 = vunpack.c.0.s8 %v12075
    %v12077 = vlaneseq
    %v12078 = vshrl.u32 %v12077, 7
    %v12079 = vsub.s32 %v12076, %v12078
    %v12080 = vrot.slane %v12052, %v12079
    %v12081 = vcombine.low %v12059, %v12066
    %v12082 = vcombine.low %v12073, %v12080
    %v12084 = vunpack.c.l.s4 1966171168
    %v12085 = vunpack.c.0.s8 %v12084
    %v12086 = vlaneseq
    %v12087 = vshrl.u32 %v12086, 7
    %v12088 = vsub.s32 %v12085, %v12087
    %v12089 = vrot.slane %v12081, %v12088
    %v12091 = vunpack.c.l.s4 1966171168
    %v12092 = vunpack.c.0.s8 %v12091
    %v12093 = vlaneseq
    %v12094 = vshrl.u32 %v12093, 7
    %v12095 = vsub.s32 %v12092, %v12094
    %v12096 = vrot.slane %v12082, %v12095
    %v12097 = vcombine.low %v12089, %v12096
    %v12098 = vcombine.low %v6403, %v6407
    %v12099 = vcombine.low %v6411, %v6415
    %v12100 = vcombine.low %v6419, %v6423
    %v12101 = vcombine.low %v6427, %v6431
    %v12103 = vunpack.c.l.s4 1966171168
    %v12104 = vunpack.c.0.s8 %v12103
    %v12105 = vlaneseq
    %v12106 = vshrl.u32 %v12105, 7
    %v12107 = vsub.s32 %v12104, %v12106
    %v12108 = vrot.slane %v12098, %v12107
    %v12110 = vunpack.c.l.s4 1966171168
    %v12111 = vunpack.c.0.s8 %v12110
    %v12112 = vlaneseq
    %v12113 = vshrl.u32 %v12112, 7
    %v12114 = vsub.s32 %v12111, %v12113
    %v12115 = vrot.slane %v12099, %v12114
    %v12117 = vunpack.c.l.s4 1966171168
    %v12118 = vunpack.c.0.s8 %v12117
    %v12119 = vlaneseq
    %v12120 = vshrl.u32 %v12119, 7
    %v12121 = vsub.s32 %v12118, %v12120
    %v12122 = vrot.slane %v12100, %v12121
    %v12124 = vunpack.c.l.s4 1966171168
    %v12125 = vunpack.c.0.s8 %v12124
    %v12126 = vlaneseq
    %v12127 = vshrl.u32 %v12126, 7
    %v12128 = vsub.s32 %v12125, %v12127
    %v12129 = vrot.slane %v12101, %v12128
    %v12130 = vcombine.low %v12108, %v12115
    %v12131 = vcombine.low %v12122, %v12129
    %v12133 = vunpack.c.l.s4 1966171168
    %v12134 = vunpack.c.0.s8 %v12133
    %v12135 = vlaneseq
    %v12136 = vshrl.u32 %v12135, 7
    %v12137 = vsub.s32 %v12134, %v12136
    %v12138 = vrot.slane %v12130, %v12137
    %v12140 = vunpack.c.l.s4 1966171168
    %v12141 = vunpack.c.0.s8 %v12140
    %v12142 = vlaneseq
    %v12143 = vshrl.u32 %v12142, 7
    %v12144 = vsub.s32 %v12141, %v12143
    %v12145 = vrot.slane %v12131, %v12144
    %v12146 = vcombine.low %v12138, %v12145
    %v12147 = vcombine.low %v6435, %v6439
    %v12148 = vcombine.low %v6443, %v6447
    %v12149 = vcombine.low %v6451, %v6455
    %v12150 = vcombine.low %v6459, %v6463
    %v12152 = vunpack.c.l.s4 1966171168
    %v12153 = vunpack.c.0.s8 %v12152
    %v12154 = vlaneseq
    %v12155 = vshrl.u32 %v12154, 7
    %v12156 = vsub.s32 %v12153, %v12155
    %v12157 = vrot.slane %v12147, %v12156
    %v12159 = vunpack.c.l.s4 1966171168
    %v12160 = vunpack.c.0.s8 %v12159
    %v12161 = vlaneseq
    %v12162 = vshrl.u32 %v12161, 7
    %v12163 = vsub.s32 %v12160, %v12162
    %v12164 = vrot.slane %v12148, %v12163
    %v12166 = vunpack.c.l.s4 1966171168
    %v12167 = vunpack.c.0.s8 %v12166
    %v12168 = vlaneseq
    %v12169 = vshrl.u32 %v12168, 7
    %v12170 = vsub.s32 %v12167, %v12169
    %v12171 = vrot.slane %v12149, %v12170
    %v12173 = vunpack.c.l.s4 1966171168
    %v12174 = vunpack.c.0.s8 %v12173
    %v12175 = vlaneseq
    %v12176 = vshrl.u32 %v12175, 7
    %v12177 = vsub.s32 %v12174, %v12176
    %v12178 = vrot.slane %v12150, %v12177
    %v12179 = vcombine.low %v12157, %v12164
    %v12180 = vcombine.low %v12171, %v12178
    %v12182 = vunpack.c.l.s4 1966171168
    %v12183 = vunpack.c.0.s8 %v12182
    %v12184 = vlaneseq
    %v12185 = vshrl.u32 %v12184, 7
    %v12186 = vsub.s32 %v12183, %v12185
    %v12187 = vrot.slane %v12179, %v12186
    %v12189 = vunpack.c.l.s4 1966171168
    %v12190 = vunpack.c.0.s8 %v12189
    %v12191 = vlaneseq
    %v12192 = vshrl.u32 %v12191, 7
    %v12193 = vsub.s32 %v12190, %v12192
    %v12194 = vrot.slane %v12180, %v12193
    %v12195 = vcombine.low %v12187, %v12194
    %v12196 = vcombine.low %v6467, %v6471
    %v12197 = vcombine.low %v6475, %v6479
    %v12198 = vcombine.low %v6483, %v6487
    %v12199 = vcombine.low %v6491, %v6495
    %v12201 = vunpack.c.l.s4 1966171168
    %v12202 = vunpack.c.0.s8 %v12201
    %v12203 = vlaneseq
    %v12204 = vshrl.u32 %v12203, 7
    %v12205 = vsub.s32 %v12202, %v12204
    %v12206 = vrot.slane %v12196, %v12205
    %v12208 = vunpack.c.l.s4 1966171168
    %v12209 = vunpack.c.0.s8 %v12208
    %v12210 = vlaneseq
    %v12211 = vshrl.u32 %v12210, 7
    %v12212 = vsub.s32 %v12209, %v12211
    %v12213 = vrot.slane %v12197, %v12212
    %v12215 = vunpack.c.l.s4 1966171168
    %v12216 = vunpack.c.0.s8 %v12215
    %v12217 = vlaneseq
    %v12218 = vshrl.u32 %v12217, 7
    %v12219 = vsub.s32 %v12216, %v12218
    %v12220 = vrot.slane %v12198, %v12219
    %v12222 = vunpack.c.l.s4 1966171168
    %v12223 = vunpack.c.0.s8 %v12222
    %v12224 = vlaneseq
    %v12225 = vshrl.u32 %v12224, 7
    %v12226 = vsub.s32 %v12223, %v12225
    %v12227 = vrot.slane %v12199, %v12226
    %v12228 = vcombine.low %v12206, %v12213
    %v12229 = vcombine.low %v12220, %v12227
    %v12231 = vunpack.c.l.s4 1966171168
    %v12232 = vunpack.c.0.s8 %v12231
    %v12233 = vlaneseq
    %v12234 = vshrl.u32 %v12233, 7
    %v12235 = vsub.s32 %v12232, %v12234
    %v12236 = vrot.slane %v12228, %v12235
    %v12238 = vunpack.c.l.s4 1966171168
    %v12239 = vunpack.c.0.s8 %v12238
    %v12240 = vlaneseq
    %v12241 = vshrl.u32 %v12240, 7
    %v12242 = vsub.s32 %v12239, %v12241
    %v12243 = vrot.slane %v12229, %v12242
    %v12244 = vcombine.low %v12236, %v12243
    %v12245 = vcombine.low %v6499, %v6503
    %v12246 = vcombine.low %v6507, %v6511
    %v12247 = vcombine.low %v6515, %v6519
    %v12248 = vcombine.low %v6523, %v6527
    %v12250 = vunpack.c.l.s4 1966171168
    %v12251 = vunpack.c.0.s8 %v12250
    %v12252 = vlaneseq
    %v12253 = vshrl.u32 %v12252, 7
    %v12254 = vsub.s32 %v12251, %v12253
    %v12255 = vrot.slane %v12245, %v12254
    %v12257 = vunpack.c.l.s4 1966171168
    %v12258 = vunpack.c.0.s8 %v12257
    %v12259 = vlaneseq
    %v12260 = vshrl.u32 %v12259, 7
    %v12261 = vsub.s32 %v12258, %v12260
    %v12262 = vrot.slane %v12246, %v12261
    %v12264 = vunpack.c.l.s4 1966171168
    %v12265 = vunpack.c.0.s8 %v12264
    %v12266 = vlaneseq
    %v12267 = vshrl.u32 %v12266, 7
    %v12268 = vsub.s32 %v12265, %v12267
    %v12269 = vrot.slane %v12247, %v12268
    %v12271 = vunpack.c.l.s4 1966171168
    %v12272 = vunpack.c.0.s8 %v12271
    %v12273 = vlaneseq
    %v12274 = vshrl.u32 %v12273, 7
    %v12275 = vsub.s32 %v12272, %v12274
    %v12276 = vrot.slane %v12248, %v12275
    %v12277 = vcombine.low %v12255, %v12262
    %v12278 = vcombine.low %v12269, %v12276
    %v12280 = vunpack.c.l.s4 1966171168
    %v12281 = vunpack.c.0.s8 %v12280
    %v12282 = vlaneseq
    %v12283 = vshrl.u32 %v12282, 7
    %v12284 = vsub.s32 %v12281, %v12283
    %v12285 = vrot.slane %v12277, %v12284
    %v12287 = vunpack.c.l.s4 1966171168
    %v12288 = vunpack.c.0.s8 %v12287
    %v12289 = vlaneseq
    %v12290 = vshrl.u32 %v12289, 7
    %v12291 = vsub.s32 %v12288, %v12290
    %v12292 = vrot.slane %v12278, %v12291
    %v12293 = vcombine.low %v12285, %v12292
    %v12294 = vcombine.low %v6531, %v6535
    %v12295 = vcombine.low %v6539, %v6543
    %v12296 = vcombine.low %v6547, %v6551
    %v12297 = vcombine.low %v6555, %v6559
    %v12299 = vunpack.c.l.s4 1966171168
    %v12300 = vunpack.c.0.s8 %v12299
    %v12301 = vlaneseq
    %v12302 = vshrl.u32 %v12301, 7
    %v12303 = vsub.s32 %v12300, %v12302
    %v12304 = vrot.slane %v12294, %v12303
    %v12306 = vunpack.c.l.s4 1966171168
    %v12307 = vunpack.c.0.s8 %v12306
    %v12308 = vlaneseq
    %v12309 = vshrl.u32 %v12308, 7
    %v12310 = vsub.s32 %v12307, %v12309
    %v12311 = vrot.slane %v12295, %v12310
    %v12313 = vunpack.c.l.s4 1966171168
    %v12314 = vunpack.c.0.s8 %v12313
    %v12315 = vlaneseq
    %v12316 = vshrl.u32 %v12315, 7
    %v12317 = vsub.s32 %v12314, %v12316
    %v12318 = vrot.slane %v12296, %v12317
    %v12320 = vunpack.c.l.s4 1966171168
    %v12321 = vunpack.c.0.s8 %v12320
    %v12322 = vlaneseq
    %v12323 = vshrl.u32 %v12322, 7
    %v12324 = vsub.s32 %v12321, %v12323
    %v12325 = vrot.slane %v12297, %v12324
    %v12326 = vcombine.low %v12304, %v12311
    %v12327 = vcombine.low %v12318, %v12325
    %v12329 = vunpack.c.l.s4 1966171168
    %v12330 = vunpack.c.0.s8 %v12329
    %v12331 = vlaneseq
    %v12332 = vshrl.u32 %v12331, 7
    %v12333 = vsub.s32 %v12330, %v12332
    %v12334 = vrot.slane %v12326, %v12333
    %v12336 = vunpack.c.l.s4 1966171168
    %v12337 = vunpack.c.0.s8 %v12336
    %v12338 = vlaneseq
    %v12339 = vshrl.u32 %v12338, 7
    %v12340 = vsub.s32 %v12337, %v12339
    %v12341 = vrot.slane %v12327, %v12340
    %v12342 = vcombine.low %v12334, %v12341
    %v12343 = vcombine.low %v6563, %v6567
    %v12344 = vcombine.low %v6571, %v6575
    %v12345 = vcombine.low %v6579, %v6583
    %v12346 = vcombine.low %v6587, %v6591
    %v12348 = vunpack.c.l.s4 1966171168
    %v12349 = vunpack.c.0.s8 %v12348
    %v12350 = vlaneseq
    %v12351 = vshrl.u32 %v12350, 7
    %v12352 = vsub.s32 %v12349, %v12351
    %v12353 = vrot.slane %v12343, %v12352
    %v12355 = vunpack.c.l.s4 1966171168
    %v12356 = vunpack.c.0.s8 %v12355
    %v12357 = vlaneseq
    %v12358 = vshrl.u32 %v12357, 7
    %v12359 = vsub.s32 %v12356, %v12358
    %v12360 = vrot.slane %v12344, %v12359
    %v12362 = vunpack.c.l.s4 1966171168
    %v12363 = vunpack.c.0.s8 %v12362
    %v12364 = vlaneseq
    %v12365 = vshrl.u32 %v12364, 7
    %v12366 = vsub.s32 %v12363, %v12365
    %v12367 = vrot.slane %v12345, %v12366
    %v12369 = vunpack.c.l.s4 1966171168
    %v12370 = vunpack.c.0.s8 %v12369
    %v12371 = vlaneseq
    %v12372 = vshrl.u32 %v12371, 7
    %v12373 = vsub.s32 %v12370, %v12372
    %v12374 = vrot.slane %v12346, %v12373
    %v12375 = vcombine.low %v12353, %v12360
    %v12376 = vcombine.low %v12367, %v12374
    %v12378 = vunpack.c.l.s4 1966171168
    %v12379 = vunpack.c.0.s8 %v12378
    %v12380 = vlaneseq
    %v12381 = vshrl.u32 %v12380, 7
    %v12382 = vsub.s32 %v12379, %v12381
    %v12383 = vrot.slane %v12375, %v12382
    %v12385 = vunpack.c.l.s4 1966171168
    %v12386 = vunpack.c.0.s8 %v12385
    %v12387 = vlaneseq
    %v12388 = vshrl.u32 %v12387, 7
    %v12389 = vsub.s32 %v12386, %v12388
    %v12390 = vrot.slane %v12376, %v12389
    %v12391 = vcombine.low %v12383, %v12390
    %v12392 = vcombine.low %v6595, %v6599
    %v12393 = vcombine.low %v6603, %v6607
    %v12394 = vcombine.low %v6611, %v6615
    %v12395 = vcombine.low %v6619, %v6623
    %v12397 = vunpack.c.l.s4 1966171168
    %v12398 = vunpack.c.0.s8 %v12397
    %v12399 = vlaneseq
    %v12400 = vshrl.u32 %v12399, 7
    %v12401 = vsub.s32 %v12398, %v12400
    %v12402 = vrot.slane %v12392, %v12401
    %v12404 = vunpack.c.l.s4 1966171168
    %v12405 = vunpack.c.0.s8 %v12404
    %v12406 = vlaneseq
    %v12407 = vshrl.u32 %v12406, 7
    %v12408 = vsub.s32 %v12405, %v12407
    %v12409 = vrot.slane %v12393, %v12408
    %v12411 = vunpack.c.l.s4 1966171168
    %v12412 = vunpack.c.0.s8 %v12411
    %v12413 = vlaneseq
    %v12414 = vshrl.u32 %v12413, 7
    %v12415 = vsub.s32 %v12412, %v12414
    %v12416 = vrot.slane %v12394, %v12415
    %v12418 = vunpack.c.l.s4 1966171168
    %v12419 = vunpack.c.0.s8 %v12418
    %v12420 = vlaneseq
    %v12421 = vshrl.u32 %v12420, 7
    %v12422 = vsub.s32 %v12419, %v12421
    %v12423 = vrot.slane %v12395, %v12422
    %v12424 = vcombine.low %v12402, %v12409
    %v12425 = vcombine.low %v12416, %v12423
    %v12427 = vunpack.c.l.s4 1966171168
    %v12428 = vunpack.c.0.s8 %v12427
    %v12429 = vlaneseq
    %v12430 = vshrl.u32 %v12429, 7
    %v12431 = vsub.s32 %v12428, %v12430
    %v12432 = vrot.slane %v12424, %v12431
    %v12434 = vunpack.c.l.s4 1966171168
    %v12435 = vunpack.c.0.s8 %v12434
    %v12436 = vlaneseq
    %v12437 = vshrl.u32 %v12436, 7
    %v12438 = vsub.s32 %v12435, %v12437
    %v12439 = vrot.slane %v12425, %v12438
    %v12440 = vcombine.low %v12432, %v12439
    %v12441 = vcombine.low %v6627, %v6631
    %v12442 = vcombine.low %v6635, %v6639
    %v12443 = vcombine.low %v6643, %v6647
    %v12444 = vcombine.low %v6651, %v6655
    %v12446 = vunpack.c.l.s4 1966171168
    %v12447 = vunpack.c.0.s8 %v12446
    %v12448 = vlaneseq
    %v12449 = vshrl.u32 %v12448, 7
    %v12450 = vsub.s32 %v12447, %v12449
    %v12451 = vrot.slane %v12441, %v12450
    %v12453 = vunpack.c.l.s4 1966171168
    %v12454 = vunpack.c.0.s8 %v12453
    %v12455 = vlaneseq
    %v12456 = vshrl.u32 %v12455, 7
    %v12457 = vsub.s32 %v12454, %v12456
    %v12458 = vrot.slane %v12442, %v12457
    %v12460 = vunpack.c.l.s4 1966171168
    %v12461 = vunpack.c.0.s8 %v12460
    %v12462 = vlaneseq
    %v12463 = vshrl.u32 %v12462, 7
    %v12464 = vsub.s32 %v12461, %v12463
    %v12465 = vrot.slane %v12443, %v12464
    %v12467 = vunpack.c.l.s4 1966171168
    %v12468 = vunpack.c.0.s8 %v12467
    %v12469 = vlaneseq
    %v12470 = vshrl.u32 %v12469, 7
    %v12471 = vsub.s32 %v12468, %v12470
    %v12472 = vrot.slane %v12444, %v12471
    %v12473 = vcombine.low %v12451, %v12458
    %v12474 = vcombine.low %v12465, %v12472
    %v12476 = vunpack.c.l.s4 1966171168
    %v12477 = vunpack.c.0.s8 %v12476
    %v12478 = vlaneseq
    %v12479 = vshrl.u32 %v12478, 7
    %v12480 = vsub.s32 %v12477, %v12479
    %v12481 = vrot.slane %v12473, %v12480
    %v12483 = vunpack.c.l.s4 1966171168
    %v12484 = vunpack.c.0.s8 %v12483
    %v12485 = vlaneseq
    %v12486 = vshrl.u32 %v12485, 7
    %v12487 = vsub.s32 %v12484, %v12486
    %v12488 = vrot.slane %v12474, %v12487
    %v12489 = vcombine.low %v12481, %v12488
    %v12490 = vcombine.low %v6659, %v6663
    %v12491 = vcombine.low %v6667, %v6671
    %v12492 = vcombine.low %v6675, %v6679
    %v12493 = vcombine.low %v6683, %v6687
    %v12495 = vunpack.c.l.s4 1966171168
    %v12496 = vunpack.c.0.s8 %v12495
    %v12497 = vlaneseq
    %v12498 = vshrl.u32 %v12497, 7
    %v12499 = vsub.s32 %v12496, %v12498
    %v12500 = vrot.slane %v12490, %v12499
    %v12502 = vunpack.c.l.s4 1966171168
    %v12503 = vunpack.c.0.s8 %v12502
    %v12504 = vlaneseq
    %v12505 = vshrl.u32 %v12504, 7
    %v12506 = vsub.s32 %v12503, %v12505
    %v12507 = vrot.slane %v12491, %v12506
    %v12509 = vunpack.c.l.s4 1966171168
    %v12510 = vunpack.c.0.s8 %v12509
    %v12511 = vlaneseq
    %v12512 = vshrl.u32 %v12511, 7
    %v12513 = vsub.s32 %v12510, %v12512
    %v12514 = vrot.slane %v12492, %v12513
    %v12516 = vunpack.c.l.s4 1966171168
    %v12517 = vunpack.c.0.s8 %v12516
    %v12518 = vlaneseq
    %v12519 = vshrl.u32 %v12518, 7
    %v12520 = vsub.s32 %v12517, %v12519
    %v12521 = vrot.slane %v12493, %v12520
    %v12522 = vcombine.low %v12500, %v12507
    %v12523 = vcombine.low %v12514, %v12521
    %v12525 = vunpack.c.l.s4 1966171168
    %v12526 = vunpack.c.0.s8 %v12525
    %v12527 = vlaneseq
    %v12528 = vshrl.u32 %v12527, 7
    %v12529 = vsub.s32 %v12526, %v12528
    %v12530 = vrot.slane %v12522, %v12529
    %v12532 = vunpack.c.l.s4 1966171168
    %v12533 = vunpack.c.0.s8 %v12532
    %v12534 = vlaneseq
    %v12535 = vshrl.u32 %v12534, 7
    %v12536 = vsub.s32 %v12533, %v12535
    %v12537 = vrot.slane %v12523, %v12536
    %v12538 = vcombine.low %v12530, %v12537
    %v12539 = vcombine.low %v6691, %v6695
    %v12540 = vcombine.low %v6699, %v6703
    %v12541 = vcombine.low %v6707, %v6711
    %v12542 = vcombine.low %v6715, %v6719
    %v12544 = vunpack.c.l.s4 1966171168
    %v12545 = vunpack.c.0.s8 %v12544
    %v12546 = vlaneseq
    %v12547 = vshrl.u32 %v12546, 7
    %v12548 = vsub.s32 %v12545, %v12547
    %v12549 = vrot.slane %v12539, %v12548
    %v12551 = vunpack.c.l.s4 1966171168
    %v12552 = vunpack.c.0.s8 %v12551
    %v12553 = vlaneseq
    %v12554 = vshrl.u32 %v12553, 7
    %v12555 = vsub.s32 %v12552, %v12554
    %v12556 = vrot.slane %v12540, %v12555
    %v12558 = vunpack.c.l.s4 1966171168
    %v12559 = vunpack.c.0.s8 %v12558
    %v12560 = vlaneseq
    %v12561 = vshrl.u32 %v12560, 7
    %v12562 = vsub.s32 %v12559, %v12561
    %v12563 = vrot.slane %v12541, %v12562
    %v12565 = vunpack.c.l.s4 1966171168
    %v12566 = vunpack.c.0.s8 %v12565
    %v12567 = vlaneseq
    %v12568 = vshrl.u32 %v12567, 7
    %v12569 = vsub.s32 %v12566, %v12568
    %v12570 = vrot.slane %v12542, %v12569
    %v12571 = vcombine.low %v12549, %v12556
    %v12572 = vcombine.low %v12563, %v12570
    %v12574 = vunpack.c.l.s4 1966171168
    %v12575 = vunpack.c.0.s8 %v12574
    %v12576 = vlaneseq
    %v12577 = vshrl.u32 %v12576, 7
    %v12578 = vsub.s32 %v12575, %v12577
    %v12579 = vrot.slane %v12571, %v12578
    %v12581 = vunpack.c.l.s4 1966171168
    %v12582 = vunpack.c.0.s8 %v12581
    %v12583 = vlaneseq
    %v12584 = vshrl.u32 %v12583, 7
    %v12585 = vsub.s32 %v12582, %v12584
    %v12586 = vrot.slane %v12572, %v12585
    %v12587 = vcombine.low %v12579, %v12586
    %v12588 = vcombine.low %v6723, %v6727
    %v12589 = vcombine.low %v6731, %v6735
    %v12590 = vcombine.low %v6739, %v6743
    %v12591 = vcombine.low %v6747, %v6751
    %v12593 = vunpack.c.l.s4 1966171168
    %v12594 = vunpack.c.0.s8 %v12593
    %v12595 = vlaneseq
    %v12596 = vshrl.u32 %v12595, 7
    %v12597 = vsub.s32 %v12594, %v12596
    %v12598 = vrot.slane %v12588, %v12597
    %v12600 = vunpack.c.l.s4 1966171168
    %v12601 = vunpack.c.0.s8 %v12600
    %v12602 = vlaneseq
    %v12603 = vshrl.u32 %v12602, 7
    %v12604 = vsub.s32 %v12601, %v12603
    %v12605 = vrot.slane %v12589, %v12604
    %v12607 = vunpack.c.l.s4 1966171168
    %v12608 = vunpack.c.0.s8 %v12607
    %v12609 = vlaneseq
    %v12610 = vshrl.u32 %v12609, 7
    %v12611 = vsub.s32 %v12608, %v12610
    %v12612 = vrot.slane %v12590, %v12611
    %v12614 = vunpack.c.l.s4 1966171168
    %v12615 = vunpack.c.0.s8 %v12614
    %v12616 = vlaneseq
    %v12617 = vshrl.u32 %v12616, 7
    %v12618 = vsub.s32 %v12615, %v12617
    %v12619 = vrot.slane %v12591, %v12618
    %v12620 = vcombine.low %v12598, %v12605
    %v12621 = vcombine.low %v12612, %v12619
    %v12623 = vunpack.c.l.s4 1966171168
    %v12624 = vunpack.c.0.s8 %v12623
    %v12625 = vlaneseq
    %v12626 = vshrl.u32 %v12625, 7
    %v12627 = vsub.s32 %v12624, %v12626
    %v12628 = vrot.slane %v12620, %v12627
    %v12630 = vunpack.c.l.s4 1966171168
    %v12631 = vunpack.c.0.s8 %v12630
    %v12632 = vlaneseq
    %v12633 = vshrl.u32 %v12632, 7
    %v12634 = vsub.s32 %v12631, %v12633
    %v12635 = vrot.slane %v12621, %v12634
    %v12636 = vcombine.low %v12628, %v12635
    %v12637 = vcombine.low %v6755, %v6759
    %v12638 = vcombine.low %v6763, %v6767
    %v12639 = vcombine.low %v6771, %v6775
    %v12640 = vcombine.low %v6779, %v6783
    %v12642 = vunpack.c.l.s4 1966171168
    %v12643 = vunpack.c.0.s8 %v12642
    %v12644 = vlaneseq
    %v12645 = vshrl.u32 %v12644, 7
    %v12646 = vsub.s32 %v12643, %v12645
    %v12647 = vrot.slane %v12637, %v12646
    %v12649 = vunpack.c.l.s4 1966171168
    %v12650 = vunpack.c.0.s8 %v12649
    %v12651 = vlaneseq
    %v12652 = vshrl.u32 %v12651, 7
    %v12653 = vsub.s32 %v12650, %v12652
    %v12654 = vrot.slane %v12638, %v12653
    %v12656 = vunpack.c.l.s4 1966171168
    %v12657 = vunpack.c.0.s8 %v12656
    %v12658 = vlaneseq
    %v12659 = vshrl.u32 %v12658, 7
    %v12660 = vsub.s32 %v12657, %v12659
    %v12661 = vrot.slane %v12639, %v12660
    %v12663 = vunpack.c.l.s4 1966171168
    %v12664 = vunpack.c.0.s8 %v12663
    %v12665 = vlaneseq
    %v12666 = vshrl.u32 %v12665, 7
    %v12667 = vsub.s32 %v12664, %v12666
    %v12668 = vrot.slane %v12640, %v12667
    %v12669 = vcombine.low %v12647, %v12654
    %v12670 = vcombine.low %v12661, %v12668
    %v12672 = vunpack.c.l.s4 1966171168
    %v12673 = vunpack.c.0.s8 %v12672
    %v12674 = vlaneseq
    %v12675 = vshrl.u32 %v12674, 7
    %v12676 = vsub.s32 %v12673, %v12675
    %v12677 = vrot.slane %v12669, %v12676
    %v12679 = vunpack.c.l.s4 1966171168
    %v12680 = vunpack.c.0.s8 %v12679
    %v12681 = vlaneseq
    %v12682 = vshrl.u32 %v12681, 7
    %v12683 = vsub.s32 %v12680, %v12682
    %v12684 = vrot.slane %v12670, %v12683
    %v12685 = vcombine.low %v12677, %v12684
    %v12686 = vcombine.low %v6787, %v6791
    %v12687 = vcombine.low %v6795, %v6799
    %v12688 = vcombine.low %v6803, %v6807
    %v12689 = vcombine.low %v6811, %v6815
    %v12691 = vunpack.c.l.s4 1966171168
    %v12692 = vunpack.c.0.s8 %v12691
    %v12693 = vlaneseq
    %v12694 = vshrl.u32 %v12693, 7
    %v12695 = vsub.s32 %v12692, %v12694
    %v12696 = vrot.slane %v12686, %v12695
    %v12698 = vunpack.c.l.s4 1966171168
    %v12699 = vunpack.c.0.s8 %v12698
    %v12700 = vlaneseq
    %v12701 = vshrl.u32 %v12700, 7
    %v12702 = vsub.s32 %v12699, %v12701
    %v12703 = vrot.slane %v12687, %v12702
    %v12705 = vunpack.c.l.s4 1966171168
    %v12706 = vunpack.c.0.s8 %v12705
    %v12707 = vlaneseq
    %v12708 = vshrl.u32 %v12707, 7
    %v12709 = vsub.s32 %v12706, %v12708
    %v12710 = vrot.slane %v12688, %v12709
    %v12712 = vunpack.c.l.s4 1966171168
    %v12713 = vunpack.c.0.s8 %v12712
    %v12714 = vlaneseq
    %v12715 = vshrl.u32 %v12714, 7
    %v12716 = vsub.s32 %v12713, %v12715
    %v12717 = vrot.slane %v12689, %v12716
    %v12718 = vcombine.low %v12696, %v12703
    %v12719 = vcombine.low %v12710, %v12717
    %v12721 = vunpack.c.l.s4 1966171168
    %v12722 = vunpack.c.0.s8 %v12721
    %v12723 = vlaneseq
    %v12724 = vshrl.u32 %v12723, 7
    %v12725 = vsub.s32 %v12722, %v12724
    %v12726 = vrot.slane %v12718, %v12725
    %v12728 = vunpack.c.l.s4 1966171168
    %v12729 = vunpack.c.0.s8 %v12728
    %v12730 = vlaneseq
    %v12731 = vshrl.u32 %v12730, 7
    %v12732 = vsub.s32 %v12729, %v12731
    %v12733 = vrot.slane %v12719, %v12732
    %v12734 = vcombine.low %v12726, %v12733
    %v12735 = vcombine.low %v6819, %v6823
    %v12736 = vcombine.low %v6827, %v6831
    %v12737 = vcombine.low %v6835, %v6839
    %v12738 = vcombine.low %v6843, %v6847
    %v12740 = vunpack.c.l.s4 1966171168
    %v12741 = vunpack.c.0.s8 %v12740
    %v12742 = vlaneseq
    %v12743 = vshrl.u32 %v12742, 7
    %v12744 = vsub.s32 %v12741, %v12743
    %v12745 = vrot.slane %v12735, %v12744
    %v12747 = vunpack.c.l.s4 1966171168
    %v12748 = vunpack.c.0.s8 %v12747
    %v12749 = vlaneseq
    %v12750 = vshrl.u32 %v12749, 7
    %v12751 = vsub.s32 %v12748, %v12750
    %v12752 = vrot.slane %v12736, %v12751
    %v12754 = vunpack.c.l.s4 1966171168
    %v12755 = vunpack.c.0.s8 %v12754
    %v12756 = vlaneseq
    %v12757 = vshrl.u32 %v12756, 7
    %v12758 = vsub.s32 %v12755, %v12757
    %v12759 = vrot.slane %v12737, %v12758
    %v12761 = vunpack.c.l.s4 1966171168
    %v12762 = vunpack.c.0.s8 %v12761
    %v12763 = vlaneseq
    %v12764 = vshrl.u32 %v12763, 7
    %v12765 = vsub.s32 %v12762, %v12764
    %v12766 = vrot.slane %v12738, %v12765
    %v12767 = vcombine.low %v12745, %v12752
    %v12768 = vcombine.low %v12759, %v12766
    %v12770 = vunpack.c.l.s4 1966171168
    %v12771 = vunpack.c.0.s8 %v12770
    %v12772 = vlaneseq
    %v12773 = vshrl.u32 %v12772, 7
    %v12774 = vsub.s32 %v12771, %v12773
    %v12775 = vrot.slane %v12767, %v12774
    %v12777 = vunpack.c.l.s4 1966171168
    %v12778 = vunpack.c.0.s8 %v12777
    %v12779 = vlaneseq
    %v12780 = vshrl.u32 %v12779, 7
    %v12781 = vsub.s32 %v12778, %v12780
    %v12782 = vrot.slane %v12768, %v12781
    %v12783 = vcombine.low %v12775, %v12782
    %v12784 = vcombine.low %v6851, %v6855
    %v12785 = vcombine.low %v6859, %v6863
    %v12786 = vcombine.low %v6867, %v6871
    %v12787 = vcombine.low %v6875, %v6879
    %v12789 = vunpack.c.l.s4 1966171168
    %v12790 = vunpack.c.0.s8 %v12789
    %v12791 = vlaneseq
    %v12792 = vshrl.u32 %v12791, 7
    %v12793 = vsub.s32 %v12790, %v12792
    %v12794 = vrot.slane %v12784, %v12793
    %v12796 = vunpack.c.l.s4 1966171168
    %v12797 = vunpack.c.0.s8 %v12796
    %v12798 = vlaneseq
    %v12799 = vshrl.u32 %v12798, 7
    %v12800 = vsub.s32 %v12797, %v12799
    %v12801 = vrot.slane %v12785, %v12800
    %v12803 = vunpack.c.l.s4 1966171168
    %v12804 = vunpack.c.0.s8 %v12803
    %v12805 = vlaneseq
    %v12806 = vshrl.u32 %v12805, 7
    %v12807 = vsub.s32 %v12804, %v12806
    %v12808 = vrot.slane %v12786, %v12807
    %v12810 = vunpack.c.l.s4 1966171168
    %v12811 = vunpack.c.0.s8 %v12810
    %v12812 = vlaneseq
    %v12813 = vshrl.u32 %v12812, 7
    %v12814 = vsub.s32 %v12811, %v12813
    %v12815 = vrot.slane %v12787, %v12814
    %v12816 = vcombine.low %v12794, %v12801
    %v12817 = vcombine.low %v12808, %v12815
    %v12819 = vunpack.c.l.s4 1966171168
    %v12820 = vunpack.c.0.s8 %v12819
    %v12821 = vlaneseq
    %v12822 = vshrl.u32 %v12821, 7
    %v12823 = vsub.s32 %v12820, %v12822
    %v12824 = vrot.slane %v12816, %v12823
    %v12826 = vunpack.c.l.s4 1966171168
    %v12827 = vunpack.c.0.s8 %v12826
    %v12828 = vlaneseq
    %v12829 = vshrl.u32 %v12828, 7
    %v12830 = vsub.s32 %v12827, %v12829
    %v12831 = vrot.slane %v12817, %v12830
    %v12832 = vcombine.low %v12824, %v12831
    %v12833 = vcombine.low %v6883, %v6887
    %v12834 = vcombine.low %v6891, %v6895
    %v12835 = vcombine.low %v6899, %v6903
    %v12836 = vcombine.low %v6907, %v6911
    %v12838 = vunpack.c.l.s4 1966171168
    %v12839 = vunpack.c.0.s8 %v12838
    %v12840 = vlaneseq
    %v12841 = vshrl.u32 %v12840, 7
    %v12842 = vsub.s32 %v12839, %v12841
    %v12843 = vrot.slane %v12833, %v12842
    %v12845 = vunpack.c.l.s4 1966171168
    %v12846 = vunpack.c.0.s8 %v12845
    %v12847 = vlaneseq
    %v12848 = vshrl.u32 %v12847, 7
    %v12849 = vsub.s32 %v12846, %v12848
    %v12850 = vrot.slane %v12834, %v12849
    %v12852 = vunpack.c.l.s4 1966171168
    %v12853 = vunpack.c.0.s8 %v12852
    %v12854 = vlaneseq
    %v12855 = vshrl.u32 %v12854, 7
    %v12856 = vsub.s32 %v12853, %v12855
    %v12857 = vrot.slane %v12835, %v12856
    %v12859 = vunpack.c.l.s4 1966171168
    %v12860 = vunpack.c.0.s8 %v12859
    %v12861 = vlaneseq
    %v12862 = vshrl.u32 %v12861, 7
    %v12863 = vsub.s32 %v12860, %v12862
    %v12864 = vrot.slane %v12836, %v12863
    %v12865 = vcombine.low %v12843, %v12850
    %v12866 = vcombine.low %v12857, %v12864
    %v12868 = vunpack.c.l.s4 1966171168
    %v12869 = vunpack.c.0.s8 %v12868
    %v12870 = vlaneseq
    %v12871 = vshrl.u32 %v12870, 7
    %v12872 = vsub.s32 %v12869, %v12871
    %v12873 = vrot.slane %v12865, %v12872
    %v12875 = vunpack.c.l.s4 1966171168
    %v12876 = vunpack.c.0.s8 %v12875
    %v12877 = vlaneseq
    %v12878 = vshrl.u32 %v12877, 7
    %v12879 = vsub.s32 %v12876, %v12878
    %v12880 = vrot.slane %v12866, %v12879
    %v12881 = vcombine.low %v12873, %v12880
    %v12882 = vcombine.low %v6915, %v6919
    %v12883 = vcombine.low %v6923, %v6927
    %v12884 = vcombine.low %v6931, %v6935
    %v12885 = vcombine.low %v6939, %v6943
    %v12887 = vunpack.c.l.s4 1966171168
    %v12888 = vunpack.c.0.s8 %v12887
    %v12889 = vlaneseq
    %v12890 = vshrl.u32 %v12889, 7
    %v12891 = vsub.s32 %v12888, %v12890
    %v12892 = vrot.slane %v12882, %v12891
    %v12894 = vunpack.c.l.s4 1966171168
    %v12895 = vunpack.c.0.s8 %v12894
    %v12896 = vlaneseq
    %v12897 = vshrl.u32 %v12896, 7
    %v12898 = vsub.s32 %v12895, %v12897
    %v12899 = vrot.slane %v12883, %v12898
    %v12901 = vunpack.c.l.s4 1966171168
    %v12902 = vunpack.c.0.s8 %v12901
    %v12903 = vlaneseq
    %v12904 = vshrl.u32 %v12903, 7
    %v12905 = vsub.s32 %v12902, %v12904
    %v12906 = vrot.slane %v12884, %v12905
    %v12908 = vunpack.c.l.s4 1966171168
    %v12909 = vunpack.c.0.s8 %v12908
    %v12910 = vlaneseq
    %v12911 = vshrl.u32 %v12910, 7
    %v12912 = vsub.s32 %v12909, %v12911
    %v12913 = vrot.slane %v12885, %v12912
    %v12914 = vcombine.low %v12892, %v12899
    %v12915 = vcombine.low %v12906, %v12913
    %v12917 = vunpack.c.l.s4 1966171168
    %v12918 = vunpack.c.0.s8 %v12917
    %v12919 = vlaneseq
    %v12920 = vshrl.u32 %v12919, 7
    %v12921 = vsub.s32 %v12918, %v12920
    %v12922 = vrot.slane %v12914, %v12921
    %v12924 = vunpack.c.l.s4 1966171168
    %v12925 = vunpack.c.0.s8 %v12924
    %v12926 = vlaneseq
    %v12927 = vshrl.u32 %v12926, 7
    %v12928 = vsub.s32 %v12925, %v12927
    %v12929 = vrot.slane %v12915, %v12928
    %v12930 = vcombine.low %v12922, %v12929
    %v12931 = vcombine.low %v6947, %v6951
    %v12932 = vcombine.low %v6955, %v6959
    %v12933 = vcombine.low %v6963, %v6967
    %v12934 = vcombine.low %v6971, %v6975
    %v12936 = vunpack.c.l.s4 1966171168
    %v12937 = vunpack.c.0.s8 %v12936
    %v12938 = vlaneseq
    %v12939 = vshrl.u32 %v12938, 7
    %v12940 = vsub.s32 %v12937, %v12939
    %v12941 = vrot.slane %v12931, %v12940
    %v12943 = vunpack.c.l.s4 1966171168
    %v12944 = vunpack.c.0.s8 %v12943
    %v12945 = vlaneseq
    %v12946 = vshrl.u32 %v12945, 7
    %v12947 = vsub.s32 %v12944, %v12946
    %v12948 = vrot.slane %v12932, %v12947
    %v12950 = vunpack.c.l.s4 1966171168
    %v12951 = vunpack.c.0.s8 %v12950
    %v12952 = vlaneseq
    %v12953 = vshrl.u32 %v12952, 7
    %v12954 = vsub.s32 %v12951, %v12953
    %v12955 = vrot.slane %v12933, %v12954
    %v12957 = vunpack.c.l.s4 1966171168
    %v12958 = vunpack.c.0.s8 %v12957
    %v12959 = vlaneseq
    %v12960 = vshrl.u32 %v12959, 7
    %v12961 = vsub.s32 %v12958, %v12960
    %v12962 = vrot.slane %v12934, %v12961
    %v12963 = vcombine.low %v12941, %v12948
    %v12964 = vcombine.low %v12955, %v12962
    %v12966 = vunpack.c.l.s4 1966171168
    %v12967 = vunpack.c.0.s8 %v12966
    %v12968 = vlaneseq
    %v12969 = vshrl.u32 %v12968, 7
    %v12970 = vsub.s32 %v12967, %v12969
    %v12971 = vrot.slane %v12963, %v12970
    %v12973 = vunpack.c.l.s4 1966171168
    %v12974 = vunpack.c.0.s8 %v12973
    %v12975 = vlaneseq
    %v12976 = vshrl.u32 %v12975, 7
    %v12977 = vsub.s32 %v12974, %v12976
    %v12978 = vrot.slane %v12964, %v12977
    %v12979 = vcombine.low %v12971, %v12978
    %v12980 = vcombine.low %v6979, %v6983
    %v12981 = vcombine.low %v6987, %v6991
    %v12982 = vcombine.low %v6995, %v6999
    %v12983 = vcombine.low %v7003, %v7007
    %v12985 = vunpack.c.l.s4 1966171168
    %v12986 = vunpack.c.0.s8 %v12985
    %v12987 = vlaneseq
    %v12988 = vshrl.u32 %v12987, 7
    %v12989 = vsub.s32 %v12986, %v12988
    %v12990 = vrot.slane %v12980, %v12989
    %v12992 = vunpack.c.l.s4 1966171168
    %v12993 = vunpack.c.0.s8 %v12992
    %v12994 = vlaneseq
    %v12995 = vshrl.u32 %v12994, 7
    %v12996 = vsub.s32 %v12993, %v12995
    %v12997 = vrot.slane %v12981, %v12996
    %v12999 = vunpack.c.l.s4 1966171168
    %v13000 = vunpack.c.0.s8 %v12999
    %v13001 = vlaneseq
    %v13002 = vshrl.u32 %v13001, 7
    %v13003 = vsub.s32 %v13000, %v13002
    %v13004 = vrot.slane %v12982, %v13003
    %v13006 = vunpack.c.l.s4 1966171168
    %v13007 = vunpack.c.0.s8 %v13006
    %v13008 = vlaneseq
    %v13009 = vshrl.u32 %v13008, 7
    %v13010 = vsub.s32 %v13007, %v13009
    %v13011 = vrot.slane %v12983, %v13010
    %v13012 = vcombine.low %v12990, %v12997
    %v13013 = vcombine.low %v13004, %v13011
    %v13015 = vunpack.c.l.s4 1966171168
    %v13016 = vunpack.c.0.s8 %v13015
    %v13017 = vlaneseq
    %v13018 = vshrl.u32 %v13017, 7
    %v13019 = vsub.s32 %v13016, %v13018
    %v13020 = vrot.slane %v13012, %v13019
    %v13022 = vunpack.c.l.s4 1966171168
    %v13023 = vunpack.c.0.s8 %v13022
    %v13024 = vlaneseq
    %v13025 = vshrl.u32 %v13024, 7
    %v13026 = vsub.s32 %v13023, %v13025
    %v13027 = vrot.slane %v13013, %v13026
    %v13028 = vcombine.low %v13020, %v13027
    %v13029 = vcombine.low %v7011, %v7015
    %v13030 = vcombine.low %v7019, %v7023
    %v13031 = vcombine.low %v7027, %v7031
    %v13032 = vcombine.low %v7035, %v7039
    %v13034 = vunpack.c.l.s4 1966171168
    %v13035 = vunpack.c.0.s8 %v13034
    %v13036 = vlaneseq
    %v13037 = vshrl.u32 %v13036, 7
    %v13038 = vsub.s32 %v13035, %v13037
    %v13039 = vrot.slane %v13029, %v13038
    %v13041 = vunpack.c.l.s4 1966171168
    %v13042 = vunpack.c.0.s8 %v13041
    %v13043 = vlaneseq
    %v13044 = vshrl.u32 %v13043, 7
    %v13045 = vsub.s32 %v13042, %v13044
    %v13046 = vrot.slane %v13030, %v13045
    %v13048 = vunpack.c.l.s4 1966171168
    %v13049 = vunpack.c.0.s8 %v13048
    %v13050 = vlaneseq
    %v13051 = vshrl.u32 %v13050, 7
    %v13052 = vsub.s32 %v13049, %v13051
    %v13053 = vrot.slane %v13031, %v13052
    %v13055 = vunpack.c.l.s4 1966171168
    %v13056 = vunpack.c.0.s8 %v13055
    %v13057 = vlaneseq
    %v13058 = vshrl.u32 %v13057, 7
    %v13059 = vsub.s32 %v13056, %v13058
    %v13060 = vrot.slane %v13032, %v13059
    %v13061 = vcombine.low %v13039, %v13046
    %v13062 = vcombine.low %v13053, %v13060
    %v13064 = vunpack.c.l.s4 1966171168
    %v13065 = vunpack.c.0.s8 %v13064
    %v13066 = vlaneseq
    %v13067 = vshrl.u32 %v13066, 7
    %v13068 = vsub.s32 %v13065, %v13067
    %v13069 = vrot.slane %v13061, %v13068
    %v13071 = vunpack.c.l.s4 1966171168
    %v13072 = vunpack.c.0.s8 %v13071
    %v13073 = vlaneseq
    %v13074 = vshrl.u32 %v13073, 7
    %v13075 = vsub.s32 %v13072, %v13074
    %v13076 = vrot.slane %v13062, %v13075
    %v13077 = vcombine.low %v13069, %v13076
    %v13078 = vcombine.low %v7043, %v7047
    %v13079 = vcombine.low %v7051, %v7055
    %v13080 = vcombine.low %v7059, %v7063
    %v13081 = vcombine.low %v7067, %v7071
    %v13083 = vunpack.c.l.s4 1966171168
    %v13084 = vunpack.c.0.s8 %v13083
    %v13085 = vlaneseq
    %v13086 = vshrl.u32 %v13085, 7
    %v13087 = vsub.s32 %v13084, %v13086
    %v13088 = vrot.slane %v13078, %v13087
    %v13090 = vunpack.c.l.s4 1966171168
    %v13091 = vunpack.c.0.s8 %v13090
    %v13092 = vlaneseq
    %v13093 = vshrl.u32 %v13092, 7
    %v13094 = vsub.s32 %v13091, %v13093
    %v13095 = vrot.slane %v13079, %v13094
    %v13097 = vunpack.c.l.s4 1966171168
    %v13098 = vunpack.c.0.s8 %v13097
    %v13099 = vlaneseq
    %v13100 = vshrl.u32 %v13099, 7
    %v13101 = vsub.s32 %v13098, %v13100
    %v13102 = vrot.slane %v13080, %v13101
    %v13104 = vunpack.c.l.s4 1966171168
    %v13105 = vunpack.c.0.s8 %v13104
    %v13106 = vlaneseq
    %v13107 = vshrl.u32 %v13106, 7
    %v13108 = vsub.s32 %v13105, %v13107
    %v13109 = vrot.slane %v13081, %v13108
    %v13110 = vcombine.low %v13088, %v13095
    %v13111 = vcombine.low %v13102, %v13109
    %v13113 = vunpack.c.l.s4 1966171168
    %v13114 = vunpack.c.0.s8 %v13113
    %v13115 = vlaneseq
    %v13116 = vshrl.u32 %v13115, 7
    %v13117 = vsub.s32 %v13114, %v13116
    %v13118 = vrot.slane %v13110, %v13117
    %v13120 = vunpack.c.l.s4 1966171168
    %v13121 = vunpack.c.0.s8 %v13120
    %v13122 = vlaneseq
    %v13123 = vshrl.u32 %v13122, 7
    %v13124 = vsub.s32 %v13121, %v13123
    %v13125 = vrot.slane %v13111, %v13124
    %v13126 = vcombine.low %v13118, %v13125
    %v13127 = vcombine.low %v7075, %v7079
    %v13128 = vcombine.low %v7083, %v7087
    %v13129 = vcombine.low %v7091, %v7095
    %v13130 = vcombine.low %v7099, %v7103
    %v13132 = vunpack.c.l.s4 1966171168
    %v13133 = vunpack.c.0.s8 %v13132
    %v13134 = vlaneseq
    %v13135 = vshrl.u32 %v13134, 7
    %v13136 = vsub.s32 %v13133, %v13135
    %v13137 = vrot.slane %v13127, %v13136
    %v13139 = vunpack.c.l.s4 1966171168
    %v13140 = vunpack.c.0.s8 %v13139
    %v13141 = vlaneseq
    %v13142 = vshrl.u32 %v13141, 7
    %v13143 = vsub.s32 %v13140, %v13142
    %v13144 = vrot.slane %v13128, %v13143
    %v13146 = vunpack.c.l.s4 1966171168
    %v13147 = vunpack.c.0.s8 %v13146
    %v13148 = vlaneseq
    %v13149 = vshrl.u32 %v13148, 7
    %v13150 = vsub.s32 %v13147, %v13149
    %v13151 = vrot.slane %v13129, %v13150
    %v13153 = vunpack.c.l.s4 1966171168
    %v13154 = vunpack.c.0.s8 %v13153
    %v13155 = vlaneseq
    %v13156 = vshrl.u32 %v13155, 7
    %v13157 = vsub.s32 %v13154, %v13156
    %v13158 = vrot.slane %v13130, %v13157
    %v13159 = vcombine.low %v13137, %v13144
    %v13160 = vcombine.low %v13151, %v13158
    %v13162 = vunpack.c.l.s4 1966171168
    %v13163 = vunpack.c.0.s8 %v13162
    %v13164 = vlaneseq
    %v13165 = vshrl.u32 %v13164, 7
    %v13166 = vsub.s32 %v13163, %v13165
    %v13167 = vrot.slane %v13159, %v13166
    %v13169 = vunpack.c.l.s4 1966171168
    %v13170 = vunpack.c.0.s8 %v13169
    %v13171 = vlaneseq
    %v13172 = vshrl.u32 %v13171, 7
    %v13173 = vsub.s32 %v13170, %v13172
    %v13174 = vrot.slane %v13160, %v13173
    %v13175 = vcombine.low %v13167, %v13174
    %v13176 = vcombine.low %v7107, %v7111
    %v13177 = vcombine.low %v7115, %v7119
    %v13178 = vcombine.low %v7123, %v7127
    %v13179 = vcombine.low %v7131, %v7135
    %v13181 = vunpack.c.l.s4 1966171168
    %v13182 = vunpack.c.0.s8 %v13181
    %v13183 = vlaneseq
    %v13184 = vshrl.u32 %v13183, 7
    %v13185 = vsub.s32 %v13182, %v13184
    %v13186 = vrot.slane %v13176, %v13185
    %v13188 = vunpack.c.l.s4 1966171168
    %v13189 = vunpack.c.0.s8 %v13188
    %v13190 = vlaneseq
    %v13191 = vshrl.u32 %v13190, 7
    %v13192 = vsub.s32 %v13189, %v13191
    %v13193 = vrot.slane %v13177, %v13192
    %v13195 = vunpack.c.l.s4 1966171168
    %v13196 = vunpack.c.0.s8 %v13195
    %v13197 = vlaneseq
    %v13198 = vshrl.u32 %v13197, 7
    %v13199 = vsub.s32 %v13196, %v13198
    %v13200 = vrot.slane %v13178, %v13199
    %v13202 = vunpack.c.l.s4 1966171168
    %v13203 = vunpack.c.0.s8 %v13202
    %v13204 = vlaneseq
    %v13205 = vshrl.u32 %v13204, 7
    %v13206 = vsub.s32 %v13203, %v13205
    %v13207 = vrot.slane %v13179, %v13206
    %v13208 = vcombine.low %v13186, %v13193
    %v13209 = vcombine.low %v13200, %v13207
    %v13211 = vunpack.c.l.s4 1966171168
    %v13212 = vunpack.c.0.s8 %v13211
    %v13213 = vlaneseq
    %v13214 = vshrl.u32 %v13213, 7
    %v13215 = vsub.s32 %v13212, %v13214
    %v13216 = vrot.slane %v13208, %v13215
    %v13218 = vunpack.c.l.s4 1966171168
    %v13219 = vunpack.c.0.s8 %v13218
    %v13220 = vlaneseq
    %v13221 = vshrl.u32 %v13220, 7
    %v13222 = vsub.s32 %v13219, %v13221
    %v13223 = vrot.slane %v13209, %v13222
    %v13224 = vcombine.low %v13216, %v13223
    %v13225 = vcombine.low %v7139, %v7143
    %v13226 = vcombine.low %v7147, %v7151
    %v13227 = vcombine.low %v7155, %v7159
    %v13228 = vcombine.low %v7163, %v7167
    %v13230 = vunpack.c.l.s4 1966171168
    %v13231 = vunpack.c.0.s8 %v13230
    %v13232 = vlaneseq
    %v13233 = vshrl.u32 %v13232, 7
    %v13234 = vsub.s32 %v13231, %v13233
    %v13235 = vrot.slane %v13225, %v13234
    %v13237 = vunpack.c.l.s4 1966171168
    %v13238 = vunpack.c.0.s8 %v13237
    %v13239 = vlaneseq
    %v13240 = vshrl.u32 %v13239, 7
    %v13241 = vsub.s32 %v13238, %v13240
    %v13242 = vrot.slane %v13226, %v13241
    %v13244 = vunpack.c.l.s4 1966171168
    %v13245 = vunpack.c.0.s8 %v13244
    %v13246 = vlaneseq
    %v13247 = vshrl.u32 %v13246, 7
    %v13248 = vsub.s32 %v13245, %v13247
    %v13249 = vrot.slane %v13227, %v13248
    %v13251 = vunpack.c.l.s4 1966171168
    %v13252 = vunpack.c.0.s8 %v13251
    %v13253 = vlaneseq
    %v13254 = vshrl.u32 %v13253, 7
    %v13255 = vsub.s32 %v13252, %v13254
    %v13256 = vrot.slane %v13228, %v13255
    %v13257 = vcombine.low %v13235, %v13242
    %v13258 = vcombine.low %v13249, %v13256
    %v13260 = vunpack.c.l.s4 1966171168
    %v13261 = vunpack.c.0.s8 %v13260
    %v13262 = vlaneseq
    %v13263 = vshrl.u32 %v13262, 7
    %v13264 = vsub.s32 %v13261, %v13263
    %v13265 = vrot.slane %v13257, %v13264
    %v13267 = vunpack.c.l.s4 1966171168
    %v13268 = vunpack.c.0.s8 %v13267
    %v13269 = vlaneseq
    %v13270 = vshrl.u32 %v13269, 7
    %v13271 = vsub.s32 %v13268, %v13270
    %v13272 = vrot.slane %v13258, %v13271
    %v13273 = vcombine.low %v13265, %v13272
    %v13274 = vcombine.low %v7171, %v7175
    %v13275 = vcombine.low %v7179, %v7183
    %v13276 = vcombine.low %v7187, %v7191
    %v13277 = vcombine.low %v7195, %v7199
    %v13279 = vunpack.c.l.s4 1966171168
    %v13280 = vunpack.c.0.s8 %v13279
    %v13281 = vlaneseq
    %v13282 = vshrl.u32 %v13281, 7
    %v13283 = vsub.s32 %v13280, %v13282
    %v13284 = vrot.slane %v13274, %v13283
    %v13286 = vunpack.c.l.s4 1966171168
    %v13287 = vunpack.c.0.s8 %v13286
    %v13288 = vlaneseq
    %v13289 = vshrl.u32 %v13288, 7
    %v13290 = vsub.s32 %v13287, %v13289
    %v13291 = vrot.slane %v13275, %v13290
    %v13293 = vunpack.c.l.s4 1966171168
    %v13294 = vunpack.c.0.s8 %v13293
    %v13295 = vlaneseq
    %v13296 = vshrl.u32 %v13295, 7
    %v13297 = vsub.s32 %v13294, %v13296
    %v13298 = vrot.slane %v13276, %v13297
    %v13300 = vunpack.c.l.s4 1966171168
    %v13301 = vunpack.c.0.s8 %v13300
    %v13302 = vlaneseq
    %v13303 = vshrl.u32 %v13302, 7
    %v13304 = vsub.s32 %v13301, %v13303
    %v13305 = vrot.slane %v13277, %v13304
    %v13306 = vcombine.low %v13284, %v13291
    %v13307 = vcombine.low %v13298, %v13305
    %v13309 = vunpack.c.l.s4 1966171168
    %v13310 = vunpack.c.0.s8 %v13309
    %v13311 = vlaneseq
    %v13312 = vshrl.u32 %v13311, 7
    %v13313 = vsub.s32 %v13310, %v13312
    %v13314 = vrot.slane %v13306, %v13313
    %v13316 = vunpack.c.l.s4 1966171168
    %v13317 = vunpack.c.0.s8 %v13316
    %v13318 = vlaneseq
    %v13319 = vshrl.u32 %v13318, 7
    %v13320 = vsub.s32 %v13317, %v13319
    %v13321 = vrot.slane %v13307, %v13320
    %v13322 = vcombine.low %v13314, %v13321
    %v13323 = vcombine.low %v7203, %v7207
    %v13324 = vcombine.low %v7211, %v7215
    %v13325 = vcombine.low %v7219, %v7223
    %v13326 = vcombine.low %v7227, %v7231
    %v13328 = vunpack.c.l.s4 1966171168
    %v13329 = vunpack.c.0.s8 %v13328
    %v13330 = vlaneseq
    %v13331 = vshrl.u32 %v13330, 7
    %v13332 = vsub.s32 %v13329, %v13331
    %v13333 = vrot.slane %v13323, %v13332
    %v13335 = vunpack.c.l.s4 1966171168
    %v13336 = vunpack.c.0.s8 %v13335
    %v13337 = vlaneseq
    %v13338 = vshrl.u32 %v13337, 7
    %v13339 = vsub.s32 %v13336, %v13338
    %v13340 = vrot.slane %v13324, %v13339
    %v13342 = vunpack.c.l.s4 1966171168
    %v13343 = vunpack.c.0.s8 %v13342
    %v13344 = vlaneseq
    %v13345 = vshrl.u32 %v13344, 7
    %v13346 = vsub.s32 %v13343, %v13345
    %v13347 = vrot.slane %v13325, %v13346
    %v13349 = vunpack.c.l.s4 1966171168
    %v13350 = vunpack.c.0.s8 %v13349
    %v13351 = vlaneseq
    %v13352 = vshrl.u32 %v13351, 7
    %v13353 = vsub.s32 %v13350, %v13352
    %v13354 = vrot.slane %v13326, %v13353
    %v13355 = vcombine.low %v13333, %v13340
    %v13356 = vcombine.low %v13347, %v13354
    %v13358 = vunpack.c.l.s4 1966171168
    %v13359 = vunpack.c.0.s8 %v13358
    %v13360 = vlaneseq
    %v13361 = vshrl.u32 %v13360, 7
    %v13362 = vsub.s32 %v13359, %v13361
    %v13363 = vrot.slane %v13355, %v13362
    %v13365 = vunpack.c.l.s4 1966171168
    %v13366 = vunpack.c.0.s8 %v13365
    %v13367 = vlaneseq
    %v13368 = vshrl.u32 %v13367, 7
    %v13369 = vsub.s32 %v13366, %v13368
    %v13370 = vrot.slane %v13356, %v13369
    %v13371 = vcombine.low %v13363, %v13370
    %v13372 = vcombine.low %v7235, %v7239
    %v13373 = vcombine.low %v7243, %v7247
    %v13374 = vcombine.low %v7251, %v7255
    %v13375 = vcombine.low %v7259, %v7263
    %v13377 = vunpack.c.l.s4 1966171168
    %v13378 = vunpack.c.0.s8 %v13377
    %v13379 = vlaneseq
    %v13380 = vshrl.u32 %v13379, 7
    %v13381 = vsub.s32 %v13378, %v13380
    %v13382 = vrot.slane %v13372, %v13381
    %v13384 = vunpack.c.l.s4 1966171168
    %v13385 = vunpack.c.0.s8 %v13384
    %v13386 = vlaneseq
    %v13387 = vshrl.u32 %v13386, 7
    %v13388 = vsub.s32 %v13385, %v13387
    %v13389 = vrot.slane %v13373, %v13388
    %v13391 = vunpack.c.l.s4 1966171168
    %v13392 = vunpack.c.0.s8 %v13391
    %v13393 = vlaneseq
    %v13394 = vshrl.u32 %v13393, 7
    %v13395 = vsub.s32 %v13392, %v13394
    %v13396 = vrot.slane %v13374, %v13395
    %v13398 = vunpack.c.l.s4 1966171168
    %v13399 = vunpack.c.0.s8 %v13398
    %v13400 = vlaneseq
    %v13401 = vshrl.u32 %v13400, 7
    %v13402 = vsub.s32 %v13399, %v13401
    %v13403 = vrot.slane %v13375, %v13402
    %v13404 = vcombine.low %v13382, %v13389
    %v13405 = vcombine.low %v13396, %v13403
    %v13407 = vunpack.c.l.s4 1966171168
    %v13408 = vunpack.c.0.s8 %v13407
    %v13409 = vlaneseq
    %v13410 = vshrl.u32 %v13409, 7
    %v13411 = vsub.s32 %v13408, %v13410
    %v13412 = vrot.slane %v13404, %v13411
    %v13414 = vunpack.c.l.s4 1966171168
    %v13415 = vunpack.c.0.s8 %v13414
    %v13416 = vlaneseq
    %v13417 = vshrl.u32 %v13416, 7
    %v13418 = vsub.s32 %v13415, %v13417
    %v13419 = vrot.slane %v13405, %v13418
    %v13420 = vcombine.low %v13412, %v13419
    %v13421 = vcombine.low %v7267, %v7271
    %v13422 = vcombine.low %v7275, %v7279
    %v13423 = vcombine.low %v7283, %v7287
    %v13424 = vcombine.low %v7291, %v7295
    %v13426 = vunpack.c.l.s4 1966171168
    %v13427 = vunpack.c.0.s8 %v13426
    %v13428 = vlaneseq
    %v13429 = vshrl.u32 %v13428, 7
    %v13430 = vsub.s32 %v13427, %v13429
    %v13431 = vrot.slane %v13421, %v13430
    %v13433 = vunpack.c.l.s4 1966171168
    %v13434 = vunpack.c.0.s8 %v13433
    %v13435 = vlaneseq
    %v13436 = vshrl.u32 %v13435, 7
    %v13437 = vsub.s32 %v13434, %v13436
    %v13438 = vrot.slane %v13422, %v13437
    %v13440 = vunpack.c.l.s4 1966171168
    %v13441 = vunpack.c.0.s8 %v13440
    %v13442 = vlaneseq
    %v13443 = vshrl.u32 %v13442, 7
    %v13444 = vsub.s32 %v13441, %v13443
    %v13445 = vrot.slane %v13423, %v13444
    %v13447 = vunpack.c.l.s4 1966171168
    %v13448 = vunpack.c.0.s8 %v13447
    %v13449 = vlaneseq
    %v13450 = vshrl.u32 %v13449, 7
    %v13451 = vsub.s32 %v13448, %v13450
    %v13452 = vrot.slane %v13424, %v13451
    %v13453 = vcombine.low %v13431, %v13438
    %v13454 = vcombine.low %v13445, %v13452
    %v13456 = vunpack.c.l.s4 1966171168
    %v13457 = vunpack.c.0.s8 %v13456
    %v13458 = vlaneseq
    %v13459 = vshrl.u32 %v13458, 7
    %v13460 = vsub.s32 %v13457, %v13459
    %v13461 = vrot.slane %v13453, %v13460
    %v13463 = vunpack.c.l.s4 1966171168
    %v13464 = vunpack.c.0.s8 %v13463
    %v13465 = vlaneseq
    %v13466 = vshrl.u32 %v13465, 7
    %v13467 = vsub.s32 %v13464, %v13466
    %v13468 = vrot.slane %v13454, %v13467
    %v13469 = vcombine.low %v13461, %v13468
    %13470 = vset.pattern.permute.xlu0 0
    %13471 = vperm.xlu0 %13470, %v7344
    %v13472 = vpop.permute.xlu0 %13471
    %13473 = vset.pattern.permute.xlu0 0
    %13474 = vperm.xlu0 %13473, %v7393
    %v13475 = vpop.permute.xlu0 %13474
    %13476 = vset.pattern.permute.xlu0 0
    %13477 = vperm.xlu0 %13476, %v7442
    %v13478 = vpop.permute.xlu0 %13477
    %13479 = vset.pattern.permute.xlu0 0
    %13480 = vperm.xlu0 %13479, %v7491
    %v13481 = vpop.permute.xlu0 %13480
    %13482 = vset.pattern.permute.xlu0 0
    %13483 = vperm.xlu0 %13482, %v7540
    %v13484 = vpop.permute.xlu0 %13483
    %13485 = vset.pattern.permute.xlu0 0
    %13486 = vperm.xlu0 %13485, %v7589
    %v13487 = vpop.permute.xlu0 %13486
    %13488 = vset.pattern.permute.xlu0 0
    %13489 = vperm.xlu0 %13488, %v7638
    %v13490 = vpop.permute.xlu0 %13489
    %13491 = vset.pattern.permute.xlu0 0
    %13492 = vperm.xlu0 %13491, %v7687
    %v13493 = vpop.permute.xlu0 %13492
    %13494 = vset.pattern.permute.xlu0 0
    %13495 = vperm.xlu0 %13494, %v7736
    %v13496 = vpop.permute.xlu0 %13495
    %13497 = vset.pattern.permute.xlu0 0
    %13498 = vperm.xlu0 %13497, %v7785
    %v13499 = vpop.permute.xlu0 %13498
    %13500 = vset.pattern.permute.xlu0 0
    %13501 = vperm.xlu0 %13500, %v7834
    %v13502 = vpop.permute.xlu0 %13501
    %13503 = vset.pattern.permute.xlu0 0
    %13504 = vperm.xlu0 %13503, %v7883
    %v13505 = vpop.permute.xlu0 %13504
    %13506 = vset.pattern.permute.xlu0 0
    %13507 = vperm.xlu0 %13506, %v7932
    %v13508 = vpop.permute.xlu0 %13507
    %13509 = vset.pattern.permute.xlu0 0
    %13510 = vperm.xlu0 %13509, %v7981
    %v13511 = vpop.permute.xlu0 %13510
    %13512 = vset.pattern.permute.xlu0 0
    %13513 = vperm.xlu0 %13512, %v8030
    %v13514 = vpop.permute.xlu0 %13513
    %13515 = vset.pattern.permute.xlu0 0
    %13516 = vperm.xlu0 %13515, %v8079
    %v13517 = vpop.permute.xlu0 %13516
    %13518 = vset.pattern.permute.xlu0 0
    %13519 = vperm.xlu0 %13518, %v8128
    %v13520 = vpop.permute.xlu0 %13519
    %13521 = vset.pattern.permute.xlu0 0
    %13522 = vperm.xlu0 %13521, %v8177
    %v13523 = vpop.permute.xlu0 %13522
    %13524 = vset.pattern.permute.xlu0 0
    %13525 = vperm.xlu0 %13524, %v8226
    %v13526 = vpop.permute.xlu0 %13525
    %13527 = vset.pattern.permute.xlu0 0
    %13528 = vperm.xlu0 %13527, %v8275
    %v13529 = vpop.permute.xlu0 %13528
    %13530 = vset.pattern.permute.xlu0 0
    %13531 = vperm.xlu0 %13530, %v8324
    %v13532 = vpop.permute.xlu0 %13531
    %13533 = vset.pattern.permute.xlu0 0
    %13534 = vperm.xlu0 %13533, %v8373
    %v13535 = vpop.permute.xlu0 %13534
    %13536 = vset.pattern.permute.xlu0 0
    %13537 = vperm.xlu0 %13536, %v8422
    %v13538 = vpop.permute.xlu0 %13537
    %13539 = vset.pattern.permute.xlu0 0
    %13540 = vperm.xlu0 %13539, %v8471
    %v13541 = vpop.permute.xlu0 %13540
    %13542 = vset.pattern.permute.xlu0 0
    %13543 = vperm.xlu0 %13542, %v8520
    %v13544 = vpop.permute.xlu0 %13543
    %13545 = vset.pattern.permute.xlu0 0
    %13546 = vperm.xlu0 %13545, %v8569
    %v13547 = vpop.permute.xlu0 %13546
    %13548 = vset.pattern.permute.xlu0 0
    %13549 = vperm.xlu0 %13548, %v8618
    %v13550 = vpop.permute.xlu0 %13549
    %13551 = vset.pattern.permute.xlu0 0
    %13552 = vperm.xlu0 %13551, %v8667
    %v13553 = vpop.permute.xlu0 %13552
    %13554 = vset.pattern.permute.xlu0 0
    %13555 = vperm.xlu0 %13554, %v8716
    %v13556 = vpop.permute.xlu0 %13555
    %13557 = vset.pattern.permute.xlu0 0
    %13558 = vperm.xlu0 %13557, %v8765
    %v13559 = vpop.permute.xlu0 %13558
    %13560 = vset.pattern.permute.xlu0 0
    %13561 = vperm.xlu0 %13560, %v8814
    %v13562 = vpop.permute.xlu0 %13561
    %13563 = vset.pattern.permute.xlu0 0
    %13564 = vperm.xlu0 %13563, %v8863
    %v13565 = vpop.permute.xlu0 %13564
    %13566 = vset.pattern.permute.xlu0 0
    %13567 = vperm.xlu0 %13566, %v8912
    %v13568 = vpop.permute.xlu0 %13567
    %13569 = vset.pattern.permute.xlu0 0
    %13570 = vperm.xlu0 %13569, %v8961
    %v13571 = vpop.permute.xlu0 %13570
    %13572 = vset.pattern.permute.xlu0 0
    %13573 = vperm.xlu0 %13572, %v9010
    %v13574 = vpop.permute.xlu0 %13573
    %13575 = vset.pattern.permute.xlu0 0
    %13576 = vperm.xlu0 %13575, %v9059
    %v13577 = vpop.permute.xlu0 %13576
    %13578 = vset.pattern.permute.xlu0 0
    %13579 = vperm.xlu0 %13578, %v9108
    %v13580 = vpop.permute.xlu0 %13579
    %13581 = vset.pattern.permute.xlu0 0
    %13582 = vperm.xlu0 %13581, %v9157
    %v13583 = vpop.permute.xlu0 %13582
    %13584 = vset.pattern.permute.xlu0 0
    %13585 = vperm.xlu0 %13584, %v9206
    %v13586 = vpop.permute.xlu0 %13585
    %13587 = vset.pattern.permute.xlu0 0
    %13588 = vperm.xlu0 %13587, %v9255
    %v13589 = vpop.permute.xlu0 %13588
    %13590 = vset.pattern.permute.xlu0 0
    %13591 = vperm.xlu0 %13590, %v9304
    %v13592 = vpop.permute.xlu0 %13591
    %13593 = vset.pattern.permute.xlu0 0
    %13594 = vperm.xlu0 %13593, %v9353
    %v13595 = vpop.permute.xlu0 %13594
    %13596 = vset.pattern.permute.xlu0 0
    %13597 = vperm.xlu0 %13596, %v9402
    %v13598 = vpop.permute.xlu0 %13597
    %13599 = vset.pattern.permute.xlu0 0
    %13600 = vperm.xlu0 %13599, %v9451
    %v13601 = vpop.permute.xlu0 %13600
    %13602 = vset.pattern.permute.xlu0 0
    %13603 = vperm.xlu0 %13602, %v9500
    %v13604 = vpop.permute.xlu0 %13603
    %13605 = vset.pattern.permute.xlu0 0
    %13606 = vperm.xlu0 %13605, %v9549
    %v13607 = vpop.permute.xlu0 %13606
    %13608 = vset.pattern.permute.xlu0 0
    %13609 = vperm.xlu0 %13608, %v9598
    %v13610 = vpop.permute.xlu0 %13609
    %13611 = vset.pattern.permute.xlu0 0
    %13612 = vperm.xlu0 %13611, %v9647
    %v13613 = vpop.permute.xlu0 %13612
    %13614 = vset.pattern.permute.xlu0 0
    %13615 = vperm.xlu0 %13614, %v9696
    %v13616 = vpop.permute.xlu0 %13615
    %13617 = vset.pattern.permute.xlu0 0
    %13618 = vperm.xlu0 %13617, %v9745
    %v13619 = vpop.permute.xlu0 %13618
    %13620 = vset.pattern.permute.xlu0 0
    %13621 = vperm.xlu0 %13620, %v9794
    %v13622 = vpop.permute.xlu0 %13621
    %13623 = vset.pattern.permute.xlu0 0
    %13624 = vperm.xlu0 %13623, %v9843
    %v13625 = vpop.permute.xlu0 %13624
    %13626 = vset.pattern.permute.xlu0 0
    %13627 = vperm.xlu0 %13626, %v9892
    %v13628 = vpop.permute.xlu0 %13627
    %13629 = vset.pattern.permute.xlu0 0
    %13630 = vperm.xlu0 %13629, %v9941
    %v13631 = vpop.permute.xlu0 %13630
    %13632 = vset.pattern.permute.xlu0 0
    %13633 = vperm.xlu0 %13632, %v9990
    %v13634 = vpop.permute.xlu0 %13633
    %13635 = vset.pattern.permute.xlu0 0
    %13636 = vperm.xlu0 %13635, %v10039
    %v13637 = vpop.permute.xlu0 %13636
    %13638 = vset.pattern.permute.xlu0 0
    %13639 = vperm.xlu0 %13638, %v10088
    %v13640 = vpop.permute.xlu0 %13639
    %13641 = vset.pattern.permute.xlu0 0
    %13642 = vperm.xlu0 %13641, %v10137
    %v13643 = vpop.permute.xlu0 %13642
    %13644 = vset.pattern.permute.xlu0 0
    %13645 = vperm.xlu0 %13644, %v10186
    %v13646 = vpop.permute.xlu0 %13645
    %13647 = vset.pattern.permute.xlu0 0
    %13648 = vperm.xlu0 %13647, %v10235
    %v13649 = vpop.permute.xlu0 %13648
    %13650 = vset.pattern.permute.xlu0 0
    %13651 = vperm.xlu0 %13650, %v10284
    %v13652 = vpop.permute.xlu0 %13651
    %13653 = vset.pattern.permute.xlu0 0
    %13654 = vperm.xlu0 %13653, %v10333
    %v13655 = vpop.permute.xlu0 %13654
    %13656 = vset.pattern.permute.xlu0 0
    %13657 = vperm.xlu0 %13656, %v10382
    %v13658 = vpop.permute.xlu0 %13657
    %13659 = vset.pattern.permute.xlu0 0
    %13660 = vperm.xlu0 %13659, %v10431
    %v13661 = vpop.permute.xlu0 %13660
    %13662 = vset.pattern.permute.xlu0 0
    %13663 = vperm.xlu0 %13662, %v10480
    %v13664 = vpop.permute.xlu0 %13663
    %13665 = vset.pattern.permute.xlu0 0
    %13666 = vperm.xlu0 %13665, %v10529
    %v13667 = vpop.permute.xlu0 %13666
    %13668 = vset.pattern.permute.xlu0 0
    %13669 = vperm.xlu0 %13668, %v10578
    %v13670 = vpop.permute.xlu0 %13669
    %13671 = vset.pattern.permute.xlu0 0
    %13672 = vperm.xlu0 %13671, %v10627
    %v13673 = vpop.permute.xlu0 %13672
    %13674 = vset.pattern.permute.xlu0 0
    %13675 = vperm.xlu0 %13674, %v10676
    %v13676 = vpop.permute.xlu0 %13675
    %13677 = vset.pattern.permute.xlu0 0
    %13678 = vperm.xlu0 %13677, %v10725
    %v13679 = vpop.permute.xlu0 %13678
    %13680 = vset.pattern.permute.xlu0 0
    %13681 = vperm.xlu0 %13680, %v10774
    %v13682 = vpop.permute.xlu0 %13681
    %13683 = vset.pattern.permute.xlu0 0
    %13684 = vperm.xlu0 %13683, %v10823
    %v13685 = vpop.permute.xlu0 %13684
    %13686 = vset.pattern.permute.xlu0 0
    %13687 = vperm.xlu0 %13686, %v10872
    %v13688 = vpop.permute.xlu0 %13687
    %13689 = vset.pattern.permute.xlu0 0
    %13690 = vperm.xlu0 %13689, %v10921
    %v13691 = vpop.permute.xlu0 %13690
    %13692 = vset.pattern.permute.xlu0 0
    %13693 = vperm.xlu0 %13692, %v10970
    %v13694 = vpop.permute.xlu0 %13693
    %13695 = vset.pattern.permute.xlu0 0
    %13696 = vperm.xlu0 %13695, %v11019
    %v13697 = vpop.permute.xlu0 %13696
    %13698 = vset.pattern.permute.xlu0 0
    %13699 = vperm.xlu0 %13698, %v11068
    %v13700 = vpop.permute.xlu0 %13699
    %13701 = vset.pattern.permute.xlu0 0
    %13702 = vperm.xlu0 %13701, %v11117
    %v13703 = vpop.permute.xlu0 %13702
    %13704 = vset.pattern.permute.xlu0 0
    %13705 = vperm.xlu0 %13704, %v11166
    %v13706 = vpop.permute.xlu0 %13705
    %13707 = vset.pattern.permute.xlu0 0
    %13708 = vperm.xlu0 %13707, %v11215
    %v13709 = vpop.permute.xlu0 %13708
    %13710 = vset.pattern.permute.xlu0 0
    %13711 = vperm.xlu0 %13710, %v11264
    %v13712 = vpop.permute.xlu0 %13711
    %13713 = vset.pattern.permute.xlu0 0
    %13714 = vperm.xlu0 %13713, %v11313
    %v13715 = vpop.permute.xlu0 %13714
    %13716 = vset.pattern.permute.xlu0 0
    %13717 = vperm.xlu0 %13716, %v11362
    %v13718 = vpop.permute.xlu0 %13717
    %13719 = vset.pattern.permute.xlu0 0
    %13720 = vperm.xlu0 %13719, %v11411
    %v13721 = vpop.permute.xlu0 %13720
    %13722 = vset.pattern.permute.xlu0 0
    %13723 = vperm.xlu0 %13722, %v11460
    %v13724 = vpop.permute.xlu0 %13723
    %13725 = vset.pattern.permute.xlu0 0
    %13726 = vperm.xlu0 %13725, %v11509
    %v13727 = vpop.permute.xlu0 %13726
    %13728 = vset.pattern.permute.xlu0 0
    %13729 = vperm.xlu0 %13728, %v11558
    %v13730 = vpop.permute.xlu0 %13729
    %13731 = vset.pattern.permute.xlu0 0
    %13732 = vperm.xlu0 %13731, %v11607
    %v13733 = vpop.permute.xlu0 %13732
    %13734 = vset.pattern.permute.xlu0 0
    %13735 = vperm.xlu0 %13734, %v11656
    %v13736 = vpop.permute.xlu0 %13735
    %13737 = vset.pattern.permute.xlu0 0
    %13738 = vperm.xlu0 %13737, %v11705
    %v13739 = vpop.permute.xlu0 %13738
    %13740 = vset.pattern.permute.xlu0 0
    %13741 = vperm.xlu0 %13740, %v11754
    %v13742 = vpop.permute.xlu0 %13741
    %13743 = vset.pattern.permute.xlu0 0
    %13744 = vperm.xlu0 %13743, %v11803
    %v13745 = vpop.permute.xlu0 %13744
    %13746 = vset.pattern.permute.xlu0 0
    %13747 = vperm.xlu0 %13746, %v11852
    %v13748 = vpop.permute.xlu0 %13747
    %13749 = vset.pattern.permute.xlu0 0
    %13750 = vperm.xlu0 %13749, %v11901
    %v13751 = vpop.permute.xlu0 %13750
    %13752 = vset.pattern.permute.xlu0 0
    %13753 = vperm.xlu0 %13752, %v11950
    %v13754 = vpop.permute.xlu0 %13753
    %13755 = vset.pattern.permute.xlu0 0
    %13756 = vperm.xlu0 %13755, %v11999
    %v13757 = vpop.permute.xlu0 %13756
    %13758 = vset.pattern.permute.xlu0 0
    %13759 = vperm.xlu0 %13758, %v12048
    %v13760 = vpop.permute.xlu0 %13759
    %13761 = vset.pattern.permute.xlu0 0
    %13762 = vperm.xlu0 %13761, %v12097
    %v13763 = vpop.permute.xlu0 %13762
    %13764 = vset.pattern.permute.xlu0 0
    %13765 = vperm.xlu0 %13764, %v12146
    %v13766 = vpop.permute.xlu0 %13765
    %13767 = vset.pattern.permute.xlu0 0
    %13768 = vperm.xlu0 %13767, %v12195
    %v13769 = vpop.permute.xlu0 %13768
    %13770 = vset.pattern.permute.xlu0 0
    %13771 = vperm.xlu0 %13770, %v12244
    %v13772 = vpop.permute.xlu0 %13771
    %13773 = vset.pattern.permute.xlu0 0
    %13774 = vperm.xlu0 %13773, %v12293
    %v13775 = vpop.permute.xlu0 %13774
    %13776 = vset.pattern.permute.xlu0 0
    %13777 = vperm.xlu0 %13776, %v12342
    %v13778 = vpop.permute.xlu0 %13777
    %13779 = vset.pattern.permute.xlu0 0
    %13780 = vperm.xlu0 %13779, %v12391
    %v13781 = vpop.permute.xlu0 %13780
    %13782 = vset.pattern.permute.xlu0 0
    %13783 = vperm.xlu0 %13782, %v12440
    %v13784 = vpop.permute.xlu0 %13783
    %13785 = vset.pattern.permute.xlu0 0
    %13786 = vperm.xlu0 %13785, %v12489
    %v13787 = vpop.permute.xlu0 %13786
    %13788 = vset.pattern.permute.xlu0 0
    %13789 = vperm.xlu0 %13788, %v12538
    %v13790 = vpop.permute.xlu0 %13789
    %13791 = vset.pattern.permute.xlu0 0
    %13792 = vperm.xlu0 %13791, %v12587
    %v13793 = vpop.permute.xlu0 %13792
    %13794 = vset.pattern.permute.xlu0 0
    %13795 = vperm.xlu0 %13794, %v12636
    %v13796 = vpop.permute.xlu0 %13795
    %13797 = vset.pattern.permute.xlu0 0
    %13798 = vperm.xlu0 %13797, %v12685
    %v13799 = vpop.permute.xlu0 %13798
    %13800 = vset.pattern.permute.xlu0 0
    %13801 = vperm.xlu0 %13800, %v12734
    %v13802 = vpop.permute.xlu0 %13801
    %13803 = vset.pattern.permute.xlu0 0
    %13804 = vperm.xlu0 %13803, %v12783
    %v13805 = vpop.permute.xlu0 %13804
    %13806 = vset.pattern.permute.xlu0 0
    %13807 = vperm.xlu0 %13806, %v12832
    %v13808 = vpop.permute.xlu0 %13807
    %13809 = vset.pattern.permute.xlu0 0
    %13810 = vperm.xlu0 %13809, %v12881
    %v13811 = vpop.permute.xlu0 %13810
    %13812 = vset.pattern.permute.xlu0 0
    %13813 = vperm.xlu0 %13812, %v12930
    %v13814 = vpop.permute.xlu0 %13813
    %13815 = vset.pattern.permute.xlu0 0
    %13816 = vperm.xlu0 %13815, %v12979
    %v13817 = vpop.permute.xlu0 %13816
    %13818 = vset.pattern.permute.xlu0 0
    %13819 = vperm.xlu0 %13818, %v13028
    %v13820 = vpop.permute.xlu0 %13819
    %13821 = vset.pattern.permute.xlu0 0
    %13822 = vperm.xlu0 %13821, %v13077
    %v13823 = vpop.permute.xlu0 %13822
    %13824 = vset.pattern.permute.xlu0 0
    %13825 = vperm.xlu0 %13824, %v13126
    %v13826 = vpop.permute.xlu0 %13825
    %13827 = vset.pattern.permute.xlu0 0
    %13828 = vperm.xlu0 %13827, %v13175
    %v13829 = vpop.permute.xlu0 %13828
    %13830 = vset.pattern.permute.xlu0 0
    %13831 = vperm.xlu0 %13830, %v13224
    %v13832 = vpop.permute.xlu0 %13831
    %13833 = vset.pattern.permute.xlu0 0
    %13834 = vperm.xlu0 %13833, %v13273
    %v13835 = vpop.permute.xlu0 %13834
    %13836 = vset.pattern.permute.xlu0 0
    %13837 = vperm.xlu0 %13836, %v13322
    %v13838 = vpop.permute.xlu0 %13837
    %13839 = vset.pattern.permute.xlu0 0
    %13840 = vperm.xlu0 %13839, %v13371
    %v13841 = vpop.permute.xlu0 %13840
    %13842 = vset.pattern.permute.xlu0 0
    %13843 = vperm.xlu0 %13842, %v13420
    %v13844 = vpop.permute.xlu0 %13843
    %13845 = vset.pattern.permute.xlu0 0
    %13846 = vperm.xlu0 %13845, %v13469
    %v13847 = vpop.permute.xlu0 %13846
    %v13848 = vlaneseq
    %v13849 = vand.u32 %v13848, 127
    %v13850 = vlaneseq
    %v13851 = vshrl.u32 %v13850, 7
    %v13852 = vsub.s32 %v13849, %v13851
    %v13853 = vrot.slane %v13472, %v13852
    %v13854 = vadd.s32 %v13849, 4294967288
    %v13855 = vlaneseq
    %v13856 = vshrl.u32 %v13855, 7
    %v13857 = vsub.s32 %v13854, %v13856
    %v13858 = vrot.slane %v13475, %v13857
    %vm13859 = vcmask 130112
    %v13860 = vsel %vm13859, %v13858, %v13853
    %v13861 = vadd.s32 %v13849, 4294967280
    %v13862 = vlaneseq
    %v13863 = vshrl.u32 %v13862, 7
    %v13864 = vsub.s32 %v13861, %v13863
    %v13865 = vrot.slane %v13478, %v13864
    %vm13866 = vcmask 195712
    %v13867 = vsel %vm13866, %v13865, %v13860
    %v13868 = vadd.s32 %v13849, 4294967272
    %v13869 = vlaneseq
    %v13870 = vshrl.u32 %v13869, 7
    %v13871 = vsub.s32 %v13868, %v13870
    %v13872 = vrot.slane %v13481, %v13871
    %vm13873 = vcmask 261312
    %v13874 = vsel %vm13873, %v13872, %v13867
    %v13875 = vadd.s32 %v13849, 4294967264
    %v13876 = vlaneseq
    %v13877 = vshrl.u32 %v13876, 7
    %v13878 = vsub.s32 %v13875, %v13877
    %v13879 = vrot.slane %v13484, %v13878
    %vm13880 = vcmask 326912
    %v13881 = vsel %vm13880, %v13879, %v13874
    %v13882 = vadd.s32 %v13849, 4294967256
    %v13883 = vlaneseq
    %v13884 = vshrl.u32 %v13883, 7
    %v13885 = vsub.s32 %v13882, %v13884
    %v13886 = vrot.slane %v13487, %v13885
    %vm13887 = vcmask 392512
    %v13888 = vsel %vm13887, %v13886, %v13881
    %v13889 = vadd.s32 %v13849, 4294967248
    %v13890 = vlaneseq
    %v13891 = vshrl.u32 %v13890, 7
    %v13892 = vsub.s32 %v13889, %v13891
    %v13893 = vrot.slane %v13490, %v13892
    %vm13894 = vcmask 458112
    %v13895 = vsel %vm13894, %v13893, %v13888
    %v13896 = vadd.s32 %v13849, 4294967240
    %v13897 = vlaneseq
    %v13898 = vshrl.u32 %v13897, 7
    %v13899 = vsub.s32 %v13896, %v13898
    %v13900 = vrot.slane %v13493, %v13899
    %vm13901 = vcmask 523712
    %v13902 = vsel %vm13901, %v13900, %v13895
    %v13903 = vadd.s32 %v13849, 4294967232
    %v13904 = vlaneseq
    %v13905 = vshrl.u32 %v13904, 7
    %v13906 = vsub.s32 %v13903, %v13905
    %v13907 = vrot.slane %v13496, %v13906
    %vm13908 = vcmask 589312
    %v13909 = vsel %vm13908, %v13907, %v13902
    %v13910 = vadd.s32 %v13849, 4294967224
    %v13911 = vlaneseq
    %v13912 = vshrl.u32 %v13911, 7
    %v13913 = vsub.s32 %v13910, %v13912
    %v13914 = vrot.slane %v13499, %v13913
    %vm13915 = vcmask 654912
    %v13916 = vsel %vm13915, %v13914, %v13909
    %v13917 = vadd.s32 %v13849, 4294967216
    %v13918 = vlaneseq
    %v13919 = vshrl.u32 %v13918, 7
    %v13920 = vsub.s32 %v13917, %v13919
    %v13921 = vrot.slane %v13502, %v13920
    %vm13922 = vcmask 720512
    %v13923 = vsel %vm13922, %v13921, %v13916
    %v13924 = vadd.s32 %v13849, 4294967208
    %v13925 = vlaneseq
    %v13926 = vshrl.u32 %v13925, 7
    %v13927 = vsub.s32 %v13924, %v13926
    %v13928 = vrot.slane %v13505, %v13927
    %vm13929 = vcmask 786112
    %v13930 = vsel %vm13929, %v13928, %v13923
    %v13931 = vadd.s32 %v13849, 4294967200
    %v13932 = vlaneseq
    %v13933 = vshrl.u32 %v13932, 7
    %v13934 = vsub.s32 %v13931, %v13933
    %v13935 = vrot.slane %v13508, %v13934
    %vm13936 = vcmask 851712
    %v13937 = vsel %vm13936, %v13935, %v13930
    %v13938 = vadd.s32 %v13849, 4294967192
    %v13939 = vlaneseq
    %v13940 = vshrl.u32 %v13939, 7
    %v13941 = vsub.s32 %v13938, %v13940
    %v13942 = vrot.slane %v13511, %v13941
    %vm13943 = vcmask 917312
    %v13944 = vsel %vm13943, %v13942, %v13937
    %v13945 = vadd.s32 %v13849, 4294967184
    %v13946 = vlaneseq
    %v13947 = vshrl.u32 %v13946, 7
    %v13948 = vsub.s32 %v13945, %v13947
    %v13949 = vrot.slane %v13514, %v13948
    %vm13950 = vcmask 982912
    %v13951 = vsel %vm13950, %v13949, %v13944
    %v13952 = vadd.s32 %v13849, 4294967176
    %v13953 = vlaneseq
    %v13954 = vshrl.u32 %v13953, 7
    %v13955 = vsub.s32 %v13952, %v13954
    %v13956 = vrot.slane %v13517, %v13955
    %vm13957 = vcmask 1048512
    %v13958 = vsel %vm13957, %v13956, %v13951
    %v13959 = vlaneseq
    %v13960 = vshrl.u32 %v13959, 7
    %v13961 = vsub.s32 %v13849, %v13960
    %v13962 = vrot.slane %v13520, %v13961
    %v13963 = vlaneseq
    %v13964 = vshrl.u32 %v13963, 7
    %v13965 = vsub.s32 %v13854, %v13964
    %v13966 = vrot.slane %v13523, %v13965
    %v13967 = vsel %vm13859, %v13966, %v13962
    %v13968 = vlaneseq
    %v13969 = vshrl.u32 %v13968, 7
    %v13970 = vsub.s32 %v13861, %v13969
    %v13971 = vrot.slane %v13526, %v13970
    %v13972 = vsel %vm13866, %v13971, %v13967
    %v13973 = vlaneseq
    %v13974 = vshrl.u32 %v13973, 7
    %v13975 = vsub.s32 %v13868, %v13974
    %v13976 = vrot.slane %v13529, %v13975
    %v13977 = vsel %vm13873, %v13976, %v13972
    %v13978 = vlaneseq
    %v13979 = vshrl.u32 %v13978, 7
    %v13980 = vsub.s32 %v13875, %v13979
    %v13981 = vrot.slane %v13532, %v13980
    %v13982 = vsel %vm13880, %v13981, %v13977
    %v13983 = vlaneseq
    %v13984 = vshrl.u32 %v13983, 7
    %v13985 = vsub.s32 %v13882, %v13984
    %v13986 = vrot.slane %v13535, %v13985
    %v13987 = vsel %vm13887, %v13986, %v13982
    %v13988 = vlaneseq
    %v13989 = vshrl.u32 %v13988, 7
    %v13990 = vsub.s32 %v13889, %v13989
    %v13991 = vrot.slane %v13538, %v13990
    %v13992 = vsel %vm13894, %v13991, %v13987
    %v13993 = vlaneseq
    %v13994 = vshrl.u32 %v13993, 7
    %v13995 = vsub.s32 %v13896, %v13994
    %v13996 = vrot.slane %v13541, %v13995
    %v13997 = vsel %vm13901, %v13996, %v13992
    %v13998 = vlaneseq
    %v13999 = vshrl.u32 %v13998, 7
    %v14000 = vsub.s32 %v13903, %v13999
    %v14001 = vrot.slane %v13544, %v14000
    %v14002 = vsel %vm13908, %v14001, %v13997
    %v14003 = vlaneseq
    %v14004 = vshrl.u32 %v14003, 7
    %v14005 = vsub.s32 %v13910, %v14004
    %v14006 = vrot.slane %v13547, %v14005
    %v14007 = vsel %vm13915, %v14006, %v14002
    %v14008 = vlaneseq
    %v14009 = vshrl.u32 %v14008, 7
    %v14010 = vsub.s32 %v13917, %v14009
    %v14011 = vrot.slane %v13550, %v14010
    %v14012 = vsel %vm13922, %v14011, %v14007
    %v14013 = vlaneseq
    %v14014 = vshrl.u32 %v14013, 7
    %v14015 = vsub.s32 %v13924, %v14014
    %v14016 = vrot.slane %v13553, %v14015
    %v14017 = vsel %vm13929, %v14016, %v14012
    %v14018 = vlaneseq
    %v14019 = vshrl.u32 %v14018, 7
    %v14020 = vsub.s32 %v13931, %v14019
    %v14021 = vrot.slane %v13556, %v14020
    %v14022 = vsel %vm13936, %v14021, %v14017
    %v14023 = vlaneseq
    %v14024 = vshrl.u32 %v14023, 7
    %v14025 = vsub.s32 %v13938, %v14024
    %v14026 = vrot.slane %v13559, %v14025
    %v14027 = vsel %vm13943, %v14026, %v14022
    %v14028 = vlaneseq
    %v14029 = vshrl.u32 %v14028, 7
    %v14030 = vsub.s32 %v13945, %v14029
    %v14031 = vrot.slane %v13562, %v14030
    %v14032 = vsel %vm13950, %v14031, %v14027
    %v14033 = vlaneseq
    %v14034 = vshrl.u32 %v14033, 7
    %v14035 = vsub.s32 %v13952, %v14034
    %v14036 = vrot.slane %v13565, %v14035
    %v14037 = vsel %vm13957, %v14036, %v14032
    %v14038 = vlaneseq
    %v14039 = vshrl.u32 %v14038, 7
    %v14040 = vsub.s32 %v13849, %v14039
    %v14041 = vrot.slane %v13568, %v14040
    %v14042 = vlaneseq
    %v14043 = vshrl.u32 %v14042, 7
    %v14044 = vsub.s32 %v13854, %v14043
    %v14045 = vrot.slane %v13571, %v14044
    %v14046 = vsel %vm13859, %v14045, %v14041
    %v14047 = vlaneseq
    %v14048 = vshrl.u32 %v14047, 7
    %v14049 = vsub.s32 %v13861, %v14048
    %v14050 = vrot.slane %v13574, %v14049
    %v14051 = vsel %vm13866, %v14050, %v14046
    %v14052 = vlaneseq
    %v14053 = vshrl.u32 %v14052, 7
    %v14054 = vsub.s32 %v13868, %v14053
    %v14055 = vrot.slane %v13577, %v14054
    %v14056 = vsel %vm13873, %v14055, %v14051
    %v14057 = vlaneseq
    %v14058 = vshrl.u32 %v14057, 7
    %v14059 = vsub.s32 %v13875, %v14058
    %v14060 = vrot.slane %v13580, %v14059
    %v14061 = vsel %vm13880, %v14060, %v14056
    %v14062 = vlaneseq
    %v14063 = vshrl.u32 %v14062, 7
    %v14064 = vsub.s32 %v13882, %v14063
    %v14065 = vrot.slane %v13583, %v14064
    %v14066 = vsel %vm13887, %v14065, %v14061
    %v14067 = vlaneseq
    %v14068 = vshrl.u32 %v14067, 7
    %v14069 = vsub.s32 %v13889, %v14068
    %v14070 = vrot.slane %v13586, %v14069
    %v14071 = vsel %vm13894, %v14070, %v14066
    %v14072 = vlaneseq
    %v14073 = vshrl.u32 %v14072, 7
    %v14074 = vsub.s32 %v13896, %v14073
    %v14075 = vrot.slane %v13589, %v14074
    %v14076 = vsel %vm13901, %v14075, %v14071
    %v14077 = vlaneseq
    %v14078 = vshrl.u32 %v14077, 7
    %v14079 = vsub.s32 %v13903, %v14078
    %v14080 = vrot.slane %v13592, %v14079
    %v14081 = vsel %vm13908, %v14080, %v14076
    %v14082 = vlaneseq
    %v14083 = vshrl.u32 %v14082, 7
    %v14084 = vsub.s32 %v13910, %v14083
    %v14085 = vrot.slane %v13595, %v14084
    %v14086 = vsel %vm13915, %v14085, %v14081
    %v14087 = vlaneseq
    %v14088 = vshrl.u32 %v14087, 7
    %v14089 = vsub.s32 %v13917, %v14088
    %v14090 = vrot.slane %v13598, %v14089
    %v14091 = vsel %vm13922, %v14090, %v14086
    %v14092 = vlaneseq
    %v14093 = vshrl.u32 %v14092, 7
    %v14094 = vsub.s32 %v13924, %v14093
    %v14095 = vrot.slane %v13601, %v14094
    %v14096 = vsel %vm13929, %v14095, %v14091
    %v14097 = vlaneseq
    %v14098 = vshrl.u32 %v14097, 7
    %v14099 = vsub.s32 %v13931, %v14098
    %v14100 = vrot.slane %v13604, %v14099
    %v14101 = vsel %vm13936, %v14100, %v14096
    %v14102 = vlaneseq
    %v14103 = vshrl.u32 %v14102, 7
    %v14104 = vsub.s32 %v13938, %v14103
    %v14105 = vrot.slane %v13607, %v14104
    %v14106 = vsel %vm13943, %v14105, %v14101
    %v14107 = vlaneseq
    %v14108 = vshrl.u32 %v14107, 7
    %v14109 = vsub.s32 %v13945, %v14108
    %v14110 = vrot.slane %v13610, %v14109
    %v14111 = vsel %vm13950, %v14110, %v14106
    %v14112 = vlaneseq
    %v14113 = vshrl.u32 %v14112, 7
    %v14114 = vsub.s32 %v13952, %v14113
    %v14115 = vrot.slane %v13613, %v14114
    %v14116 = vsel %vm13957, %v14115, %v14111
    %v14117 = vlaneseq
    %v14118 = vshrl.u32 %v14117, 7
    %v14119 = vsub.s32 %v13849, %v14118
    %v14120 = vrot.slane %v13616, %v14119
    %v14121 = vlaneseq
    %v14122 = vshrl.u32 %v14121, 7
    %v14123 = vsub.s32 %v13854, %v14122
    %v14124 = vrot.slane %v13619, %v14123
    %v14125 = vsel %vm13859, %v14124, %v14120
    %v14126 = vlaneseq
    %v14127 = vshrl.u32 %v14126, 7
    %v14128 = vsub.s32 %v13861, %v14127
    %v14129 = vrot.slane %v13622, %v14128
    %v14130 = vsel %vm13866, %v14129, %v14125
    %v14131 = vlaneseq
    %v14132 = vshrl.u32 %v14131, 7
    %v14133 = vsub.s32 %v13868, %v14132
    %v14134 = vrot.slane %v13625, %v14133
    %v14135 = vsel %vm13873, %v14134, %v14130
    %v14136 = vlaneseq
    %v14137 = vshrl.u32 %v14136, 7
    %v14138 = vsub.s32 %v13875, %v14137
    %v14139 = vrot.slane %v13628, %v14138
    %v14140 = vsel %vm13880, %v14139, %v14135
    %v14141 = vlaneseq
    %v14142 = vshrl.u32 %v14141, 7
    %v14143 = vsub.s32 %v13882, %v14142
    %v14144 = vrot.slane %v13631, %v14143
    %v14145 = vsel %vm13887, %v14144, %v14140
    %v14146 = vlaneseq
    %v14147 = vshrl.u32 %v14146, 7
    %v14148 = vsub.s32 %v13889, %v14147
    %v14149 = vrot.slane %v13634, %v14148
    %v14150 = vsel %vm13894, %v14149, %v14145
    %v14151 = vlaneseq
    %v14152 = vshrl.u32 %v14151, 7
    %v14153 = vsub.s32 %v13896, %v14152
    %v14154 = vrot.slane %v13637, %v14153
    %v14155 = vsel %vm13901, %v14154, %v14150
    %v14156 = vlaneseq
    %v14157 = vshrl.u32 %v14156, 7
    %v14158 = vsub.s32 %v13903, %v14157
    %v14159 = vrot.slane %v13640, %v14158
    %v14160 = vsel %vm13908, %v14159, %v14155
    %v14161 = vlaneseq
    %v14162 = vshrl.u32 %v14161, 7
    %v14163 = vsub.s32 %v13910, %v14162
    %v14164 = vrot.slane %v13643, %v14163
    %v14165 = vsel %vm13915, %v14164, %v14160
    %v14166 = vlaneseq
    %v14167 = vshrl.u32 %v14166, 7
    %v14168 = vsub.s32 %v13917, %v14167
    %v14169 = vrot.slane %v13646, %v14168
    %v14170 = vsel %vm13922, %v14169, %v14165
    %v14171 = vlaneseq
    %v14172 = vshrl.u32 %v14171, 7
    %v14173 = vsub.s32 %v13924, %v14172
    %v14174 = vrot.slane %v13649, %v14173
    %v14175 = vsel %vm13929, %v14174, %v14170
    %v14176 = vlaneseq
    %v14177 = vshrl.u32 %v14176, 7
    %v14178 = vsub.s32 %v13931, %v14177
    %v14179 = vrot.slane %v13652, %v14178
    %v14180 = vsel %vm13936, %v14179, %v14175
    %v14181 = vlaneseq
    %v14182 = vshrl.u32 %v14181, 7
    %v14183 = vsub.s32 %v13938, %v14182
    %v14184 = vrot.slane %v13655, %v14183
    %v14185 = vsel %vm13943, %v14184, %v14180
    %v14186 = vlaneseq
    %v14187 = vshrl.u32 %v14186, 7
    %v14188 = vsub.s32 %v13945, %v14187
    %v14189 = vrot.slane %v13658, %v14188
    %v14190 = vsel %vm13950, %v14189, %v14185
    %v14191 = vlaneseq
    %v14192 = vshrl.u32 %v14191, 7
    %v14193 = vsub.s32 %v13952, %v14192
    %v14194 = vrot.slane %v13661, %v14193
    %v14195 = vsel %vm13957, %v14194, %v14190
    %v14196 = vlaneseq
    %v14197 = vshrl.u32 %v14196, 7
    %v14198 = vsub.s32 %v13849, %v14197
    %v14199 = vrot.slane %v13664, %v14198
    %v14200 = vlaneseq
    %v14201 = vshrl.u32 %v14200, 7
    %v14202 = vsub.s32 %v13854, %v14201
    %v14203 = vrot.slane %v13667, %v14202
    %v14204 = vsel %vm13859, %v14203, %v14199
    %v14205 = vlaneseq
    %v14206 = vshrl.u32 %v14205, 7
    %v14207 = vsub.s32 %v13861, %v14206
    %v14208 = vrot.slane %v13670, %v14207
    %v14209 = vsel %vm13866, %v14208, %v14204
    %v14210 = vlaneseq
    %v14211 = vshrl.u32 %v14210, 7
    %v14212 = vsub.s32 %v13868, %v14211
    %v14213 = vrot.slane %v13673, %v14212
    %v14214 = vsel %vm13873, %v14213, %v14209
    %v14215 = vlaneseq
    %v14216 = vshrl.u32 %v14215, 7
    %v14217 = vsub.s32 %v13875, %v14216
    %v14218 = vrot.slane %v13676, %v14217
    %v14219 = vsel %vm13880, %v14218, %v14214
    %v14220 = vlaneseq
    %v14221 = vshrl.u32 %v14220, 7
    %v14222 = vsub.s32 %v13882, %v14221
    %v14223 = vrot.slane %v13679, %v14222
    %v14224 = vsel %vm13887, %v14223, %v14219
    %v14225 = vlaneseq
    %v14226 = vshrl.u32 %v14225, 7
    %v14227 = vsub.s32 %v13889, %v14226
    %v14228 = vrot.slane %v13682, %v14227
    %v14229 = vsel %vm13894, %v14228, %v14224
    %v14230 = vlaneseq
    %v14231 = vshrl.u32 %v14230, 7
    %v14232 = vsub.s32 %v13896, %v14231
    %v14233 = vrot.slane %v13685, %v14232
    %v14234 = vsel %vm13901, %v14233, %v14229
    %v14235 = vlaneseq
    %v14236 = vshrl.u32 %v14235, 7
    %v14237 = vsub.s32 %v13903, %v14236
    %v14238 = vrot.slane %v13688, %v14237
    %v14239 = vsel %vm13908, %v14238, %v14234
    %v14240 = vlaneseq
    %v14241 = vshrl.u32 %v14240, 7
    %v14242 = vsub.s32 %v13910, %v14241
    %v14243 = vrot.slane %v13691, %v14242
    %v14244 = vsel %vm13915, %v14243, %v14239
    %v14245 = vlaneseq
    %v14246 = vshrl.u32 %v14245, 7
    %v14247 = vsub.s32 %v13917, %v14246
    %v14248 = vrot.slane %v13694, %v14247
    %v14249 = vsel %vm13922, %v14248, %v14244
    %v14250 = vlaneseq
    %v14251 = vshrl.u32 %v14250, 7
    %v14252 = vsub.s32 %v13924, %v14251
    %v14253 = vrot.slane %v13697, %v14252
    %v14254 = vsel %vm13929, %v14253, %v14249
    %v14255 = vlaneseq
    %v14256 = vshrl.u32 %v14255, 7
    %v14257 = vsub.s32 %v13931, %v14256
    %v14258 = vrot.slane %v13700, %v14257
    %v14259 = vsel %vm13936, %v14258, %v14254
    %v14260 = vlaneseq
    %v14261 = vshrl.u32 %v14260, 7
    %v14262 = vsub.s32 %v13938, %v14261
    %v14263 = vrot.slane %v13703, %v14262
    %v14264 = vsel %vm13943, %v14263, %v14259
    %v14265 = vlaneseq
    %v14266 = vshrl.u32 %v14265, 7
    %v14267 = vsub.s32 %v13945, %v14266
    %v14268 = vrot.slane %v13706, %v14267
    %v14269 = vsel %vm13950, %v14268, %v14264
    %v14270 = vlaneseq
    %v14271 = vshrl.u32 %v14270, 7
    %v14272 = vsub.s32 %v13952, %v14271
    %v14273 = vrot.slane %v13709, %v14272
    %v14274 = vsel %vm13957, %v14273, %v14269
    %v14275 = vlaneseq
    %v14276 = vshrl.u32 %v14275, 7
    %v14277 = vsub.s32 %v13849, %v14276
    %v14278 = vrot.slane %v13712, %v14277
    %v14279 = vlaneseq
    %v14280 = vshrl.u32 %v14279, 7
    %v14281 = vsub.s32 %v13854, %v14280
    %v14282 = vrot.slane %v13715, %v14281
    %v14283 = vsel %vm13859, %v14282, %v14278
    %v14284 = vlaneseq
    %v14285 = vshrl.u32 %v14284, 7
    %v14286 = vsub.s32 %v13861, %v14285
    %v14287 = vrot.slane %v13718, %v14286
    %v14288 = vsel %vm13866, %v14287, %v14283
    %v14289 = vlaneseq
    %v14290 = vshrl.u32 %v14289, 7
    %v14291 = vsub.s32 %v13868, %v14290
    %v14292 = vrot.slane %v13721, %v14291
    %v14293 = vsel %vm13873, %v14292, %v14288
    %v14294 = vlaneseq
    %v14295 = vshrl.u32 %v14294, 7
    %v14296 = vsub.s32 %v13875, %v14295
    %v14297 = vrot.slane %v13724, %v14296
    %v14298 = vsel %vm13880, %v14297, %v14293
    %v14299 = vlaneseq
    %v14300 = vshrl.u32 %v14299, 7
    %v14301 = vsub.s32 %v13882, %v14300
    %v14302 = vrot.slane %v13727, %v14301
    %v14303 = vsel %vm13887, %v14302, %v14298
    %v14304 = vlaneseq
    %v14305 = vshrl.u32 %v14304, 7
    %v14306 = vsub.s32 %v13889, %v14305
    %v14307 = vrot.slane %v13730, %v14306
    %v14308 = vsel %vm13894, %v14307, %v14303
    %v14309 = vlaneseq
    %v14310 = vshrl.u32 %v14309, 7
    %v14311 = vsub.s32 %v13896, %v14310
    %v14312 = vrot.slane %v13733, %v14311
    %v14313 = vsel %vm13901, %v14312, %v14308
    %v14314 = vlaneseq
    %v14315 = vshrl.u32 %v14314, 7
    %v14316 = vsub.s32 %v13903, %v14315
    %v14317 = vrot.slane %v13736, %v14316
    %v14318 = vsel %vm13908, %v14317, %v14313
    %v14319 = vlaneseq
    %v14320 = vshrl.u32 %v14319, 7
    %v14321 = vsub.s32 %v13910, %v14320
    %v14322 = vrot.slane %v13739, %v14321
    %v14323 = vsel %vm13915, %v14322, %v14318
    %v14324 = vlaneseq
    %v14325 = vshrl.u32 %v14324, 7
    %v14326 = vsub.s32 %v13917, %v14325
    %v14327 = vrot.slane %v13742, %v14326
    %v14328 = vsel %vm13922, %v14327, %v14323
    %v14329 = vlaneseq
    %v14330 = vshrl.u32 %v14329, 7
    %v14331 = vsub.s32 %v13924, %v14330
    %v14332 = vrot.slane %v13745, %v14331
    %v14333 = vsel %vm13929, %v14332, %v14328
    %v14334 = vlaneseq
    %v14335 = vshrl.u32 %v14334, 7
    %v14336 = vsub.s32 %v13931, %v14335
    %v14337 = vrot.slane %v13748, %v14336
    %v14338 = vsel %vm13936, %v14337, %v14333
    %v14339 = vlaneseq
    %v14340 = vshrl.u32 %v14339, 7
    %v14341 = vsub.s32 %v13938, %v14340
    %v14342 = vrot.slane %v13751, %v14341
    %v14343 = vsel %vm13943, %v14342, %v14338
    %v14344 = vlaneseq
    %v14345 = vshrl.u32 %v14344, 7
    %v14346 = vsub.s32 %v13945, %v14345
    %v14347 = vrot.slane %v13754, %v14346
    %v14348 = vsel %vm13950, %v14347, %v14343
    %v14349 = vlaneseq
    %v14350 = vshrl.u32 %v14349, 7
    %v14351 = vsub.s32 %v13952, %v14350
    %v14352 = vrot.slane %v13757, %v14351
    %v14353 = vsel %vm13957, %v14352, %v14348
    %v14354 = vlaneseq
    %v14355 = vshrl.u32 %v14354, 7
    %v14356 = vsub.s32 %v13849, %v14355
    %v14357 = vrot.slane %v13760, %v14356
    %v14358 = vlaneseq
    %v14359 = vshrl.u32 %v14358, 7
    %v14360 = vsub.s32 %v13854, %v14359
    %v14361 = vrot.slane %v13763, %v14360
    %v14362 = vsel %vm13859, %v14361, %v14357
    %v14363 = vlaneseq
    %v14364 = vshrl.u32 %v14363, 7
    %v14365 = vsub.s32 %v13861, %v14364
    %v14366 = vrot.slane %v13766, %v14365
    %v14367 = vsel %vm13866, %v14366, %v14362
    %v14368 = vlaneseq
    %v14369 = vshrl.u32 %v14368, 7
    %v14370 = vsub.s32 %v13868, %v14369
    %v14371 = vrot.slane %v13769, %v14370
    %v14372 = vsel %vm13873, %v14371, %v14367
    %v14373 = vlaneseq
    %v14374 = vshrl.u32 %v14373, 7
    %v14375 = vsub.s32 %v13875, %v14374
    %v14376 = vrot.slane %v13772, %v14375
    %v14377 = vsel %vm13880, %v14376, %v14372
    %v14378 = vlaneseq
    %v14379 = vshrl.u32 %v14378, 7
    %v14380 = vsub.s32 %v13882, %v14379
    %v14381 = vrot.slane %v13775, %v14380
    %v14382 = vsel %vm13887, %v14381, %v14377
    %v14383 = vlaneseq
    %v14384 = vshrl.u32 %v14383, 7
    %v14385 = vsub.s32 %v13889, %v14384
    %v14386 = vrot.slane %v13778, %v14385
    %v14387 = vsel %vm13894, %v14386, %v14382
    %v14388 = vlaneseq
    %v14389 = vshrl.u32 %v14388, 7
    %v14390 = vsub.s32 %v13896, %v14389
    %v14391 = vrot.slane %v13781, %v14390
    %v14392 = vsel %vm13901, %v14391, %v14387
    %v14393 = vlaneseq
    %v14394 = vshrl.u32 %v14393, 7
    %v14395 = vsub.s32 %v13903, %v14394
    %v14396 = vrot.slane %v13784, %v14395
    %v14397 = vsel %vm13908, %v14396, %v14392
    %v14398 = vlaneseq
    %v14399 = vshrl.u32 %v14398, 7
    %v14400 = vsub.s32 %v13910, %v14399
    %v14401 = vrot.slane %v13787, %v14400
    %v14402 = vsel %vm13915, %v14401, %v14397
    %v14403 = vlaneseq
    %v14404 = vshrl.u32 %v14403, 7
    %v14405 = vsub.s32 %v13917, %v14404
    %v14406 = vrot.slane %v13790, %v14405
    %v14407 = vsel %vm13922, %v14406, %v14402
    %v14408 = vlaneseq
    %v14409 = vshrl.u32 %v14408, 7
    %v14410 = vsub.s32 %v13924, %v14409
    %v14411 = vrot.slane %v13793, %v14410
    %v14412 = vsel %vm13929, %v14411, %v14407
    %v14413 = vlaneseq
    %v14414 = vshrl.u32 %v14413, 7
    %v14415 = vsub.s32 %v13931, %v14414
    %v14416 = vrot.slane %v13796, %v14415
    %v14417 = vsel %vm13936, %v14416, %v14412
    %v14418 = vlaneseq
    %v14419 = vshrl.u32 %v14418, 7
    %v14420 = vsub.s32 %v13938, %v14419
    %v14421 = vrot.slane %v13799, %v14420
    %v14422 = vsel %vm13943, %v14421, %v14417
    %v14423 = vlaneseq
    %v14424 = vshrl.u32 %v14423, 7
    %v14425 = vsub.s32 %v13945, %v14424
    %v14426 = vrot.slane %v13802, %v14425
    %v14427 = vsel %vm13950, %v14426, %v14422
    %v14428 = vlaneseq
    %v14429 = vshrl.u32 %v14428, 7
    %v14430 = vsub.s32 %v13952, %v14429
    %v14431 = vrot.slane %v13805, %v14430
    %v14432 = vsel %vm13957, %v14431, %v14427
    %v14433 = vlaneseq
    %v14434 = vshrl.u32 %v14433, 7
    %v14435 = vsub.s32 %v13849, %v14434
    %v14436 = vrot.slane %v13808, %v14435
    %v14437 = vlaneseq
    %v14438 = vshrl.u32 %v14437, 7
    %v14439 = vsub.s32 %v13854, %v14438
    %v14440 = vrot.slane %v13811, %v14439
    %v14441 = vsel %vm13859, %v14440, %v14436
    %v14442 = vlaneseq
    %v14443 = vshrl.u32 %v14442, 7
    %v14444 = vsub.s32 %v13861, %v14443
    %v14445 = vrot.slane %v13814, %v14444
    %v14446 = vsel %vm13866, %v14445, %v14441
    %v14447 = vlaneseq
    %v14448 = vshrl.u32 %v14447, 7
    %v14449 = vsub.s32 %v13868, %v14448
    %v14450 = vrot.slane %v13817, %v14449
    %v14451 = vsel %vm13873, %v14450, %v14446
    %v14452 = vlaneseq
    %v14453 = vshrl.u32 %v14452, 7
    %v14454 = vsub.s32 %v13875, %v14453
    %v14455 = vrot.slane %v13820, %v14454
    %v14456 = vsel %vm13880, %v14455, %v14451
    %v14457 = vlaneseq
    %v14458 = vshrl.u32 %v14457, 7
    %v14459 = vsub.s32 %v13882, %v14458
    %v14460 = vrot.slane %v13823, %v14459
    %v14461 = vsel %vm13887, %v14460, %v14456
    %v14462 = vlaneseq
    %v14463 = vshrl.u32 %v14462, 7
    %v14464 = vsub.s32 %v13889, %v14463
    %v14465 = vrot.slane %v13826, %v14464
    %v14466 = vsel %vm13894, %v14465, %v14461
    %v14467 = vlaneseq
    %v14468 = vshrl.u32 %v14467, 7
    %v14469 = vsub.s32 %v13896, %v14468
    %v14470 = vrot.slane %v13829, %v14469
    %v14471 = vsel %vm13901, %v14470, %v14466
    %v14472 = vlaneseq
    %v14473 = vshrl.u32 %v14472, 7
    %v14474 = vsub.s32 %v13903, %v14473
    %v14475 = vrot.slane %v13832, %v14474
    %v14476 = vsel %vm13908, %v14475, %v14471
    %v14477 = vlaneseq
    %v14478 = vshrl.u32 %v14477, 7
    %v14479 = vsub.s32 %v13910, %v14478
    %v14480 = vrot.slane %v13835, %v14479
    %v14481 = vsel %vm13915, %v14480, %v14476
    %v14482 = vlaneseq
    %v14483 = vshrl.u32 %v14482, 7
    %v14484 = vsub.s32 %v13917, %v14483
    %v14485 = vrot.slane %v13838, %v14484
    %v14486 = vsel %vm13922, %v14485, %v14481
    %v14487 = vlaneseq
    %v14488 = vshrl.u32 %v14487, 7
    %v14489 = vsub.s32 %v13924, %v14488
    %v14490 = vrot.slane %v13841, %v14489
    %v14491 = vsel %vm13929, %v14490, %v14486
    %v14492 = vlaneseq
    %v14493 = vshrl.u32 %v14492, 7
    %v14494 = vsub.s32 %v13931, %v14493
    %v14495 = vrot.slane %v13844, %v14494
    %v14496 = vsel %vm13936, %v14495, %v14491
    %v14497 = vlaneseq
    %v14498 = vshrl.u32 %v14497, 7
    %v14499 = vsub.s32 %v13938, %v14498
    %v14500 = vrot.slane %v13847, %v14499
    %v14501 = vsel %vm13943, %v14500, %v14496
    %v14502 = vcombine.low %v13958, %v14037
    %v14503 = vcombine.low %v14116, %v14195
    %v14504 = vcombine.low %v14274, %v14353
    %v14505 = vcombine.low %v14432, %v14501
    %v14507 = vunpack.c.l.s4 1966171168
    %v14508 = vunpack.c.0.s8 %v14507
    %v14509 = vlaneseq
    %v14510 = vshrl.u32 %v14509, 7
    %v14511 = vsub.s32 %v14508, %v14510
    %v14512 = vrot.slane %v14502, %v14511
    %v14514 = vunpack.c.l.s4 1966171168
    %v14515 = vunpack.c.0.s8 %v14514
    %v14516 = vlaneseq
    %v14517 = vshrl.u32 %v14516, 7
    %v14518 = vsub.s32 %v14515, %v14517
    %v14519 = vrot.slane %v14503, %v14518
    %v14521 = vunpack.c.l.s4 1966171168
    %v14522 = vunpack.c.0.s8 %v14521
    %v14523 = vlaneseq
    %v14524 = vshrl.u32 %v14523, 7
    %v14525 = vsub.s32 %v14522, %v14524
    %v14526 = vrot.slane %v14504, %v14525
    %v14528 = vunpack.c.l.s4 1966171168
    %v14529 = vunpack.c.0.s8 %v14528
    %v14530 = vlaneseq
    %v14531 = vshrl.u32 %v14530, 7
    %v14532 = vsub.s32 %v14529, %v14531
    %v14533 = vrot.slane %v14505, %v14532
    %v14534 = vcombine.low %v14512, %v14519
    %v14535 = vcombine.low %v14526, %v14533
    %v14537 = vunpack.c.l.s4 1966171168
    %v14538 = vunpack.c.0.s8 %v14537
    %v14539 = vlaneseq
    %v14540 = vshrl.u32 %v14539, 7
    %v14541 = vsub.s32 %v14538, %v14540
    %v14542 = vrot.slane %v14534, %v14541
    %v14544 = vunpack.c.l.s4 1966171168
    %v14545 = vunpack.c.0.s8 %v14544
    %v14546 = vlaneseq
    %v14547 = vshrl.u32 %v14546, 7
    %v14548 = vsub.s32 %v14545, %v14547
    %v14549 = vrot.slane %v14535, %v14548
    %v14550 = vcombine.low %v14542, %v14549
    %v14552 = vlaneseq
    %vm14553 = vcmp.ge.s32.totalorder %v14552, 0
    %vm14554 = vcmp.lt.s32.totalorder %v14552, 1008
    %vm14555 = vmand %vm14553, %vm14554
    %14556 = vst.msk [vmem:[#allocation3] sm:$0xff] %vm14555, %v14550
    // Predicated region
    $region30: #{mlp_forward.1} parent=1 // pred_check
      _
    $region31: #{mlp_forward.1} parent=1 // pred_check_branch
      %14558 = sbr.rel (0) target = $region33
    $region32: #{mlp_forward.1} parent=1 // pred_region
      %s14560 = ssub.s32 128, 128
      %14561 = vsyncadd [#allocation4], %s14560
      %s14563 = sshll.u32 [#allocation3], 4
      %s14564 = int_to_ptr.vmem [resolvable:$true] %s14563
      %14566 = dma.vmem_to_hbm [thread:$0]  %s14564, 128, %s7, [#allocation4]
    $region33: #{mlp_forward.1} parent=1 // pred_fallthru
      _
    // Predicated region
    $region34: #{mlp_forward.1} parent=1 // pred_check
      _
    $region35: #{mlp_forward.1} parent=1 // pred_check_branch
      %14568 = sbr.rel (0) target = $region37
    $region36: #{mlp_forward.1} parent=1 // pred_region
      %14569 = dma.done [#allocation4], 128
    $region37: #{mlp_forward.1} parent=1 // pred_fallthru
      _
    %14570 = vsyncpa [#allocation4], 1

</llo_original>
